<compile_context>
chip_gen: v7x
topology: tpu7x:2x2x1
jax: 0.10.0
libtpu: 0.0.40
codegen_flags: <defaults>
</compile_context>

<pallas_src>
import functools

import jax
import jax.numpy as jnp
from jax import lax
from jax.experimental import pallas as pl
from jax.experimental.pallas import tpu as pltpu


def _round_up(x, m):
    return (x + m - 1) // m * m


def _pick_tile(dim, candidates):
    for c in candidates:
        if dim % c == 0:
            return c
    return dim


# -----------------------------------------------------------------------------
# Kernel 1: batched tiled matmul  (G, M, K) x (G, K, N) -> (G, M, N)
#   * bf16 operands, f32 VMEM scratch accumulator, configurable output dtype.
#   * optional relu / tanh epilogue fused on the last K step.
#   * optional fused per-column sum / sum-of-squares (BatchNorm statistics),
#     emitted as per-(g, i)-block partials so no second HBM pass over the f32
#     activations is needed.
# -----------------------------------------------------------------------------
def _bmm_kernel(a_ref, b_ref, o_ref, *rest, activation, with_stats):
    if with_stats:
        stats_ref, acc_ref = rest
    else:
        (acc_ref,) = rest

    k = pl.program_id(3)

    @pl.when(k == 0)
    def _():
        acc_ref[...] = jnp.zeros_like(acc_ref)

    acc_ref[...] += jnp.dot(a_ref[...], b_ref[...],
                            preferred_element_type=jnp.float32)

    @pl.when(k == pl.num_programs(3) - 1)
    def _():
        r = acc_ref[...]
        if activation == "relu":
            r = jnp.maximum(r, 0.0)
        elif activation == "tanh":
            r = jnp.tanh(r)
        o_ref[...] = r.astype(o_ref.dtype)
        if with_stats:
            stats = jnp.concatenate(
                [jnp.sum(r, axis=0, keepdims=True),
                 jnp.sum(r * r, axis=0, keepdims=True)], axis=0)   # (2, tn)
            stats_ref[...] = stats[None]


def pallas_bmm(a, b, activation="none", out_dtype=jnp.float32, with_stats=False):
    """a: (G, M, K) bf16, b: (G, K, N) bf16 -> (G, Mp, N) out_dtype
    (Mp = M rounded up to a multiple of 8).  If with_stats, additionally
    returns per-column (sum, sum_sq) over all G*Mp rows, each shaped (1, N)."""
    G, M, K = a.shape
    Gb, Kb, N = b.shape
    assert G == Gb and K == Kb, (a.shape, b.shape)

    Mp = _round_up(M, 8)
    Kp = K if K % 128 == 0 else _round_up(K, 8)   # non-128 K -> single full-dim K block
    if (Mp, Kp) != (M, K):
        a = jnp.zeros((G, Mp, Kp), a.dtype).at[:, :M, :K].set(a)
    if Kp != K:
        b = jnp.zeros((G, Kp, N), b.dtype).at[:, :K, :].set(b)

    tm = _pick_tile(Mp, (512, 256, 128, 64, 32, 16, 8))
    tk = _pick_tile(Kp, (512, 256, 128)) if Kp % 128 == 0 else Kp
    tn = _pick_tile(N, (256, 128)) if N % 128 == 0 else N

    gi, gj, gk = Mp // tm, N // tn, Kp // tk
    grid = (G, gi, gj, gk)

    if with_stats:
        out_shape = (jax.ShapeDtypeStruct((G, Mp, N), out_dtype),
                     jax.ShapeDtypeStruct((G, gi, 2, N), jnp.float32))
        out_specs = (pl.BlockSpec((None, tm, tn), lambda g, i, j, k: (g, i, j)),
                     pl.BlockSpec((None, 1, 2, tn), lambda g, i, j, k: (g, i, 0, j)))
    else:
        out_shape = jax.ShapeDtypeStruct((G, Mp, N), out_dtype)
        out_specs = pl.BlockSpec((None, tm, tn), lambda g, i, j, k: (g, i, j))

    res = pl.pallas_call(
        functools.partial(_bmm_kernel, activation=activation,
                          with_stats=with_stats),
        out_shape=out_shape,
        grid=grid,
        in_specs=[
            pl.BlockSpec((None, tm, tk), lambda g, i, j, k: (g, i, k)),
            pl.BlockSpec((None, tk, tn), lambda g, i, j, k: (g, k, j)),
        ],
        out_specs=out_specs,
        scratch_shapes=[pltpu.VMEM((tm, tn), jnp.float32)],
        compiler_params=pltpu.CompilerParams(
            dimension_semantics=("parallel", "parallel", "parallel", "arbitrary")),
    )(a, b)

    if not with_stats:
        return res
    out, partial_stats = res
    sums = jnp.sum(partial_stats, axis=(0, 1))        # (2, N) f32
    return out, sums[0:1, :], sums[1:2, :]


# -----------------------------------------------------------------------------
# Kernel 2: per-channel scale/shift + ReLU (BatchNorm apply), tiled over rows,
# bf16 output so the next layer's patch gather moves half the bytes.
# -----------------------------------------------------------------------------
def _bn_relu_kernel(x_ref, scale_ref, shift_ref, o_ref):
    o_ref[...] = jnp.maximum(
        x_ref[...] * scale_ref[...] + shift_ref[...], 0.0).astype(o_ref.dtype)


def pallas_bn_relu(x, scale, shift, out_dtype=jnp.bfloat16):
    M, C = x.shape
    assert M % 8 == 0, M
    tm = _pick_tile(M, (1024, 512, 256, 128, 64, 32, 16, 8))
    return pl.pallas_call(
        _bn_relu_kernel,
        out_shape=jax.ShapeDtypeStruct((M, C), out_dtype),
        grid=(M // tm,),
        in_specs=[pl.BlockSpec((tm, C), lambda i: (i, 0)),
                  pl.BlockSpec((1, C), lambda i: (0, 0)),
                  pl.BlockSpec((1, C), lambda i: (0, 0))],
        out_specs=pl.BlockSpec((tm, C), lambda i: (i, 0)),
        compiler_params=pltpu.CompilerParams(
            dimension_semantics=("parallel",)),
    )(x, scale, shift)


def _bn_scale_shift(col_sum, col_sq, true_rows, eps=1e-5):
    # Fresh-module training-mode BatchNorm2d: batch stats, gamma=1, beta=0.
    # Padded rows (if any) are exact zeros from the matmul, so the sums are
    # unaffected; we just divide by the true row count.
    cnt = jnp.float32(true_rows)
    mean = col_sum / cnt
    var = jnp.maximum(col_sq / cnt - mean * mean, 0.0)
    scale = lax.rsqrt(var + eps)          # gamma = 1
    shift = -mean * scale                 # beta = 0
    return scale, shift


# -----------------------------------------------------------------------------
# ConvTranspose2d(k=4, s=2, p=1): 4-way sub-pixel decomposition (NHWC).
# Output row 2m+r gets input rows m+a, a in {0,-1} (r=0) / {0,1} (r=1),
# with kernel tap kh = r + 1 - 2a; same for columns.
# -----------------------------------------------------------------------------
_PARITY_OFFS = {0: (0, -1), 1: (0, 1)}


def _subpixel_patches(x):
    """x: (B, H, W, C) -> (4, B*H*W, 4*C) bf16, parity order g = 2r + s."""
    x = x.astype(jnp.bfloat16)
    B, H, W, C = x.shape
    xp = jnp.pad(x, ((0, 0), (1, 1), (1, 1), (0, 0)))
    groups = []
    for r in (0, 1):
        for s in (0, 1):
            taps = [xp[:, 1 + a:1 + a + H, 1 + b:1 + b + W, :]
                    for a in _PARITY_OFFS[r] for b in _PARITY_OFFS[s]]
            groups.append(jnp.concatenate(taps, axis=-1).reshape(B * H * W, 4 * C))
    return jnp.stack(groups, axis=0)


def _convt_s2_weight_mat(w):
    """w: (Cin, Cout, 4, 4) torch ConvTranspose layout -> (4, 4*Cin, Cout) bf16."""
    mats = []
    for r in (0, 1):
        for s in (0, 1):
            taps = [w[:, :, r + 1 - 2 * a, s + 1 - 2 * b]
                    for a in _PARITY_OFFS[r] for b in _PARITY_OFFS[s]]
            mats.append(jnp.concatenate(taps, axis=0))
    return jnp.stack(mats, axis=0).astype(jnp.bfloat16)


def _conv3x3_patches(x):
    """x: (B, H, W, C) -> (1, B*H*W, 9*C) bf16 for the stride-1 k=3 p=1 layer."""
    x = x.astype(jnp.bfloat16)
    B, H, W, C = x.shape
    xp = jnp.pad(x, ((0, 0), (1, 1), (1, 1), (0, 0)))
    taps = [xp[:, di:di + H, dj:dj + W, :] for di in range(3) for dj in range(3)]
    return jnp.concatenate(taps, axis=-1).reshape(B * H * W, 9 * C)[None]


# -----------------------------------------------------------------------------
# One-time parameter preparation (reshape / flip / fold bias / pad / bf16 cast).
# -----------------------------------------------------------------------------
def prepare_params(params, mg, z_dim):
    prep = {}

    # fc: fold bias via a ones column; permute output features so the fc result
    # reshapes directly into NHWC (B, mg, mg, 512); pad K to a lane multiple.
    W, b = params["fc_w"], params["fc_b"]
    Wp = W.reshape(512, mg, mg, z_dim).transpose(1, 2, 0, 3).reshape(512 * mg * mg, z_dim)
    bp = b.reshape(512, mg, mg).transpose(1, 2, 0).reshape(-1)
    w_aug = jnp.concatenate([Wp.T, bp[None, :]], axis=0)      # (z_dim+1, 512*mg*mg)
    kfc = _round_up(z_dim + 1, 128)
    w_aug = jnp.zeros((kfc, 512 * mg * mg), jnp.float32).at[:z_dim + 1].set(w_aug)
    prep["fc_w"] = w_aug.astype(jnp.bfloat16)[None]           # (1, kfc, 512*mg*mg)

    # Three stride-2 ConvTranspose blocks -> (4, 4*Cin, Cout) sub-pixel weights.
    for i in range(3):
        prep[f"convt{i}_w"] = _convt_s2_weight_mat(params[f"convt{i}_w"])

    # Final ConvTranspose(64->3, k=3, s=1, p=1) == stride-1 conv with flipped,
    # channel-swapped kernel; pad N (3 -> 128) once here for lane-dense stores.
    w_t = params["convt3_w"]                                   # (64, 3, 3, 3)
    w_conv = jnp.flip(w_t, (2, 3))                             # [ic, oc, di, dj]
    wmat = w_conv.transpose(2, 3, 0, 1).reshape(9 * 64, 3)     # rows = (di, dj, ic)
    wmat_p = jnp.zeros((9 * 64, 128), jnp.float32).at[:, :3].set(wmat)
    prep["convt3_w"] = wmat_p.astype(jnp.bfloat16)[None]       # (1, 576, 128)
    return prep


# -----------------------------------------------------------------------------
# Full forward pass (public API: z (B, z_dim) -> NCHW image).
# -----------------------------------------------------------------------------
def conv_generator_forward(z, prep, mg):
    B, z_dim = z.shape
    kfc = prep["fc_w"].shape[1]

    # fc + ReLU (bias folded through a ones column); bf16 out feeds patch gather.
    a = jnp.zeros((B, kfc), jnp.float32).at[:, :z_dim].set(z).at[:, z_dim].set(1.0)
    h = pallas_bmm(a.astype(jnp.bfloat16)[None], prep["fc_w"],
                   activation="relu", out_dtype=jnp.bfloat16)
    x = h[0, :B].reshape(B, mg, mg, 512)                       # NHWC, bf16

    # Three (ConvT k4 s2 p1 -> BN -> ReLU) blocks via sub-pixel decomposition.
    # BN statistics come fused out of the matmul kernel (no extra HBM pass).
    for i in range(3):
        Bsz, H, W, _ = x.shape
        M = Bsz * H * W
        patches = _subpixel_patches(x)                         # (4, M, 4*Cin) bf16
        y, s, sq = pallas_bmm(patches, prep[f"convt{i}_w"], with_stats=True)
        _, Mp, Cout = y.shape
        scale, shift = _bn_scale_shift(s, sq, true_rows=4 * M)
        ybn = pallas_bn_relu(y.reshape(4 * Mp, Cout), scale, shift)
        y4 = ybn.reshape(4, Mp, Cout)[:, :M]
        # parity interleave (depth-to-space): g = 2r + s -> (b, 2m+r, 2n+s, c)
        x = (y4.reshape(2, 2, Bsz, H, W, Cout)
               .transpose(2, 3, 0, 4, 1, 5)
               .reshape(Bsz, 2 * H, 2 * W, Cout))

    # Final ConvT(64->3, k=3, s=1, p=1) + Tanh (fused in matmul epilogue).
    Bsz, H, W, _ = x.shape
    M = Bsz * H * W
    patches = _conv3x3_patches(x)                              # (1, M, 576) bf16
    y = pallas_bmm(patches, prep["convt3_w"], activation="tanh")
    out = y[0, :M, :3].reshape(Bsz, H, W, 3)
    # TODO(synk): im2col / depth-to-space / NCHW transpose remain XLA layout ops.
    return out.transpose(0, 3, 1, 2)                           # NCHW


# -----------------------------------------------------------------------------
# Pure-JAX reference (same bf16 operand rounding) for correctness checking.
# -----------------------------------------------------------------------------
def _convt_ref(x_nhwc, w_t, stride, pad):
    k = w_t.shape[2]
    w_hwio = jnp.flip(w_t, (2, 3)).transpose(2, 3, 0, 1)       # (kh, kw, Cin, Cout)
    return lax.conv_general_dilated(
        x_nhwc, w_hwio, window_strides=(1, 1),
        padding=[(k - 1 - pad, k - 1 - pad)] * 2,
        lhs_dilation=(stride, stride), rhs_dilation=(1, 1),
        dimension_numbers=("NHWC", "HWIO", "NHWC"),
        preferred_element_type=jnp.float32)


def reference_forward(z, params, mg):
    B = z.shape[0]
    W, b = params["fc_w"], params["fc_b"]
    h = jnp.dot(z.astype(jnp.bfloat16), W.T.astype(jnp.bfloat16),
                preferred_element_type=jnp.float32) + b
    h = jnp.maximum(h, 0.0)
    x = h.reshape(B, 512, mg, mg).transpose(0, 2, 3, 1)        # NHWC
    for i in range(3):
        y = _convt_ref(x.astype(jnp.bfloat16),
                       params[f"convt{i}_w"].astype(jnp.bfloat16), 2, 1)
        mean = jnp.mean(y, axis=(0, 1, 2))
        var = jnp.mean((y - mean) ** 2, axis=(0, 1, 2))
        x = jnp.maximum((y - mean) * lax.rsqrt(var + 1e-5), 0.0)
    y = _convt_ref(x.astype(jnp.bfloat16),
                   params["convt3_w"].astype(jnp.bfloat16), 1, 1)
    return jnp.tanh(y).transpose(0, 3, 1, 2)


# -----------------------------------------------------------------------------
# Deterministic parameter init (shapes match the nn.Module __init__).
# -----------------------------------------------------------------------------
def init_params(key, mg, z_dim):
    ks = jax.random.split(key, 6)
    return {
        "fc_w":     jax.random.normal(ks[0], (512 * mg * mg, z_dim), jnp.float32) * 0.05,
        "fc_b":     jax.random.normal(ks[1], (512 * mg * mg,),       jnp.float32) * 0.05,
        "convt0_w": jax.random.normal(ks[2], (512, 256, 4, 4), jnp.float32) * 0.02,
        "convt1_w": jax.random.normal(ks[3], (256, 128, 4, 4), jnp.float32) * 0.02,
        "convt2_w": jax.random.normal(ks[4], (128, 64, 4, 4),  jnp.float32) * 0.02,
        "convt3_w": jax.random.normal(ks[5], (64, 3, 3, 3),    jnp.float32) * 0.02,
        # BatchNorm gamma=1 / beta=0 (fresh-module defaults) are implicit.
    }


if __name__ == "__main__":
    mg, z_dim, B = 2, 32, 2
    key = jax.random.PRNGKey(0)
    kp, kz = jax.random.split(key)
    params = init_params(kp, mg, z_dim)
    z = jax.random.normal(kz, (B, z_dim), jnp.float32)

    prep = prepare_params(params, mg, z_dim)
    fwd = jax.jit(functools.partial(conv_generator_forward, mg=mg))
    out = jax.block_until_ready(fwd(z, prep))

    expected = (B, 3, mg * 8, mg * 8)          # 2 -> 4 -> 8 -> 16 spatial, 3 channels
    assert out.shape == expected, (out.shape, expected)
    assert bool(jnp.all(jnp.isfinite(out)))
    assert bool(jnp.all(jnp.abs(out) <= 1.0 + 1e-5))

    ref = jax.jit(functools.partial(reference_forward, mg=mg))(z, params)
    err = float(jnp.max(jnp.abs(out - ref)))
    assert err < 0.1, err
    print("KERNEL_OK")
</pallas_src>

<mosaic_0001>
module attributes {stable_mosaic.version = 11 : i64} {
  func.func @_bmm_kernel(%arg0: i32, %arg1: i32, %arg2: i32, %arg3: i32, %arg4: memref<1x8x128xbf16, #tpu.memory_space<vmem>>, %arg5: memref<1x128x256xbf16, #tpu.memory_space<vmem>>, %arg6: memref<1x8x256xbf16, #tpu.memory_space<vmem>>, %arg7: memref<8x256xf32, #tpu.memory_space<vmem>>) attributes {dimension_semantics = [#tpu.dimension_semantics<parallel>, #tpu.dimension_semantics<parallel>, #tpu.dimension_semantics<parallel>, #tpu.dimension_semantics<arbitrary>], iteration_bounds = array<i64: 1, 1, 8, 1>, scalar_prefetch = 0 : i64, scratch_operands = 1 : i64, tpu.core_type = #tpu.core_type<tc>, window_params = [{transform_indices = @transform_0, window_bounds = array<i64: 1, 8, 128>}, {transform_indices = @transform_1, window_bounds = array<i64: 1, 128, 256>}, {transform_indices = @transform_2, window_bounds = array<i64: 1, 8, 256>}]} {
    %c0_i32 = arith.constant 0 : i32
    %0 = arith.cmpi eq, %arg3, %c0_i32 : i32
    %1 = arith.extui %0 : i1 to i32
    %c0_i32_0 = arith.constant 0 : i32
    %2 = arith.cmpi ne, %1, %c0_i32_0 : i32
    scf.if %2 {
      %cst_12 = arith.constant 0.000000e+00 : f32
      %14 = vector.broadcast %cst_12 : f32 to vector<8x256xf32>
      %c0_13 = arith.constant 0 : index
      %c0_14 = arith.constant 0 : index
      %15 = vector.load %arg7[%c0_13, %c0_14] : memref<8x256xf32, #tpu.memory_space<vmem>>, vector<8x256xf32>
      tpu.vector_store %arg7[%c0_13, %c0_14], %14 {strides = array<i32>} : memref<8x256xf32, #tpu.memory_space<vmem>>, vector<8x256xf32>,
    } else {
    }
    %c0 = arith.constant 0 : index
    %c0_1 = arith.constant 0 : index
    %3 = vector.load %arg7[%c0, %c0_1] : memref<8x256xf32, #tpu.memory_space<vmem>>, vector<8x256xf32>
    %c0_2 = arith.constant 0 : index
    %c0_3 = arith.constant 0 : index
    %c0_4 = arith.constant 0 : index
    %4 = vector.load %arg4[%c0_2, %c0_3, %c0_4] : memref<1x8x128xbf16, #tpu.memory_space<vmem>>, vector<1x8x128xbf16>
    %5 = vector.shape_cast %4 : vector<1x8x128xbf16> to vector<8x128xbf16>
    %c0_5 = arith.constant 0 : index
    %c0_6 = arith.constant 0 : index
    %c0_7 = arith.constant 0 : index
    %6 = vector.load %arg5[%c0_5, %c0_6, %c0_7] : memref<1x128x256xbf16, #tpu.memory_space<vmem>>, vector<1x128x256xbf16>
    %7 = vector.shape_cast %6 : vector<1x128x256xbf16> to vector<128x256xbf16>
    %cst = arith.constant dense<0.000000e+00> : vector<8x256xf32>
    %8 = tpu.matmul %5, %7, %cst {dimension_numbers = #tpu.dot_dimension_numbers<[1], [0], [0], [1], [0, 0, 1, 1], [], []>} : vector<8x128xbf16>, vector<128x256xbf16>, vector<8x256xf32> -> vector<8x256xf32>
    %9 = arith.addf %3, %8 : vector<8x256xf32>
    %c0_8 = arith.constant 0 : index
    %c0_9 = arith.constant 0 : index
    %10 = vector.load %arg7[%c0_8, %c0_9] : memref<8x256xf32, #tpu.memory_space<vmem>>, vector<8x256xf32>
    tpu.vector_store %arg7[%c0_8, %c0_9], %9 {strides = array<i32>} : memref<8x256xf32, #tpu.memory_space<vmem>>, vector<8x256xf32>,
    %c0_i32_10 = arith.constant 0 : i32
    %11 = arith.cmpi eq, %arg3, %c0_i32_10 : i32
    %12 = arith.extui %11 : i1 to i32
    %c0_i32_11 = arith.constant 0 : i32
    %13 = arith.cmpi ne, %12, %c0_i32_11 : i32
    scf.if %13 {
      %c0_12 = arith.constant 0 : index
      %c0_13 = arith.constant 0 : index
      %14 = vector.load %arg7[%c0_12, %c0_13] : memref<8x256xf32, #tpu.memory_space<vmem>>, vector<8x256xf32>
      %cst_14 = arith.constant 0.000000e+00 : f32
      %15 = vector.broadcast %cst_14 : f32 to vector<8x256xf32>
      %16 = arith.maximumf %14, %15 : vector<8x256xf32>
      %17 = arith.truncf %16 : vector<8x256xf32> to vector<8x256xbf16>
      %c0_15 = arith.constant 0 : index
      %c0_16 = arith.constant 0 : index
      %c0_17 = arith.constant 0 : index
      %18 = vector.load %arg6[%c0_15, %c0_16, %c0_17] : memref<1x8x256xbf16, #tpu.memory_space<vmem>>, vector<1x8x256xbf16>
      %19 = vector.shape_cast %18 : vector<1x8x256xbf16> to vector<8x256xbf16>
      %20 = vector.shape_cast %17 : vector<8x256xbf16> to vector<1x8x256xbf16>
      tpu.vector_store %arg6[%c0_15, %c0_16, %c0_17], %20 {strides = array<i32>} : memref<1x8x256xbf16, #tpu.memory_space<vmem>>, vector<1x8x256xbf16>,
    } else {
    }
    return
  }
  func.func @transform_0(%arg0: i32, %arg1: i32, %arg2: i32, %arg3: i32) -> (i32, i32, i32) {
    %c0_i32 = arith.constant 0 : i32
    return %arg0, %arg1, %arg3 : i32, i32, i32
  }
  func.func @transform_1(%arg0: i32, %arg1: i32, %arg2: i32, %arg3: i32) -> (i32, i32, i32) {
    %c0_i32 = arith.constant 0 : i32
    return %arg0, %arg3, %arg2 : i32, i32, i32
  }
  func.func @transform_2(%arg0: i32, %arg1: i32, %arg2: i32, %arg3: i32) -> (i32, i32, i32) {
    %c0_i32 = arith.constant 0 : i32
    return %arg0, %arg1, %arg2 : i32, i32, i32
  }
}

module attributes {stable_mosaic.version = 11 : i64} {
  func.func @_bmm_kernel(%arg0: i32, %arg1: i32, %arg2: i32, %arg3: i32, %arg4: memref<1x8x512xbf16, #tpu.memory_space<vmem>>, %arg5: memref<1x512x256xbf16, #tpu.memory_space<vmem>>, %arg6: memref<1x8x256xf32, #tpu.memory_space<vmem>>, %arg7: memref<1x1x2x256xf32, #tpu.memory_space<vmem>>, %arg8: memref<8x256xf32, #tpu.memory_space<vmem>>) attributes {dimension_semantics = [#tpu.dimension_semantics<parallel>, #tpu.dimension_semantics<parallel>, #tpu.dimension_semantics<parallel>, #tpu.dimension_semantics<arbitrary>], iteration_bounds = array<i64: 4, 1, 1, 4>, scalar_prefetch = 0 : i64, scratch_operands = 1 : i64, tpu.core_type = #tpu.core_type<tc>, window_params = [{transform_indices = @transform_0, window_bounds = array<i64: 1, 8, 512>}, {transform_indices = @transform_1, window_bounds = array<i64: 1, 512, 256>}, {transform_indices = @transform_2, window_bounds = array<i64: 1, 8, 256>}, {transform_indices = @transform_3, window_bounds = array<i64: 1, 1, 2, 256>}]} {
    %c0_i32 = arith.constant 0 : i32
    %0 = arith.cmpi eq, %arg3, %c0_i32 : i32
    %1 = arith.extui %0 : i1 to i32
    %c0_i32_0 = arith.constant 0 : i32
    %2 = arith.cmpi ne, %1, %c0_i32_0 : i32
    scf.if %2 {
      %cst_11 = arith.constant 0.000000e+00 : f32
      %14 = vector.broadcast %cst_11 : f32 to vector<8x256xf32>
      %c0_12 = arith.constant 0 : index
      %c0_13 = arith.constant 0 : index
      %15 = vector.load %arg8[%c0_12, %c0_13] : memref<8x256xf32, #tpu.memory_space<vmem>>, vector<8x256xf32>
      tpu.vector_store %arg8[%c0_12, %c0_13], %14 {strides = array<i32>} : memref<8x256xf32, #tpu.memory_space<vmem>>, vector<8x256xf32>,
    } else {
    }
    %c0 = arith.constant 0 : index
    %c0_1 = arith.constant 0 : index
    %3 = vector.load %arg8[%c0, %c0_1] : memref<8x256xf32, #tpu.memory_space<vmem>>, vector<8x256xf32>
    %c0_2 = arith.constant 0 : index
    %c0_3 = arith.constant 0 : index
    %c0_4 = arith.constant 0 : index
    %4 = vector.load %arg4[%c0_2, %c0_3, %c0_4] : memref<1x8x512xbf16, #tpu.memory_space<vmem>>, vector<1x8x512xbf16>
    %5 = vector.shape_cast %4 : vector<1x8x512xbf16> to vector<8x512xbf16>
    %c0_5 = arith.constant 0 : index
    %c0_6 = arith.constant 0 : index
    %c0_7 = arith.constant 0 : index
    %6 = vector.load %arg5[%c0_5, %c0_6, %c0_7] : memref<1x512x256xbf16, #tpu.memory_space<vmem>>, vector<1x512x256xbf16>
    %7 = vector.shape_cast %6 : vector<1x512x256xbf16> to vector<512x256xbf16>
    %cst = arith.constant dense<0.000000e+00> : vector<8x256xf32>
    %8 = tpu.matmul %5, %7, %cst {dimension_numbers = #tpu.dot_dimension_numbers<[1], [0], [0], [1], [0, 0, 1, 1], [], []>} : vector<8x512xbf16>, vector<512x256xbf16>, vector<8x256xf32> -> vector<8x256xf32>
    %9 = arith.addf %3, %8 : vector<8x256xf32>
    %c0_8 = arith.constant 0 : index
    %c0_9 = arith.constant 0 : index
    %10 = vector.load %arg8[%c0_8, %c0_9] : memref<8x256xf32, #tpu.memory_space<vmem>>, vector<8x256xf32>
    tpu.vector_store %arg8[%c0_8, %c0_9], %9 {strides = array<i32>} : memref<8x256xf32, #tpu.memory_space<vmem>>, vector<8x256xf32>,
    %c3_i32 = arith.constant 3 : i32
    %11 = arith.cmpi eq, %arg3, %c3_i32 : i32
    %12 = arith.extui %11 : i1 to i32
    %c0_i32_10 = arith.constant 0 : i32
    %13 = arith.cmpi ne, %12, %c0_i32_10 : i32
    scf.if %13 {
      %c0_11 = arith.constant 0 : index
      %c0_12 = arith.constant 0 : index
      %14 = vector.load %arg8[%c0_11, %c0_12] : memref<8x256xf32, #tpu.memory_space<vmem>>, vector<8x256xf32>
      %c0_13 = arith.constant 0 : index
      %c0_14 = arith.constant 0 : index
      %c0_15 = arith.constant 0 : index
      %15 = vector.load %arg6[%c0_13, %c0_14, %c0_15] : memref<1x8x256xf32, #tpu.memory_space<vmem>>, vector<1x8x256xf32>
      %16 = vector.shape_cast %15 : vector<1x8x256xf32> to vector<8x256xf32>
      %17 = vector.shape_cast %14 : vector<8x256xf32> to vector<1x8x256xf32>
      tpu.vector_store %arg6[%c0_13, %c0_14, %c0_15], %17 {strides = array<i32>} : memref<1x8x256xf32, #tpu.memory_space<vmem>>, vector<1x8x256xf32>,
      %cst_16 = arith.constant dense<0.000000e+00> : vector<256xf32>
      %18 = vector.multi_reduction <add>, %14, %cst_16 [0] : vector<8x256xf32> to vector<256xf32>
      %19 = vector.shape_cast %18 : vector<256xf32> to vector<1x256xf32>
      %20 = arith.mulf %14, %14 : vector<8x256xf32>
      %cst_17 = arith.constant dense<0.000000e+00> : vector<256xf32>
      %21 = vector.multi_reduction <add>, %20, %cst_17 [0] : vector<8x256xf32> to vector<256xf32>
      %22 = vector.shape_cast %21 : vector<256xf32> to vector<1x256xf32>
      %23 = tpu.concatenate %19, %22 in 0 : vector<1x256xf32>, vector<1x256xf32> -> vector<2x256xf32>
      %24 = vector.shape_cast %23 : vector<2x256xf32> to vector<1x2x256xf32>
      %c0_18 = arith.constant 0 : index
      %c0_19 = arith.constant 0 : index
      %c0_20 = arith.constant 0 : index
      %c0_21 = arith.constant 0 : index
      %25 = vector.load %arg7[%c0_18, %c0_19, %c0_20, %c0_21] : memref<1x1x2x256xf32, #tpu.memory_space<vmem>>, vector<1x1x2x256xf32>
      %26 = vector.shape_cast %25 : vector<1x1x2x256xf32> to vector<1x2x256xf32>
      %27 = vector.shape_cast %24 : vector<1x2x256xf32> to vector<1x1x2x256xf32>
      tpu.vector_store %arg7[%c0_18, %c0_19, %c0_20, %c0_21], %27 {strides = array<i32>} : memref<1x1x2x256xf32, #tpu.memory_space<vmem>>, vector<1x1x2x256xf32>,
    } else {
    }
    return
  }
  func.func @transform_0(%arg0: i32, %arg1: i32, %arg2: i32, %arg3: i32) -> (i32, i32, i32) {
    %c0_i32 = arith.constant 0 : i32
    return %arg0, %arg1, %arg3 : i32, i32, i32
  }
  func.func @transform_1(%arg0: i32, %arg1: i32, %arg2: i32, %arg3: i32) -> (i32, i32, i32) {
    %c0_i32 = arith.constant 0 : i32
    return %arg0, %arg3, %arg2 : i32, i32, i32
  }
  func.func @transform_2(%arg0: i32, %arg1: i32, %arg2: i32, %arg3: i32) -> (i32, i32, i32) {
    %c0_i32 = arith.constant 0 : i32
    return %arg0, %arg1, %arg2 : i32, i32, i32
  }
  func.func @transform_3(%arg0: i32, %arg1: i32, %arg2: i32, %arg3: i32) -> (i32, i32, i32, i32) {
    %c0_i32 = arith.constant 0 : i32
    %c0_i32_0 = arith.constant 0 : i32
    return %arg0, %arg1, %c0_i32, %arg2 : i32, i32, i32, i32
  }
}

module attributes {stable_mosaic.version = 11 : i64} {
  func.func @_bn_relu_kernel(%arg0: i32, %arg1: memref<32x256xf32, #tpu.memory_space<vmem>>, %arg2: memref<1x256xf32, #tpu.memory_space<vmem>>, %arg3: memref<1x256xf32, #tpu.memory_space<vmem>>, %arg4: memref<32x256xbf16, #tpu.memory_space<vmem>>) attributes {dimension_semantics = [#tpu.dimension_semantics<parallel>], iteration_bounds = array<i64: 1>, scalar_prefetch = 0 : i64, scratch_operands = 0 : i64, tpu.core_type = #tpu.core_type<tc>, window_params = [{transform_indices = @transform_0, window_bounds = array<i64: 32, 256>}, {pipeline_mode = #tpu.pipeline_mode<synchronous>, transform_indices = @transform_1, window_bounds = array<i64: 1, 256>}, {pipeline_mode = #tpu.pipeline_mode<synchronous>, transform_indices = @transform_2, window_bounds = array<i64: 1, 256>}, {transform_indices = @transform_3, window_bounds = array<i64: 32, 256>}]} {
    %c0 = arith.constant 0 : index
    %c0_0 = arith.constant 0 : index
    %0 = vector.load %arg1[%c0, %c0_0] : memref<32x256xf32, #tpu.memory_space<vmem>>, vector<32x256xf32>
    %c0_1 = arith.constant 0 : index
    %c0_2 = arith.constant 0 : index
    %1 = vector.load %arg2[%c0_1, %c0_2] : memref<1x256xf32, #tpu.memory_space<vmem>>, vector<1x256xf32>
    %2 = vector.broadcast %1 : vector<1x256xf32> to vector<32x256xf32>
    %3 = arith.mulf %0, %2 : vector<32x256xf32>
    %c0_3 = arith.constant 0 : index
    %c0_4 = arith.constant 0 : index
    %4 = vector.load %arg3[%c0_3, %c0_4] : memref<1x256xf32, #tpu.memory_space<vmem>>, vector<1x256xf32>
    %5 = vector.broadcast %4 : vector<1x256xf32> to vector<32x256xf32>
    %6 = arith.addf %3, %5 : vector<32x256xf32>
    %cst = arith.constant 0.000000e+00 : f32
    %7 = vector.broadcast %cst : f32 to vector<32x256xf32>
    %8 = arith.maximumf %6, %7 : vector<32x256xf32>
    %9 = arith.truncf %8 : vector<32x256xf32> to vector<32x256xbf16>
    %c0_5 = arith.constant 0 : index
    %c0_6 = arith.constant 0 : index
    %10 = vector.load %arg4[%c0_5, %c0_6] : memref<32x256xbf16, #tpu.memory_space<vmem>>, vector<32x256xbf16>
    tpu.vector_store %arg4[%c0_5, %c0_6], %9 {strides = array<i32>} : memref<32x256xbf16, #tpu.memory_space<vmem>>, vector<32x256xbf16>,
    return
  }
  func.func @transform_0(%arg0: i32) -> (i32, i32) {
    %c0_i32 = arith.constant 0 : i32
    %c0_i32_0 = arith.constant 0 : i32
    return %arg0, %c0_i32 : i32, i32
  }
  func.func @transform_1(%arg0: i32) -> (i32, i32) {
    %c0_i32 = arith.constant 0 : i32
    %c0_i32_0 = arith.constant 0 : i32
    %c0_i32_1 = arith.constant 0 : i32
    return %c0_i32, %c0_i32_0 : i32, i32
  }
  func.func @transform_2(%arg0: i32) -> (i32, i32) {
    %c0_i32 = arith.constant 0 : i32
    %c0_i32_0 = arith.constant 0 : i32
    %c0_i32_1 = arith.constant 0 : i32
    return %c0_i32, %c0_i32_0 : i32, i32
  }
  func.func @transform_3(%arg0: i32) -> (i32, i32) {
    %c0_i32 = arith.constant 0 : i32
    %c0_i32_0 = arith.constant 0 : i32
    return %arg0, %c0_i32 : i32, i32
  }
}

module attributes {stable_mosaic.version = 11 : i64} {
  func.func @_bmm_kernel(%arg0: i32, %arg1: i32, %arg2: i32, %arg3: i32, %arg4: memref<1x32x512xbf16, #tpu.memory_space<vmem>>, %arg5: memref<1x512x128xbf16, #tpu.memory_space<vmem>>, %arg6: memref<1x32x128xf32, #tpu.memory_space<vmem>>, %arg7: memref<1x1x2x128xf32, #tpu.memory_space<vmem>>, %arg8: memref<32x128xf32, #tpu.memory_space<vmem>>) attributes {dimension_semantics = [#tpu.dimension_semantics<parallel>, #tpu.dimension_semantics<parallel>, #tpu.dimension_semantics<parallel>, #tpu.dimension_semantics<arbitrary>], iteration_bounds = array<i64: 4, 1, 1, 2>, scalar_prefetch = 0 : i64, scratch_operands = 1 : i64, tpu.core_type = #tpu.core_type<tc>, window_params = [{transform_indices = @transform_0, window_bounds = array<i64: 1, 32, 512>}, {transform_indices = @transform_1, window_bounds = array<i64: 1, 512, 128>}, {transform_indices = @transform_2, window_bounds = array<i64: 1, 32, 128>}, {transform_indices = @transform_3, window_bounds = array<i64: 1, 1, 2, 128>}]} {
    %c0_i32 = arith.constant 0 : i32
    %0 = arith.cmpi eq, %arg3, %c0_i32 : i32
    %1 = arith.extui %0 : i1 to i32
    %c0_i32_0 = arith.constant 0 : i32
    %2 = arith.cmpi ne, %1, %c0_i32_0 : i32
    scf.if %2 {
      %cst_11 = arith.constant 0.000000e+00 : f32
      %14 = vector.broadcast %cst_11 : f32 to vector<32x128xf32>
      %c0_12 = arith.constant 0 : index
      %c0_13 = arith.constant 0 : index
      %15 = vector.load %arg8[%c0_12, %c0_13] : memref<32x128xf32, #tpu.memory_space<vmem>>, vector<32x128xf32>
      tpu.vector_store %arg8[%c0_12, %c0_13], %14 {strides = array<i32>} : memref<32x128xf32, #tpu.memory_space<vmem>>, vector<32x128xf32>,
    } else {
    }
    %c0 = arith.constant 0 : index
    %c0_1 = arith.constant 0 : index
    %3 = vector.load %arg8[%c0, %c0_1] : memref<32x128xf32, #tpu.memory_space<vmem>>, vector<32x128xf32>
    %c0_2 = arith.constant 0 : index
    %c0_3 = arith.constant 0 : index
    %c0_4 = arith.constant 0 : index
    %4 = vector.load %arg4[%c0_2, %c0_3, %c0_4] : memref<1x32x512xbf16, #tpu.memory_space<vmem>>, vector<1x32x512xbf16>
    %5 = vector.shape_cast %4 : vector<1x32x512xbf16> to vector<32x512xbf16>
    %c0_5 = arith.constant 0 : index
    %c0_6 = arith.constant 0 : index
    %c0_7 = arith.constant 0 : index
    %6 = vector.load %arg5[%c0_5, %c0_6, %c0_7] : memref<1x512x128xbf16, #tpu.memory_space<vmem>>, vector<1x512x128xbf16>
    %7 = vector.shape_cast %6 : vector<1x512x128xbf16> to vector<512x128xbf16>
    %cst = arith.constant dense<0.000000e+00> : vector<32x128xf32>
    %8 = tpu.matmul %5, %7, %cst {dimension_numbers = #tpu.dot_dimension_numbers<[1], [0], [0], [1], [0, 0, 1, 1], [], []>} : vector<32x512xbf16>, vector<512x128xbf16>, vector<32x128xf32> -> vector<32x128xf32>
    %9 = arith.addf %3, %8 : vector<32x128xf32>
    %c0_8 = arith.constant 0 : index
    %c0_9 = arith.constant 0 : index
    %10 = vector.load %arg8[%c0_8, %c0_9] : memref<32x128xf32, #tpu.memory_space<vmem>>, vector<32x128xf32>
    tpu.vector_store %arg8[%c0_8, %c0_9], %9 {strides = array<i32>} : memref<32x128xf32, #tpu.memory_space<vmem>>, vector<32x128xf32>,
    %c1_i32 = arith.constant 1 : i32
    %11 = arith.cmpi eq, %arg3, %c1_i32 : i32
    %12 = arith.extui %11 : i1 to i32
    %c0_i32_10 = arith.constant 0 : i32
    %13 = arith.cmpi ne, %12, %c0_i32_10 : i32
    scf.if %13 {
      %c0_11 = arith.constant 0 : index
      %c0_12 = arith.constant 0 : index
      %14 = vector.load %arg8[%c0_11, %c0_12] : memref<32x128xf32, #tpu.memory_space<vmem>>, vector<32x128xf32>
      %c0_13 = arith.constant 0 : index
      %c0_14 = arith.constant 0 : index
      %c0_15 = arith.constant 0 : index
      %15 = vector.load %arg6[%c0_13, %c0_14, %c0_15] : memref<1x32x128xf32, #tpu.memory_space<vmem>>, vector<1x32x128xf32>
      %16 = vector.shape_cast %15 : vector<1x32x128xf32> to vector<32x128xf32>
      %17 = vector.shape_cast %14 : vector<32x128xf32> to vector<1x32x128xf32>
      tpu.vector_store %arg6[%c0_13, %c0_14, %c0_15], %17 {strides = array<i32>} : memref<1x32x128xf32, #tpu.memory_space<vmem>>, vector<1x32x128xf32>,
      %cst_16 = arith.constant dense<0.000000e+00> : vector<128xf32>
      %18 = vector.multi_reduction <add>, %14, %cst_16 [0] : vector<32x128xf32> to vector<128xf32>
      %19 = vector.shape_cast %18 : vector<128xf32> to vector<1x128xf32>
      %20 = arith.mulf %14, %14 : vector<32x128xf32>
      %cst_17 = arith.constant dense<0.000000e+00> : vector<128xf32>
      %21 = vector.multi_reduction <add>, %20, %cst_17 [0] : vector<32x128xf32> to vector<128xf32>
      %22 = vector.shape_cast %21 : vector<128xf32> to vector<1x128xf32>
      %23 = tpu.concatenate %19, %22 in 0 : vector<1x128xf32>, vector<1x128xf32> -> vector<2x128xf32>
      %24 = vector.shape_cast %23 : vector<2x128xf32> to vector<1x2x128xf32>
      %c0_18 = arith.constant 0 : index
      %c0_19 = arith.constant 0 : index
      %c0_20 = arith.constant 0 : index
      %c0_21 = arith.constant 0 : index
      %25 = vector.load %arg7[%c0_18, %c0_19, %c0_20, %c0_21] : memref<1x1x2x128xf32, #tpu.memory_space<vmem>>, vector<1x1x2x128xf32>
      %26 = vector.shape_cast %25 : vector<1x1x2x128xf32> to vector<1x2x128xf32>
      %27 = vector.shape_cast %24 : vector<1x2x128xf32> to vector<1x1x2x128xf32>
      tpu.vector_store %arg7[%c0_18, %c0_19, %c0_20, %c0_21], %27 {strides = array<i32>} : memref<1x1x2x128xf32, #tpu.memory_space<vmem>>, vector<1x1x2x128xf32>,
    } else {
    }
    return
  }
  func.func @transform_0(%arg0: i32, %arg1: i32, %arg2: i32, %arg3: i32) -> (i32, i32, i32) {
    %c0_i32 = arith.constant 0 : i32
    return %arg0, %arg1, %arg3 : i32, i32, i32
  }
  func.func @transform_1(%arg0: i32, %arg1: i32, %arg2: i32, %arg3: i32) -> (i32, i32, i32) {
    %c0_i32 = arith.constant 0 : i32
    return %arg0, %arg3, %arg2 : i32, i32, i32
  }
  func.func @transform_2(%arg0: i32, %arg1: i32, %arg2: i32, %arg3: i32) -> (i32, i32, i32) {
    %c0_i32 = arith.constant 0 : i32
    return %arg0, %arg1, %arg2 : i32, i32, i32
  }
  func.func @transform_3(%arg0: i32, %arg1: i32, %arg2: i32, %arg3: i32) -> (i32, i32, i32, i32) {
    %c0_i32 = arith.constant 0 : i32
    %c0_i32_0 = arith.constant 0 : i32
    return %arg0, %arg1, %c0_i32, %arg2 : i32, i32, i32, i32
  }
}

module attributes {stable_mosaic.version = 11 : i64} {
  func.func @_bn_relu_kernel(%arg0: i32, %arg1: memref<128x128xf32, #tpu.memory_space<vmem>>, %arg2: memref<1x128xf32, #tpu.memory_space<vmem>>, %arg3: memref<1x128xf32, #tpu.memory_space<vmem>>, %arg4: memref<128x128xbf16, #tpu.memory_space<vmem>>) attributes {dimension_semantics = [#tpu.dimension_semantics<parallel>], iteration_bounds = array<i64: 1>, scalar_prefetch = 0 : i64, scratch_operands = 0 : i64, tpu.core_type = #tpu.core_type<tc>, window_params = [{transform_indices = @transform_0, window_bounds = array<i64: 128, 128>}, {pipeline_mode = #tpu.pipeline_mode<synchronous>, transform_indices = @transform_1, window_bounds = array<i64: 1, 128>}, {pipeline_mode = #tpu.pipeline_mode<synchronous>, transform_indices = @transform_2, window_bounds = array<i64: 1, 128>}, {transform_indices = @transform_3, window_bounds = array<i64: 128, 128>}]} {
    %c0 = arith.constant 0 : index
    %c0_0 = arith.constant 0 : index
    %0 = vector.load %arg1[%c0, %c0_0] : memref<128x128xf32, #tpu.memory_space<vmem>>, vector<128x128xf32>
    %c0_1 = arith.constant 0 : index
    %c0_2 = arith.constant 0 : index
    %1 = vector.load %arg2[%c0_1, %c0_2] : memref<1x128xf32, #tpu.memory_space<vmem>>, vector<1x128xf32>
    %2 = vector.broadcast %1 : vector<1x128xf32> to vector<128x128xf32>
    %3 = arith.mulf %0, %2 : vector<128x128xf32>
    %c0_3 = arith.constant 0 : index
    %c0_4 = arith.constant 0 : index
    %4 = vector.load %arg3[%c0_3, %c0_4] : memref<1x128xf32, #tpu.memory_space<vmem>>, vector<1x128xf32>
    %5 = vector.broadcast %4 : vector<1x128xf32> to vector<128x128xf32>
    %6 = arith.addf %3, %5 : vector<128x128xf32>
    %cst = arith.constant 0.000000e+00 : f32
    %7 = vector.broadcast %cst : f32 to vector<128x128xf32>
    %8 = arith.maximumf %6, %7 : vector<128x128xf32>
    %9 = arith.truncf %8 : vector<128x128xf32> to vector<128x128xbf16>
    %c0_5 = arith.constant 0 : index
    %c0_6 = arith.constant 0 : index
    %10 = vector.load %arg4[%c0_5, %c0_6] : memref<128x128xbf16, #tpu.memory_space<vmem>>, vector<128x128xbf16>
    tpu.vector_store %arg4[%c0_5, %c0_6], %9 {strides = array<i32>} : memref<128x128xbf16, #tpu.memory_space<vmem>>, vector<128x128xbf16>,
    return
  }
  func.func @transform_0(%arg0: i32) -> (i32, i32) {
    %c0_i32 = arith.constant 0 : i32
    %c0_i32_0 = arith.constant 0 : i32
    return %arg0, %c0_i32 : i32, i32
  }
  func.func @transform_1(%arg0: i32) -> (i32, i32) {
    %c0_i32 = arith.constant 0 : i32
    %c0_i32_0 = arith.constant 0 : i32
    %c0_i32_1 = arith.constant 0 : i32
    return %c0_i32, %c0_i32_0 : i32, i32
  }
  func.func @transform_2(%arg0: i32) -> (i32, i32) {
    %c0_i32 = arith.constant 0 : i32
    %c0_i32_0 = arith.constant 0 : i32
    %c0_i32_1 = arith.constant 0 : i32
    return %c0_i32, %c0_i32_0 : i32, i32
  }
  func.func @transform_3(%arg0: i32) -> (i32, i32) {
    %c0_i32 = arith.constant 0 : i32
    %c0_i32_0 = arith.constant 0 : i32
    return %arg0, %c0_i32 : i32, i32
  }
}

module attributes {stable_mosaic.version = 11 : i64} {
  func.func @_bmm_kernel(%arg0: i32, %arg1: i32, %arg2: i32, %arg3: i32, %arg4: memref<1x128x512xbf16, #tpu.memory_space<vmem>>, %arg5: memref<1x512x64xbf16, #tpu.memory_space<vmem>>, %arg6: memref<1x128x64xf32, #tpu.memory_space<vmem>>, %arg7: memref<1x1x2x64xf32, #tpu.memory_space<vmem>>, %arg8: memref<128x64xf32, #tpu.memory_space<vmem>>) attributes {dimension_semantics = [#tpu.dimension_semantics<parallel>, #tpu.dimension_semantics<parallel>, #tpu.dimension_semantics<parallel>, #tpu.dimension_semantics<arbitrary>], iteration_bounds = array<i64: 4, 1, 1, 1>, scalar_prefetch = 0 : i64, scratch_operands = 1 : i64, tpu.core_type = #tpu.core_type<tc>, window_params = [{transform_indices = @transform_0, window_bounds = array<i64: 1, 128, 512>}, {transform_indices = @transform_1, window_bounds = array<i64: 1, 512, 64>}, {transform_indices = @transform_2, window_bounds = array<i64: 1, 128, 64>}, {transform_indices = @transform_3, window_bounds = array<i64: 1, 1, 2, 64>}]} {
    %c0_i32 = arith.constant 0 : i32
    %0 = arith.cmpi eq, %arg3, %c0_i32 : i32
    %1 = arith.extui %0 : i1 to i32
    %c0_i32_0 = arith.constant 0 : i32
    %2 = arith.cmpi ne, %1, %c0_i32_0 : i32
    scf.if %2 {
      %cst_12 = arith.constant 0.000000e+00 : f32
      %14 = vector.broadcast %cst_12 : f32 to vector<128x64xf32>
      %c0_13 = arith.constant 0 : index
      %c0_14 = arith.constant 0 : index
      %15 = vector.load %arg8[%c0_13, %c0_14] : memref<128x64xf32, #tpu.memory_space<vmem>>, vector<128x64xf32>
      tpu.vector_store %arg8[%c0_13, %c0_14], %14 {strides = array<i32>} : memref<128x64xf32, #tpu.memory_space<vmem>>, vector<128x64xf32>,
    } else {
    }
    %c0 = arith.constant 0 : index
    %c0_1 = arith.constant 0 : index
    %3 = vector.load %arg8[%c0, %c0_1] : memref<128x64xf32, #tpu.memory_space<vmem>>, vector<128x64xf32>
    %c0_2 = arith.constant 0 : index
    %c0_3 = arith.constant 0 : index
    %c0_4 = arith.constant 0 : index
    %4 = vector.load %arg4[%c0_2, %c0_3, %c0_4] : memref<1x128x512xbf16, #tpu.memory_space<vmem>>, vector<1x128x512xbf16>
    %5 = vector.shape_cast %4 : vector<1x128x512xbf16> to vector<128x512xbf16>
    %c0_5 = arith.constant 0 : index
    %c0_6 = arith.constant 0 : index
    %c0_7 = arith.constant 0 : index
    %6 = vector.load %arg5[%c0_5, %c0_6, %c0_7] : memref<1x512x64xbf16, #tpu.memory_space<vmem>>, vector<1x512x64xbf16>
    %7 = vector.shape_cast %6 : vector<1x512x64xbf16> to vector<512x64xbf16>
    %cst = arith.constant dense<0.000000e+00> : vector<128x64xf32>
    %8 = tpu.matmul %5, %7, %cst {dimension_numbers = #tpu.dot_dimension_numbers<[1], [0], [0], [1], [0, 0, 1, 1], [], []>} : vector<128x512xbf16>, vector<512x64xbf16>, vector<128x64xf32> -> vector<128x64xf32>
    %9 = arith.addf %3, %8 : vector<128x64xf32>
    %c0_8 = arith.constant 0 : index
    %c0_9 = arith.constant 0 : index
    %10 = vector.load %arg8[%c0_8, %c0_9] : memref<128x64xf32, #tpu.memory_space<vmem>>, vector<128x64xf32>
    tpu.vector_store %arg8[%c0_8, %c0_9], %9 {strides = array<i32>} : memref<128x64xf32, #tpu.memory_space<vmem>>, vector<128x64xf32>,
    %c0_i32_10 = arith.constant 0 : i32
    %11 = arith.cmpi eq, %arg3, %c0_i32_10 : i32
    %12 = arith.extui %11 : i1 to i32
    %c0_i32_11 = arith.constant 0 : i32
    %13 = arith.cmpi ne, %12, %c0_i32_11 : i32
    scf.if %13 {
      %c0_12 = arith.constant 0 : index
      %c0_13 = arith.constant 0 : index
      %14 = vector.load %arg8[%c0_12, %c0_13] : memref<128x64xf32, #tpu.memory_space<vmem>>, vector<128x64xf32>
      %c0_14 = arith.constant 0 : index
      %c0_15 = arith.constant 0 : index
      %c0_16 = arith.constant 0 : index
      %15 = vector.load %arg6[%c0_14, %c0_15, %c0_16] : memref<1x128x64xf32, #tpu.memory_space<vmem>>, vector<1x128x64xf32>
      %16 = vector.shape_cast %15 : vector<1x128x64xf32> to vector<128x64xf32>
      %17 = vector.shape_cast %14 : vector<128x64xf32> to vector<1x128x64xf32>
      tpu.vector_store %arg6[%c0_14, %c0_15, %c0_16], %17 {strides = array<i32>} : memref<1x128x64xf32, #tpu.memory_space<vmem>>, vector<1x128x64xf32>,
      %cst_17 = arith.constant dense<0.000000e+00> : vector<64xf32>
      %18 = vector.multi_reduction <add>, %14, %cst_17 [0] : vector<128x64xf32> to vector<64xf32>
      %19 = vector.shape_cast %18 : vector<64xf32> to vector<1x64xf32>
      %20 = arith.mulf %14, %14 : vector<128x64xf32>
      %cst_18 = arith.constant dense<0.000000e+00> : vector<64xf32>
      %21 = vector.multi_reduction <add>, %20, %cst_18 [0] : vector<128x64xf32> to vector<64xf32>
      %22 = vector.shape_cast %21 : vector<64xf32> to vector<1x64xf32>
      %23 = tpu.concatenate %19, %22 in 0 : vector<1x64xf32>, vector<1x64xf32> -> vector<2x64xf32>
      %24 = vector.shape_cast %23 : vector<2x64xf32> to vector<1x2x64xf32>
      %c0_19 = arith.constant 0 : index
      %c0_20 = arith.constant 0 : index
      %c0_21 = arith.constant 0 : index
      %c0_22 = arith.constant 0 : index
      %25 = vector.load %arg7[%c0_19, %c0_20, %c0_21, %c0_22] : memref<1x1x2x64xf32, #tpu.memory_space<vmem>>, vector<1x1x2x64xf32>
      %26 = vector.shape_cast %25 : vector<1x1x2x64xf32> to vector<1x2x64xf32>
      %27 = vector.shape_cast %24 : vector<1x2x64xf32> to vector<1x1x2x64xf32>
      tpu.vector_store %arg7[%c0_19, %c0_20, %c0_21, %c0_22], %27 {strides = array<i32>} : memref<1x1x2x64xf32, #tpu.memory_space<vmem>>, vector<1x1x2x64xf32>,
    } else {
    }
    return
  }
  func.func @transform_0(%arg0: i32, %arg1: i32, %arg2: i32, %arg3: i32) -> (i32, i32, i32) {
    %c0_i32 = arith.constant 0 : i32
    return %arg0, %arg1, %arg3 : i32, i32, i32
  }
  func.func @transform_1(%arg0: i32, %arg1: i32, %arg2: i32, %arg3: i32) -> (i32, i32, i32) {
    %c0_i32 = arith.constant 0 : i32
    return %arg0, %arg3, %arg2 : i32, i32, i32
  }
  func.func @transform_2(%arg0: i32, %arg1: i32, %arg2: i32, %arg3: i32) -> (i32, i32, i32) {
    %c0_i32 = arith.constant 0 : i32
    return %arg0, %arg1, %arg2 : i32, i32, i32
  }
  func.func @transform_3(%arg0: i32, %arg1: i32, %arg2: i32, %arg3: i32) -> (i32, i32, i32, i32) {
    %c0_i32 = arith.constant 0 : i32
    %c0_i32_0 = arith.constant 0 : i32
    return %arg0, %arg1, %c0_i32, %arg2 : i32, i32, i32, i32
  }
}

module attributes {stable_mosaic.version = 11 : i64} {
  func.func @_bn_relu_kernel(%arg0: i32, %arg1: memref<512x64xf32, #tpu.memory_space<vmem>>, %arg2: memref<1x64xf32, #tpu.memory_space<vmem>>, %arg3: memref<1x64xf32, #tpu.memory_space<vmem>>, %arg4: memref<512x64xbf16, #tpu.memory_space<vmem>>) attributes {dimension_semantics = [#tpu.dimension_semantics<parallel>], iteration_bounds = array<i64: 1>, scalar_prefetch = 0 : i64, scratch_operands = 0 : i64, tpu.core_type = #tpu.core_type<tc>, window_params = [{transform_indices = @transform_0, window_bounds = array<i64: 512, 64>}, {pipeline_mode = #tpu.pipeline_mode<synchronous>, transform_indices = @transform_1, window_bounds = array<i64: 1, 64>}, {pipeline_mode = #tpu.pipeline_mode<synchronous>, transform_indices = @transform_2, window_bounds = array<i64: 1, 64>}, {transform_indices = @transform_3, window_bounds = array<i64: 512, 64>}]} {
    %c0 = arith.constant 0 : index
    %c0_0 = arith.constant 0 : index
    %0 = vector.load %arg1[%c0, %c0_0] : memref<512x64xf32, #tpu.memory_space<vmem>>, vector<512x64xf32>
    %c0_1 = arith.constant 0 : index
    %c0_2 = arith.constant 0 : index
    %1 = vector.load %arg2[%c0_1, %c0_2] : memref<1x64xf32, #tpu.memory_space<vmem>>, vector<1x64xf32>
    %2 = vector.broadcast %1 : vector<1x64xf32> to vector<512x64xf32>
    %3 = arith.mulf %0, %2 : vector<512x64xf32>
    %c0_3 = arith.constant 0 : index
    %c0_4 = arith.constant 0 : index
    %4 = vector.load %arg3[%c0_3, %c0_4] : memref<1x64xf32, #tpu.memory_space<vmem>>, vector<1x64xf32>
    %5 = vector.broadcast %4 : vector<1x64xf32> to vector<512x64xf32>
    %6 = arith.addf %3, %5 : vector<512x64xf32>
    %cst = arith.constant 0.000000e+00 : f32
    %7 = vector.broadcast %cst : f32 to vector<512x64xf32>
    %8 = arith.maximumf %6, %7 : vector<512x64xf32>
    %9 = arith.truncf %8 : vector<512x64xf32> to vector<512x64xbf16>
    %c0_5 = arith.constant 0 : index
    %c0_6 = arith.constant 0 : index
    %10 = vector.load %arg4[%c0_5, %c0_6] : memref<512x64xbf16, #tpu.memory_space<vmem>>, vector<512x64xbf16>
    tpu.vector_store %arg4[%c0_5, %c0_6], %9 {strides = array<i32>} : memref<512x64xbf16, #tpu.memory_space<vmem>>, vector<512x64xbf16>,
    return
  }
  func.func @transform_0(%arg0: i32) -> (i32, i32) {
    %c0_i32 = arith.constant 0 : i32
    %c0_i32_0 = arith.constant 0 : i32
    return %arg0, %c0_i32 : i32, i32
  }
  func.func @transform_1(%arg0: i32) -> (i32, i32) {
    %c0_i32 = arith.constant 0 : i32
    %c0_i32_0 = arith.constant 0 : i32
    %c0_i32_1 = arith.constant 0 : i32
    return %c0_i32, %c0_i32_0 : i32, i32
  }
  func.func @transform_2(%arg0: i32) -> (i32, i32) {
    %c0_i32 = arith.constant 0 : i32
    %c0_i32_0 = arith.constant 0 : i32
    %c0_i32_1 = arith.constant 0 : i32
    return %c0_i32, %c0_i32_0 : i32, i32
  }
  func.func @transform_3(%arg0: i32) -> (i32, i32) {
    %c0_i32 = arith.constant 0 : i32
    %c0_i32_0 = arith.constant 0 : i32
    return %arg0, %c0_i32 : i32, i32
  }
}

module attributes {stable_mosaic.version = 11 : i64} {
  func.func @_bmm_kernel(%arg0: i32, %arg1: i32, %arg2: i32, %arg3: i32, %arg4: memref<1x512x576xbf16, #tpu.memory_space<vmem>>, %arg5: memref<1x576x128xbf16, #tpu.memory_space<vmem>>, %arg6: memref<1x512x128xf32, #tpu.memory_space<vmem>>, %arg7: memref<512x128xf32, #tpu.memory_space<vmem>>) attributes {dimension_semantics = [#tpu.dimension_semantics<parallel>, #tpu.dimension_semantics<parallel>, #tpu.dimension_semantics<parallel>, #tpu.dimension_semantics<arbitrary>], iteration_bounds = array<i64: 1, 1, 1, 1>, scalar_prefetch = 0 : i64, scratch_operands = 1 : i64, tpu.core_type = #tpu.core_type<tc>, window_params = [{transform_indices = @transform_0, window_bounds = array<i64: 1, 512, 576>}, {transform_indices = @transform_1, window_bounds = array<i64: 1, 576, 128>}, {transform_indices = @transform_2, window_bounds = array<i64: 1, 512, 128>}]} {
    %c0_i32 = arith.constant 0 : i32
    %0 = arith.cmpi eq, %arg3, %c0_i32 : i32
    %1 = arith.extui %0 : i1 to i32
    %c0_i32_0 = arith.constant 0 : i32
    %2 = arith.cmpi ne, %1, %c0_i32_0 : i32
    scf.if %2 {
      %cst_12 = arith.constant 0.000000e+00 : f32
      %14 = vector.broadcast %cst_12 : f32 to vector<512x128xf32>
      %c0_13 = arith.constant 0 : index
      %c0_14 = arith.constant 0 : index
      %15 = vector.load %arg7[%c0_13, %c0_14] : memref<512x128xf32, #tpu.memory_space<vmem>>, vector<512x128xf32>
      tpu.vector_store %arg7[%c0_13, %c0_14], %14 {strides = array<i32>} : memref<512x128xf32, #tpu.memory_space<vmem>>, vector<512x128xf32>,
    } else {
    }
    %c0 = arith.constant 0 : index
    %c0_1 = arith.constant 0 : index
    %3 = vector.load %arg7[%c0, %c0_1] : memref<512x128xf32, #tpu.memory_space<vmem>>, vector<512x128xf32>
    %c0_2 = arith.constant 0 : index
    %c0_3 = arith.constant 0 : index
    %c0_4 = arith.constant 0 : index
    %4 = vector.load %arg4[%c0_2, %c0_3, %c0_4] : memref<1x512x576xbf16, #tpu.memory_space<vmem>>, vector<1x512x576xbf16>
    %5 = vector.shape_cast %4 : vector<1x512x576xbf16> to vector<512x576xbf16>
    %c0_5 = arith.constant 0 : index
    %c0_6 = arith.constant 0 : index
    %c0_7 = arith.constant 0 : index
    %6 = vector.load %arg5[%c0_5, %c0_6, %c0_7] : memref<1x576x128xbf16, #tpu.memory_space<vmem>>, vector<1x576x128xbf16>
    %7 = vector.shape_cast %6 : vector<1x576x128xbf16> to vector<576x128xbf16>
    %cst = arith.constant dense<0.000000e+00> : vector<512x128xf32>
    %8 = tpu.matmul %5, %7, %cst {dimension_numbers = #tpu.dot_dimension_numbers<[1], [0], [0], [1], [0, 0, 1, 1], [], []>} : vector<512x576xbf16>, vector<576x128xbf16>, vector<512x128xf32> -> vector<512x128xf32>
    %9 = arith.addf %3, %8 : vector<512x128xf32>
    %c0_8 = arith.constant 0 : index
    %c0_9 = arith.constant 0 : index
    %10 = vector.load %arg7[%c0_8, %c0_9] : memref<512x128xf32, #tpu.memory_space<vmem>>, vector<512x128xf32>
    tpu.vector_store %arg7[%c0_8, %c0_9], %9 {strides = array<i32>} : memref<512x128xf32, #tpu.memory_space<vmem>>, vector<512x128xf32>,
    %c0_i32_10 = arith.constant 0 : i32
    %11 = arith.cmpi eq, %arg3, %c0_i32_10 : i32
    %12 = arith.extui %11 : i1 to i32
    %c0_i32_11 = arith.constant 0 : i32
    %13 = arith.cmpi ne, %12, %c0_i32_11 : i32
    scf.if %13 {
      %c0_12 = arith.constant 0 : index
      %c0_13 = arith.constant 0 : index
      %14 = vector.load %arg7[%c0_12, %c0_13] : memref<512x128xf32, #tpu.memory_space<vmem>>, vector<512x128xf32>
      %15 = math.tanh %14 : vector<512x128xf32>
      %c0_14 = arith.constant 0 : index
      %c0_15 = arith.constant 0 : index
      %c0_16 = arith.constant 0 : index
      %16 = vector.load %arg6[%c0_14, %c0_15, %c0_16] : memref<1x512x128xf32, #tpu.memory_space<vmem>>, vector<1x512x128xf32>
      %17 = vector.shape_cast %16 : vector<1x512x128xf32> to vector<512x128xf32>
      %18 = vector.shape_cast %15 : vector<512x128xf32> to vector<1x512x128xf32>
      tpu.vector_store %arg6[%c0_14, %c0_15, %c0_16], %18 {strides = array<i32>} : memref<1x512x128xf32, #tpu.memory_space<vmem>>, vector<1x512x128xf32>,
    } else {
    }
    return
  }
  func.func @transform_0(%arg0: i32, %arg1: i32, %arg2: i32, %arg3: i32) -> (i32, i32, i32) {
    %c0_i32 = arith.constant 0 : i32
    return %arg0, %arg1, %arg3 : i32, i32, i32
  }
  func.func @transform_1(%arg0: i32, %arg1: i32, %arg2: i32, %arg3: i32) -> (i32, i32, i32) {
    %c0_i32 = arith.constant 0 : i32
    return %arg0, %arg3, %arg2 : i32, i32, i32
  }
  func.func @transform_2(%arg0: i32, %arg1: i32, %arg2: i32, %arg3: i32) -> (i32, i32, i32) {
    %c0_i32 = arith.constant 0 : i32
    return %arg0, %arg1, %arg2 : i32, i32, i32
  }
}

</mosaic_0001>

<llo_original>
// kernel: squeeze.2
$region0: #{squeeze.2}
  %s0 = inlined_call_operand.vmem [shape: bf16[1,2,2048], index: 0, kind: input, shape index: {}]
  %s1 = inlined_call_operand.vmem [shape: bf16[2,2,2,512], index: 1, kind: output, shape index: {}]
  $region1: #{squeeze.2} parent=0
    #allocation0 [shape = 'u8[65536]{0}', space=vmem, size = 0x10000, scoped, tag = 'scoped mem for output reshape']
    #allocation1 [shape = 'u8[65536]{0}', space=vmem, size = 0x10000, scoped, tag = 'scoped mem for input reshape']
    %s3 = smul.u32 1, 2
    %s4 = sshllo.u32 0, %s3
    %s5 = smul.addr 1, 15
    %s6 = scalar_lea.vmem %s0, %s5
    %s7 = sshrl.u32 %s4, 1
    %s8 = sor.u32 %s4, %s7
    %s9 = sand.u32 %s8, 85
    %s10 = sshrl.u32 %s9, 1
    %s11 = sor.u32 %s9, %s10
    %s12 = sand.u32 51, %s11
    %s13 = sshrl.u32 %s12, 2
    %s14 = sor.u32 %s12, %s13
    %s15 = sand.u32 15, %s14
    %v16 = vld [vmem:[%s6] sm:%s15]
    %v17 = vunpack.c.l.bf16 %v16
    %v18 = vunpack.c.h.bf16 %v16
    %s19 = scalar_lea.vmem [#allocation1], 120
    %20 = vst [vmem:[%s19] sm:%s4] %v17
    %s21 = smul.addr 1, 14
    %s22 = scalar_lea.vmem %s0, %s21
    %s23 = sshrl.u32 %s4, 1
    %s24 = sor.u32 %s4, %s23
    %s25 = sand.u32 %s24, 85
    %s26 = sshrl.u32 %s25, 1
    %s27 = sor.u32 %s25, %s26
    %s28 = sand.u32 51, %s27
    %s29 = sshrl.u32 %s28, 2
    %s30 = sor.u32 %s28, %s29
    %s31 = sand.u32 15, %s30
    %v32 = vld [vmem:[%s22] sm:%s31]
    %v33 = vunpack.c.l.bf16 %v32
    %v34 = vunpack.c.h.bf16 %v32
    %s35 = scalar_lea.vmem [#allocation1], 112
    %36 = vst [vmem:[%s35] sm:%s4] %v33
    %s37 = smul.addr 1, 13
    %s38 = scalar_lea.vmem %s0, %s37
    %s39 = sshrl.u32 %s4, 1
    %s40 = sor.u32 %s4, %s39
    %s41 = sand.u32 %s40, 85
    %s42 = sshrl.u32 %s41, 1
    %s43 = sor.u32 %s41, %s42
    %s44 = sand.u32 51, %s43
    %s45 = sshrl.u32 %s44, 2
    %s46 = sor.u32 %s44, %s45
    %s47 = sand.u32 15, %s46
    %v48 = vld [vmem:[%s38] sm:%s47]
    %v49 = vunpack.c.l.bf16 %v48
    %v50 = vunpack.c.h.bf16 %v48
    %s51 = scalar_lea.vmem [#allocation1], 104
    %52 = vst [vmem:[%s51] sm:%s4] %v49
    %s53 = smul.addr 1, 12
    %s54 = scalar_lea.vmem %s0, %s53
    %s55 = sshrl.u32 %s4, 1
    %s56 = sor.u32 %s4, %s55
    %s57 = sand.u32 %s56, 85
    %s58 = sshrl.u32 %s57, 1
    %s59 = sor.u32 %s57, %s58
    %s60 = sand.u32 51, %s59
    %s61 = sshrl.u32 %s60, 2
    %s62 = sor.u32 %s60, %s61
    %s63 = sand.u32 15, %s62
    %v64 = vld [vmem:[%s54] sm:%s63]
    %v65 = vunpack.c.l.bf16 %v64
    %v66 = vunpack.c.h.bf16 %v64
    %s67 = scalar_lea.vmem [#allocation1], 96
    %68 = vst [vmem:[%s67] sm:%s4] %v65
    %s69 = smul.addr 1, 11
    %s70 = scalar_lea.vmem %s0, %s69
    %s71 = sshrl.u32 %s4, 1
    %s72 = sor.u32 %s4, %s71
    %s73 = sand.u32 %s72, 85
    %s74 = sshrl.u32 %s73, 1
    %s75 = sor.u32 %s73, %s74
    %s76 = sand.u32 51, %s75
    %s77 = sshrl.u32 %s76, 2
    %s78 = sor.u32 %s76, %s77
    %s79 = sand.u32 15, %s78
    %v80 = vld [vmem:[%s70] sm:%s79]
    %v81 = vunpack.c.l.bf16 %v80
    %v82 = vunpack.c.h.bf16 %v80
    %s83 = scalar_lea.vmem [#allocation1], 88
    %84 = vst [vmem:[%s83] sm:%s4] %v81
    %s85 = smul.addr 1, 10
    %s86 = scalar_lea.vmem %s0, %s85
    %s87 = sshrl.u32 %s4, 1
    %s88 = sor.u32 %s4, %s87
    %s89 = sand.u32 %s88, 85
    %s90 = sshrl.u32 %s89, 1
    %s91 = sor.u32 %s89, %s90
    %s92 = sand.u32 51, %s91
    %s93 = sshrl.u32 %s92, 2
    %s94 = sor.u32 %s92, %s93
    %s95 = sand.u32 15, %s94
    %v96 = vld [vmem:[%s86] sm:%s95]
    %v97 = vunpack.c.l.bf16 %v96
    %v98 = vunpack.c.h.bf16 %v96
    %s99 = scalar_lea.vmem [#allocation1], 80
    %100 = vst [vmem:[%s99] sm:%s4] %v97
    %s101 = smul.addr 1, 9
    %s102 = scalar_lea.vmem %s0, %s101
    %s103 = sshrl.u32 %s4, 1
    %s104 = sor.u32 %s4, %s103
    %s105 = sand.u32 %s104, 85
    %s106 = sshrl.u32 %s105, 1
    %s107 = sor.u32 %s105, %s106
    %s108 = sand.u32 51, %s107
    %s109 = sshrl.u32 %s108, 2
    %s110 = sor.u32 %s108, %s109
    %s111 = sand.u32 15, %s110
    %v112 = vld [vmem:[%s102] sm:%s111]
    %v113 = vunpack.c.l.bf16 %v112
    %v114 = vunpack.c.h.bf16 %v112
    %s115 = scalar_lea.vmem [#allocation1], 72
    %116 = vst [vmem:[%s115] sm:%s4] %v113
    %s117 = smul.addr 1, 8
    %s118 = scalar_lea.vmem %s0, %s117
    %s119 = sshrl.u32 %s4, 1
    %s120 = sor.u32 %s4, %s119
    %s121 = sand.u32 %s120, 85
    %s122 = sshrl.u32 %s121, 1
    %s123 = sor.u32 %s121, %s122
    %s124 = sand.u32 51, %s123
    %s125 = sshrl.u32 %s124, 2
    %s126 = sor.u32 %s124, %s125
    %s127 = sand.u32 15, %s126
    %v128 = vld [vmem:[%s118] sm:%s127]
    %v129 = vunpack.c.l.bf16 %v128
    %v130 = vunpack.c.h.bf16 %v128
    %s131 = scalar_lea.vmem [#allocation1], 64
    %132 = vst [vmem:[%s131] sm:%s4] %v129
    %s133 = smul.addr 1, 7
    %s134 = scalar_lea.vmem %s0, %s133
    %s135 = sshrl.u32 %s4, 1
    %s136 = sor.u32 %s4, %s135
    %s137 = sand.u32 %s136, 85
    %s138 = sshrl.u32 %s137, 1
    %s139 = sor.u32 %s137, %s138
    %s140 = sand.u32 51, %s139
    %s141 = sshrl.u32 %s140, 2
    %s142 = sor.u32 %s140, %s141
    %s143 = sand.u32 15, %s142
    %v144 = vld [vmem:[%s134] sm:%s143]
    %v145 = vunpack.c.l.bf16 %v144
    %v146 = vunpack.c.h.bf16 %v144
    %s147 = scalar_lea.vmem [#allocation1], 56
    %148 = vst [vmem:[%s147] sm:%s4] %v145
    %s149 = smul.addr 1, 6
    %s150 = scalar_lea.vmem %s0, %s149
    %s151 = sshrl.u32 %s4, 1
    %s152 = sor.u32 %s4, %s151
    %s153 = sand.u32 %s152, 85
    %s154 = sshrl.u32 %s153, 1
    %s155 = sor.u32 %s153, %s154
    %s156 = sand.u32 51, %s155
    %s157 = sshrl.u32 %s156, 2
    %s158 = sor.u32 %s156, %s157
    %s159 = sand.u32 15, %s158
    %v160 = vld [vmem:[%s150] sm:%s159]
    %v161 = vunpack.c.l.bf16 %v160
    %v162 = vunpack.c.h.bf16 %v160
    %s163 = scalar_lea.vmem [#allocation1], 48
    %164 = vst [vmem:[%s163] sm:%s4] %v161
    %s165 = smul.addr 1, 5
    %s166 = scalar_lea.vmem %s0, %s165
    %s167 = sshrl.u32 %s4, 1
    %s168 = sor.u32 %s4, %s167
    %s169 = sand.u32 %s168, 85
    %s170 = sshrl.u32 %s169, 1
    %s171 = sor.u32 %s169, %s170
    %s172 = sand.u32 51, %s171
    %s173 = sshrl.u32 %s172, 2
    %s174 = sor.u32 %s172, %s173
    %s175 = sand.u32 15, %s174
    %v176 = vld [vmem:[%s166] sm:%s175]
    %v177 = vunpack.c.l.bf16 %v176
    %v178 = vunpack.c.h.bf16 %v176
    %s179 = scalar_lea.vmem [#allocation1], 40
    %180 = vst [vmem:[%s179] sm:%s4] %v177
    %s181 = smul.addr 1, 4
    %s182 = scalar_lea.vmem %s0, %s181
    %s183 = sshrl.u32 %s4, 1
    %s184 = sor.u32 %s4, %s183
    %s185 = sand.u32 %s184, 85
    %s186 = sshrl.u32 %s185, 1
    %s187 = sor.u32 %s185, %s186
    %s188 = sand.u32 51, %s187
    %s189 = sshrl.u32 %s188, 2
    %s190 = sor.u32 %s188, %s189
    %s191 = sand.u32 15, %s190
    %v192 = vld [vmem:[%s182] sm:%s191]
    %v193 = vunpack.c.l.bf16 %v192
    %v194 = vunpack.c.h.bf16 %v192
    %s195 = scalar_lea.vmem [#allocation1], 32
    %196 = vst [vmem:[%s195] sm:%s4] %v193
    %s197 = smul.addr 1, 3
    %s198 = scalar_lea.vmem %s0, %s197
    %s199 = sshrl.u32 %s4, 1
    %s200 = sor.u32 %s4, %s199
    %s201 = sand.u32 %s200, 85
    %s202 = sshrl.u32 %s201, 1
    %s203 = sor.u32 %s201, %s202
    %s204 = sand.u32 51, %s203
    %s205 = sshrl.u32 %s204, 2
    %s206 = sor.u32 %s204, %s205
    %s207 = sand.u32 15, %s206
    %v208 = vld [vmem:[%s198] sm:%s207]
    %v209 = vunpack.c.l.bf16 %v208
    %v210 = vunpack.c.h.bf16 %v208
    %s211 = scalar_lea.vmem [#allocation1], 24
    %212 = vst [vmem:[%s211] sm:%s4] %v209
    %s213 = smul.addr 1, 2
    %s214 = scalar_lea.vmem %s0, %s213
    %s215 = sshrl.u32 %s4, 1
    %s216 = sor.u32 %s4, %s215
    %s217 = sand.u32 %s216, 85
    %s218 = sshrl.u32 %s217, 1
    %s219 = sor.u32 %s217, %s218
    %s220 = sand.u32 51, %s219
    %s221 = sshrl.u32 %s220, 2
    %s222 = sor.u32 %s220, %s221
    %s223 = sand.u32 15, %s222
    %v224 = vld [vmem:[%s214] sm:%s223]
    %v225 = vunpack.c.l.bf16 %v224
    %v226 = vunpack.c.h.bf16 %v224
    %s227 = scalar_lea.vmem [#allocation1], 16
    %228 = vst [vmem:[%s227] sm:%s4] %v225
    %s229 = scalar_lea.vmem %s0, 1
    %s230 = sshrl.u32 %s4, 1
    %s231 = sor.u32 %s4, %s230
    %s232 = sand.u32 %s231, 85
    %s233 = sshrl.u32 %s232, 1
    %s234 = sor.u32 %s232, %s233
    %s235 = sand.u32 51, %s234
    %s236 = sshrl.u32 %s235, 2
    %s237 = sor.u32 %s235, %s236
    %s238 = sand.u32 15, %s237
    %v239 = vld [vmem:[%s229] sm:%s238]
    %v240 = vunpack.c.l.bf16 %v239
    %v241 = vunpack.c.h.bf16 %v239
    %s242 = scalar_lea.vmem [#allocation1], 8
    %243 = vst [vmem:[%s242] sm:%s4] %v240
    %s244 = sshrl.u32 %s4, 1
    %s245 = sor.u32 %s4, %s244
    %s246 = sand.u32 %s245, 85
    %s247 = sshrl.u32 %s246, 1
    %s248 = sor.u32 %s246, %s247
    %s249 = sand.u32 51, %s248
    %s250 = sshrl.u32 %s249, 2
    %s251 = sor.u32 %s249, %s250
    %s252 = sand.u32 15, %s251
    %v253 = vld [vmem:[%s0] sm:%s252]
    %v254 = vunpack.c.l.bf16 %v253
    %v255 = vunpack.c.h.bf16 %v253
    %256 = vst [vmem:[#allocation1] sm:%s4] %v254
    %v257 = vld [vmem:[#allocation1] sm:$0x3]
    %258 = vst [vmem:[#allocation0] sm:$0x1] %v257
    %s259 = scalar_lea.vmem [#allocation0], 63
    %260 = vst [vmem:[%s259] sm:$0x2] %v257
    %s261 = scalar_lea.vmem [#allocation1], 8
    %v262 = vld [vmem:[%s261] sm:$0x3]
    %s263 = scalar_lea.vmem [#allocation0], 8
    %264 = vst [vmem:[%s263] sm:$0x1] %v262
    %s265 = scalar_lea.vmem [#allocation0], 71
    %266 = vst [vmem:[%s265] sm:$0x2] %v262
    %s267 = scalar_lea.vmem [#allocation1], 16
    %v268 = vld [vmem:[%s267] sm:$0x3]
    %s269 = scalar_lea.vmem [#allocation0], 16
    %270 = vst [vmem:[%s269] sm:$0x1] %v268
    %s271 = scalar_lea.vmem [#allocation0], 79
    %272 = vst [vmem:[%s271] sm:$0x2] %v268
    %s273 = scalar_lea.vmem [#allocation1], 24
    %v274 = vld [vmem:[%s273] sm:$0x3]
    %s275 = scalar_lea.vmem [#allocation0], 24
    %276 = vst [vmem:[%s275] sm:$0x1] %v274
    %s277 = scalar_lea.vmem [#allocation0], 87
    %278 = vst [vmem:[%s277] sm:$0x2] %v274
    %s279 = scalar_lea.vmem [#allocation1], 32
    %v280 = vld [vmem:[%s279] sm:$0x3]
    %s281 = scalar_lea.vmem [#allocation0], 1
    %282 = vst [vmem:[%s281] sm:$0x1] %v280
    %s283 = scalar_lea.vmem [#allocation0], 64
    %284 = vst [vmem:[%s283] sm:$0x2] %v280
    %s285 = scalar_lea.vmem [#allocation1], 40
    %v286 = vld [vmem:[%s285] sm:$0x3]
    %s287 = scalar_lea.vmem [#allocation0], 9
    %288 = vst [vmem:[%s287] sm:$0x1] %v286
    %s289 = scalar_lea.vmem [#allocation0], 72
    %290 = vst [vmem:[%s289] sm:$0x2] %v286
    %s291 = scalar_lea.vmem [#allocation1], 48
    %v292 = vld [vmem:[%s291] sm:$0x3]
    %s293 = scalar_lea.vmem [#allocation0], 17
    %294 = vst [vmem:[%s293] sm:$0x1] %v292
    %s295 = scalar_lea.vmem [#allocation0], 80
    %296 = vst [vmem:[%s295] sm:$0x2] %v292
    %s297 = scalar_lea.vmem [#allocation1], 56
    %v298 = vld [vmem:[%s297] sm:$0x3]
    %s299 = scalar_lea.vmem [#allocation0], 25
    %300 = vst [vmem:[%s299] sm:$0x1] %v298
    %s301 = scalar_lea.vmem [#allocation0], 88
    %302 = vst [vmem:[%s301] sm:$0x2] %v298
    %s303 = scalar_lea.vmem [#allocation1], 64
    %v304 = vld [vmem:[%s303] sm:$0x3]
    %s305 = scalar_lea.vmem [#allocation0], 32
    %306 = vst [vmem:[%s305] sm:$0x1] %v304
    %s307 = scalar_lea.vmem [#allocation0], 95
    %308 = vst [vmem:[%s307] sm:$0x2] %v304
    %s309 = scalar_lea.vmem [#allocation1], 72
    %v310 = vld [vmem:[%s309] sm:$0x3]
    %s311 = scalar_lea.vmem [#allocation0], 40
    %312 = vst [vmem:[%s311] sm:$0x1] %v310
    %s313 = scalar_lea.vmem [#allocation0], 103
    %314 = vst [vmem:[%s313] sm:$0x2] %v310
    %s315 = scalar_lea.vmem [#allocation1], 80
    %v316 = vld [vmem:[%s315] sm:$0x3]
    %s317 = scalar_lea.vmem [#allocation0], 48
    %318 = vst [vmem:[%s317] sm:$0x1] %v316
    %s319 = scalar_lea.vmem [#allocation0], 111
    %320 = vst [vmem:[%s319] sm:$0x2] %v316
    %s321 = scalar_lea.vmem [#allocation1], 88
    %v322 = vld [vmem:[%s321] sm:$0x3]
    %s323 = scalar_lea.vmem [#allocation0], 56
    %324 = vst [vmem:[%s323] sm:$0x1] %v322
    %s325 = scalar_lea.vmem [#allocation0], 119
    %326 = vst [vmem:[%s325] sm:$0x2] %v322
    %s327 = scalar_lea.vmem [#allocation1], 96
    %v328 = vld [vmem:[%s327] sm:$0x3]
    %s329 = scalar_lea.vmem [#allocation0], 33
    %330 = vst [vmem:[%s329] sm:$0x1] %v328
    %s331 = scalar_lea.vmem [#allocation0], 96
    %332 = vst [vmem:[%s331] sm:$0x2] %v328
    %s333 = scalar_lea.vmem [#allocation1], 104
    %v334 = vld [vmem:[%s333] sm:$0x3]
    %s335 = scalar_lea.vmem [#allocation0], 41
    %336 = vst [vmem:[%s335] sm:$0x1] %v334
    %s337 = scalar_lea.vmem [#allocation0], 104
    %338 = vst [vmem:[%s337] sm:$0x2] %v334
    %s339 = scalar_lea.vmem [#allocation1], 112
    %v340 = vld [vmem:[%s339] sm:$0x3]
    %s341 = scalar_lea.vmem [#allocation0], 49
    %342 = vst [vmem:[%s341] sm:$0x1] %v340
    %s343 = scalar_lea.vmem [#allocation0], 112
    %344 = vst [vmem:[%s343] sm:$0x2] %v340
    %s345 = scalar_lea.vmem [#allocation1], 120
    %v346 = vld [vmem:[%s345] sm:$0x3]
    %s347 = scalar_lea.vmem [#allocation0], 57
    %348 = vst [vmem:[%s347] sm:$0x1] %v346
    %s349 = scalar_lea.vmem [#allocation0], 120
    %350 = vst [vmem:[%s349] sm:$0x2] %v346
    %s352 = smul.u32 1, 2
    %s353 = sshllo.u32 0, %s352
    %s354 = sshrl.u32 %s352, 1
    %v355 = vld [vmem:[#allocation0] sm:%s353]
    %v356 = vpack.c.bf16 0.0, %v355
    %s357 = sshllo.u32 0, %s354
    %358 = vst [vmem:[%s1] sm:%s357] %v356
    %s359 = scalar_lea.vmem [#allocation0], 8
    %v360 = vld [vmem:[%s359] sm:%s353]
    %v361 = vpack.c.bf16 0.0, %v360
    %s362 = sshllo.u32 0, %s354
    %s363 = scalar_lea.vmem %s1, 1
    %364 = vst [vmem:[%s363] sm:%s362] %v361
    %s365 = scalar_lea.vmem [#allocation0], 16
    %v366 = vld [vmem:[%s365] sm:%s353]
    %v367 = vpack.c.bf16 0.0, %v366
    %s368 = sshllo.u32 0, %s354
    %s369 = smul.addr 1, 2
    %s370 = scalar_lea.vmem %s1, %s369
    %371 = vst [vmem:[%s370] sm:%s368] %v367
    %s372 = scalar_lea.vmem [#allocation0], 24
    %v373 = vld [vmem:[%s372] sm:%s353]
    %v374 = vpack.c.bf16 0.0, %v373
    %s375 = sshllo.u32 0, %s354
    %s376 = smul.addr 1, 3
    %s377 = scalar_lea.vmem %s1, %s376
    %378 = vst [vmem:[%s377] sm:%s375] %v374
    %s379 = scalar_lea.vmem [#allocation0], 32
    %v380 = vld [vmem:[%s379] sm:%s353]
    %v381 = vpack.c.bf16 0.0, %v380
    %s382 = sshllo.u32 0, %s354
    %s383 = smul.addr 1, 4
    %s384 = scalar_lea.vmem %s1, %s383
    %385 = vst [vmem:[%s384] sm:%s382] %v381
    %s386 = scalar_lea.vmem [#allocation0], 40
    %v387 = vld [vmem:[%s386] sm:%s353]
    %v388 = vpack.c.bf16 0.0, %v387
    %s389 = sshllo.u32 0, %s354
    %s390 = smul.addr 1, 5
    %s391 = scalar_lea.vmem %s1, %s390
    %392 = vst [vmem:[%s391] sm:%s389] %v388
    %s393 = scalar_lea.vmem [#allocation0], 48
    %v394 = vld [vmem:[%s393] sm:%s353]
    %v395 = vpack.c.bf16 0.0, %v394
    %s396 = sshllo.u32 0, %s354
    %s397 = smul.addr 1, 6
    %s398 = scalar_lea.vmem %s1, %s397
    %399 = vst [vmem:[%s398] sm:%s396] %v395
    %s400 = scalar_lea.vmem [#allocation0], 56
    %v401 = vld [vmem:[%s400] sm:%s353]
    %v402 = vpack.c.bf16 0.0, %v401
    %s403 = sshllo.u32 0, %s354
    %s404 = smul.addr 1, 7
    %s405 = scalar_lea.vmem %s1, %s404
    %406 = vst [vmem:[%s405] sm:%s403] %v402
    %s407 = scalar_lea.vmem [#allocation0], 64
    %v408 = vld [vmem:[%s407] sm:%s353]
    %v409 = vpack.c.bf16 0.0, %v408
    %s410 = sshllo.u32 0, %s354
    %s411 = smul.addr 1, 8
    %s412 = scalar_lea.vmem %s1, %s411
    %413 = vst [vmem:[%s412] sm:%s410] %v409
    %s414 = scalar_lea.vmem [#allocation0], 72
    %v415 = vld [vmem:[%s414] sm:%s353]
    %v416 = vpack.c.bf16 0.0, %v415
    %s417 = sshllo.u32 0, %s354
    %s418 = smul.addr 1, 9
    %s419 = scalar_lea.vmem %s1, %s418
    %420 = vst [vmem:[%s419] sm:%s417] %v416
    %s421 = scalar_lea.vmem [#allocation0], 80
    %v422 = vld [vmem:[%s421] sm:%s353]
    %v423 = vpack.c.bf16 0.0, %v422
    %s424 = sshllo.u32 0, %s354
    %s425 = smul.addr 1, 10
    %s426 = scalar_lea.vmem %s1, %s425
    %427 = vst [vmem:[%s426] sm:%s424] %v423
    %s428 = scalar_lea.vmem [#allocation0], 88
    %v429 = vld [vmem:[%s428] sm:%s353]
    %v430 = vpack.c.bf16 0.0, %v429
    %s431 = sshllo.u32 0, %s354
    %s432 = smul.addr 1, 11
    %s433 = scalar_lea.vmem %s1, %s432
    %434 = vst [vmem:[%s433] sm:%s431] %v430
    %s435 = scalar_lea.vmem [#allocation0], 96
    %v436 = vld [vmem:[%s435] sm:%s353]
    %v437 = vpack.c.bf16 0.0, %v436
    %s438 = sshllo.u32 0, %s354
    %s439 = smul.addr 1, 12
    %s440 = scalar_lea.vmem %s1, %s439
    %441 = vst [vmem:[%s440] sm:%s438] %v437
    %s442 = scalar_lea.vmem [#allocation0], 104
    %v443 = vld [vmem:[%s442] sm:%s353]
    %v444 = vpack.c.bf16 0.0, %v443
    %s445 = sshllo.u32 0, %s354
    %s446 = smul.addr 1, 13
    %s447 = scalar_lea.vmem %s1, %s446
    %448 = vst [vmem:[%s447] sm:%s445] %v444
    %s449 = scalar_lea.vmem [#allocation0], 112
    %v450 = vld [vmem:[%s449] sm:%s353]
    %v451 = vpack.c.bf16 0.0, %v450
    %s452 = sshllo.u32 0, %s354
    %s453 = smul.addr 1, 14
    %s454 = scalar_lea.vmem %s1, %s453
    %455 = vst [vmem:[%s454] sm:%s452] %v451
    %s456 = scalar_lea.vmem [#allocation0], 120
    %v457 = vld [vmem:[%s456] sm:%s353]
    %v458 = vpack.c.bf16 0.0, %v457
    %s459 = sshllo.u32 0, %s354
    %s460 = smul.addr 1, 15
    %s461 = scalar_lea.vmem %s1, %s460
    %462 = vst [vmem:[%s461] sm:%s459] %v458

// kernel: conv_generator_forward.10
$region0: #{conv_generator_forward.10}
  #allocation0 [shape = 'u32[]', space=smem, size = 0x4, offset = 0x4, fixed_abs, tag = 'smem constant byte address 0x4 - core index']
  #allocation1 [shape = 'u32[144,128]{1,0:T(1,128)}', space=vmem, size = 0x12000, scoped, tag = 'internal scratch']
  %s0 = inlined_call_operand.vmem [shape: f32[32,256], index: 0, kind: input, shape index: {}]
  %s1 = inlined_call_operand.vmem [shape: f32[1,256], index: 1, kind: input, shape index: {}]
  %s2 = inlined_call_operand.vmem [shape: f32[1,256], index: 2, kind: input, shape index: {}]
  %s3 = inlined_call_operand.vmem [shape: bf16[32,256], index: 3, kind: output, shape index: {}]
  %s4 = sld [smem:[#allocation0]]
  $region22: #{conv_generator_forward.10} parent=0
    _
  %s6 = ssub.s32 1, %s4
  %s7 = scalar_select 0, %s6, %s4
  // Predicated region
  $region2: #{conv_generator_forward.10} parent=0 // pred_check
    _
  $region3: #{conv_generator_forward.10} parent=0 // pred_check_branch
    %9 = sbr.rel (0) target = $region5
  $region4: #{conv_generator_forward.10} parent=0 // pred_region
    _
  $region5: #{conv_generator_forward.10} parent=0 // pred_fallthru
    _
  // Predicated region
  $region6: #{conv_generator_forward.10} parent=0 // pred_check
    _
  $region7: #{conv_generator_forward.10} parent=0 // pred_check_branch
    %11 = sbr.rel (0) target = $region9
  $region8: #{conv_generator_forward.10} parent=0 // pred_region
    _
  $region9: #{conv_generator_forward.10} parent=0 // pred_fallthru
    _
  // Predicated region
  $region10: #{conv_generator_forward.10} parent=0 // pred_check
    _
  $region11: #{conv_generator_forward.10} parent=0 // pred_check_branch
    %13 = sbr.rel (0) target = $region13
  $region12: #{conv_generator_forward.10} parent=0 // pred_region
    _
  $region13: #{conv_generator_forward.10} parent=0 // pred_fallthru
    _
  %v14 = vld [vmem:[%s0] sm:$0xff]
  %v15 = vld [vmem:[%s0 + $0x8] sm:$0xff]
  %v16 = vld [vmem:[%s0 + $0x10] sm:$0xff]
  %v17 = vld [vmem:[%s0 + $0x18] sm:$0xff]
  %v18 = vld [vmem:[%s0 + $0x20] sm:$0xff]
  %v19 = vld [vmem:[%s0 + $0x28] sm:$0xff]
  %v20 = vld [vmem:[%s0 + $0x30] sm:$0xff]
  %v21 = vld [vmem:[%s0 + $0x38] sm:$0xff]
  %v22 = vld [vmem:[%s1] sm:$0x3]
  %v24 = vlaneseq
  %v25 = vshrl.u32 %v24, 7
  %v26 = vsub.s32 0, %v25
  %v27 = vrot.slane %v22, %v26
  %v28 = vlaneseq
  %v29 = vshrl.u32 %v28, 7
  %v30 = vsub.s32 1, %v29
  %v31 = vrot.slane %v22, %v30
  %v34 = vmul.f32 %v14, %v27
  %v35 = vmul.f32 %v15, %v31
  %v36 = vmul.f32 %v16, %v27
  %v37 = vmul.f32 %v17, %v31
  %v38 = vmul.f32 %v18, %v27
  %v39 = vmul.f32 %v19, %v31
  %v40 = vmul.f32 %v20, %v27
  %v41 = vmul.f32 %v21, %v31
  %v42 = vld [vmem:[%s2] sm:$0x3]
  %v44 = vlaneseq
  %v45 = vshrl.u32 %v44, 7
  %v46 = vsub.s32 0, %v45
  %v47 = vrot.slane %v42, %v46
  %v48 = vlaneseq
  %v49 = vshrl.u32 %v48, 7
  %v50 = vsub.s32 1, %v49
  %v51 = vrot.slane %v42, %v50
  %v54 = vadd.f32 %v34, %v47
  %v55 = vadd.f32 %v35, %v51
  %v56 = vadd.f32 %v36, %v47
  %v57 = vadd.f32 %v37, %v51
  %v58 = vadd.f32 %v38, %v47
  %v59 = vadd.f32 %v39, %v51
  %v60 = vadd.f32 %v40, %v47
  %v61 = vadd.f32 %v41, %v51
  %v62 = vmax.f32 %v54, 0.0
  %v63 = vmax.f32 %v55, 0.0
  %v64 = vmax.f32 %v56, 0.0
  %v65 = vmax.f32 %v57, 0.0
  %v66 = vmax.f32 %v58, 0.0
  %v67 = vmax.f32 %v59, 0.0
  %v68 = vmax.f32 %v60, 0.0
  %v69 = vmax.f32 %v61, 0.0
  %v70 = vpack.c.bf16 %v64, %v62
  %v71 = vpack.c.bf16 %v65, %v63
  %v72 = vpack.c.bf16 %v68, %v66
  %v73 = vpack.c.bf16 %v69, %v67
  %v78 = vunpack.c.l.b16 %v70
  %v79 = vunpack.c.l.b16 %v71
  %v80 = vunpack.c.h.b16 %v70
  %v81 = vunpack.c.h.b16 %v71
  %v82 = vunpack.c.l.b16 %v72
  %v83 = vunpack.c.l.b16 %v73
  %v84 = vunpack.c.h.b16 %v72
  %v85 = vunpack.c.h.b16 %v73
  %v86 = vpack.c.b16 %v79, %v78
  %v87 = vpack.c.b16 %v81, %v80
  %v88 = vpack.c.b16 %v83, %v82
  %v89 = vpack.c.b16 %v85, %v84
  %94 = vst [vmem:[%s3] sm:$0xff] %v86
  %95 = vst [vmem:[%s3 + $0x8] sm:$0xff] %v87
  %96 = vst [vmem:[%s3 + $0x10] sm:$0xff] %v88
  %97 = vst [vmem:[%s3 + $0x18] sm:$0xff] %v89
  // Predicated region
  $region14: #{conv_generator_forward.10} parent=0 // pred_check
    _
  $region15: #{conv_generator_forward.10} parent=0 // pred_check_branch
    %99 = sbr.rel (0) target = $region17
  $region16: #{conv_generator_forward.10} parent=0 // pred_region
    _
  $region17: #{conv_generator_forward.10} parent=0 // pred_fallthru
    _
  // Predicated region
  $region18: #{conv_generator_forward.10} parent=0 // pred_check
    _
  $region19: #{conv_generator_forward.10} parent=0 // pred_check_branch
    %101 = sbr.rel (0) target = $region21
  $region20: #{conv_generator_forward.10} parent=0 // pred_region
    _
  $region21: #{conv_generator_forward.10} parent=0 // pred_fallthru
    _

// kernel: conv_generator_forward.8
$region0: #{conv_generator_forward.8}
  #allocation0 [shape = 'u32[]', space=smem, size = 0x4, offset = 0x4, fixed_abs, tag = 'smem constant byte address 0x4 - core index']
  #allocation1 [shape = 'u32[144,128]{1,0:T(1,128)}', space=vmem, size = 0x12000, scoped, tag = 'internal scratch']
  #allocation2 [shape = 'f32[8,256]{1,0:T(8,128)}', space=vmem, size = 0x2000, scoped, tag = 'scratch operand']
  %s0 = inlined_call_operand.vmem [shape: bf16[1,8,128], index: 0, kind: input, shape index: {}]
  %s1 = inlined_call_operand.hbm [shape: bf16[1,128,2048], index: 1, kind: input, shape index: {}]
  %s2 = inlined_call_operand.vmem [shape: bf16[1,8,2048], index: 2, kind: output, shape index: {}]
  %s3 = sld [smem:[#allocation0]]
  $region53: #{conv_generator_forward.8} parent=0
    _
  %s5 = ssub.s32 1, %s3
  %s6 = scalar_select 0, %s5, %s3
  $region1: #{conv_generator_forward.8} parent=0
    #allocation3 [shape = 'u8[131072]{0}', space=vmem, size = 0x20000, scoped, tag = 'input window, operand 1']
    #allocation4 [shape = 's32[2]{0}', space=sflag, size = 0x8, scoped, tag = 'scoped memory for conv_generator_forward.8']
    %7 = vsyncpa [#allocation4], 0
    %s8 = scalar_lea.sflag [#allocation4], 1
    %9 = vsyncpa %s8, 0
    loop: start=0, step=1, limit=10
    $region2: #{conv_generator_forward.8} parent=1 // loop_pre_header
      _
    $region3: #{conv_generator_forward.8} parent=1 // loop_header
      %s11 = sphi 0, %s15
      %p12 = scmp.ge.s32.totalorder %s11, 10
      %s18 = sphi 0, %s44
      %s19 = sphi 0, %s40
      %s20 = sphi 0, %s36
      %s21 = sphi 0, %s32
      %s22 = sphi 0, %s18
      %s23 = sphi 0, %s19
      %s24 = sphi 0, %s20
      %s25 = sphi 0, %s21
      %s26 = sphi 0, %s22
      %s27 = sphi 0, %s23
      %s28 = sphi 0, %s24
      %s29 = sphi 0, %s25
      %s51 = sphi 0, %s53
      %s54 = sphi 0, %s51
      %s55 = sphi 0, %s54
      %s71 = sphi 0, %s55
      %s81 = sphi 0, %s83
      %s84 = sphi 0, %s81
      %s85 = sphi 0, %s84
      %s101 = sphi 0, %s85
      %s111 = sphi 0, %s113
      %s114 = sphi 0, %s111
      %s115 = sphi 0, %s114
      %s131 = sphi 0, %s115
    $region4: #{conv_generator_forward.8} parent=1 // loop_header_branch
      %14 = sbr.rel (%p12) target = $region8
    $region5: #{conv_generator_forward.8} parent=1 // loop_body
      %s16 = ssub.s32 %s11, 1
      %s17 = ssub.s32 %s11, 2
      %s30 = sadd.s32 1, %s21
      %p31 = scmp.ge.s32.totalorder %s30, 1
      %s32 = scalar_select %p31, 0, %s30
      %s33 = sadd.s32 1, %s20
      %s34 = scalar_select %p31, %s33, %s20
      %p35 = scmp.ge.s32.totalorder %s34, 8
      %s36 = scalar_select %p35, 0, %s34
      %s37 = sadd.s32 1, %s19
      %s38 = scalar_select %p35, %s37, %s19
      %p39 = scmp.ge.s32.totalorder %s38, 1
      %s40 = scalar_select %p39, 0, %s38
      %s41 = sadd.s32 1, %s18
      %s42 = scalar_select %p39, %s41, %s18
      %p43 = scmp.ge.s32.totalorder %s42, 1
      %s44 = scalar_select %p43, 0, %s42
      %s45 = ssub.s32 %s18, %s44
      %s46 = ssub.s32 %s19, %s40
      %s47 = sor.u32 %s45, %s46
      %s48 = ssub.s32 %s21, %s32
      %s49 = sor.u32 %s47, %s48
      %p50 = scmp.eq.s32.totalorder %s49, 0
      %s52 = sadd.s32 %s51, 1
      %s53 = scalar_select %p50, %s51, %s52
      %p56 = pneg %p50
      %p57 = scmp.eq.s32.totalorder %s11, 7
      %p58 = por %p56, %p57
      %p59 = scmp.ne.s32.totalorder %s51, %s54
      %p60 = scmp.eq.s32.totalorder %s11, 0
      %p61 = por %p59, %p60
      %p62 = scmp.ne.s32.totalorder %s51, %s54
      %p63 = scmp.eq.s32.totalorder %s16, 7
      %p64 = por %p62, %p63
      %p65 = scmp.ne.s32.totalorder %s54, %s55
      %p66 = scmp.eq.s32.totalorder %s16, 0
      %p67 = por %p65, %p66
      %p68 = scmp.ne.s32.totalorder %s54, %s55
      %p69 = scmp.eq.s32.totalorder %s17, 7
      %p70 = por %p68, %p69
      %p72 = scmp.ne.s32.totalorder %s55, %s71
      %p73 = scmp.eq.s32.totalorder %s17, 0
      %p74 = por %p72, %p73
      %s75 = ssub.s32 %s18, %s44
      %s76 = ssub.s32 %s21, %s32
      %s77 = sor.u32 %s75, %s76
      %s78 = ssub.s32 %s20, %s36
      %s79 = sor.u32 %s77, %s78
      %p80 = scmp.eq.s32.totalorder %s79, 0
      %s82 = sadd.s32 %s81, 1
      %s83 = scalar_select %p80, %s81, %s82
      %p86 = pneg %p80
      %p87 = scmp.eq.s32.totalorder %s11, 7
      %p88 = por %p86, %p87
      %p89 = scmp.ne.s32.totalorder %s81, %s84
      %p90 = scmp.eq.s32.totalorder %s11, 0
      %p91 = por %p89, %p90
      %p92 = scmp.ne.s32.totalorder %s81, %s84
      %p93 = scmp.eq.s32.totalorder %s16, 7
      %p94 = por %p92, %p93
      %p95 = scmp.ne.s32.totalorder %s84, %s85
      %p96 = scmp.eq.s32.totalorder %s16, 0
      %p97 = por %p95, %p96
      %p98 = scmp.ne.s32.totalorder %s84, %s85
      %p99 = scmp.eq.s32.totalorder %s17, 7
      %p100 = por %p98, %p99
      %p102 = scmp.ne.s32.totalorder %s85, %s101
      %p103 = scmp.eq.s32.totalorder %s17, 0
      %p104 = por %p102, %p103
      %s105 = ssub.s32 %s18, %s44
      %s106 = ssub.s32 %s19, %s40
      %s107 = sor.u32 %s105, %s106
      %s108 = ssub.s32 %s20, %s36
      %s109 = sor.u32 %s107, %s108
      %p110 = scmp.eq.s32.totalorder %s109, 0
      %s112 = sadd.s32 %s111, 1
      %s113 = scalar_select %p110, %s111, %s112
      %p116 = pneg %p110
      %p117 = scmp.eq.s32.totalorder %s11, 7
      %p118 = por %p116, %p117
      %p119 = scmp.ne.s32.totalorder %s111, %s114
      %p120 = scmp.eq.s32.totalorder %s11, 0
      %p121 = por %p119, %p120
      %p122 = scmp.ne.s32.totalorder %s111, %s114
      %p123 = scmp.eq.s32.totalorder %s16, 7
      %p124 = por %p122, %p123
      %p125 = scmp.ne.s32.totalorder %s114, %s115
      %p126 = scmp.eq.s32.totalorder %s16, 0
      %p127 = por %p125, %p126
      %p128 = scmp.ne.s32.totalorder %s114, %s115
      %p129 = scmp.eq.s32.totalorder %s17, 7
      %p130 = por %p128, %p129
      %p132 = scmp.ne.s32.totalorder %s115, %s131
      %p133 = scmp.eq.s32.totalorder %s17, 0
      %p134 = por %p132, %p133
      %p135 = scmp.le.s32.totalorder 1, %s11
      %p136 = scmp.lt.s32.totalorder %s11, 9
      %p137 = pnand %p135, %p136
      %p138 = pneg %p137
      // Predicated region
      $region9: #{conv_generator_forward.8} parent=5 // pred_check
        _
      $region10: #{conv_generator_forward.8} parent=5 // pred_check_branch
        %140 = sbr.rel (%p137) target = $region12
      $region11: #{conv_generator_forward.8} parent=5 // pred_region
        %s141 = ssub.s32 %s11, 1
        // Predicated region
        $region13: #{conv_generator_forward.8} parent=11 // pred_check
          %p142 = pneg %p67
        $region14: #{conv_generator_forward.8} parent=11 // pred_check_branch
          %144 = sbr.rel (%p142) target = $region16
        $region15: #{conv_generator_forward.8} parent=11 // pred_region
          %p145 = scmp.lt.s32.totalorder %s22, 0
          %s146 = scalar_select %p145, %s22, 0
          %p147 = scmp.lt.s32.totalorder %s23, 0
          %s148 = scalar_select %p147, %s23, 0
          %p149 = scmp.lt.s32.totalorder %s25, 0
          %s150 = scalar_select %p149, %s25, 0
          %s151 = sadd.s32 %s150, %s148
          %s152 = sadd.s32 %s151, %s146
          %s153 = smul.addr %s152, 4
          %s154 = scalar_lea.vmem %s0, %s153
        $region16: #{conv_generator_forward.8} parent=11 // pred_fallthru
          _
      $region12: #{conv_generator_forward.8} parent=5 // pred_fallthru
        _
      %p155 = scmp.lt.s32.totalorder %s11, 8
      // Predicated region
      $region17: #{conv_generator_forward.8} parent=5 // pred_check
        %p156 = pneg %p155
      $region18: #{conv_generator_forward.8} parent=5 // pred_check_branch
        %158 = sbr.rel (%p156) target = $region20
      $region19: #{conv_generator_forward.8} parent=5 // pred_region
        // Predicated region
        $region21: #{conv_generator_forward.8} parent=19 // pred_check
          %p159 = pneg %p91
        $region22: #{conv_generator_forward.8} parent=19 // pred_check_branch
          %161 = sbr.rel (%p159) target = $region24
        $region23: #{conv_generator_forward.8} parent=19 // pred_region
          %s162 = sand.u32 %s81, 1
          %s163 = scalar_lea.sflag [#allocation4], %s162
          %s164 = sand.u32 %s81, 1
          %s165 = smul.addr %s164, 128
          %s166 = scalar_lea.vmem [#allocation3], %s165
          %s167 = smul.u32 16, %s21
          %s168 = smul.u32 2, %s20
          %s170 = ssub.s32 2048, 2048
          %171 = vsyncadd %s163, %s170
          %s172 = smul.addr %s167, 16
          %s173 = sadd.s32 %s168, %s172
          %s174 = smul.addr %s18, 256
          %s175 = sadd.s32 %s173, %s174
          %s176 = smul.addr %s175, 64
          %s177 = scalar_lea.hbm %s1, %s176
          %s178 = sshll.u32 %s166, 4
          %s179 = int_to_ptr.vmem [resolvable:$true] %s178
          %184 = dma.hbm_to_vmem [thread:$0]  %s177, 2048, %s179, %s163, 1024, 128, 8
        $region24: #{conv_generator_forward.8} parent=19 // pred_fallthru
          _
      $region20: #{conv_generator_forward.8} parent=5 // pred_fallthru
        _
      %p185 = scmp.le.s32.totalorder 1, %s11
      %p186 = scmp.lt.s32.totalorder %s11, 9
      %p187 = pnand %p185, %p186
      %p188 = pneg %p187
      // Predicated region
      $region25: #{conv_generator_forward.8} parent=5 // pred_check
        _
      $region26: #{conv_generator_forward.8} parent=5 // pred_check_branch
        %190 = sbr.rel (%p187) target = $region28
      $region27: #{conv_generator_forward.8} parent=5 // pred_region
        %s191 = ssub.s32 %s11, 1
        %s192 = sand.u32 %s84, 1
        %s193 = scalar_lea.sflag [#allocation4], %s192
        %s194 = sand.u32 %s84, 1
        %s195 = smul.addr %s194, 128
        %s196 = scalar_lea.vmem [#allocation3], %s195
        // Predicated region
        $region29: #{conv_generator_forward.8} parent=27 // pred_check
          %p197 = pneg %p97
        $region30: #{conv_generator_forward.8} parent=27 // pred_check_branch
          %199 = sbr.rel (%p197) target = $region32
        $region31: #{conv_generator_forward.8} parent=27 // pred_region
          %200 = dma.done %s193, 2048
        $region32: #{conv_generator_forward.8} parent=27 // pred_fallthru
          _
        %p201 = scmp.lt.s32.totalorder %s22, 0
        %s202 = scalar_select %p201, %s22, 0
        %p203 = scmp.lt.s32.totalorder %s23, 0
        %s204 = scalar_select %p203, %s23, 0
        %p205 = scmp.lt.s32.totalorder %s25, 0
        %s206 = scalar_select %p205, %s25, 0
        %s207 = sadd.s32 %s206, %s204
        %s208 = sadd.s32 %s207, %s202
        %s209 = smul.addr %s208, 4
        %s210 = scalar_lea.vmem %s0, %s209
        %p211 = pneg %p67
        %p212 = pneg %p64
        %s213 = sand.u32 %s84, 1
        %s214 = scalar_lea.sflag [#allocation4], %s213
        %s215 = sand.u32 %s84, 1
        %s216 = smul.addr %s215, 128
        %s217 = scalar_lea.vmem [#allocation3], %s216
        %p218 = pneg %p97
        %p219 = pneg %p94
        %p220 = pneg %p127
        %p221 = pneg %p124
        %s222 = smul.u32 2, %s24
        %p223 = scmp.lt.s32.totalorder %s22, 0
        %s224 = scalar_select %p223, %s22, 0
        %p225 = scmp.lt.s32.totalorder %s23, 0
        %s226 = scalar_select %p225, %s23, 0
        %p227 = scmp.lt.s32.totalorder %s222, 15
        %s228 = scalar_select %p227, %s222, 15
        %s229 = smul.addr %s226, 16
        %s230 = sadd.s32 %s228, %s229
        %s231 = smul.addr %s224, 16
        %s232 = sadd.s32 %s230, %s231
        %s233 = smul.addr %s232, 4
        %s234 = scalar_lea.vmem %s2, %s233
        %p235 = scmp.lt.s32.totalorder %s22, 0
        %s236 = scalar_select %p235, %s22, 0
        %p237 = scmp.lt.s32.totalorder %s23, 0
        %s238 = scalar_select %p237, %s23, 0
        %p239 = scmp.lt.s32.totalorder %s25, 0
        %s240 = scalar_select %p239, %s25, 0
        %s241 = sadd.s32 %s240, %s238
        %s242 = sadd.s32 %s241, %s236
        %s243 = smul.addr %s242, 4
        %s244 = scalar_lea.vmem %s0, %s243
        %s245 = smul.u32 16, %s25
        %s246 = smul.u32 2, %s24
        %s247 = smul.u32 2, %s24
        %p248 = scmp.lt.s32.totalorder %s22, 0
        %s249 = scalar_select %p248, %s22, 0
        %p250 = scmp.lt.s32.totalorder %s23, 0
        %s251 = scalar_select %p250, %s23, 0
        %p252 = scmp.lt.s32.totalorder %s247, 15
        %s253 = scalar_select %p252, %s247, 15
        %s254 = smul.addr %s251, 16
        %s255 = sadd.s32 %s253, %s254
        %s256 = smul.addr %s249, 16
        %s257 = sadd.s32 %s255, %s256
        %s258 = smul.addr %s257, 4
        %s259 = scalar_lea.vmem %s2, %s258
        %s260 = smul.u32 2, %s24
        %p262 = scmp.eq.s32.totalorder %s25, 0
        // Predicated region
        $region33: #{conv_generator_forward.8} parent=27 // pred_check
          %p263 = pneg %p262
        $region34: #{conv_generator_forward.8} parent=27 // pred_check_branch
          %265 = sbr.rel (%p263) target = $region36
        $region35: #{conv_generator_forward.8} parent=27 // pred_region
          %266 = vst [vmem:[#allocation2] sm:$0xff] 0.0
          %267 = vst [vmem:[#allocation2 + $0x8] sm:$0xff] 0.0
        $region36: #{conv_generator_forward.8} parent=27 // pred_fallthru
          _
        %v268 = vld [vmem:[#allocation2] sm:$0xff]
        %v269 = vld [vmem:[#allocation2 + $0x8] sm:$0xff]
        %v270 = vld [vmem:[%s244] sm:$0xf]
        %v271 = vld [vmem:[%s196] sm:$0xff]
        %v272 = vld [vmem:[%s196 + $0x8] sm:$0xff]
        %v273 = vld [vmem:[%s196 + $0x10] sm:$0xff]
        %v274 = vld [vmem:[%s196 + $0x18] sm:$0xff]
        %v275 = vld [vmem:[%s196 + $0x20] sm:$0xff]
        %v276 = vld [vmem:[%s196 + $0x28] sm:$0xff]
        %v277 = vld [vmem:[%s196 + $0x30] sm:$0xff]
        %v278 = vld [vmem:[%s196 + $0x38] sm:$0xff]
        %v279 = vld [vmem:[%s196 + $0x40] sm:$0xff]
        %v280 = vld [vmem:[%s196 + $0x48] sm:$0xff]
        %v281 = vld [vmem:[%s196 + $0x50] sm:$0xff]
        %v282 = vld [vmem:[%s196 + $0x58] sm:$0xff]
        %v283 = vld [vmem:[%s196 + $0x60] sm:$0xff]
        %v284 = vld [vmem:[%s196 + $0x68] sm:$0xff]
        %v285 = vld [vmem:[%s196 + $0x70] sm:$0xff]
        %v286 = vld [vmem:[%s196 + $0x78] sm:$0xff]
        %v303 = vunpack.c.l.b16 %v271
        %v304 = vunpack.c.h.b16 %v271
        %v305 = vunpack.c.l.b16 %v272
        %v306 = vunpack.c.h.b16 %v272
        %v307 = vunpack.c.l.b16 %v273
        %v308 = vunpack.c.h.b16 %v273
        %v309 = vunpack.c.l.b16 %v274
        %v310 = vunpack.c.h.b16 %v274
        %v311 = vunpack.c.l.b16 %v275
        %v312 = vunpack.c.h.b16 %v275
        %v313 = vunpack.c.l.b16 %v276
        %v314 = vunpack.c.h.b16 %v276
        %v315 = vunpack.c.l.b16 %v277
        %v316 = vunpack.c.h.b16 %v277
        %v317 = vunpack.c.l.b16 %v278
        %v318 = vunpack.c.h.b16 %v278
        %v319 = vunpack.c.l.b16 %v279
        %v320 = vunpack.c.h.b16 %v279
        %v321 = vunpack.c.l.b16 %v280
        %v322 = vunpack.c.h.b16 %v280
        %v323 = vunpack.c.l.b16 %v281
        %v324 = vunpack.c.h.b16 %v281
        %v325 = vunpack.c.l.b16 %v282
        %v326 = vunpack.c.h.b16 %v282
        %v327 = vunpack.c.l.b16 %v283
        %v328 = vunpack.c.h.b16 %v283
        %v329 = vunpack.c.l.b16 %v284
        %v330 = vunpack.c.h.b16 %v284
        %v331 = vunpack.c.l.b16 %v285
        %v332 = vunpack.c.h.b16 %v285
        %v333 = vunpack.c.l.b16 %v286
        %v334 = vunpack.c.h.b16 %v286
        %v335 = vpack.c.b16 %v305, %v303
        %v336 = vpack.c.b16 %v306, %v304
        %v337 = vpack.c.b16 %v309, %v307
        %v338 = vpack.c.b16 %v310, %v308
        %v339 = vpack.c.b16 %v313, %v311
        %v340 = vpack.c.b16 %v314, %v312
        %v341 = vpack.c.b16 %v317, %v315
        %v342 = vpack.c.b16 %v318, %v316
        %v343 = vpack.c.b16 %v321, %v319
        %v344 = vpack.c.b16 %v322, %v320
        %v345 = vpack.c.b16 %v325, %v323
        %v346 = vpack.c.b16 %v326, %v324
        %v347 = vpack.c.b16 %v329, %v327
        %v348 = vpack.c.b16 %v330, %v328
        %v349 = vpack.c.b16 %v333, %v331
        %v350 = vpack.c.b16 %v334, %v332
        %367 = vmatprep.subr.bf16.mxu0 %v336
        %368 = vmatpush1.bf16.msra.mxu0 %v335
        %369 = vmatprep.subr.bf16.mxu0 %v338
        %370 = vmatpush1.bf16.msra.mxu0 %v337
        %371 = vmatprep.subr.bf16.mxu0 %v340
        %372 = vmatpush1.bf16.msra.mxu0 %v339
        %373 = vmatprep.subr.bf16.mxu0 %v342
        %374 = vmatpush1.bf16.msra.mxu0 %v341
        %375 = vmatprep.subr.bf16.mxu0 %v344
        %376 = vmatpush1.bf16.msra.mxu0 %v343
        %377 = vmatprep.subr.bf16.mxu0 %v346
        %378 = vmatpush1.bf16.msra.mxu0 %v345
        %379 = vmatprep.subr.bf16.mxu0 %v348
        %380 = vmatpush1.bf16.msra.mxu0 %v347
        %381 = vmatprep.subr.bf16.mxu0 %v350
        %382 = vmatpush1.bf16.msra.mxu0 %v349
        %383 = vmatprep.subr.bf16.mxu0 0
        %384 = vmatpush1.bf16.msra.mxu0 0
        %385 = vmatprep.subr.bf16.mxu0 0
        %386 = vmatpush1.bf16.msra.mxu0 0
        %387 = vmatprep.subr.bf16.mxu0 0
        %388 = vmatpush1.bf16.msra.mxu0 0
        %389 = vmatprep.subr.bf16.mxu0 0
        %390 = vmatpush1.bf16.msra.mxu0 0
        %391 = vmatprep.subr.bf16.mxu0 0
        %392 = vmatpush1.bf16.msra.mxu0 0
        %393 = vmatprep.subr.bf16.mxu0 0
        %394 = vmatpush1.bf16.msra.mxu0 0
        %395 = vmatprep.subr.bf16.mxu0 0
        %396 = vmatpush1.bf16.msra.mxu0 0
        %397 = vmatprep.subr.bf16.mxu0 0
        %398 = vmatpush1.bf16.msra.mxu0 0
        %399 = vmatprep.mubr.bf16.mxu0 0
        %400 = vmatmul.mubr.bf16.gmra.mrb[0].mxu0 %v270
        %v401 = vpop.f32.mrb[0].mxu0
        %v402 = vadd.f32 0.0, %v401
        %v403 = vpop.f32.mrb[0].mxu0
        %v404 = vadd.f32 0.0, %v403
        %v405 = vpop.f32.mrb[0].mxu0
        %v406 = vpop.f32.mrb[0].mxu0
        %407 = vdwg.mxu0
        %v408 = vadd.f32 %v268, %v402
        %v409 = vadd.f32 %v269, %v404
        %410 = vst [vmem:[#allocation2] sm:$0xff] %v408
        %411 = vst [vmem:[#allocation2 + $0x8] sm:$0xff] %v409
        // Predicated region
        $region37: #{conv_generator_forward.8} parent=27 // pred_check
          %p412 = pneg %p262
        $region38: #{conv_generator_forward.8} parent=27 // pred_check_branch
          %414 = sbr.rel (%p412) target = $region40
        $region39: #{conv_generator_forward.8} parent=27 // pred_region
          %v415 = vld [vmem:[#allocation2] sm:$0xff]
          %v416 = vld [vmem:[#allocation2 + $0x8] sm:$0xff]
          %v417 = vmax.f32 %v415, 0.0
          %v418 = vmax.f32 %v416, 0.0
          %v419 = vpack.c.bf16 %v417, %v417
          %v420 = vpack.c.bf16 %v418, %v418
          %v423 = vunpack.c.l.b16 %v419
          %v424 = vunpack.c.l.b16 %v420
          %v425 = vpack.c.b16 %v424, %v423
          %427 = vst [vmem:[%s259] sm:$0xff] %v425
        $region40: #{conv_generator_forward.8} parent=27 // pred_fallthru
          _
        %s428 = smul.u32 2, %s24
        %p429 = scmp.lt.s32.totalorder %s22, 0
        %s430 = scalar_select %p429, %s22, 0
        %p431 = scmp.lt.s32.totalorder %s23, 0
        %s432 = scalar_select %p431, %s23, 0
        %p433 = scmp.lt.s32.totalorder %s428, 15
        %s434 = scalar_select %p433, %s428, 15
        %s435 = smul.addr %s432, 16
        %s436 = sadd.s32 %s434, %s435
        %s437 = smul.addr %s430, 16
        %s438 = sadd.s32 %s436, %s437
        %s439 = smul.addr %s438, 4
        %s440 = scalar_lea.vmem %s2, %s439
        // Predicated region
        $region41: #{conv_generator_forward.8} parent=27 // pred_check
          %p441 = pneg %p124
        $region42: #{conv_generator_forward.8} parent=27 // pred_check_branch
          %443 = sbr.rel (%p441) target = $region44
        $region43: #{conv_generator_forward.8} parent=27 // pred_region
          %s444 = smul.u32 2, %s24
        $region44: #{conv_generator_forward.8} parent=27 // pred_fallthru
          _
      $region28: #{conv_generator_forward.8} parent=5 // pred_fallthru
        _
      %p445 = scmp.le.s32.totalorder 2, %s11
      // Predicated region
      $region45: #{conv_generator_forward.8} parent=5 // pred_check
        %p446 = pneg %p445
      $region46: #{conv_generator_forward.8} parent=5 // pred_check_branch
        %448 = sbr.rel (%p446) target = $region48
      $region47: #{conv_generator_forward.8} parent=5 // pred_region
        %s449 = ssub.s32 %s11, 2
        // Predicated region
        $region49: #{conv_generator_forward.8} parent=47 // pred_check
          %p450 = pneg %p130
        $region50: #{conv_generator_forward.8} parent=47 // pred_check_branch
          %452 = sbr.rel (%p450) target = $region52
        $region51: #{conv_generator_forward.8} parent=47 // pred_region
          %s453 = smul.u32 2, %s28
          %p454 = scmp.lt.s32.totalorder %s26, 0
          %s455 = scalar_select %p454, %s26, 0
          %p456 = scmp.lt.s32.totalorder %s27, 0
          %s457 = scalar_select %p456, %s27, 0
          %p458 = scmp.lt.s32.totalorder %s453, 15
          %s459 = scalar_select %p458, %s453, 15
          %s460 = smul.addr %s457, 16
          %s461 = sadd.s32 %s459, %s460
          %s462 = smul.addr %s455, 16
          %s463 = sadd.s32 %s461, %s462
          %s464 = smul.addr %s463, 4
          %s465 = scalar_lea.vmem %s2, %s464
        $region52: #{conv_generator_forward.8} parent=47 // pred_fallthru
          _
      $region48: #{conv_generator_forward.8} parent=5 // pred_fallthru
        _
    $region6: #{conv_generator_forward.8} parent=1 // loop_footer
      %s15 = sadd.s32 1, %s11
    $region7: #{conv_generator_forward.8} parent=1 // loop_footer_branch
      %10 = sbr.rel target = $region3
    $region8: #{conv_generator_forward.8} parent=1 // loop_exit
      _
    %466 = vsyncpa [#allocation4], 1
    %s467 = scalar_lea.sflag [#allocation4], 1
    %468 = vsyncpa %s467, 1

// kernel: conv_generator_forward.9
$region0: #{conv_generator_forward.9}
  #allocation0 [shape = 'u32[]', space=smem, size = 0x4, offset = 0x4, fixed_abs, tag = 'smem constant byte address 0x4 - core index']
  #allocation1 [shape = 'u32[144,128]{1,0:T(1,128)}', space=vmem, size = 0x12000, scoped, tag = 'internal scratch']
  #allocation2 [shape = 'f32[8,256]{1,0:T(8,128)}', space=vmem, size = 0x2000, scoped, tag = 'scratch operand']
  %s0 = inlined_call_operand.vmem [shape: bf16[4,8,2048], index: 0, kind: input, shape index: {}]
  %s1 = inlined_call_operand.hbm [shape: bf16[4,2048,256], index: 1, kind: input, shape index: {}]
  %s2 = inlined_call_operand.vmem [shape: f32[4,8,256], index: 2, kind: output, shape index: {0}]
  %s3 = inlined_call_operand.vmem [shape: f32[4,1,2,256], index: 3, kind: output, shape index: {1}]
  %4 = xla_tuple %s2, %s3
  %s5 = sld [smem:[#allocation0]]
  $region61: #{conv_generator_forward.9} parent=0
    _
  %s7 = ssub.s32 1, %s5
  %s8 = scalar_select 0, %s7, %s5
  $region1: #{conv_generator_forward.9} parent=0
    #allocation3 [shape = 'u8[524288]{0}', space=vmem, size = 0x80000, scoped, tag = 'input window, operand 1']
    #allocation4 [shape = 's32[2]{0}', space=sflag, size = 0x8, scoped, tag = 'scoped memory for conv_generator_forward.9']
    %9 = vsyncpa [#allocation4], 0
    %s10 = scalar_lea.sflag [#allocation4], 1
    %11 = vsyncpa %s10, 0
    loop: start=0, step=1, limit=18
    $region2: #{conv_generator_forward.9} parent=1 // loop_pre_header
      _
    $region3: #{conv_generator_forward.9} parent=1 // loop_header
      %s13 = sphi 0, %s17
      %p14 = scmp.ge.s32.totalorder %s13, 18
      %s20 = sphi 0, %s46
      %s21 = sphi 0, %s42
      %s22 = sphi 0, %s38
      %s23 = sphi 0, %s34
      %s24 = sphi 0, %s20
      %s25 = sphi 0, %s21
      %s26 = sphi 0, %s22
      %s27 = sphi 0, %s23
      %s28 = sphi 0, %s24
      %s29 = sphi 0, %s25
      %s30 = sphi 0, %s26
      %s31 = sphi 0, %s27
      %s53 = sphi 0, %s55
      %s56 = sphi 0, %s53
      %s57 = sphi 0, %s56
      %s73 = sphi 0, %s57
      %s83 = sphi 0, %s85
      %s86 = sphi 0, %s83
      %s87 = sphi 0, %s86
      %s103 = sphi 0, %s87
      %s113 = sphi 0, %s115
      %s116 = sphi 0, %s113
      %s117 = sphi 0, %s116
      %s133 = sphi 0, %s117
      %s143 = sphi 0, %s145
      %s146 = sphi 0, %s143
      %s147 = sphi 0, %s146
      %s163 = sphi 0, %s147
    $region4: #{conv_generator_forward.9} parent=1 // loop_header_branch
      %16 = sbr.rel (%p14) target = $region8
    $region5: #{conv_generator_forward.9} parent=1 // loop_body
      %s18 = ssub.s32 %s13, 1
      %s19 = ssub.s32 %s13, 2
      %s32 = sadd.s32 1, %s23
      %p33 = scmp.ge.s32.totalorder %s32, 4
      %s34 = scalar_select %p33, 0, %s32
      %s35 = sadd.s32 1, %s22
      %s36 = scalar_select %p33, %s35, %s22
      %p37 = scmp.ge.s32.totalorder %s36, 1
      %s38 = scalar_select %p37, 0, %s36
      %s39 = sadd.s32 1, %s21
      %s40 = scalar_select %p37, %s39, %s21
      %p41 = scmp.ge.s32.totalorder %s40, 1
      %s42 = scalar_select %p41, 0, %s40
      %s43 = sadd.s32 1, %s20
      %s44 = scalar_select %p41, %s43, %s20
      %p45 = scmp.ge.s32.totalorder %s44, 4
      %s46 = scalar_select %p45, 0, %s44
      %s47 = ssub.s32 %s20, %s46
      %s48 = ssub.s32 %s21, %s42
      %s49 = sor.u32 %s47, %s48
      %s50 = ssub.s32 %s23, %s34
      %s51 = sor.u32 %s49, %s50
      %p52 = scmp.eq.s32.totalorder %s51, 0
      %s54 = sadd.s32 %s53, 1
      %s55 = scalar_select %p52, %s53, %s54
      %p58 = pneg %p52
      %p59 = scmp.eq.s32.totalorder %s13, 15
      %p60 = por %p58, %p59
      %p61 = scmp.ne.s32.totalorder %s53, %s56
      %p62 = scmp.eq.s32.totalorder %s13, 0
      %p63 = por %p61, %p62
      %p64 = scmp.ne.s32.totalorder %s53, %s56
      %p65 = scmp.eq.s32.totalorder %s18, 15
      %p66 = por %p64, %p65
      %p67 = scmp.ne.s32.totalorder %s56, %s57
      %p68 = scmp.eq.s32.totalorder %s18, 0
      %p69 = por %p67, %p68
      %p70 = scmp.ne.s32.totalorder %s56, %s57
      %p71 = scmp.eq.s32.totalorder %s19, 15
      %p72 = por %p70, %p71
      %p74 = scmp.ne.s32.totalorder %s57, %s73
      %p75 = scmp.eq.s32.totalorder %s19, 0
      %p76 = por %p74, %p75
      %s77 = ssub.s32 %s20, %s46
      %s78 = ssub.s32 %s23, %s34
      %s79 = sor.u32 %s77, %s78
      %s80 = ssub.s32 %s22, %s38
      %s81 = sor.u32 %s79, %s80
      %p82 = scmp.eq.s32.totalorder %s81, 0
      %s84 = sadd.s32 %s83, 1
      %s85 = scalar_select %p82, %s83, %s84
      %p88 = pneg %p82
      %p89 = scmp.eq.s32.totalorder %s13, 15
      %p90 = por %p88, %p89
      %p91 = scmp.ne.s32.totalorder %s83, %s86
      %p92 = scmp.eq.s32.totalorder %s13, 0
      %p93 = por %p91, %p92
      %p94 = scmp.ne.s32.totalorder %s83, %s86
      %p95 = scmp.eq.s32.totalorder %s18, 15
      %p96 = por %p94, %p95
      %p97 = scmp.ne.s32.totalorder %s86, %s87
      %p98 = scmp.eq.s32.totalorder %s18, 0
      %p99 = por %p97, %p98
      %p100 = scmp.ne.s32.totalorder %s86, %s87
      %p101 = scmp.eq.s32.totalorder %s19, 15
      %p102 = por %p100, %p101
      %p104 = scmp.ne.s32.totalorder %s87, %s103
      %p105 = scmp.eq.s32.totalorder %s19, 0
      %p106 = por %p104, %p105
      %s107 = ssub.s32 %s20, %s46
      %s108 = ssub.s32 %s21, %s42
      %s109 = sor.u32 %s107, %s108
      %s110 = ssub.s32 %s22, %s38
      %s111 = sor.u32 %s109, %s110
      %p112 = scmp.eq.s32.totalorder %s111, 0
      %s114 = sadd.s32 %s113, 1
      %s115 = scalar_select %p112, %s113, %s114
      %p118 = pneg %p112
      %p119 = scmp.eq.s32.totalorder %s13, 15
      %p120 = por %p118, %p119
      %p121 = scmp.ne.s32.totalorder %s113, %s116
      %p122 = scmp.eq.s32.totalorder %s13, 0
      %p123 = por %p121, %p122
      %p124 = scmp.ne.s32.totalorder %s113, %s116
      %p125 = scmp.eq.s32.totalorder %s18, 15
      %p126 = por %p124, %p125
      %p127 = scmp.ne.s32.totalorder %s116, %s117
      %p128 = scmp.eq.s32.totalorder %s18, 0
      %p129 = por %p127, %p128
      %p130 = scmp.ne.s32.totalorder %s116, %s117
      %p131 = scmp.eq.s32.totalorder %s19, 15
      %p132 = por %p130, %p131
      %p134 = scmp.ne.s32.totalorder %s117, %s133
      %p135 = scmp.eq.s32.totalorder %s19, 0
      %p136 = por %p134, %p135
      %s137 = ssub.s32 %s20, %s46
      %s138 = ssub.s32 %s21, %s42
      %s139 = sor.u32 %s137, %s138
      %s140 = ssub.s32 %s22, %s38
      %s141 = sor.u32 %s139, %s140
      %p142 = scmp.eq.s32.totalorder %s141, 0
      %s144 = sadd.s32 %s143, 1
      %s145 = scalar_select %p142, %s143, %s144
      %p148 = pneg %p142
      %p149 = scmp.eq.s32.totalorder %s13, 15
      %p150 = por %p148, %p149
      %p151 = scmp.ne.s32.totalorder %s143, %s146
      %p152 = scmp.eq.s32.totalorder %s13, 0
      %p153 = por %p151, %p152
      %p154 = scmp.ne.s32.totalorder %s143, %s146
      %p155 = scmp.eq.s32.totalorder %s18, 15
      %p156 = por %p154, %p155
      %p157 = scmp.ne.s32.totalorder %s146, %s147
      %p158 = scmp.eq.s32.totalorder %s18, 0
      %p159 = por %p157, %p158
      %p160 = scmp.ne.s32.totalorder %s146, %s147
      %p161 = scmp.eq.s32.totalorder %s19, 15
      %p162 = por %p160, %p161
      %p164 = scmp.ne.s32.totalorder %s147, %s163
      %p165 = scmp.eq.s32.totalorder %s19, 0
      %p166 = por %p164, %p165
      %p167 = scmp.le.s32.totalorder 1, %s13
      %p168 = scmp.lt.s32.totalorder %s13, 17
      %p169 = pnand %p167, %p168
      %p170 = pneg %p169
      // Predicated region
      $region9: #{conv_generator_forward.9} parent=5 // pred_check
        _
      $region10: #{conv_generator_forward.9} parent=5 // pred_check_branch
        %172 = sbr.rel (%p169) target = $region12
      $region11: #{conv_generator_forward.9} parent=5 // pred_region
        %s173 = ssub.s32 %s13, 1
      $region12: #{conv_generator_forward.9} parent=5 // pred_fallthru
        _
      %p174 = scmp.lt.s32.totalorder %s13, 16
      // Predicated region
      $region13: #{conv_generator_forward.9} parent=5 // pred_check
        %p175 = pneg %p174
      $region14: #{conv_generator_forward.9} parent=5 // pred_check_branch
        %177 = sbr.rel (%p175) target = $region16
      $region15: #{conv_generator_forward.9} parent=5 // pred_region
        // Predicated region
        $region17: #{conv_generator_forward.9} parent=15 // pred_check
          %p178 = pneg %p63
        $region18: #{conv_generator_forward.9} parent=15 // pred_check_branch
          %180 = sbr.rel (%p178) target = $region20
        $region19: #{conv_generator_forward.9} parent=15 // pred_region
          %s181 = smul.u32 4, %s23
          %p182 = scmp.lt.s32.totalorder %s20, 3
          %s183 = scalar_select %p182, %s20, 3
          %p184 = scmp.lt.s32.totalorder %s21, 0
          %s185 = scalar_select %p184, %s21, 0
          %p186 = scmp.lt.s32.totalorder %s181, 15
          %s187 = scalar_select %p186, %s181, 15
          %s188 = smul.addr %s185, 16
          %s189 = sadd.s32 %s187, %s188
          %s190 = smul.addr %s183, 16
          %s191 = sadd.s32 %s189, %s190
          %s192 = smul.addr %s191, 4
          %s193 = scalar_lea.vmem %s0, %s192
          %s194 = smul.u32 4, %s23
        $region20: #{conv_generator_forward.9} parent=15 // pred_fallthru
          _
        // Predicated region
        $region21: #{conv_generator_forward.9} parent=15 // pred_check
          %p195 = pneg %p93
        $region22: #{conv_generator_forward.9} parent=15 // pred_check_branch
          %197 = sbr.rel (%p195) target = $region24
        $region23: #{conv_generator_forward.9} parent=15 // pred_region
          %s198 = sand.u32 %s83, 1
          %s199 = scalar_lea.sflag [#allocation4], %s198
          %s200 = sand.u32 %s83, 1
          %s201 = smul.addr %s200, 512
          %s202 = scalar_lea.vmem [#allocation3], %s201
          %s203 = smul.u32 64, %s23
          %s204 = smul.u32 2, %s22
          %s206 = ssub.s32 8192, 8192
          %207 = vsyncadd %s199, %s206
          %s208 = smul.addr %s203, 2
          %s209 = sadd.s32 %s204, %s208
          %s210 = smul.addr %s20, 512
          %s211 = sadd.s32 %s209, %s210
          %s212 = smul.addr %s211, 64
          %s213 = scalar_lea.hbm %s1, %s212
          %s214 = sshll.u32 %s202, 4
          %s215 = int_to_ptr.vmem [resolvable:$true] %s214
          %220 = dma.hbm_to_vmem [thread:$0]  %s213, 8192, %s215, %s199, 128, 128, 8
        $region24: #{conv_generator_forward.9} parent=15 // pred_fallthru
          _
      $region16: #{conv_generator_forward.9} parent=5 // pred_fallthru
        _
      %p221 = scmp.le.s32.totalorder 1, %s13
      %p222 = scmp.lt.s32.totalorder %s13, 17
      %p223 = pnand %p221, %p222
      %p224 = pneg %p223
      // Predicated region
      $region25: #{conv_generator_forward.9} parent=5 // pred_check
        _
      $region26: #{conv_generator_forward.9} parent=5 // pred_check_branch
        %226 = sbr.rel (%p223) target = $region28
      $region27: #{conv_generator_forward.9} parent=5 // pred_region
        %s227 = ssub.s32 %s13, 1
        %s228 = sand.u32 %s86, 1
        %s229 = scalar_lea.sflag [#allocation4], %s228
        %s230 = sand.u32 %s86, 1
        %s231 = smul.addr %s230, 512
        %s232 = scalar_lea.vmem [#allocation3], %s231
        // Predicated region
        $region29: #{conv_generator_forward.9} parent=27 // pred_check
          %p233 = pneg %p99
        $region30: #{conv_generator_forward.9} parent=27 // pred_check_branch
          %235 = sbr.rel (%p233) target = $region32
        $region31: #{conv_generator_forward.9} parent=27 // pred_region
          %236 = dma.done %s229, 8192
        $region32: #{conv_generator_forward.9} parent=27 // pred_fallthru
          _
        %s237 = smul.u32 4, %s27
        %p238 = scmp.lt.s32.totalorder %s24, 3
        %s239 = scalar_select %p238, %s24, 3
        %p240 = scmp.lt.s32.totalorder %s25, 0
        %s241 = scalar_select %p240, %s25, 0
        %p242 = scmp.lt.s32.totalorder %s237, 15
        %s243 = scalar_select %p242, %s237, 15
        %s244 = smul.addr %s241, 16
        %s245 = sadd.s32 %s243, %s244
        %s246 = smul.addr %s239, 16
        %s247 = sadd.s32 %s245, %s246
        %s248 = smul.addr %s247, 4
        %s249 = scalar_lea.vmem %s0, %s248
        %p250 = pneg %p69
        %p251 = pneg %p66
        %s252 = sand.u32 %s86, 1
        %s253 = scalar_lea.sflag [#allocation4], %s252
        %s254 = sand.u32 %s86, 1
        %s255 = smul.addr %s254, 512
        %s256 = scalar_lea.vmem [#allocation3], %s255
        %p257 = pneg %p99
        %p258 = pneg %p96
        %p259 = pneg %p129
        %p260 = pneg %p126
        %s261 = smul.u32 2, %s26
        %p262 = scmp.lt.s32.totalorder %s24, 3
        %s263 = scalar_select %p262, %s24, 3
        %p264 = scmp.lt.s32.totalorder %s25, 0
        %s265 = scalar_select %p264, %s25, 0
        %p266 = scmp.lt.s32.totalorder %s261, 1
        %s267 = scalar_select %p266, %s261, 1
        %s268 = smul.addr %s265, 2
        %s269 = sadd.s32 %s267, %s268
        %s270 = smul.addr %s263, 2
        %s271 = sadd.s32 %s269, %s270
        %s272 = smul.addr %s271, 8
        %s273 = scalar_lea.vmem %s2, %s272
        %p274 = pneg %p159
        %p275 = pneg %p156
        %s276 = smul.u32 2, %s26
        %p277 = scmp.lt.s32.totalorder %s24, 3
        %s278 = scalar_select %p277, %s24, 3
        %p279 = scmp.lt.s32.totalorder %s25, 0
        %s280 = scalar_select %p279, %s25, 0
        %p281 = scmp.lt.s32.totalorder %s276, 1
        %s282 = scalar_select %p281, %s276, 1
        %s283 = smul.addr %s280, 2
        %s284 = sadd.s32 %s282, %s283
        %s285 = smul.addr %s278, 2
        %s286 = sadd.s32 %s284, %s285
        %s287 = smul.addr %s286, 2
        %s288 = scalar_lea.vmem %s3, %s287
        %s289 = smul.u32 4, %s27
        %p290 = scmp.lt.s32.totalorder %s24, 3
        %s291 = scalar_select %p290, %s24, 3
        %p292 = scmp.lt.s32.totalorder %s25, 0
        %s293 = scalar_select %p292, %s25, 0
        %p294 = scmp.lt.s32.totalorder %s289, 15
        %s295 = scalar_select %p294, %s289, 15
        %s296 = smul.addr %s293, 16
        %s297 = sadd.s32 %s295, %s296
        %s298 = smul.addr %s291, 16
        %s299 = sadd.s32 %s297, %s298
        %s300 = smul.addr %s299, 4
        %s301 = scalar_lea.vmem %s0, %s300
        %s302 = smul.u32 4, %s27
        %s303 = smul.u32 64, %s27
        %s304 = smul.u32 2, %s26
        %s305 = smul.u32 2, %s26
        %p306 = scmp.lt.s32.totalorder %s24, 3
        %s307 = scalar_select %p306, %s24, 3
        %p308 = scmp.lt.s32.totalorder %s25, 0
        %s309 = scalar_select %p308, %s25, 0
        %p310 = scmp.lt.s32.totalorder %s305, 1
        %s311 = scalar_select %p310, %s305, 1
        %s312 = smul.addr %s309, 2
        %s313 = sadd.s32 %s311, %s312
        %s314 = smul.addr %s307, 2
        %s315 = sadd.s32 %s313, %s314
        %s316 = smul.addr %s315, 8
        %s317 = scalar_lea.vmem %s2, %s316
        %s318 = smul.u32 2, %s26
        %s319 = smul.u32 2, %s26
        %p320 = scmp.lt.s32.totalorder %s24, 3
        %s321 = scalar_select %p320, %s24, 3
        %p322 = scmp.lt.s32.totalorder %s25, 0
        %s323 = scalar_select %p322, %s25, 0
        %p324 = scmp.lt.s32.totalorder %s319, 1
        %s325 = scalar_select %p324, %s319, 1
        %s326 = smul.addr %s323, 2
        %s327 = sadd.s32 %s325, %s326
        %s328 = smul.addr %s321, 2
        %s329 = sadd.s32 %s327, %s328
        %s330 = smul.addr %s329, 2
        %s331 = scalar_lea.vmem %s3, %s330
        %s332 = smul.u32 2, %s26
        %p333 = scmp.eq.s32.totalorder %s27, 0
        // Predicated region
        $region33: #{conv_generator_forward.9} parent=27 // pred_check
          %p334 = pneg %p333
        $region34: #{conv_generator_forward.9} parent=27 // pred_check_branch
          %336 = sbr.rel (%p334) target = $region36
        $region35: #{conv_generator_forward.9} parent=27 // pred_region
          %337 = vst [vmem:[#allocation2] sm:$0xff] 0.0
          %338 = vst [vmem:[#allocation2 + $0x8] sm:$0xff] 0.0
        $region36: #{conv_generator_forward.9} parent=27 // pred_fallthru
          _
        %v339 = vld [vmem:[#allocation2] sm:$0xff]
        %v340 = vld [vmem:[#allocation2 + $0x8] sm:$0xff]
        %v341 = vld [vmem:[%s301] sm:$0xff]
        %v342 = vld [vmem:[%s301 + $0x8] sm:$0xff]
        %v343 = vld [vmem:[%s232] sm:$0xff]
        %v344 = vld [vmem:[%s232 + $0x8] sm:$0xff]
        %v345 = vld [vmem:[%s232 + $0x10] sm:$0xff]
        %v346 = vld [vmem:[%s232 + $0x18] sm:$0xff]
        %v347 = vld [vmem:[%s232 + $0x20] sm:$0xff]
        %v348 = vld [vmem:[%s232 + $0x28] sm:$0xff]
        %v349 = vld [vmem:[%s232 + $0x30] sm:$0xff]
        %v350 = vld [vmem:[%s232 + $0x38] sm:$0xff]
        %v351 = vld [vmem:[%s232 + $0x40] sm:$0xff]
        %v352 = vld [vmem:[%s232 + $0x48] sm:$0xff]
        %v353 = vld [vmem:[%s232 + $0x50] sm:$0xff]
        %v354 = vld [vmem:[%s232 + $0x58] sm:$0xff]
        %v355 = vld [vmem:[%s232 + $0x60] sm:$0xff]
        %v356 = vld [vmem:[%s232 + $0x68] sm:$0xff]
        %v357 = vld [vmem:[%s232 + $0x70] sm:$0xff]
        %v358 = vld [vmem:[%s232 + $0x78] sm:$0xff]
        %v359 = vld [vmem:[%s232 + $0x80] sm:$0xff]
        %v360 = vld [vmem:[%s232 + $0x88] sm:$0xff]
        %v361 = vld [vmem:[%s232 + $0x90] sm:$0xff]
        %v362 = vld [vmem:[%s232 + $0x98] sm:$0xff]
        %v363 = vld [vmem:[%s232 + $0xa0] sm:$0xff]
        %v364 = vld [vmem:[%s232 + $0xa8] sm:$0xff]
        %v365 = vld [vmem:[%s232 + $0xb0] sm:$0xff]
        %v366 = vld [vmem:[%s232 + $0xb8] sm:$0xff]
        %v367 = vld [vmem:[%s232 + $0xc0] sm:$0xff]
        %v368 = vld [vmem:[%s232 + $0xc8] sm:$0xff]
        %v369 = vld [vmem:[%s232 + $0xd0] sm:$0xff]
        %v370 = vld [vmem:[%s232 + $0xd8] sm:$0xff]
        %v371 = vld [vmem:[%s232 + $0xe0] sm:$0xff]
        %v372 = vld [vmem:[%s232 + $0xe8] sm:$0xff]
        %v373 = vld [vmem:[%s232 + $0xf0] sm:$0xff]
        %v374 = vld [vmem:[%s232 + $0xf8] sm:$0xff]
        %v375 = vld [vmem:[%s232 + $0x100] sm:$0xff]
        %v376 = vld [vmem:[%s232 + $0x108] sm:$0xff]
        %v377 = vld [vmem:[%s232 + $0x110] sm:$0xff]
        %v378 = vld [vmem:[%s232 + $0x118] sm:$0xff]
        %v379 = vld [vmem:[%s232 + $0x120] sm:$0xff]
        %v380 = vld [vmem:[%s232 + $0x128] sm:$0xff]
        %v381 = vld [vmem:[%s232 + $0x130] sm:$0xff]
        %v382 = vld [vmem:[%s232 + $0x138] sm:$0xff]
        %v383 = vld [vmem:[%s232 + $0x140] sm:$0xff]
        %v384 = vld [vmem:[%s232 + $0x148] sm:$0xff]
        %v385 = vld [vmem:[%s232 + $0x150] sm:$0xff]
        %v386 = vld [vmem:[%s232 + $0x158] sm:$0xff]
        %v387 = vld [vmem:[%s232 + $0x160] sm:$0xff]
        %v388 = vld [vmem:[%s232 + $0x168] sm:$0xff]
        %v389 = vld [vmem:[%s232 + $0x170] sm:$0xff]
        %v390 = vld [vmem:[%s232 + $0x178] sm:$0xff]
        %v391 = vld [vmem:[%s232 + $0x180] sm:$0xff]
        %v392 = vld [vmem:[%s232 + $0x188] sm:$0xff]
        %v393 = vld [vmem:[%s232 + $0x190] sm:$0xff]
        %v394 = vld [vmem:[%s232 + $0x198] sm:$0xff]
        %v395 = vld [vmem:[%s232 + $0x1a0] sm:$0xff]
        %v396 = vld [vmem:[%s232 + $0x1a8] sm:$0xff]
        %v397 = vld [vmem:[%s232 + $0x1b0] sm:$0xff]
        %v398 = vld [vmem:[%s232 + $0x1b8] sm:$0xff]
        %v399 = vld [vmem:[%s232 + $0x1c0] sm:$0xff]
        %v400 = vld [vmem:[%s232 + $0x1c8] sm:$0xff]
        %v401 = vld [vmem:[%s232 + $0x1d0] sm:$0xff]
        %v402 = vld [vmem:[%s232 + $0x1d8] sm:$0xff]
        %v403 = vld [vmem:[%s232 + $0x1e0] sm:$0xff]
        %v404 = vld [vmem:[%s232 + $0x1e8] sm:$0xff]
        %v405 = vld [vmem:[%s232 + $0x1f0] sm:$0xff]
        %v406 = vld [vmem:[%s232 + $0x1f8] sm:$0xff]
        %v409 = vunpack.c.l.b16 %v341
        %v410 = vunpack.c.h.b16 %v341
        %v411 = vunpack.c.l.b16 %v342
        %v412 = vunpack.c.h.b16 %v342
        %v413 = vpack.c.b16 %v409, %v409
        %v414 = vpack.c.b16 %v410, %v410
        %v415 = vpack.c.b16 %v411, %v411
        %v416 = vpack.c.b16 %v412, %v412
        %v485 = vunpack.c.l.b16 %v343
        %v486 = vunpack.c.h.b16 %v343
        %v487 = vunpack.c.l.b16 %v344
        %v488 = vunpack.c.h.b16 %v344
        %v489 = vunpack.c.l.b16 %v345
        %v490 = vunpack.c.h.b16 %v345
        %v491 = vunpack.c.l.b16 %v346
        %v492 = vunpack.c.h.b16 %v346
        %v493 = vunpack.c.l.b16 %v347
        %v494 = vunpack.c.h.b16 %v347
        %v495 = vunpack.c.l.b16 %v348
        %v496 = vunpack.c.h.b16 %v348
        %v497 = vunpack.c.l.b16 %v349
        %v498 = vunpack.c.h.b16 %v349
        %v499 = vunpack.c.l.b16 %v350
        %v500 = vunpack.c.h.b16 %v350
        %v501 = vunpack.c.l.b16 %v351
        %v502 = vunpack.c.h.b16 %v351
        %v503 = vunpack.c.l.b16 %v352
        %v504 = vunpack.c.h.b16 %v352
        %v505 = vunpack.c.l.b16 %v353
        %v506 = vunpack.c.h.b16 %v353
        %v507 = vunpack.c.l.b16 %v354
        %v508 = vunpack.c.h.b16 %v354
        %v509 = vunpack.c.l.b16 %v355
        %v510 = vunpack.c.h.b16 %v355
        %v511 = vunpack.c.l.b16 %v356
        %v512 = vunpack.c.h.b16 %v356
        %v513 = vunpack.c.l.b16 %v357
        %v514 = vunpack.c.h.b16 %v357
        %v515 = vunpack.c.l.b16 %v358
        %v516 = vunpack.c.h.b16 %v358
        %v517 = vunpack.c.l.b16 %v359
        %v518 = vunpack.c.h.b16 %v359
        %v519 = vunpack.c.l.b16 %v360
        %v520 = vunpack.c.h.b16 %v360
        %v521 = vunpack.c.l.b16 %v361
        %v522 = vunpack.c.h.b16 %v361
        %v523 = vunpack.c.l.b16 %v362
        %v524 = vunpack.c.h.b16 %v362
        %v525 = vunpack.c.l.b16 %v363
        %v526 = vunpack.c.h.b16 %v363
        %v527 = vunpack.c.l.b16 %v364
        %v528 = vunpack.c.h.b16 %v364
        %v529 = vunpack.c.l.b16 %v365
        %v530 = vunpack.c.h.b16 %v365
        %v531 = vunpack.c.l.b16 %v366
        %v532 = vunpack.c.h.b16 %v366
        %v533 = vunpack.c.l.b16 %v367
        %v534 = vunpack.c.h.b16 %v367
        %v535 = vunpack.c.l.b16 %v368
        %v536 = vunpack.c.h.b16 %v368
        %v537 = vunpack.c.l.b16 %v369
        %v538 = vunpack.c.h.b16 %v369
        %v539 = vunpack.c.l.b16 %v370
        %v540 = vunpack.c.h.b16 %v370
        %v541 = vunpack.c.l.b16 %v371
        %v542 = vunpack.c.h.b16 %v371
        %v543 = vunpack.c.l.b16 %v372
        %v544 = vunpack.c.h.b16 %v372
        %v545 = vunpack.c.l.b16 %v373
        %v546 = vunpack.c.h.b16 %v373
        %v547 = vunpack.c.l.b16 %v374
        %v548 = vunpack.c.h.b16 %v374
        %v549 = vunpack.c.l.b16 %v375
        %v550 = vunpack.c.h.b16 %v375
        %v551 = vunpack.c.l.b16 %v376
        %v552 = vunpack.c.h.b16 %v376
        %v553 = vunpack.c.l.b16 %v377
        %v554 = vunpack.c.h.b16 %v377
        %v555 = vunpack.c.l.b16 %v378
        %v556 = vunpack.c.h.b16 %v378
        %v557 = vunpack.c.l.b16 %v379
        %v558 = vunpack.c.h.b16 %v379
        %v559 = vunpack.c.l.b16 %v380
        %v560 = vunpack.c.h.b16 %v380
        %v561 = vunpack.c.l.b16 %v381
        %v562 = vunpack.c.h.b16 %v381
        %v563 = vunpack.c.l.b16 %v382
        %v564 = vunpack.c.h.b16 %v382
        %v565 = vunpack.c.l.b16 %v383
        %v566 = vunpack.c.h.b16 %v383
        %v567 = vunpack.c.l.b16 %v384
        %v568 = vunpack.c.h.b16 %v384
        %v569 = vunpack.c.l.b16 %v385
        %v570 = vunpack.c.h.b16 %v385
        %v571 = vunpack.c.l.b16 %v386
        %v572 = vunpack.c.h.b16 %v386
        %v573 = vunpack.c.l.b16 %v387
        %v574 = vunpack.c.h.b16 %v387
        %v575 = vunpack.c.l.b16 %v388
        %v576 = vunpack.c.h.b16 %v388
        %v577 = vunpack.c.l.b16 %v389
        %v578 = vunpack.c.h.b16 %v389
        %v579 = vunpack.c.l.b16 %v390
        %v580 = vunpack.c.h.b16 %v390
        %v581 = vunpack.c.l.b16 %v391
        %v582 = vunpack.c.h.b16 %v391
        %v583 = vunpack.c.l.b16 %v392
        %v584 = vunpack.c.h.b16 %v392
        %v585 = vunpack.c.l.b16 %v393
        %v586 = vunpack.c.h.b16 %v393
        %v587 = vunpack.c.l.b16 %v394
        %v588 = vunpack.c.h.b16 %v394
        %v589 = vunpack.c.l.b16 %v395
        %v590 = vunpack.c.h.b16 %v395
        %v591 = vunpack.c.l.b16 %v396
        %v592 = vunpack.c.h.b16 %v396
        %v593 = vunpack.c.l.b16 %v397
        %v594 = vunpack.c.h.b16 %v397
        %v595 = vunpack.c.l.b16 %v398
        %v596 = vunpack.c.h.b16 %v398
        %v597 = vunpack.c.l.b16 %v399
        %v598 = vunpack.c.h.b16 %v399
        %v599 = vunpack.c.l.b16 %v400
        %v600 = vunpack.c.h.b16 %v400
        %v601 = vunpack.c.l.b16 %v401
        %v602 = vunpack.c.h.b16 %v401
        %v603 = vunpack.c.l.b16 %v402
        %v604 = vunpack.c.h.b16 %v402
        %v605 = vunpack.c.l.b16 %v403
        %v606 = vunpack.c.h.b16 %v403
        %v607 = vunpack.c.l.b16 %v404
        %v608 = vunpack.c.h.b16 %v404
        %v609 = vunpack.c.l.b16 %v405
        %v610 = vunpack.c.h.b16 %v405
        %v611 = vunpack.c.l.b16 %v406
        %v612 = vunpack.c.h.b16 %v406
        %v613 = vpack.c.b16 %v487, %v485
        %v614 = vpack.c.b16 %v488, %v486
        %v615 = vpack.c.b16 %v491, %v489
        %v616 = vpack.c.b16 %v492, %v490
        %v617 = vpack.c.b16 %v495, %v493
        %v618 = vpack.c.b16 %v496, %v494
        %v619 = vpack.c.b16 %v499, %v497
        %v620 = vpack.c.b16 %v500, %v498
        %v621 = vpack.c.b16 %v503, %v501
        %v622 = vpack.c.b16 %v504, %v502
        %v623 = vpack.c.b16 %v507, %v505
        %v624 = vpack.c.b16 %v508, %v506
        %v625 = vpack.c.b16 %v511, %v509
        %v626 = vpack.c.b16 %v512, %v510
        %v627 = vpack.c.b16 %v515, %v513
        %v628 = vpack.c.b16 %v516, %v514
        %v629 = vpack.c.b16 %v519, %v517
        %v630 = vpack.c.b16 %v520, %v518
        %v631 = vpack.c.b16 %v523, %v521
        %v632 = vpack.c.b16 %v524, %v522
        %v633 = vpack.c.b16 %v527, %v525
        %v634 = vpack.c.b16 %v528, %v526
        %v635 = vpack.c.b16 %v531, %v529
        %v636 = vpack.c.b16 %v532, %v530
        %v637 = vpack.c.b16 %v535, %v533
        %v638 = vpack.c.b16 %v536, %v534
        %v639 = vpack.c.b16 %v539, %v537
        %v640 = vpack.c.b16 %v540, %v538
        %v641 = vpack.c.b16 %v543, %v541
        %v642 = vpack.c.b16 %v544, %v542
        %v643 = vpack.c.b16 %v547, %v545
        %v644 = vpack.c.b16 %v548, %v546
        %v645 = vpack.c.b16 %v551, %v549
        %v646 = vpack.c.b16 %v552, %v550
        %v647 = vpack.c.b16 %v555, %v553
        %v648 = vpack.c.b16 %v556, %v554
        %v649 = vpack.c.b16 %v559, %v557
        %v650 = vpack.c.b16 %v560, %v558
        %v651 = vpack.c.b16 %v563, %v561
        %v652 = vpack.c.b16 %v564, %v562
        %v653 = vpack.c.b16 %v567, %v565
        %v654 = vpack.c.b16 %v568, %v566
        %v655 = vpack.c.b16 %v571, %v569
        %v656 = vpack.c.b16 %v572, %v570
        %v657 = vpack.c.b16 %v575, %v573
        %v658 = vpack.c.b16 %v576, %v574
        %v659 = vpack.c.b16 %v579, %v577
        %v660 = vpack.c.b16 %v580, %v578
        %v661 = vpack.c.b16 %v583, %v581
        %v662 = vpack.c.b16 %v584, %v582
        %v663 = vpack.c.b16 %v587, %v585
        %v664 = vpack.c.b16 %v588, %v586
        %v665 = vpack.c.b16 %v591, %v589
        %v666 = vpack.c.b16 %v592, %v590
        %v667 = vpack.c.b16 %v595, %v593
        %v668 = vpack.c.b16 %v596, %v594
        %v669 = vpack.c.b16 %v599, %v597
        %v670 = vpack.c.b16 %v600, %v598
        %v671 = vpack.c.b16 %v603, %v601
        %v672 = vpack.c.b16 %v604, %v602
        %v673 = vpack.c.b16 %v607, %v605
        %v674 = vpack.c.b16 %v608, %v606
        %v675 = vpack.c.b16 %v611, %v609
        %v676 = vpack.c.b16 %v612, %v610
        %741 = vmatprep.subr.bf16.mxu0 %v614
        %742 = vmatpush1.bf16.msra.mxu0 %v613
        %743 = vmatprep.subr.bf16.mxu0 %v616
        %744 = vmatpush1.bf16.msra.mxu0 %v615
        %745 = vmatprep.subr.bf16.mxu0 %v618
        %746 = vmatpush1.bf16.msra.mxu0 %v617
        %747 = vmatprep.subr.bf16.mxu0 %v620
        %748 = vmatpush1.bf16.msra.mxu0 %v619
        %749 = vmatprep.subr.bf16.mxu0 %v622
        %750 = vmatpush1.bf16.msra.mxu0 %v621
        %751 = vmatprep.subr.bf16.mxu0 %v624
        %752 = vmatpush1.bf16.msra.mxu0 %v623
        %753 = vmatprep.subr.bf16.mxu0 %v626
        %754 = vmatpush1.bf16.msra.mxu0 %v625
        %755 = vmatprep.subr.bf16.mxu0 %v628
        %756 = vmatpush1.bf16.msra.mxu0 %v627
        %757 = vmatprep.subr.bf16.mxu0 %v630
        %758 = vmatpush1.bf16.msra.mxu0 %v629
        %759 = vmatprep.subr.bf16.mxu0 %v632
        %760 = vmatpush1.bf16.msra.mxu0 %v631
        %761 = vmatprep.subr.bf16.mxu0 %v634
        %762 = vmatpush1.bf16.msra.mxu0 %v633
        %763 = vmatprep.subr.bf16.mxu0 %v636
        %764 = vmatpush1.bf16.msra.mxu0 %v635
        %765 = vmatprep.subr.bf16.mxu0 %v638
        %766 = vmatpush1.bf16.msra.mxu0 %v637
        %767 = vmatprep.subr.bf16.mxu0 %v640
        %768 = vmatpush1.bf16.msra.mxu0 %v639
        %769 = vmatprep.subr.bf16.mxu0 %v642
        %770 = vmatpush1.bf16.msra.mxu0 %v641
        %771 = vmatprep.subr.bf16.mxu0 %v644
        %772 = vmatpush1.bf16.msra.mxu0 %v643
        %773 = vmatprep.mubr.bf16.mxu0 %v414
        %774 = vmatmul.mubr.bf16.gmra.mrb[0].mxu0 %v413
        %v775 = vpop.f32.mrb[0].mxu0
        %v776 = vadd.f32 0.0, %v775
        %v777 = vpop.f32.mrb[0].mxu0
        %v778 = vadd.f32 0.0, %v777
        %v779 = vpop.f32.mrb[0].mxu0
        %v780 = vpop.f32.mrb[0].mxu0
        %781 = vdwg.mxu0
        %782 = vmatprep.subr.bf16.mxu0 %v646
        %783 = vmatpush1.bf16.msra.mxu0 %v645
        %784 = vmatprep.subr.bf16.mxu0 %v648
        %785 = vmatpush1.bf16.msra.mxu0 %v647
        %786 = vmatprep.subr.bf16.mxu0 %v650
        %787 = vmatpush1.bf16.msra.mxu0 %v649
        %788 = vmatprep.subr.bf16.mxu0 %v652
        %789 = vmatpush1.bf16.msra.mxu0 %v651
        %790 = vmatprep.subr.bf16.mxu0 %v654
        %791 = vmatpush1.bf16.msra.mxu0 %v653
        %792 = vmatprep.subr.bf16.mxu0 %v656
        %793 = vmatpush1.bf16.msra.mxu0 %v655
        %794 = vmatprep.subr.bf16.mxu0 %v658
        %795 = vmatpush1.bf16.msra.mxu0 %v657
        %796 = vmatprep.subr.bf16.mxu0 %v660
        %797 = vmatpush1.bf16.msra.mxu0 %v659
        %798 = vmatprep.subr.bf16.mxu0 %v662
        %799 = vmatpush1.bf16.msra.mxu0 %v661
        %800 = vmatprep.subr.bf16.mxu0 %v664
        %801 = vmatpush1.bf16.msra.mxu0 %v663
        %802 = vmatprep.subr.bf16.mxu0 %v666
        %803 = vmatpush1.bf16.msra.mxu0 %v665
        %804 = vmatprep.subr.bf16.mxu0 %v668
        %805 = vmatpush1.bf16.msra.mxu0 %v667
        %806 = vmatprep.subr.bf16.mxu0 %v670
        %807 = vmatpush1.bf16.msra.mxu0 %v669
        %808 = vmatprep.subr.bf16.mxu0 %v672
        %809 = vmatpush1.bf16.msra.mxu0 %v671
        %810 = vmatprep.subr.bf16.mxu0 %v674
        %811 = vmatpush1.bf16.msra.mxu0 %v673
        %812 = vmatprep.subr.bf16.mxu0 %v676
        %813 = vmatpush1.bf16.msra.mxu0 %v675
        %814 = vmatprep.mubr.bf16.mxu0 %v416
        %815 = vmatmul.mubr.bf16.gmra.mrb[0].mxu0 %v415
        %v816 = vpop.f32.mrb[0].mxu0
        %v817 = vadd.f32 %v776, %v816
        %v818 = vpop.f32.mrb[0].mxu0
        %v819 = vadd.f32 %v778, %v818
        %v820 = vpop.f32.mrb[0].mxu0
        %v821 = vpop.f32.mrb[0].mxu0
        %822 = vdwg.mxu0
        %v823 = vadd.f32 %v339, %v817
        %v824 = vadd.f32 %v340, %v819
        %825 = vst [vmem:[#allocation2] sm:$0xff] %v823
        %826 = vst [vmem:[#allocation2 + $0x8] sm:$0xff] %v824
        %p827 = scmp.eq.s32.totalorder %s27, 3
        // Predicated region
        $region37: #{conv_generator_forward.9} parent=27 // pred_check
          %p828 = pneg %p827
        $region38: #{conv_generator_forward.9} parent=27 // pred_check_branch
          %830 = sbr.rel (%p828) target = $region40
        $region39: #{conv_generator_forward.9} parent=27 // pred_region
          %v831 = vld [vmem:[#allocation2] sm:$0xff]
          %v832 = vld [vmem:[#allocation2 + $0x8] sm:$0xff]
          %833 = vst [vmem:[%s317] sm:$0xff] %v831
          %834 = vst [vmem:[%s317 + $0x8] sm:$0xff] %v832
          %v835 = vrot.slane %v831, 4
          %v836 = vadd.f32 %v831, %v835
          %v837 = vrot.slane %v836, 2
          %v838 = vadd.f32 %v836, %v837
          %v839 = vrot.slane %v838, 1
          %v840 = vadd.f32 %v838, %v839
          %v841 = vrot.slane %v832, 4
          %v842 = vadd.f32 %v832, %v841
          %v843 = vrot.slane %v842, 2
          %v844 = vadd.f32 %v842, %v843
          %v845 = vrot.slane %v844, 1
          %v846 = vadd.f32 %v844, %v845
          %v847 = vmul.f32 %v831, %v831
          %v848 = vmul.f32 %v832, %v832
          %v849 = vrot.slane %v847, 4
          %v850 = vadd.f32 %v847, %v849
          %v851 = vrot.slane %v850, 2
          %v852 = vadd.f32 %v850, %v851
          %v853 = vrot.slane %v852, 1
          %v854 = vadd.f32 %v852, %v853
          %v855 = vrot.slane %v848, 4
          %v856 = vadd.f32 %v848, %v855
          %v857 = vrot.slane %v856, 2
          %v858 = vadd.f32 %v856, %v857
          %v859 = vrot.slane %v858, 1
          %v860 = vadd.f32 %v858, %v859
          %vm861 = vcmask 1040384
          %v862 = vsel %vm861, %v840, %v854
          %v863 = vsel %vm861, %v846, %v860
          %v866 = vcombine.low %v862, %v863
          %v868 = vunpack.c.l.s4 1983009808
          %v869 = vunpack.c.0.s8 %v868
          %v870 = vlaneseq
          %v871 = vshrl.u32 %v870, 7
          %v872 = vsub.s32 %v869, %v871
          %v873 = vrot.slane %v866, %v872
          %875 = vst [vmem:[%s331] sm:$0xf] %v873
        $region40: #{conv_generator_forward.9} parent=27 // pred_fallthru
          _
        %s876 = smul.u32 2, %s26
        %p877 = scmp.lt.s32.totalorder %s24, 3
        %s878 = scalar_select %p877, %s24, 3
        %p879 = scmp.lt.s32.totalorder %s25, 0
        %s880 = scalar_select %p879, %s25, 0
        %p881 = scmp.lt.s32.totalorder %s876, 1
        %s882 = scalar_select %p881, %s876, 1
        %s883 = smul.addr %s880, 2
        %s884 = sadd.s32 %s882, %s883
        %s885 = smul.addr %s878, 2
        %s886 = sadd.s32 %s884, %s885
        %s887 = smul.addr %s886, 8
        %s888 = scalar_lea.vmem %s2, %s887
        %s889 = smul.u32 2, %s26
        %p890 = scmp.lt.s32.totalorder %s24, 3
        %s891 = scalar_select %p890, %s24, 3
        %p892 = scmp.lt.s32.totalorder %s25, 0
        %s893 = scalar_select %p892, %s25, 0
        %p894 = scmp.lt.s32.totalorder %s889, 1
        %s895 = scalar_select %p894, %s889, 1
        %s896 = smul.addr %s893, 2
        %s897 = sadd.s32 %s895, %s896
        %s898 = smul.addr %s891, 2
        %s899 = sadd.s32 %s897, %s898
        %s900 = smul.addr %s899, 2
        %s901 = scalar_lea.vmem %s3, %s900
        // Predicated region
        $region41: #{conv_generator_forward.9} parent=27 // pred_check
          %p902 = pneg %p126
        $region42: #{conv_generator_forward.9} parent=27 // pred_check_branch
          %904 = sbr.rel (%p902) target = $region44
        $region43: #{conv_generator_forward.9} parent=27 // pred_region
          %s905 = smul.u32 2, %s26
        $region44: #{conv_generator_forward.9} parent=27 // pred_fallthru
          _
        // Predicated region
        $region45: #{conv_generator_forward.9} parent=27 // pred_check
          %p906 = pneg %p156
        $region46: #{conv_generator_forward.9} parent=27 // pred_check_branch
          %908 = sbr.rel (%p906) target = $region48
        $region47: #{conv_generator_forward.9} parent=27 // pred_region
          %s909 = smul.u32 2, %s26
        $region48: #{conv_generator_forward.9} parent=27 // pred_fallthru
          _
      $region28: #{conv_generator_forward.9} parent=5 // pred_fallthru
        _
      %p910 = scmp.le.s32.totalorder 2, %s13
      // Predicated region
      $region49: #{conv_generator_forward.9} parent=5 // pred_check
        %p911 = pneg %p910
      $region50: #{conv_generator_forward.9} parent=5 // pred_check_branch
        %913 = sbr.rel (%p911) target = $region52
      $region51: #{conv_generator_forward.9} parent=5 // pred_region
        %s914 = ssub.s32 %s13, 2
        // Predicated region
        $region53: #{conv_generator_forward.9} parent=51 // pred_check
          %p915 = pneg %p132
        $region54: #{conv_generator_forward.9} parent=51 // pred_check_branch
          %917 = sbr.rel (%p915) target = $region56
        $region55: #{conv_generator_forward.9} parent=51 // pred_region
          %s918 = smul.u32 2, %s30
          %p919 = scmp.lt.s32.totalorder %s28, 3
          %s920 = scalar_select %p919, %s28, 3
          %p921 = scmp.lt.s32.totalorder %s29, 0
          %s922 = scalar_select %p921, %s29, 0
          %p923 = scmp.lt.s32.totalorder %s918, 1
          %s924 = scalar_select %p923, %s918, 1
          %s925 = smul.addr %s922, 2
          %s926 = sadd.s32 %s924, %s925
          %s927 = smul.addr %s920, 2
          %s928 = sadd.s32 %s926, %s927
          %s929 = smul.addr %s928, 8
          %s930 = scalar_lea.vmem %s2, %s929
        $region56: #{conv_generator_forward.9} parent=51 // pred_fallthru
          _
        // Predicated region
        $region57: #{conv_generator_forward.9} parent=51 // pred_check
          %p931 = pneg %p162
        $region58: #{conv_generator_forward.9} parent=51 // pred_check_branch
          %933 = sbr.rel (%p931) target = $region60
        $region59: #{conv_generator_forward.9} parent=51 // pred_region
          %s934 = smul.u32 2, %s30
          %p935 = scmp.lt.s32.totalorder %s28, 3
          %s936 = scalar_select %p935, %s28, 3
          %p937 = scmp.lt.s32.totalorder %s29, 0
          %s938 = scalar_select %p937, %s29, 0
          %p939 = scmp.lt.s32.totalorder %s934, 1
          %s940 = scalar_select %p939, %s934, 1
          %s941 = smul.addr %s938, 2
          %s942 = sadd.s32 %s940, %s941
          %s943 = smul.addr %s936, 2
          %s944 = sadd.s32 %s942, %s943
          %s945 = smul.addr %s944, 2
          %s946 = scalar_lea.vmem %s3, %s945
        $region60: #{conv_generator_forward.9} parent=51 // pred_fallthru
          _
      $region52: #{conv_generator_forward.9} parent=5 // pred_fallthru
        _
    $region6: #{conv_generator_forward.9} parent=1 // loop_footer
      %s17 = sadd.s32 1, %s13
    $region7: #{conv_generator_forward.9} parent=1 // loop_footer_branch
      %12 = sbr.rel target = $region3
    $region8: #{conv_generator_forward.9} parent=1 // loop_exit
      _
    %947 = vsyncpa [#allocation4], 1
    %s948 = scalar_lea.sflag [#allocation4], 1
    %949 = vsyncpa %s948, 1

// kernel: conv_generator_forward.12
$region0: #{conv_generator_forward.12}
  #allocation0 [shape = 'u32[]', space=smem, size = 0x4, offset = 0x4, fixed_abs, tag = 'smem constant byte address 0x4 - core index']
  #allocation1 [shape = 'u32[144,128]{1,0:T(1,128)}', space=vmem, size = 0x12000, scoped, tag = 'internal scratch']
  %s0 = inlined_call_operand.vmem [shape: f32[128,128], index: 0, kind: input, shape index: {}]
  %s1 = inlined_call_operand.vmem [shape: f32[1,128], index: 1, kind: input, shape index: {}]
  %s2 = inlined_call_operand.vmem [shape: f32[1,128], index: 2, kind: input, shape index: {}]
  %s3 = inlined_call_operand.vmem [shape: bf16[128,128], index: 3, kind: output, shape index: {}]
  %s4 = sld [smem:[#allocation0]]
  $region22: #{conv_generator_forward.12} parent=0
    _
  %s6 = ssub.s32 1, %s4
  %s7 = scalar_select 0, %s6, %s4
  // Predicated region
  $region2: #{conv_generator_forward.12} parent=0 // pred_check
    _
  $region3: #{conv_generator_forward.12} parent=0 // pred_check_branch
    %9 = sbr.rel (0) target = $region5
  $region4: #{conv_generator_forward.12} parent=0 // pred_region
    _
  $region5: #{conv_generator_forward.12} parent=0 // pred_fallthru
    _
  // Predicated region
  $region6: #{conv_generator_forward.12} parent=0 // pred_check
    _
  $region7: #{conv_generator_forward.12} parent=0 // pred_check_branch
    %11 = sbr.rel (0) target = $region9
  $region8: #{conv_generator_forward.12} parent=0 // pred_region
    _
  $region9: #{conv_generator_forward.12} parent=0 // pred_fallthru
    _
  // Predicated region
  $region10: #{conv_generator_forward.12} parent=0 // pred_check
    _
  $region11: #{conv_generator_forward.12} parent=0 // pred_check_branch
    %13 = sbr.rel (0) target = $region13
  $region12: #{conv_generator_forward.12} parent=0 // pred_region
    _
  $region13: #{conv_generator_forward.12} parent=0 // pred_fallthru
    _
  %v14 = vld [vmem:[%s0] sm:$0xff]
  %v15 = vld [vmem:[%s0 + $0x8] sm:$0xff]
  %v16 = vld [vmem:[%s0 + $0x10] sm:$0xff]
  %v17 = vld [vmem:[%s0 + $0x18] sm:$0xff]
  %v18 = vld [vmem:[%s0 + $0x20] sm:$0xff]
  %v19 = vld [vmem:[%s0 + $0x28] sm:$0xff]
  %v20 = vld [vmem:[%s0 + $0x30] sm:$0xff]
  %v21 = vld [vmem:[%s0 + $0x38] sm:$0xff]
  %v22 = vld [vmem:[%s0 + $0x40] sm:$0xff]
  %v23 = vld [vmem:[%s0 + $0x48] sm:$0xff]
  %v24 = vld [vmem:[%s0 + $0x50] sm:$0xff]
  %v25 = vld [vmem:[%s0 + $0x58] sm:$0xff]
  %v26 = vld [vmem:[%s0 + $0x60] sm:$0xff]
  %v27 = vld [vmem:[%s0 + $0x68] sm:$0xff]
  %v28 = vld [vmem:[%s0 + $0x70] sm:$0xff]
  %v29 = vld [vmem:[%s0 + $0x78] sm:$0xff]
  %v30 = vld [vmem:[%s1] sm:$0x1]
  %v32 = vlaneseq
  %v33 = vshrl.u32 %v32, 7
  %v34 = vsub.s32 0, %v33
  %v35 = vrot.slane %v30, %v34
  %v37 = vmul.f32 %v14, %v35
  %v38 = vmul.f32 %v15, %v35
  %v39 = vmul.f32 %v16, %v35
  %v40 = vmul.f32 %v17, %v35
  %v41 = vmul.f32 %v18, %v35
  %v42 = vmul.f32 %v19, %v35
  %v43 = vmul.f32 %v20, %v35
  %v44 = vmul.f32 %v21, %v35
  %v45 = vmul.f32 %v22, %v35
  %v46 = vmul.f32 %v23, %v35
  %v47 = vmul.f32 %v24, %v35
  %v48 = vmul.f32 %v25, %v35
  %v49 = vmul.f32 %v26, %v35
  %v50 = vmul.f32 %v27, %v35
  %v51 = vmul.f32 %v28, %v35
  %v52 = vmul.f32 %v29, %v35
  %v53 = vld [vmem:[%s2] sm:$0x1]
  %v55 = vlaneseq
  %v56 = vshrl.u32 %v55, 7
  %v57 = vsub.s32 0, %v56
  %v58 = vrot.slane %v53, %v57
  %v60 = vadd.f32 %v37, %v58
  %v61 = vadd.f32 %v38, %v58
  %v62 = vadd.f32 %v39, %v58
  %v63 = vadd.f32 %v40, %v58
  %v64 = vadd.f32 %v41, %v58
  %v65 = vadd.f32 %v42, %v58
  %v66 = vadd.f32 %v43, %v58
  %v67 = vadd.f32 %v44, %v58
  %v68 = vadd.f32 %v45, %v58
  %v69 = vadd.f32 %v46, %v58
  %v70 = vadd.f32 %v47, %v58
  %v71 = vadd.f32 %v48, %v58
  %v72 = vadd.f32 %v49, %v58
  %v73 = vadd.f32 %v50, %v58
  %v74 = vadd.f32 %v51, %v58
  %v75 = vadd.f32 %v52, %v58
  %v76 = vmax.f32 %v60, 0.0
  %v77 = vmax.f32 %v61, 0.0
  %v78 = vmax.f32 %v62, 0.0
  %v79 = vmax.f32 %v63, 0.0
  %v80 = vmax.f32 %v64, 0.0
  %v81 = vmax.f32 %v65, 0.0
  %v82 = vmax.f32 %v66, 0.0
  %v83 = vmax.f32 %v67, 0.0
  %v84 = vmax.f32 %v68, 0.0
  %v85 = vmax.f32 %v69, 0.0
  %v86 = vmax.f32 %v70, 0.0
  %v87 = vmax.f32 %v71, 0.0
  %v88 = vmax.f32 %v72, 0.0
  %v89 = vmax.f32 %v73, 0.0
  %v90 = vmax.f32 %v74, 0.0
  %v91 = vmax.f32 %v75, 0.0
  %v92 = vpack.c.bf16 %v77, %v76
  %v93 = vpack.c.bf16 %v79, %v78
  %v94 = vpack.c.bf16 %v81, %v80
  %v95 = vpack.c.bf16 %v83, %v82
  %v96 = vpack.c.bf16 %v85, %v84
  %v97 = vpack.c.bf16 %v87, %v86
  %v98 = vpack.c.bf16 %v89, %v88
  %v99 = vpack.c.bf16 %v91, %v90
  %v108 = vunpack.c.l.b16 %v92
  %v109 = vunpack.c.h.b16 %v92
  %v110 = vunpack.c.l.b16 %v93
  %v111 = vunpack.c.h.b16 %v93
  %v112 = vunpack.c.l.b16 %v94
  %v113 = vunpack.c.h.b16 %v94
  %v114 = vunpack.c.l.b16 %v95
  %v115 = vunpack.c.h.b16 %v95
  %v116 = vunpack.c.l.b16 %v96
  %v117 = vunpack.c.h.b16 %v96
  %v118 = vunpack.c.l.b16 %v97
  %v119 = vunpack.c.h.b16 %v97
  %v120 = vunpack.c.l.b16 %v98
  %v121 = vunpack.c.h.b16 %v98
  %v122 = vunpack.c.l.b16 %v99
  %v123 = vunpack.c.h.b16 %v99
  %v124 = vpack.c.b16 %v108, %v108
  %v125 = vpack.c.b16 %v109, %v109
  %v126 = vpack.c.b16 %v110, %v110
  %v127 = vpack.c.b16 %v111, %v111
  %v128 = vpack.c.b16 %v112, %v112
  %v129 = vpack.c.b16 %v113, %v113
  %v130 = vpack.c.b16 %v114, %v114
  %v131 = vpack.c.b16 %v115, %v115
  %v132 = vpack.c.b16 %v116, %v116
  %v133 = vpack.c.b16 %v117, %v117
  %v134 = vpack.c.b16 %v118, %v118
  %v135 = vpack.c.b16 %v119, %v119
  %v136 = vpack.c.b16 %v120, %v120
  %v137 = vpack.c.b16 %v121, %v121
  %v138 = vpack.c.b16 %v122, %v122
  %v139 = vpack.c.b16 %v123, %v123
  %156 = vst [vmem:[%s3] sm:$0xf] %v124
  %157 = vst [vmem:[%s3 + $0x4] sm:$0xf] %v125
  %158 = vst [vmem:[%s3 + $0x8] sm:$0xf] %v126
  %159 = vst [vmem:[%s3 + $0xc] sm:$0xf] %v127
  %160 = vst [vmem:[%s3 + $0x10] sm:$0xf] %v128
  %161 = vst [vmem:[%s3 + $0x14] sm:$0xf] %v129
  %162 = vst [vmem:[%s3 + $0x18] sm:$0xf] %v130
  %163 = vst [vmem:[%s3 + $0x1c] sm:$0xf] %v131
  %164 = vst [vmem:[%s3 + $0x20] sm:$0xf] %v132
  %165 = vst [vmem:[%s3 + $0x24] sm:$0xf] %v133
  %166 = vst [vmem:[%s3 + $0x28] sm:$0xf] %v134
  %167 = vst [vmem:[%s3 + $0x2c] sm:$0xf] %v135
  %168 = vst [vmem:[%s3 + $0x30] sm:$0xf] %v136
  %169 = vst [vmem:[%s3 + $0x34] sm:$0xf] %v137
  %170 = vst [vmem:[%s3 + $0x38] sm:$0xf] %v138
  %171 = vst [vmem:[%s3 + $0x3c] sm:$0xf] %v139
  // Predicated region
  $region14: #{conv_generator_forward.12} parent=0 // pred_check
    _
  $region15: #{conv_generator_forward.12} parent=0 // pred_check_branch
    %173 = sbr.rel (0) target = $region17
  $region16: #{conv_generator_forward.12} parent=0 // pred_region
    _
  $region17: #{conv_generator_forward.12} parent=0 // pred_fallthru
    _
  // Predicated region
  $region18: #{conv_generator_forward.12} parent=0 // pred_check
    _
  $region19: #{conv_generator_forward.12} parent=0 // pred_check_branch
    %175 = sbr.rel (0) target = $region21
  $region20: #{conv_generator_forward.12} parent=0 // pred_region
    _
  $region21: #{conv_generator_forward.12} parent=0 // pred_fallthru
    _

// kernel: conv_generator_forward.11
$region0: #{conv_generator_forward.11}
  #allocation0 [shape = 'u32[]', space=smem, size = 0x4, offset = 0x4, fixed_abs, tag = 'smem constant byte address 0x4 - core index']
  #allocation1 [shape = 'u32[144,128]{1,0:T(1,128)}', space=vmem, size = 0x12000, scoped, tag = 'internal scratch']
  #allocation2 [shape = 'f32[32,128]{1,0:T(8,128)}', space=vmem, size = 0x4000, scoped, tag = 'scratch operand']
  %s0 = inlined_call_operand.vmem [shape: bf16[4,32,1024], index: 0, kind: input, shape index: {}]
  %s1 = inlined_call_operand.vmem [shape: bf16[4,1024,128], index: 1, kind: input, shape index: {}]
  %s2 = inlined_call_operand.vmem [shape: f32[4,32,128], index: 2, kind: output, shape index: {0}]
  %s3 = inlined_call_operand.vmem [shape: f32[4,1,2,128], index: 3, kind: output, shape index: {1}]
  %4 = xla_tuple %s2, %s3
  %s5 = sld [smem:[#allocation0]]
  $region80: #{conv_generator_forward.11} parent=0
    _
  %s7 = ssub.s32 1, %s5
  %s8 = scalar_select 0, %s7, %s5
  $region1: #{conv_generator_forward.11} parent=0
    #allocation3 [shape = 'u8[65536]{0}', space=vmem, size = 0x10000, scoped, tag = 'input window, operand 0']
    loop: start=0, step=1, limit=10
    $region2: #{conv_generator_forward.11} parent=1 // loop_pre_header
      _
    $region3: #{conv_generator_forward.11} parent=1 // loop_header
      %s10 = sphi 0, %s14
      %p11 = scmp.ge.s32.totalorder %s10, 10
      %s17 = sphi 0, %s43
      %s18 = sphi 0, %s39
      %s19 = sphi 0, %s35
      %s20 = sphi 0, %s31
      %s21 = sphi 0, %s17
      %s22 = sphi 0, %s18
      %s23 = sphi 0, %s19
      %s24 = sphi 0, %s20
      %s25 = sphi 0, %s21
      %s26 = sphi 0, %s22
      %s27 = sphi 0, %s23
      %s28 = sphi 0, %s24
      %s50 = sphi 0, %s52
      %s53 = sphi 0, %s50
      %s54 = sphi 0, %s53
      %s70 = sphi 0, %s54
      %s80 = sphi 0, %s82
      %s83 = sphi 0, %s80
      %s84 = sphi 0, %s83
      %s100 = sphi 0, %s84
      %s110 = sphi 0, %s112
      %s113 = sphi 0, %s110
      %s114 = sphi 0, %s113
      %s130 = sphi 0, %s114
      %s140 = sphi 0, %s142
      %s143 = sphi 0, %s140
      %s144 = sphi 0, %s143
      %s160 = sphi 0, %s144
    $region4: #{conv_generator_forward.11} parent=1 // loop_header_branch
      %13 = sbr.rel (%p11) target = $region8
    $region5: #{conv_generator_forward.11} parent=1 // loop_body
      %s15 = ssub.s32 %s10, 1
      %s16 = ssub.s32 %s10, 2
      %s29 = sadd.s32 1, %s20
      %p30 = scmp.ge.s32.totalorder %s29, 2
      %s31 = scalar_select %p30, 0, %s29
      %s32 = sadd.s32 1, %s19
      %s33 = scalar_select %p30, %s32, %s19
      %p34 = scmp.ge.s32.totalorder %s33, 1
      %s35 = scalar_select %p34, 0, %s33
      %s36 = sadd.s32 1, %s18
      %s37 = scalar_select %p34, %s36, %s18
      %p38 = scmp.ge.s32.totalorder %s37, 1
      %s39 = scalar_select %p38, 0, %s37
      %s40 = sadd.s32 1, %s17
      %s41 = scalar_select %p38, %s40, %s17
      %p42 = scmp.ge.s32.totalorder %s41, 4
      %s43 = scalar_select %p42, 0, %s41
      %s44 = ssub.s32 %s17, %s43
      %s45 = ssub.s32 %s18, %s39
      %s46 = sor.u32 %s44, %s45
      %s47 = ssub.s32 %s20, %s31
      %s48 = sor.u32 %s46, %s47
      %p49 = scmp.eq.s32.totalorder %s48, 0
      %s51 = sadd.s32 %s50, 1
      %s52 = scalar_select %p49, %s50, %s51
      %p55 = pneg %p49
      %p56 = scmp.eq.s32.totalorder %s10, 7
      %p57 = por %p55, %p56
      %p58 = scmp.ne.s32.totalorder %s50, %s53
      %p59 = scmp.eq.s32.totalorder %s10, 0
      %p60 = por %p58, %p59
      %p61 = scmp.ne.s32.totalorder %s50, %s53
      %p62 = scmp.eq.s32.totalorder %s15, 7
      %p63 = por %p61, %p62
      %p64 = scmp.ne.s32.totalorder %s53, %s54
      %p65 = scmp.eq.s32.totalorder %s15, 0
      %p66 = por %p64, %p65
      %p67 = scmp.ne.s32.totalorder %s53, %s54
      %p68 = scmp.eq.s32.totalorder %s16, 7
      %p69 = por %p67, %p68
      %p71 = scmp.ne.s32.totalorder %s54, %s70
      %p72 = scmp.eq.s32.totalorder %s16, 0
      %p73 = por %p71, %p72
      %s74 = ssub.s32 %s17, %s43
      %s75 = ssub.s32 %s20, %s31
      %s76 = sor.u32 %s74, %s75
      %s77 = ssub.s32 %s19, %s35
      %s78 = sor.u32 %s76, %s77
      %p79 = scmp.eq.s32.totalorder %s78, 0
      %s81 = sadd.s32 %s80, 1
      %s82 = scalar_select %p79, %s80, %s81
      %p85 = pneg %p79
      %p86 = scmp.eq.s32.totalorder %s10, 7
      %p87 = por %p85, %p86
      %p88 = scmp.ne.s32.totalorder %s80, %s83
      %p89 = scmp.eq.s32.totalorder %s10, 0
      %p90 = por %p88, %p89
      %p91 = scmp.ne.s32.totalorder %s80, %s83
      %p92 = scmp.eq.s32.totalorder %s15, 7
      %p93 = por %p91, %p92
      %p94 = scmp.ne.s32.totalorder %s83, %s84
      %p95 = scmp.eq.s32.totalorder %s15, 0
      %p96 = por %p94, %p95
      %p97 = scmp.ne.s32.totalorder %s83, %s84
      %p98 = scmp.eq.s32.totalorder %s16, 7
      %p99 = por %p97, %p98
      %p101 = scmp.ne.s32.totalorder %s84, %s100
      %p102 = scmp.eq.s32.totalorder %s16, 0
      %p103 = por %p101, %p102
      %s104 = ssub.s32 %s17, %s43
      %s105 = ssub.s32 %s18, %s39
      %s106 = sor.u32 %s104, %s105
      %s107 = ssub.s32 %s19, %s35
      %s108 = sor.u32 %s106, %s107
      %p109 = scmp.eq.s32.totalorder %s108, 0
      %s111 = sadd.s32 %s110, 1
      %s112 = scalar_select %p109, %s110, %s111
      %p115 = pneg %p109
      %p116 = scmp.eq.s32.totalorder %s10, 7
      %p117 = por %p115, %p116
      %p118 = scmp.ne.s32.totalorder %s110, %s113
      %p119 = scmp.eq.s32.totalorder %s10, 0
      %p120 = por %p118, %p119
      %p121 = scmp.ne.s32.totalorder %s110, %s113
      %p122 = scmp.eq.s32.totalorder %s15, 7
      %p123 = por %p121, %p122
      %p124 = scmp.ne.s32.totalorder %s113, %s114
      %p125 = scmp.eq.s32.totalorder %s15, 0
      %p126 = por %p124, %p125
      %p127 = scmp.ne.s32.totalorder %s113, %s114
      %p128 = scmp.eq.s32.totalorder %s16, 7
      %p129 = por %p127, %p128
      %p131 = scmp.ne.s32.totalorder %s114, %s130
      %p132 = scmp.eq.s32.totalorder %s16, 0
      %p133 = por %p131, %p132
      %s134 = ssub.s32 %s17, %s43
      %s135 = ssub.s32 %s18, %s39
      %s136 = sor.u32 %s134, %s135
      %s137 = ssub.s32 %s19, %s35
      %s138 = sor.u32 %s136, %s137
      %p139 = scmp.eq.s32.totalorder %s138, 0
      %s141 = sadd.s32 %s140, 1
      %s142 = scalar_select %p139, %s140, %s141
      %p145 = pneg %p139
      %p146 = scmp.eq.s32.totalorder %s10, 7
      %p147 = por %p145, %p146
      %p148 = scmp.ne.s32.totalorder %s140, %s143
      %p149 = scmp.eq.s32.totalorder %s10, 0
      %p150 = por %p148, %p149
      %p151 = scmp.ne.s32.totalorder %s140, %s143
      %p152 = scmp.eq.s32.totalorder %s15, 7
      %p153 = por %p151, %p152
      %p154 = scmp.ne.s32.totalorder %s143, %s144
      %p155 = scmp.eq.s32.totalorder %s15, 0
      %p156 = por %p154, %p155
      %p157 = scmp.ne.s32.totalorder %s143, %s144
      %p158 = scmp.eq.s32.totalorder %s16, 7
      %p159 = por %p157, %p158
      %p161 = scmp.ne.s32.totalorder %s144, %s160
      %p162 = scmp.eq.s32.totalorder %s16, 0
      %p163 = por %p161, %p162
      %p164 = scmp.le.s32.totalorder 1, %s10
      %p165 = scmp.lt.s32.totalorder %s10, 9
      %p166 = pnand %p164, %p165
      %p167 = pneg %p166
      // Predicated region
      $region9: #{conv_generator_forward.11} parent=5 // pred_check
        _
      $region10: #{conv_generator_forward.11} parent=5 // pred_check_branch
        %169 = sbr.rel (%p166) target = $region12
      $region11: #{conv_generator_forward.11} parent=5 // pred_region
        %s170 = ssub.s32 %s10, 1
      $region12: #{conv_generator_forward.11} parent=5 // pred_fallthru
        _
      %p171 = scmp.lt.s32.totalorder %s10, 8
      // Predicated region
      $region13: #{conv_generator_forward.11} parent=5 // pred_check
        %p172 = pneg %p171
      $region14: #{conv_generator_forward.11} parent=5 // pred_check_branch
        %174 = sbr.rel (%p172) target = $region16
      $region15: #{conv_generator_forward.11} parent=5 // pred_region
        // Predicated region
        $region17: #{conv_generator_forward.11} parent=15 // pred_check
          %p175 = pneg %p60
        $region18: #{conv_generator_forward.11} parent=15 // pred_check_branch
          %177 = sbr.rel (%p175) target = $region20
        $region19: #{conv_generator_forward.11} parent=15 // pred_region
          %s178 = sand.u32 %s50, 1
          %s179 = sand.u32 %s50, 1
          %s180 = smul.addr %s179, 64
          %s181 = scalar_lea.vmem [#allocation3], %s180
          %s182 = smul.u32 4, %s18
          %s183 = smul.u32 4, %s20
          %s184 = smul.addr %s182, 8
          %s185 = sadd.s32 %s183, %s184
          %s186 = smul.addr %s17, 32
          %s187 = sadd.s32 %s185, %s186
          %s188 = smul.addr %s187, 4
          %s189 = scalar_lea.vmem %s0, %s188
          // Predicated region
          $region21: #{conv_generator_forward.11} parent=19 // pred_check
            _
          $region22: #{conv_generator_forward.11} parent=19 // pred_check_branch
            %191 = sbr.rel (0) target = $region24
          $region23: #{conv_generator_forward.11} parent=19 // pred_region
            // Predicated region
            $region25: #{conv_generator_forward.11} parent=23 // pred_check
              _
            $region26: #{conv_generator_forward.11} parent=23 // pred_check_branch
              %193 = sbr.rel (0) target = $region28
            $region27: #{conv_generator_forward.11} parent=23 // pred_region
              loop: start=0, step=1, limit=1
              $region29: #{conv_generator_forward.11} parent=27 // loop_pre_header
                _
              $region30: #{conv_generator_forward.11} parent=27 // loop_header
                %s195 = sphi 0, %s199
                %p196 = scmp.ge.s32.totalorder %s195, 1
                %s200 = sphi %s189, %s189
                %s201 = sphi %s181, %s181
              $region31: #{conv_generator_forward.11} parent=27 // loop_header_branch
                %198 = sbr.rel (%p196) target = $region35
              $region32: #{conv_generator_forward.11} parent=27 // loop_body
                %v202 = vld [vmem:[%s200] sm:$0xff]
                %203 = vst [vmem:[%s201] sm:$0xff] %v202
                %v204 = vld [vmem:[%s200 + $0x8] sm:$0xff]
                %205 = vst [vmem:[%s201 + $0x8] sm:$0xff] %v204
                %v206 = vld [vmem:[%s200 + $0x20] sm:$0xff]
                %207 = vst [vmem:[%s201 + $0x10] sm:$0xff] %v206
                %v208 = vld [vmem:[%s200 + $0x28] sm:$0xff]
                %209 = vst [vmem:[%s201 + $0x18] sm:$0xff] %v208
                %v210 = vld [vmem:[%s200 + $0x40] sm:$0xff]
                %211 = vst [vmem:[%s201 + $0x20] sm:$0xff] %v210
                %v212 = vld [vmem:[%s200 + $0x48] sm:$0xff]
                %213 = vst [vmem:[%s201 + $0x28] sm:$0xff] %v212
                %v214 = vld [vmem:[%s200 + $0x60] sm:$0xff]
                %215 = vst [vmem:[%s201 + $0x30] sm:$0xff] %v214
                %v216 = vld [vmem:[%s200 + $0x68] sm:$0xff]
                %217 = vst [vmem:[%s201 + $0x38] sm:$0xff] %v216
              $region33: #{conv_generator_forward.11} parent=27 // loop_footer
                %s199 = sadd.s32 1, %s195
              $region34: #{conv_generator_forward.11} parent=27 // loop_footer_branch
                %194 = sbr.rel target = $region30
              $region35: #{conv_generator_forward.11} parent=27 // loop_exit
                _
            $region28: #{conv_generator_forward.11} parent=23 // pred_fallthru
              _
            // Predicated region
            $region36: #{conv_generator_forward.11} parent=23 // pred_check
              _
            $region37: #{conv_generator_forward.11} parent=23 // pred_check_branch
              %219 = sbr.rel target = $region39
            $region38: #{conv_generator_forward.11} parent=23 // pred_region
              _
            $region39: #{conv_generator_forward.11} parent=23 // pred_fallthru
              _
          $region24: #{conv_generator_forward.11} parent=19 // pred_fallthru
            _
          %220 = vnop
        $region20: #{conv_generator_forward.11} parent=15 // pred_fallthru
          _
        // Predicated region
        $region40: #{conv_generator_forward.11} parent=15 // pred_check
          %p221 = pneg %p90
        $region41: #{conv_generator_forward.11} parent=15 // pred_check_branch
          %223 = sbr.rel (%p221) target = $region43
        $region42: #{conv_generator_forward.11} parent=15 // pred_region
          %s224 = smul.u32 64, %s20
          %p225 = scmp.lt.s32.totalorder %s17, 3
          %s226 = scalar_select %p225, %s17, 3
          %p227 = scmp.lt.s32.totalorder %s224, 127
          %s228 = scalar_select %p227, %s224, 127
          %p229 = scmp.lt.s32.totalorder %s19, 0
          %s230 = scalar_select %p229, %s19, 0
          %s231 = sadd.s32 %s230, %s228
          %s232 = smul.addr %s226, 128
          %s233 = sadd.s32 %s231, %s232
          %s234 = smul.addr %s233, 4
          %s235 = scalar_lea.vmem %s1, %s234
          %s236 = smul.u32 64, %s20
        $region43: #{conv_generator_forward.11} parent=15 // pred_fallthru
          _
      $region16: #{conv_generator_forward.11} parent=5 // pred_fallthru
        _
      %p237 = scmp.le.s32.totalorder 1, %s10
      %p238 = scmp.lt.s32.totalorder %s10, 9
      %p239 = pnand %p237, %p238
      %p240 = pneg %p239
      // Predicated region
      $region44: #{conv_generator_forward.11} parent=5 // pred_check
        _
      $region45: #{conv_generator_forward.11} parent=5 // pred_check_branch
        %242 = sbr.rel (%p239) target = $region47
      $region46: #{conv_generator_forward.11} parent=5 // pred_region
        %s243 = ssub.s32 %s10, 1
        %s244 = sand.u32 %s53, 1
        %s245 = sand.u32 %s53, 1
        %s246 = smul.addr %s245, 64
        %s247 = scalar_lea.vmem [#allocation3], %s246
        // Predicated region
        $region48: #{conv_generator_forward.11} parent=46 // pred_check
          %p248 = pneg %p66
        $region49: #{conv_generator_forward.11} parent=46 // pred_check_branch
          %250 = sbr.rel (%p248) target = $region51
        $region50: #{conv_generator_forward.11} parent=46 // pred_region
          _
        $region51: #{conv_generator_forward.11} parent=46 // pred_fallthru
          _
        %s251 = sand.u32 %s53, 1
        %s252 = sand.u32 %s53, 1
        %s253 = smul.addr %s252, 64
        %s254 = scalar_lea.vmem [#allocation3], %s253
        %p255 = pneg %p66
        %p256 = pneg %p63
        %s257 = smul.u32 64, %s24
        %p258 = scmp.lt.s32.totalorder %s21, 3
        %s259 = scalar_select %p258, %s21, 3
        %p260 = scmp.lt.s32.totalorder %s257, 127
        %s261 = scalar_select %p260, %s257, 127
        %p262 = scmp.lt.s32.totalorder %s23, 0
        %s263 = scalar_select %p262, %s23, 0
        %s264 = sadd.s32 %s263, %s261
        %s265 = smul.addr %s259, 128
        %s266 = sadd.s32 %s264, %s265
        %s267 = smul.addr %s266, 4
        %s268 = scalar_lea.vmem %s1, %s267
        %p269 = pneg %p96
        %p270 = pneg %p93
        %p271 = pneg %p126
        %p272 = pneg %p123
        %s273 = smul.u32 4, %s22
        %p274 = scmp.lt.s32.totalorder %s21, 3
        %s275 = scalar_select %p274, %s21, 3
        %p276 = scmp.lt.s32.totalorder %s273, 3
        %s277 = scalar_select %p276, %s273, 3
        %p278 = scmp.lt.s32.totalorder %s23, 0
        %s279 = scalar_select %p278, %s23, 0
        %s280 = sadd.s32 %s279, %s277
        %s281 = smul.addr %s275, 4
        %s282 = sadd.s32 %s280, %s281
        %s283 = smul.addr %s282, 8
        %s284 = scalar_lea.vmem %s2, %s283
        %p285 = pneg %p156
        %p286 = pneg %p153
        %p287 = scmp.lt.s32.totalorder %s21, 3
        %s288 = scalar_select %p287, %s21, 3
        %p289 = scmp.lt.s32.totalorder %s22, 0
        %s290 = scalar_select %p289, %s22, 0
        %p291 = scmp.lt.s32.totalorder %s23, 0
        %s292 = scalar_select %p291, %s23, 0
        %s293 = sadd.s32 %s292, %s290
        %s294 = sadd.s32 %s293, %s288
        %s295 = smul.addr %s294, 2
        %s296 = scalar_lea.vmem %s3, %s295
        %s297 = smul.u32 4, %s22
        %s298 = smul.u32 4, %s24
        %s299 = smul.u32 64, %s24
        %p300 = scmp.lt.s32.totalorder %s21, 3
        %s301 = scalar_select %p300, %s21, 3
        %p302 = scmp.lt.s32.totalorder %s299, 127
        %s303 = scalar_select %p302, %s299, 127
        %p304 = scmp.lt.s32.totalorder %s23, 0
        %s305 = scalar_select %p304, %s23, 0
        %s306 = sadd.s32 %s305, %s303
        %s307 = smul.addr %s301, 128
        %s308 = sadd.s32 %s306, %s307
        %s309 = smul.addr %s308, 4
        %s310 = scalar_lea.vmem %s1, %s309
        %s311 = smul.u32 64, %s24
        %s312 = smul.u32 4, %s22
        %p313 = scmp.lt.s32.totalorder %s21, 3
        %s314 = scalar_select %p313, %s21, 3
        %p315 = scmp.lt.s32.totalorder %s312, 3
        %s316 = scalar_select %p315, %s312, 3
        %p317 = scmp.lt.s32.totalorder %s23, 0
        %s318 = scalar_select %p317, %s23, 0
        %s319 = sadd.s32 %s318, %s316
        %s320 = smul.addr %s314, 4
        %s321 = sadd.s32 %s319, %s320
        %s322 = smul.addr %s321, 8
        %s323 = scalar_lea.vmem %s2, %s322
        %s324 = smul.u32 4, %s22
        %p325 = scmp.lt.s32.totalorder %s21, 3
        %s326 = scalar_select %p325, %s21, 3
        %p327 = scmp.lt.s32.totalorder %s22, 0
        %s328 = scalar_select %p327, %s22, 0
        %p329 = scmp.lt.s32.totalorder %s23, 0
        %s330 = scalar_select %p329, %s23, 0
        %s331 = sadd.s32 %s330, %s328
        %s332 = sadd.s32 %s331, %s326
        %s333 = smul.addr %s332, 2
        %s334 = scalar_lea.vmem %s3, %s333
        %p336 = scmp.eq.s32.totalorder %s24, 0
        // Predicated region
        $region52: #{conv_generator_forward.11} parent=46 // pred_check
          %p337 = pneg %p336
        $region53: #{conv_generator_forward.11} parent=46 // pred_check_branch
          %339 = sbr.rel (%p337) target = $region55
        $region54: #{conv_generator_forward.11} parent=46 // pred_region
          %340 = vst [vmem:[#allocation2] sm:$0xff] 0.0
          %341 = vst [vmem:[#allocation2 + $0x8] sm:$0xff] 0.0
          %342 = vst [vmem:[#allocation2 + $0x10] sm:$0xff] 0.0
          %343 = vst [vmem:[#allocation2 + $0x18] sm:$0xff] 0.0
        $region55: #{conv_generator_forward.11} parent=46 // pred_fallthru
          _
        %v344 = vld [vmem:[#allocation2] sm:$0xff]
        %v345 = vld [vmem:[#allocation2 + $0x8] sm:$0xff]
        %v346 = vld [vmem:[#allocation2 + $0x10] sm:$0xff]
        %v347 = vld [vmem:[#allocation2 + $0x18] sm:$0xff]
        %v348 = vld [vmem:[%s247] sm:$0xff]
        %v349 = vld [vmem:[%s247 + $0x8] sm:$0xff]
        %v350 = vld [vmem:[%s247 + $0x10] sm:$0xff]
        %v351 = vld [vmem:[%s247 + $0x18] sm:$0xff]
        %v352 = vld [vmem:[%s247 + $0x20] sm:$0xff]
        %v353 = vld [vmem:[%s247 + $0x28] sm:$0xff]
        %v354 = vld [vmem:[%s247 + $0x30] sm:$0xff]
        %v355 = vld [vmem:[%s247 + $0x38] sm:$0xff]
        %v356 = vld [vmem:[%s310] sm:$0xf]
        %v357 = vld [vmem:[%s310 + $0x4] sm:$0xf]
        %v358 = vld [vmem:[%s310 + $0x8] sm:$0xf]
        %v359 = vld [vmem:[%s310 + $0xc] sm:$0xf]
        %v360 = vld [vmem:[%s310 + $0x10] sm:$0xf]
        %v361 = vld [vmem:[%s310 + $0x14] sm:$0xf]
        %v362 = vld [vmem:[%s310 + $0x18] sm:$0xf]
        %v363 = vld [vmem:[%s310 + $0x1c] sm:$0xf]
        %v364 = vld [vmem:[%s310 + $0x20] sm:$0xf]
        %v365 = vld [vmem:[%s310 + $0x24] sm:$0xf]
        %v366 = vld [vmem:[%s310 + $0x28] sm:$0xf]
        %v367 = vld [vmem:[%s310 + $0x2c] sm:$0xf]
        %v368 = vld [vmem:[%s310 + $0x30] sm:$0xf]
        %v369 = vld [vmem:[%s310 + $0x34] sm:$0xf]
        %v370 = vld [vmem:[%s310 + $0x38] sm:$0xf]
        %v371 = vld [vmem:[%s310 + $0x3c] sm:$0xf]
        %v372 = vld [vmem:[%s310 + $0x40] sm:$0xf]
        %v373 = vld [vmem:[%s310 + $0x44] sm:$0xf]
        %v374 = vld [vmem:[%s310 + $0x48] sm:$0xf]
        %v375 = vld [vmem:[%s310 + $0x4c] sm:$0xf]
        %v376 = vld [vmem:[%s310 + $0x50] sm:$0xf]
        %v377 = vld [vmem:[%s310 + $0x54] sm:$0xf]
        %v378 = vld [vmem:[%s310 + $0x58] sm:$0xf]
        %v379 = vld [vmem:[%s310 + $0x5c] sm:$0xf]
        %v380 = vld [vmem:[%s310 + $0x60] sm:$0xf]
        %v381 = vld [vmem:[%s310 + $0x64] sm:$0xf]
        %v382 = vld [vmem:[%s310 + $0x68] sm:$0xf]
        %v383 = vld [vmem:[%s310 + $0x6c] sm:$0xf]
        %v384 = vld [vmem:[%s310 + $0x70] sm:$0xf]
        %v385 = vld [vmem:[%s310 + $0x74] sm:$0xf]
        %v386 = vld [vmem:[%s310 + $0x78] sm:$0xf]
        %v387 = vld [vmem:[%s310 + $0x7c] sm:$0xf]
        %v388 = vld [vmem:[%s310 + $0x80] sm:$0xf]
        %v389 = vld [vmem:[%s310 + $0x84] sm:$0xf]
        %v390 = vld [vmem:[%s310 + $0x88] sm:$0xf]
        %v391 = vld [vmem:[%s310 + $0x8c] sm:$0xf]
        %v392 = vld [vmem:[%s310 + $0x90] sm:$0xf]
        %v393 = vld [vmem:[%s310 + $0x94] sm:$0xf]
        %v394 = vld [vmem:[%s310 + $0x98] sm:$0xf]
        %v395 = vld [vmem:[%s310 + $0x9c] sm:$0xf]
        %v396 = vld [vmem:[%s310 + $0xa0] sm:$0xf]
        %v397 = vld [vmem:[%s310 + $0xa4] sm:$0xf]
        %v398 = vld [vmem:[%s310 + $0xa8] sm:$0xf]
        %v399 = vld [vmem:[%s310 + $0xac] sm:$0xf]
        %v400 = vld [vmem:[%s310 + $0xb0] sm:$0xf]
        %v401 = vld [vmem:[%s310 + $0xb4] sm:$0xf]
        %v402 = vld [vmem:[%s310 + $0xb8] sm:$0xf]
        %v403 = vld [vmem:[%s310 + $0xbc] sm:$0xf]
        %v404 = vld [vmem:[%s310 + $0xc0] sm:$0xf]
        %v405 = vld [vmem:[%s310 + $0xc4] sm:$0xf]
        %v406 = vld [vmem:[%s310 + $0xc8] sm:$0xf]
        %v407 = vld [vmem:[%s310 + $0xcc] sm:$0xf]
        %v408 = vld [vmem:[%s310 + $0xd0] sm:$0xf]
        %v409 = vld [vmem:[%s310 + $0xd4] sm:$0xf]
        %v410 = vld [vmem:[%s310 + $0xd8] sm:$0xf]
        %v411 = vld [vmem:[%s310 + $0xdc] sm:$0xf]
        %v412 = vld [vmem:[%s310 + $0xe0] sm:$0xf]
        %v413 = vld [vmem:[%s310 + $0xe4] sm:$0xf]
        %v414 = vld [vmem:[%s310 + $0xe8] sm:$0xf]
        %v415 = vld [vmem:[%s310 + $0xec] sm:$0xf]
        %v416 = vld [vmem:[%s310 + $0xf0] sm:$0xf]
        %v417 = vld [vmem:[%s310 + $0xf4] sm:$0xf]
        %v418 = vld [vmem:[%s310 + $0xf8] sm:$0xf]
        %v419 = vld [vmem:[%s310 + $0xfc] sm:$0xf]
        %v428 = vunpack.c.l.b16 %v348
        %v429 = vunpack.c.h.b16 %v348
        %v430 = vunpack.c.l.b16 %v349
        %v431 = vunpack.c.h.b16 %v349
        %v432 = vunpack.c.l.b16 %v350
        %v433 = vunpack.c.h.b16 %v350
        %v434 = vunpack.c.l.b16 %v351
        %v435 = vunpack.c.h.b16 %v351
        %v436 = vunpack.c.l.b16 %v352
        %v437 = vunpack.c.h.b16 %v352
        %v438 = vunpack.c.l.b16 %v353
        %v439 = vunpack.c.h.b16 %v353
        %v440 = vunpack.c.l.b16 %v354
        %v441 = vunpack.c.h.b16 %v354
        %v442 = vunpack.c.l.b16 %v355
        %v443 = vunpack.c.h.b16 %v355
        %v444 = vpack.c.b16 %v432, %v428
        %v445 = vpack.c.b16 %v433, %v429
        %v446 = vpack.c.b16 %v434, %v430
        %v447 = vpack.c.b16 %v435, %v431
        %v448 = vpack.c.b16 %v440, %v436
        %v449 = vpack.c.b16 %v441, %v437
        %v450 = vpack.c.b16 %v442, %v438
        %v451 = vpack.c.b16 %v443, %v439
        %v524 = vunpack.c.l.b16 %v356
        %v525 = vunpack.c.l.b16 %v357
        %v526 = vunpack.c.l.b16 %v358
        %v527 = vunpack.c.l.b16 %v359
        %v528 = vunpack.c.l.b16 %v360
        %v529 = vunpack.c.l.b16 %v361
        %v530 = vunpack.c.l.b16 %v362
        %v531 = vunpack.c.l.b16 %v363
        %v532 = vunpack.c.l.b16 %v364
        %v533 = vunpack.c.l.b16 %v365
        %v534 = vunpack.c.l.b16 %v366
        %v535 = vunpack.c.l.b16 %v367
        %v536 = vunpack.c.l.b16 %v368
        %v537 = vunpack.c.l.b16 %v369
        %v538 = vunpack.c.l.b16 %v370
        %v539 = vunpack.c.l.b16 %v371
        %v540 = vunpack.c.l.b16 %v372
        %v541 = vunpack.c.l.b16 %v373
        %v542 = vunpack.c.l.b16 %v374
        %v543 = vunpack.c.l.b16 %v375
        %v544 = vunpack.c.l.b16 %v376
        %v545 = vunpack.c.l.b16 %v377
        %v546 = vunpack.c.l.b16 %v378
        %v547 = vunpack.c.l.b16 %v379
        %v548 = vunpack.c.l.b16 %v380
        %v549 = vunpack.c.l.b16 %v381
        %v550 = vunpack.c.l.b16 %v382
        %v551 = vunpack.c.l.b16 %v383
        %v552 = vunpack.c.l.b16 %v384
        %v553 = vunpack.c.l.b16 %v385
        %v554 = vunpack.c.l.b16 %v386
        %v555 = vunpack.c.l.b16 %v387
        %v556 = vunpack.c.l.b16 %v388
        %v557 = vunpack.c.l.b16 %v389
        %v558 = vunpack.c.l.b16 %v390
        %v559 = vunpack.c.l.b16 %v391
        %v560 = vunpack.c.l.b16 %v392
        %v561 = vunpack.c.l.b16 %v393
        %v562 = vunpack.c.l.b16 %v394
        %v563 = vunpack.c.l.b16 %v395
        %v564 = vunpack.c.l.b16 %v396
        %v565 = vunpack.c.l.b16 %v397
        %v566 = vunpack.c.l.b16 %v398
        %v567 = vunpack.c.l.b16 %v399
        %v568 = vunpack.c.l.b16 %v400
        %v569 = vunpack.c.l.b16 %v401
        %v570 = vunpack.c.l.b16 %v402
        %v571 = vunpack.c.l.b16 %v403
        %v572 = vunpack.c.l.b16 %v404
        %v573 = vunpack.c.l.b16 %v405
        %v574 = vunpack.c.l.b16 %v406
        %v575 = vunpack.c.l.b16 %v407
        %v576 = vunpack.c.l.b16 %v408
        %v577 = vunpack.c.l.b16 %v409
        %v578 = vunpack.c.l.b16 %v410
        %v579 = vunpack.c.l.b16 %v411
        %v580 = vunpack.c.l.b16 %v412
        %v581 = vunpack.c.l.b16 %v413
        %v582 = vunpack.c.l.b16 %v414
        %v583 = vunpack.c.l.b16 %v415
        %v584 = vunpack.c.l.b16 %v416
        %v585 = vunpack.c.l.b16 %v417
        %v586 = vunpack.c.l.b16 %v418
        %v587 = vunpack.c.l.b16 %v419
        %v588 = vpack.c.b16 %v525, %v524
        %v589 = vpack.c.b16 %v527, %v526
        %v590 = vpack.c.b16 %v529, %v528
        %v591 = vpack.c.b16 %v531, %v530
        %v592 = vpack.c.b16 %v533, %v532
        %v593 = vpack.c.b16 %v535, %v534
        %v594 = vpack.c.b16 %v537, %v536
        %v595 = vpack.c.b16 %v539, %v538
        %v596 = vpack.c.b16 %v541, %v540
        %v597 = vpack.c.b16 %v543, %v542
        %v598 = vpack.c.b16 %v545, %v544
        %v599 = vpack.c.b16 %v547, %v546
        %v600 = vpack.c.b16 %v549, %v548
        %v601 = vpack.c.b16 %v551, %v550
        %v602 = vpack.c.b16 %v553, %v552
        %v603 = vpack.c.b16 %v555, %v554
        %v604 = vpack.c.b16 %v557, %v556
        %v605 = vpack.c.b16 %v559, %v558
        %v606 = vpack.c.b16 %v561, %v560
        %v607 = vpack.c.b16 %v563, %v562
        %v608 = vpack.c.b16 %v565, %v564
        %v609 = vpack.c.b16 %v567, %v566
        %v610 = vpack.c.b16 %v569, %v568
        %v611 = vpack.c.b16 %v571, %v570
        %v612 = vpack.c.b16 %v573, %v572
        %v613 = vpack.c.b16 %v575, %v574
        %v614 = vpack.c.b16 %v577, %v576
        %v615 = vpack.c.b16 %v579, %v578
        %v616 = vpack.c.b16 %v581, %v580
        %v617 = vpack.c.b16 %v583, %v582
        %v618 = vpack.c.b16 %v585, %v584
        %v619 = vpack.c.b16 %v587, %v586
        %652 = vmatprep.subr.bf16.mxu0 0
        %653 = vmatpush1.bf16.msra.mxu0 %v588
        %654 = vmatprep.subr.bf16.mxu0 0
        %655 = vmatpush1.bf16.msra.mxu0 %v589
        %656 = vmatprep.subr.bf16.mxu0 0
        %657 = vmatpush1.bf16.msra.mxu0 %v590
        %658 = vmatprep.subr.bf16.mxu0 0
        %659 = vmatpush1.bf16.msra.mxu0 %v591
        %660 = vmatprep.subr.bf16.mxu0 0
        %661 = vmatpush1.bf16.msra.mxu0 %v592
        %662 = vmatprep.subr.bf16.mxu0 0
        %663 = vmatpush1.bf16.msra.mxu0 %v593
        %664 = vmatprep.subr.bf16.mxu0 0
        %665 = vmatpush1.bf16.msra.mxu0 %v594
        %666 = vmatprep.subr.bf16.mxu0 0
        %667 = vmatpush1.bf16.msra.mxu0 %v595
        %668 = vmatprep.subr.bf16.mxu0 0
        %669 = vmatpush1.bf16.msra.mxu0 %v596
        %670 = vmatprep.subr.bf16.mxu0 0
        %671 = vmatpush1.bf16.msra.mxu0 %v597
        %672 = vmatprep.subr.bf16.mxu0 0
        %673 = vmatpush1.bf16.msra.mxu0 %v598
        %674 = vmatprep.subr.bf16.mxu0 0
        %675 = vmatpush1.bf16.msra.mxu0 %v599
        %676 = vmatprep.subr.bf16.mxu0 0
        %677 = vmatpush1.bf16.msra.mxu0 %v600
        %678 = vmatprep.subr.bf16.mxu0 0
        %679 = vmatpush1.bf16.msra.mxu0 %v601
        %680 = vmatprep.subr.bf16.mxu0 0
        %681 = vmatpush1.bf16.msra.mxu0 %v602
        %682 = vmatprep.subr.bf16.mxu0 0
        %683 = vmatpush1.bf16.msra.mxu0 %v603
        %684 = vmatprep.mubr.bf16.mxu0 %v445
        %685 = vmatmul.mubr.bf16.gmra.mrb[0].mxu0 %v444
        %v686 = vpop.f32.mrb[0].mxu0
        %v687 = vadd.f32 0.0, %v686
        %v688 = vpop.f32.mrb[0].mxu0
        %v689 = vpop.f32.mrb[0].mxu0
        %v690 = vadd.f32 0.0, %v689
        %v691 = vpop.f32.mrb[0].mxu0
        %692 = vmatprep.mubr.bf16.mxu0 %v449
        %693 = vmatmul.mubr.bf16.gmra.mrb[0].mxu0 %v448
        %v694 = vpop.f32.mrb[0].mxu0
        %v695 = vadd.f32 0.0, %v694
        %v696 = vpop.f32.mrb[0].mxu0
        %v697 = vpop.f32.mrb[0].mxu0
        %v698 = vadd.f32 0.0, %v697
        %v699 = vpop.f32.mrb[0].mxu0
        %700 = vdwg.mxu0
        %701 = vmatprep.subr.bf16.mxu0 0
        %702 = vmatpush1.bf16.msra.mxu0 %v604
        %703 = vmatprep.subr.bf16.mxu0 0
        %704 = vmatpush1.bf16.msra.mxu0 %v605
        %705 = vmatprep.subr.bf16.mxu0 0
        %706 = vmatpush1.bf16.msra.mxu0 %v606
        %707 = vmatprep.subr.bf16.mxu0 0
        %708 = vmatpush1.bf16.msra.mxu0 %v607
        %709 = vmatprep.subr.bf16.mxu0 0
        %710 = vmatpush1.bf16.msra.mxu0 %v608
        %711 = vmatprep.subr.bf16.mxu0 0
        %712 = vmatpush1.bf16.msra.mxu0 %v609
        %713 = vmatprep.subr.bf16.mxu0 0
        %714 = vmatpush1.bf16.msra.mxu0 %v610
        %715 = vmatprep.subr.bf16.mxu0 0
        %716 = vmatpush1.bf16.msra.mxu0 %v611
        %717 = vmatprep.subr.bf16.mxu0 0
        %718 = vmatpush1.bf16.msra.mxu0 %v612
        %719 = vmatprep.subr.bf16.mxu0 0
        %720 = vmatpush1.bf16.msra.mxu0 %v613
        %721 = vmatprep.subr.bf16.mxu0 0
        %722 = vmatpush1.bf16.msra.mxu0 %v614
        %723 = vmatprep.subr.bf16.mxu0 0
        %724 = vmatpush1.bf16.msra.mxu0 %v615
        %725 = vmatprep.subr.bf16.mxu0 0
        %726 = vmatpush1.bf16.msra.mxu0 %v616
        %727 = vmatprep.subr.bf16.mxu0 0
        %728 = vmatpush1.bf16.msra.mxu0 %v617
        %729 = vmatprep.subr.bf16.mxu0 0
        %730 = vmatpush1.bf16.msra.mxu0 %v618
        %731 = vmatprep.subr.bf16.mxu0 0
        %732 = vmatpush1.bf16.msra.mxu0 %v619
        %733 = vmatprep.mubr.bf16.mxu0 %v447
        %734 = vmatmul.mubr.bf16.gmra.mrb[0].mxu0 %v446
        %v735 = vpop.f32.mrb[0].mxu0
        %v736 = vadd.f32 %v687, %v735
        %v737 = vpop.f32.mrb[0].mxu0
        %v738 = vpop.f32.mrb[0].mxu0
        %v739 = vadd.f32 %v690, %v738
        %v740 = vpop.f32.mrb[0].mxu0
        %741 = vmatprep.mubr.bf16.mxu0 %v451
        %742 = vmatmul.mubr.bf16.gmra.mrb[0].mxu0 %v450
        %v743 = vpop.f32.mrb[0].mxu0
        %v744 = vadd.f32 %v695, %v743
        %v745 = vpop.f32.mrb[0].mxu0
        %v746 = vpop.f32.mrb[0].mxu0
        %v747 = vadd.f32 %v698, %v746
        %v748 = vpop.f32.mrb[0].mxu0
        %749 = vdwg.mxu0
        %v750 = vadd.f32 %v344, %v736
        %v751 = vadd.f32 %v345, %v739
        %v752 = vadd.f32 %v346, %v744
        %v753 = vadd.f32 %v347, %v747
        %754 = vst [vmem:[#allocation2] sm:$0xff] %v750
        %755 = vst [vmem:[#allocation2 + $0x8] sm:$0xff] %v751
        %756 = vst [vmem:[#allocation2 + $0x10] sm:$0xff] %v752
        %757 = vst [vmem:[#allocation2 + $0x18] sm:$0xff] %v753
        %p758 = scmp.eq.s32.totalorder %s24, 1
        // Predicated region
        $region56: #{conv_generator_forward.11} parent=46 // pred_check
          %p759 = pneg %p758
        $region57: #{conv_generator_forward.11} parent=46 // pred_check_branch
          %761 = sbr.rel (%p759) target = $region59
        $region58: #{conv_generator_forward.11} parent=46 // pred_region
          %v762 = vld [vmem:[#allocation2] sm:$0xff]
          %v763 = vld [vmem:[#allocation2 + $0x8] sm:$0xff]
          %v764 = vld [vmem:[#allocation2 + $0x10] sm:$0xff]
          %v765 = vld [vmem:[#allocation2 + $0x18] sm:$0xff]
          %766 = vst [vmem:[%s323] sm:$0xff] %v762
          %767 = vst [vmem:[%s323 + $0x8] sm:$0xff] %v763
          %768 = vst [vmem:[%s323 + $0x10] sm:$0xff] %v764
          %769 = vst [vmem:[%s323 + $0x18] sm:$0xff] %v765
          %v770 = vadd.f32 %v762, %v763
          %v771 = vadd.f32 %v770, %v764
          %v772 = vadd.f32 %v771, %v765
          %v773 = vrot.slane %v772, 4
          %v774 = vadd.f32 %v772, %v773
          %v775 = vrot.slane %v774, 2
          %v776 = vadd.f32 %v774, %v775
          %v777 = vrot.slane %v776, 1
          %v778 = vadd.f32 %v776, %v777
          %v779 = vmul.f32 %v762, %v762
          %v780 = vmul.f32 %v763, %v763
          %v781 = vmul.f32 %v764, %v764
          %v782 = vmul.f32 %v765, %v765
          %v783 = vadd.f32 %v779, %v780
          %v784 = vadd.f32 %v783, %v781
          %v785 = vadd.f32 %v784, %v782
          %v786 = vrot.slane %v785, 4
          %v787 = vadd.f32 %v785, %v786
          %v788 = vrot.slane %v787, 2
          %v789 = vadd.f32 %v787, %v788
          %v790 = vrot.slane %v789, 1
          %v791 = vadd.f32 %v789, %v790
          %vm792 = vcmask 1040384
          %v793 = vsel %vm792, %v778, %v791
          %794 = vst [vmem:[%s334] sm:$0x3] %v793
        $region59: #{conv_generator_forward.11} parent=46 // pred_fallthru
          _
        %s795 = smul.u32 4, %s22
        %p796 = scmp.lt.s32.totalorder %s21, 3
        %s797 = scalar_select %p796, %s21, 3
        %p798 = scmp.lt.s32.totalorder %s795, 3
        %s799 = scalar_select %p798, %s795, 3
        %p800 = scmp.lt.s32.totalorder %s23, 0
        %s801 = scalar_select %p800, %s23, 0
        %s802 = sadd.s32 %s801, %s799
        %s803 = smul.addr %s797, 4
        %s804 = sadd.s32 %s802, %s803
        %s805 = smul.addr %s804, 8
        %s806 = scalar_lea.vmem %s2, %s805
        %p807 = scmp.lt.s32.totalorder %s21, 3
        %s808 = scalar_select %p807, %s21, 3
        %p809 = scmp.lt.s32.totalorder %s22, 0
        %s810 = scalar_select %p809, %s22, 0
        %p811 = scmp.lt.s32.totalorder %s23, 0
        %s812 = scalar_select %p811, %s23, 0
        %s813 = sadd.s32 %s812, %s810
        %s814 = sadd.s32 %s813, %s808
        %s815 = smul.addr %s814, 2
        %s816 = scalar_lea.vmem %s3, %s815
        // Predicated region
        $region60: #{conv_generator_forward.11} parent=46 // pred_check
          %p817 = pneg %p123
        $region61: #{conv_generator_forward.11} parent=46 // pred_check_branch
          %819 = sbr.rel (%p817) target = $region63
        $region62: #{conv_generator_forward.11} parent=46 // pred_region
          %s820 = smul.u32 4, %s22
        $region63: #{conv_generator_forward.11} parent=46 // pred_fallthru
          _
        // Predicated region
        $region64: #{conv_generator_forward.11} parent=46 // pred_check
          %p821 = pneg %p153
        $region65: #{conv_generator_forward.11} parent=46 // pred_check_branch
          %823 = sbr.rel (%p821) target = $region67
        $region66: #{conv_generator_forward.11} parent=46 // pred_region
          _
        $region67: #{conv_generator_forward.11} parent=46 // pred_fallthru
          _
      $region47: #{conv_generator_forward.11} parent=5 // pred_fallthru
        _
      %p824 = scmp.le.s32.totalorder 2, %s10
      // Predicated region
      $region68: #{conv_generator_forward.11} parent=5 // pred_check
        %p825 = pneg %p824
      $region69: #{conv_generator_forward.11} parent=5 // pred_check_branch
        %827 = sbr.rel (%p825) target = $region71
      $region70: #{conv_generator_forward.11} parent=5 // pred_region
        %s828 = ssub.s32 %s10, 2
        // Predicated region
        $region72: #{conv_generator_forward.11} parent=70 // pred_check
          %p829 = pneg %p129
        $region73: #{conv_generator_forward.11} parent=70 // pred_check_branch
          %831 = sbr.rel (%p829) target = $region75
        $region74: #{conv_generator_forward.11} parent=70 // pred_region
          %s832 = smul.u32 4, %s26
          %p833 = scmp.lt.s32.totalorder %s25, 3
          %s834 = scalar_select %p833, %s25, 3
          %p835 = scmp.lt.s32.totalorder %s832, 3
          %s836 = scalar_select %p835, %s832, 3
          %p837 = scmp.lt.s32.totalorder %s27, 0
          %s838 = scalar_select %p837, %s27, 0
          %s839 = sadd.s32 %s838, %s836
          %s840 = smul.addr %s834, 4
          %s841 = sadd.s32 %s839, %s840
          %s842 = smul.addr %s841, 8
          %s843 = scalar_lea.vmem %s2, %s842
        $region75: #{conv_generator_forward.11} parent=70 // pred_fallthru
          _
        // Predicated region
        $region76: #{conv_generator_forward.11} parent=70 // pred_check
          %p844 = pneg %p159
        $region77: #{conv_generator_forward.11} parent=70 // pred_check_branch
          %846 = sbr.rel (%p844) target = $region79
        $region78: #{conv_generator_forward.11} parent=70 // pred_region
          %p847 = scmp.lt.s32.totalorder %s25, 3
          %s848 = scalar_select %p847, %s25, 3
          %p849 = scmp.lt.s32.totalorder %s26, 0
          %s850 = scalar_select %p849, %s26, 0
          %p851 = scmp.lt.s32.totalorder %s27, 0
          %s852 = scalar_select %p851, %s27, 0
          %s853 = sadd.s32 %s852, %s850
          %s854 = sadd.s32 %s853, %s848
          %s855 = smul.addr %s854, 2
          %s856 = scalar_lea.vmem %s3, %s855
        $region79: #{conv_generator_forward.11} parent=70 // pred_fallthru
          _
      $region71: #{conv_generator_forward.11} parent=5 // pred_fallthru
        _
    $region6: #{conv_generator_forward.11} parent=1 // loop_footer
      %s14 = sadd.s32 1, %s10
    $region7: #{conv_generator_forward.11} parent=1 // loop_footer_branch
      %9 = sbr.rel target = $region3
    $region8: #{conv_generator_forward.11} parent=1 // loop_exit
      _

// kernel: conv_generator_forward.13
$region0: #{conv_generator_forward.13}
  #allocation0 [shape = 'u32[]', space=smem, size = 0x4, offset = 0x4, fixed_abs, tag = 'smem constant byte address 0x4 - core index']
  #allocation1 [shape = 'u32[144,128]{1,0:T(1,128)}', space=vmem, size = 0x12000, scoped, tag = 'internal scratch']
  #allocation2 [shape = 'f32[128,64]{1,0:T(8,128)}', space=vmem, size = 0x10000, scoped, tag = 'scratch operand']
  %s0 = inlined_call_operand.vmem [shape: bf16[4,128,512], index: 0, kind: input, shape index: {}]
  %s1 = inlined_call_operand.vmem [shape: bf16[4,512,64], index: 1, kind: input, shape index: {}]
  %s2 = inlined_call_operand.vmem [shape: f32[4,128,64], index: 2, kind: output, shape index: {0}]
  %s3 = inlined_call_operand.vmem [shape: f32[4,1,2,64], index: 3, kind: output, shape index: {1}]
  %4 = xla_tuple %s2, %s3
  %s5 = sld [smem:[#allocation0]]
  $region57: #{conv_generator_forward.13} parent=0
    _
  %s7 = ssub.s32 1, %s5
  %s8 = scalar_select 0, %s7, %s5
  loop: start=0, step=1, limit=6
  $region2: #{conv_generator_forward.13} parent=0 // loop_pre_header
    _
  $region3: #{conv_generator_forward.13} parent=0 // loop_header
    %s10 = sphi 0, %s14
    %p11 = scmp.ge.s32.totalorder %s10, 6
    %s17 = sphi 0, %s43
    %s18 = sphi 0, %s39
    %s19 = sphi 0, %s35
    %s20 = sphi 0, %s31
    %s21 = sphi 0, %s17
    %s22 = sphi 0, %s18
    %s23 = sphi 0, %s19
    %s24 = sphi 0, %s20
    %s25 = sphi 0, %s21
    %s26 = sphi 0, %s22
    %s27 = sphi 0, %s23
    %s28 = sphi 0, %s24
    %s50 = sphi 0, %s52
    %s53 = sphi 0, %s50
    %s54 = sphi 0, %s53
    %s70 = sphi 0, %s54
    %s80 = sphi 0, %s82
    %s83 = sphi 0, %s80
    %s84 = sphi 0, %s83
    %s100 = sphi 0, %s84
    %s110 = sphi 0, %s112
    %s113 = sphi 0, %s110
    %s114 = sphi 0, %s113
    %s130 = sphi 0, %s114
    %s140 = sphi 0, %s142
    %s143 = sphi 0, %s140
    %s144 = sphi 0, %s143
    %s160 = sphi 0, %s144
  $region4: #{conv_generator_forward.13} parent=0 // loop_header_branch
    %13 = sbr.rel (%p11) target = $region8
  $region5: #{conv_generator_forward.13} parent=0 // loop_body
    %s15 = ssub.s32 %s10, 1
    %s16 = ssub.s32 %s10, 2
    %s29 = sadd.s32 1, %s20
    %p30 = scmp.ge.s32.totalorder %s29, 1
    %s31 = scalar_select %p30, 0, %s29
    %s32 = sadd.s32 1, %s19
    %s33 = scalar_select %p30, %s32, %s19
    %p34 = scmp.ge.s32.totalorder %s33, 1
    %s35 = scalar_select %p34, 0, %s33
    %s36 = sadd.s32 1, %s18
    %s37 = scalar_select %p34, %s36, %s18
    %p38 = scmp.ge.s32.totalorder %s37, 1
    %s39 = scalar_select %p38, 0, %s37
    %s40 = sadd.s32 1, %s17
    %s41 = scalar_select %p38, %s40, %s17
    %p42 = scmp.ge.s32.totalorder %s41, 4
    %s43 = scalar_select %p42, 0, %s41
    %s44 = ssub.s32 %s17, %s43
    %s45 = ssub.s32 %s18, %s39
    %s46 = sor.u32 %s44, %s45
    %s47 = ssub.s32 %s20, %s31
    %s48 = sor.u32 %s46, %s47
    %p49 = scmp.eq.s32.totalorder %s48, 0
    %s51 = sadd.s32 %s50, 1
    %s52 = scalar_select %p49, %s50, %s51
    %p55 = pneg %p49
    %p56 = scmp.eq.s32.totalorder %s10, 3
    %p57 = por %p55, %p56
    %p58 = scmp.ne.s32.totalorder %s50, %s53
    %p59 = scmp.eq.s32.totalorder %s10, 0
    %p60 = por %p58, %p59
    %p61 = scmp.ne.s32.totalorder %s50, %s53
    %p62 = scmp.eq.s32.totalorder %s15, 3
    %p63 = por %p61, %p62
    %p64 = scmp.ne.s32.totalorder %s53, %s54
    %p65 = scmp.eq.s32.totalorder %s15, 0
    %p66 = por %p64, %p65
    %p67 = scmp.ne.s32.totalorder %s53, %s54
    %p68 = scmp.eq.s32.totalorder %s16, 3
    %p69 = por %p67, %p68
    %p71 = scmp.ne.s32.totalorder %s54, %s70
    %p72 = scmp.eq.s32.totalorder %s16, 0
    %p73 = por %p71, %p72
    %s74 = ssub.s32 %s17, %s43
    %s75 = ssub.s32 %s20, %s31
    %s76 = sor.u32 %s74, %s75
    %s77 = ssub.s32 %s19, %s35
    %s78 = sor.u32 %s76, %s77
    %p79 = scmp.eq.s32.totalorder %s78, 0
    %s81 = sadd.s32 %s80, 1
    %s82 = scalar_select %p79, %s80, %s81
    %p85 = pneg %p79
    %p86 = scmp.eq.s32.totalorder %s10, 3
    %p87 = por %p85, %p86
    %p88 = scmp.ne.s32.totalorder %s80, %s83
    %p89 = scmp.eq.s32.totalorder %s10, 0
    %p90 = por %p88, %p89
    %p91 = scmp.ne.s32.totalorder %s80, %s83
    %p92 = scmp.eq.s32.totalorder %s15, 3
    %p93 = por %p91, %p92
    %p94 = scmp.ne.s32.totalorder %s83, %s84
    %p95 = scmp.eq.s32.totalorder %s15, 0
    %p96 = por %p94, %p95
    %p97 = scmp.ne.s32.totalorder %s83, %s84
    %p98 = scmp.eq.s32.totalorder %s16, 3
    %p99 = por %p97, %p98
    %p101 = scmp.ne.s32.totalorder %s84, %s100
    %p102 = scmp.eq.s32.totalorder %s16, 0
    %p103 = por %p101, %p102
    %s104 = ssub.s32 %s17, %s43
    %s105 = ssub.s32 %s18, %s39
    %s106 = sor.u32 %s104, %s105
    %s107 = ssub.s32 %s19, %s35
    %s108 = sor.u32 %s106, %s107
    %p109 = scmp.eq.s32.totalorder %s108, 0
    %s111 = sadd.s32 %s110, 1
    %s112 = scalar_select %p109, %s110, %s111
    %p115 = pneg %p109
    %p116 = scmp.eq.s32.totalorder %s10, 3
    %p117 = por %p115, %p116
    %p118 = scmp.ne.s32.totalorder %s110, %s113
    %p119 = scmp.eq.s32.totalorder %s10, 0
    %p120 = por %p118, %p119
    %p121 = scmp.ne.s32.totalorder %s110, %s113
    %p122 = scmp.eq.s32.totalorder %s15, 3
    %p123 = por %p121, %p122
    %p124 = scmp.ne.s32.totalorder %s113, %s114
    %p125 = scmp.eq.s32.totalorder %s15, 0
    %p126 = por %p124, %p125
    %p127 = scmp.ne.s32.totalorder %s113, %s114
    %p128 = scmp.eq.s32.totalorder %s16, 3
    %p129 = por %p127, %p128
    %p131 = scmp.ne.s32.totalorder %s114, %s130
    %p132 = scmp.eq.s32.totalorder %s16, 0
    %p133 = por %p131, %p132
    %s134 = ssub.s32 %s17, %s43
    %s135 = ssub.s32 %s18, %s39
    %s136 = sor.u32 %s134, %s135
    %s137 = ssub.s32 %s19, %s35
    %s138 = sor.u32 %s136, %s137
    %p139 = scmp.eq.s32.totalorder %s138, 0
    %s141 = sadd.s32 %s140, 1
    %s142 = scalar_select %p139, %s140, %s141
    %p145 = pneg %p139
    %p146 = scmp.eq.s32.totalorder %s10, 3
    %p147 = por %p145, %p146
    %p148 = scmp.ne.s32.totalorder %s140, %s143
    %p149 = scmp.eq.s32.totalorder %s10, 0
    %p150 = por %p148, %p149
    %p151 = scmp.ne.s32.totalorder %s140, %s143
    %p152 = scmp.eq.s32.totalorder %s15, 3
    %p153 = por %p151, %p152
    %p154 = scmp.ne.s32.totalorder %s143, %s144
    %p155 = scmp.eq.s32.totalorder %s15, 0
    %p156 = por %p154, %p155
    %p157 = scmp.ne.s32.totalorder %s143, %s144
    %p158 = scmp.eq.s32.totalorder %s16, 3
    %p159 = por %p157, %p158
    %p161 = scmp.ne.s32.totalorder %s144, %s160
    %p162 = scmp.eq.s32.totalorder %s16, 0
    %p163 = por %p161, %p162
    %p164 = scmp.le.s32.totalorder 1, %s10
    %p165 = scmp.lt.s32.totalorder %s10, 5
    %p166 = pnand %p164, %p165
    %p167 = pneg %p166
    // Predicated region
    $region9: #{conv_generator_forward.13} parent=5 // pred_check
      _
    $region10: #{conv_generator_forward.13} parent=5 // pred_check_branch
      %169 = sbr.rel (%p166) target = $region12
    $region11: #{conv_generator_forward.13} parent=5 // pred_region
      %s170 = ssub.s32 %s10, 1
    $region12: #{conv_generator_forward.13} parent=5 // pred_fallthru
      _
    %p171 = scmp.lt.s32.totalorder %s10, 4
    // Predicated region
    $region13: #{conv_generator_forward.13} parent=5 // pred_check
      %p172 = pneg %p171
    $region14: #{conv_generator_forward.13} parent=5 // pred_check_branch
      %174 = sbr.rel (%p172) target = $region16
    $region15: #{conv_generator_forward.13} parent=5 // pred_region
      // Predicated region
      $region17: #{conv_generator_forward.13} parent=15 // pred_check
        %p175 = pneg %p60
      $region18: #{conv_generator_forward.13} parent=15 // pred_check_branch
        %177 = sbr.rel (%p175) target = $region20
      $region19: #{conv_generator_forward.13} parent=15 // pred_region
        %s178 = smul.u32 16, %s18
        %s179 = smul.u32 4, %s20
        %p180 = scmp.lt.s32.totalorder %s17, 3
        %s181 = scalar_select %p180, %s17, 3
        %p182 = scmp.lt.s32.totalorder %s178, 15
        %s183 = scalar_select %p182, %s178, 15
        %p184 = scmp.lt.s32.totalorder %s179, 3
        %s185 = scalar_select %p184, %s179, 3
        %s186 = smul.addr %s183, 4
        %s187 = sadd.s32 %s185, %s186
        %s188 = smul.addr %s181, 64
        %s189 = sadd.s32 %s187, %s188
        %s190 = smul.addr %s189, 4
        %s191 = scalar_lea.vmem %s0, %s190
        %s192 = smul.u32 16, %s18
        %s193 = smul.u32 4, %s20
      $region20: #{conv_generator_forward.13} parent=15 // pred_fallthru
        _
      // Predicated region
      $region21: #{conv_generator_forward.13} parent=15 // pred_check
        %p194 = pneg %p90
      $region22: #{conv_generator_forward.13} parent=15 // pred_check_branch
        %196 = sbr.rel (%p194) target = $region24
      $region23: #{conv_generator_forward.13} parent=15 // pred_region
        %s197 = smul.u32 64, %s20
        %p198 = scmp.lt.s32.totalorder %s17, 3
        %s199 = scalar_select %p198, %s17, 3
        %p200 = scmp.lt.s32.totalorder %s197, 63
        %s201 = scalar_select %p200, %s197, 63
        %p202 = scmp.lt.s32.totalorder %s19, 0
        %s203 = scalar_select %p202, %s19, 0
        %s204 = sadd.s32 %s203, %s201
        %s205 = smul.addr %s199, 64
        %s206 = sadd.s32 %s204, %s205
        %s207 = smul.addr %s206, 4
        %s208 = scalar_lea.vmem %s1, %s207
        %s209 = smul.u32 64, %s20
      $region24: #{conv_generator_forward.13} parent=15 // pred_fallthru
        _
    $region16: #{conv_generator_forward.13} parent=5 // pred_fallthru
      _
    %p210 = scmp.le.s32.totalorder 1, %s10
    %p211 = scmp.lt.s32.totalorder %s10, 5
    %p212 = pnand %p210, %p211
    %p213 = pneg %p212
    // Predicated region
    $region25: #{conv_generator_forward.13} parent=5 // pred_check
      _
    $region26: #{conv_generator_forward.13} parent=5 // pred_check_branch
      %215 = sbr.rel (%p212) target = $region28
    $region27: #{conv_generator_forward.13} parent=5 // pred_region
      %s216 = ssub.s32 %s10, 1
      %s217 = smul.u32 16, %s22
      %s218 = smul.u32 4, %s24
      %p219 = scmp.lt.s32.totalorder %s21, 3
      %s220 = scalar_select %p219, %s21, 3
      %p221 = scmp.lt.s32.totalorder %s217, 15
      %s222 = scalar_select %p221, %s217, 15
      %p223 = scmp.lt.s32.totalorder %s218, 3
      %s224 = scalar_select %p223, %s218, 3
      %s225 = smul.addr %s222, 4
      %s226 = sadd.s32 %s224, %s225
      %s227 = smul.addr %s220, 64
      %s228 = sadd.s32 %s226, %s227
      %s229 = smul.addr %s228, 4
      %s230 = scalar_lea.vmem %s0, %s229
      %p231 = pneg %p66
      %p232 = pneg %p63
      %s233 = smul.u32 64, %s24
      %p234 = scmp.lt.s32.totalorder %s21, 3
      %s235 = scalar_select %p234, %s21, 3
      %p236 = scmp.lt.s32.totalorder %s233, 63
      %s237 = scalar_select %p236, %s233, 63
      %p238 = scmp.lt.s32.totalorder %s23, 0
      %s239 = scalar_select %p238, %s23, 0
      %s240 = sadd.s32 %s239, %s237
      %s241 = smul.addr %s235, 64
      %s242 = sadd.s32 %s240, %s241
      %s243 = smul.addr %s242, 4
      %s244 = scalar_lea.vmem %s1, %s243
      %p245 = pneg %p96
      %p246 = pneg %p93
      %p247 = pneg %p126
      %p248 = pneg %p123
      %s249 = smul.u32 16, %s22
      %p250 = scmp.lt.s32.totalorder %s21, 3
      %s251 = scalar_select %p250, %s21, 3
      %p252 = scmp.lt.s32.totalorder %s249, 15
      %s253 = scalar_select %p252, %s249, 15
      %p254 = scmp.lt.s32.totalorder %s23, 0
      %s255 = scalar_select %p254, %s23, 0
      %s256 = sadd.s32 %s255, %s253
      %s257 = smul.addr %s251, 16
      %s258 = sadd.s32 %s256, %s257
      %s259 = smul.addr %s258, 8
      %s260 = scalar_lea.vmem %s2, %s259
      %p261 = pneg %p156
      %p262 = pneg %p153
      %p263 = scmp.lt.s32.totalorder %s21, 3
      %s264 = scalar_select %p263, %s21, 3
      %p265 = scmp.lt.s32.totalorder %s22, 0
      %s266 = scalar_select %p265, %s22, 0
      %p267 = scmp.lt.s32.totalorder %s23, 0
      %s268 = scalar_select %p267, %s23, 0
      %s269 = sadd.s32 %s268, %s266
      %s270 = sadd.s32 %s269, %s264
      %s271 = smul.addr %s270, 2
      %s272 = scalar_lea.vmem %s3, %s271
      %s273 = smul.u32 16, %s22
      %s274 = smul.u32 4, %s24
      %p275 = scmp.lt.s32.totalorder %s21, 3
      %s276 = scalar_select %p275, %s21, 3
      %p277 = scmp.lt.s32.totalorder %s273, 15
      %s278 = scalar_select %p277, %s273, 15
      %p279 = scmp.lt.s32.totalorder %s274, 3
      %s280 = scalar_select %p279, %s274, 3
      %s281 = smul.addr %s278, 4
      %s282 = sadd.s32 %s280, %s281
      %s283 = smul.addr %s276, 64
      %s284 = sadd.s32 %s282, %s283
      %s285 = smul.addr %s284, 4
      %s286 = scalar_lea.vmem %s0, %s285
      %s287 = smul.u32 16, %s22
      %s288 = smul.u32 4, %s24
      %s289 = smul.u32 64, %s24
      %p290 = scmp.lt.s32.totalorder %s21, 3
      %s291 = scalar_select %p290, %s21, 3
      %p292 = scmp.lt.s32.totalorder %s289, 63
      %s293 = scalar_select %p292, %s289, 63
      %p294 = scmp.lt.s32.totalorder %s23, 0
      %s295 = scalar_select %p294, %s23, 0
      %s296 = sadd.s32 %s295, %s293
      %s297 = smul.addr %s291, 64
      %s298 = sadd.s32 %s296, %s297
      %s299 = smul.addr %s298, 4
      %s300 = scalar_lea.vmem %s1, %s299
      %s301 = smul.u32 64, %s24
      %s302 = smul.u32 16, %s22
      %p303 = scmp.lt.s32.totalorder %s21, 3
      %s304 = scalar_select %p303, %s21, 3
      %p305 = scmp.lt.s32.totalorder %s302, 15
      %s306 = scalar_select %p305, %s302, 15
      %p307 = scmp.lt.s32.totalorder %s23, 0
      %s308 = scalar_select %p307, %s23, 0
      %s309 = sadd.s32 %s308, %s306
      %s310 = smul.addr %s304, 16
      %s311 = sadd.s32 %s309, %s310
      %s312 = smul.addr %s311, 8
      %s313 = scalar_lea.vmem %s2, %s312
      %s314 = smul.u32 16, %s22
      %p315 = scmp.lt.s32.totalorder %s21, 3
      %s316 = scalar_select %p315, %s21, 3
      %p317 = scmp.lt.s32.totalorder %s22, 0
      %s318 = scalar_select %p317, %s22, 0
      %p319 = scmp.lt.s32.totalorder %s23, 0
      %s320 = scalar_select %p319, %s23, 0
      %s321 = sadd.s32 %s320, %s318
      %s322 = sadd.s32 %s321, %s316
      %s323 = smul.addr %s322, 2
      %s324 = scalar_lea.vmem %s3, %s323
      %p326 = scmp.eq.s32.totalorder %s24, 0
      // Predicated region
      $region29: #{conv_generator_forward.13} parent=27 // pred_check
        %p327 = pneg %p326
      $region30: #{conv_generator_forward.13} parent=27 // pred_check_branch
        %329 = sbr.rel (%p327) target = $region32
      $region31: #{conv_generator_forward.13} parent=27 // pred_region
        %vm330 = vcmask 523264
        %331 = vst.msk [vmem:[#allocation2] sm:$0xff] %vm330, 0.0
        %332 = vst.msk [vmem:[#allocation2 + $0x8] sm:$0xff] %vm330, 0.0
        %333 = vst.msk [vmem:[#allocation2 + $0x10] sm:$0xff] %vm330, 0.0
        %334 = vst.msk [vmem:[#allocation2 + $0x18] sm:$0xff] %vm330, 0.0
        %335 = vst.msk [vmem:[#allocation2 + $0x20] sm:$0xff] %vm330, 0.0
        %336 = vst.msk [vmem:[#allocation2 + $0x28] sm:$0xff] %vm330, 0.0
        %337 = vst.msk [vmem:[#allocation2 + $0x30] sm:$0xff] %vm330, 0.0
        %338 = vst.msk [vmem:[#allocation2 + $0x38] sm:$0xff] %vm330, 0.0
        %339 = vst.msk [vmem:[#allocation2 + $0x40] sm:$0xff] %vm330, 0.0
        %340 = vst.msk [vmem:[#allocation2 + $0x48] sm:$0xff] %vm330, 0.0
        %341 = vst.msk [vmem:[#allocation2 + $0x50] sm:$0xff] %vm330, 0.0
        %342 = vst.msk [vmem:[#allocation2 + $0x58] sm:$0xff] %vm330, 0.0
        %343 = vst.msk [vmem:[#allocation2 + $0x60] sm:$0xff] %vm330, 0.0
        %344 = vst.msk [vmem:[#allocation2 + $0x68] sm:$0xff] %vm330, 0.0
        %345 = vst.msk [vmem:[#allocation2 + $0x70] sm:$0xff] %vm330, 0.0
        %346 = vst.msk [vmem:[#allocation2 + $0x78] sm:$0xff] %vm330, 0.0
      $region32: #{conv_generator_forward.13} parent=27 // pred_fallthru
        _
      %v347 = vld [vmem:[#allocation2] sm:$0xff]
      %v348 = vld [vmem:[#allocation2 + $0x8] sm:$0xff]
      %v349 = vld [vmem:[#allocation2 + $0x10] sm:$0xff]
      %v350 = vld [vmem:[#allocation2 + $0x18] sm:$0xff]
      %v351 = vld [vmem:[#allocation2 + $0x20] sm:$0xff]
      %v352 = vld [vmem:[#allocation2 + $0x28] sm:$0xff]
      %v353 = vld [vmem:[#allocation2 + $0x30] sm:$0xff]
      %v354 = vld [vmem:[#allocation2 + $0x38] sm:$0xff]
      %v355 = vld [vmem:[#allocation2 + $0x40] sm:$0xff]
      %v356 = vld [vmem:[#allocation2 + $0x48] sm:$0xff]
      %v357 = vld [vmem:[#allocation2 + $0x50] sm:$0xff]
      %v358 = vld [vmem:[#allocation2 + $0x58] sm:$0xff]
      %v359 = vld [vmem:[#allocation2 + $0x60] sm:$0xff]
      %v360 = vld [vmem:[#allocation2 + $0x68] sm:$0xff]
      %v361 = vld [vmem:[#allocation2 + $0x70] sm:$0xff]
      %v362 = vld [vmem:[#allocation2 + $0x78] sm:$0xff]
      %v363 = vld [vmem:[%s286] sm:$0xff]
      %v364 = vld [vmem:[%s286 + $0x8] sm:$0xff]
      %v365 = vld [vmem:[%s286 + $0x10] sm:$0xff]
      %v366 = vld [vmem:[%s286 + $0x18] sm:$0xff]
      %v367 = vld [vmem:[%s286 + $0x20] sm:$0xff]
      %v368 = vld [vmem:[%s286 + $0x28] sm:$0xff]
      %v369 = vld [vmem:[%s286 + $0x30] sm:$0xff]
      %v370 = vld [vmem:[%s286 + $0x38] sm:$0xff]
      %v371 = vld [vmem:[%s286 + $0x40] sm:$0xff]
      %v372 = vld [vmem:[%s286 + $0x48] sm:$0xff]
      %v373 = vld [vmem:[%s286 + $0x50] sm:$0xff]
      %v374 = vld [vmem:[%s286 + $0x58] sm:$0xff]
      %v375 = vld [vmem:[%s286 + $0x60] sm:$0xff]
      %v376 = vld [vmem:[%s286 + $0x68] sm:$0xff]
      %v377 = vld [vmem:[%s286 + $0x70] sm:$0xff]
      %v378 = vld [vmem:[%s286 + $0x78] sm:$0xff]
      %v379 = vld [vmem:[%s286 + $0x80] sm:$0xff]
      %v380 = vld [vmem:[%s286 + $0x88] sm:$0xff]
      %v381 = vld [vmem:[%s286 + $0x90] sm:$0xff]
      %v382 = vld [vmem:[%s286 + $0x98] sm:$0xff]
      %v383 = vld [vmem:[%s286 + $0xa0] sm:$0xff]
      %v384 = vld [vmem:[%s286 + $0xa8] sm:$0xff]
      %v385 = vld [vmem:[%s286 + $0xb0] sm:$0xff]
      %v386 = vld [vmem:[%s286 + $0xb8] sm:$0xff]
      %v387 = vld [vmem:[%s286 + $0xc0] sm:$0xff]
      %v388 = vld [vmem:[%s286 + $0xc8] sm:$0xff]
      %v389 = vld [vmem:[%s286 + $0xd0] sm:$0xff]
      %v390 = vld [vmem:[%s286 + $0xd8] sm:$0xff]
      %v391 = vld [vmem:[%s286 + $0xe0] sm:$0xff]
      %v392 = vld [vmem:[%s286 + $0xe8] sm:$0xff]
      %v393 = vld [vmem:[%s286 + $0xf0] sm:$0xff]
      %v394 = vld [vmem:[%s286 + $0xf8] sm:$0xff]
      %v395 = vld [vmem:[%s300] sm:$0xf]
      %v396 = vld [vmem:[%s300 + $0x4] sm:$0xf]
      %v397 = vld [vmem:[%s300 + $0x8] sm:$0xf]
      %v398 = vld [vmem:[%s300 + $0xc] sm:$0xf]
      %v399 = vld [vmem:[%s300 + $0x10] sm:$0xf]
      %v400 = vld [vmem:[%s300 + $0x14] sm:$0xf]
      %v401 = vld [vmem:[%s300 + $0x18] sm:$0xf]
      %v402 = vld [vmem:[%s300 + $0x1c] sm:$0xf]
      %v403 = vld [vmem:[%s300 + $0x20] sm:$0xf]
      %v404 = vld [vmem:[%s300 + $0x24] sm:$0xf]
      %v405 = vld [vmem:[%s300 + $0x28] sm:$0xf]
      %v406 = vld [vmem:[%s300 + $0x2c] sm:$0xf]
      %v407 = vld [vmem:[%s300 + $0x30] sm:$0xf]
      %v408 = vld [vmem:[%s300 + $0x34] sm:$0xf]
      %v409 = vld [vmem:[%s300 + $0x38] sm:$0xf]
      %v410 = vld [vmem:[%s300 + $0x3c] sm:$0xf]
      %v411 = vld [vmem:[%s300 + $0x40] sm:$0xf]
      %v412 = vld [vmem:[%s300 + $0x44] sm:$0xf]
      %v413 = vld [vmem:[%s300 + $0x48] sm:$0xf]
      %v414 = vld [vmem:[%s300 + $0x4c] sm:$0xf]
      %v415 = vld [vmem:[%s300 + $0x50] sm:$0xf]
      %v416 = vld [vmem:[%s300 + $0x54] sm:$0xf]
      %v417 = vld [vmem:[%s300 + $0x58] sm:$0xf]
      %v418 = vld [vmem:[%s300 + $0x5c] sm:$0xf]
      %v419 = vld [vmem:[%s300 + $0x60] sm:$0xf]
      %v420 = vld [vmem:[%s300 + $0x64] sm:$0xf]
      %v421 = vld [vmem:[%s300 + $0x68] sm:$0xf]
      %v422 = vld [vmem:[%s300 + $0x6c] sm:$0xf]
      %v423 = vld [vmem:[%s300 + $0x70] sm:$0xf]
      %v424 = vld [vmem:[%s300 + $0x74] sm:$0xf]
      %v425 = vld [vmem:[%s300 + $0x78] sm:$0xf]
      %v426 = vld [vmem:[%s300 + $0x7c] sm:$0xf]
      %v427 = vld [vmem:[%s300 + $0x80] sm:$0xf]
      %v428 = vld [vmem:[%s300 + $0x84] sm:$0xf]
      %v429 = vld [vmem:[%s300 + $0x88] sm:$0xf]
      %v430 = vld [vmem:[%s300 + $0x8c] sm:$0xf]
      %v431 = vld [vmem:[%s300 + $0x90] sm:$0xf]
      %v432 = vld [vmem:[%s300 + $0x94] sm:$0xf]
      %v433 = vld [vmem:[%s300 + $0x98] sm:$0xf]
      %v434 = vld [vmem:[%s300 + $0x9c] sm:$0xf]
      %v435 = vld [vmem:[%s300 + $0xa0] sm:$0xf]
      %v436 = vld [vmem:[%s300 + $0xa4] sm:$0xf]
      %v437 = vld [vmem:[%s300 + $0xa8] sm:$0xf]
      %v438 = vld [vmem:[%s300 + $0xac] sm:$0xf]
      %v439 = vld [vmem:[%s300 + $0xb0] sm:$0xf]
      %v440 = vld [vmem:[%s300 + $0xb4] sm:$0xf]
      %v441 = vld [vmem:[%s300 + $0xb8] sm:$0xf]
      %v442 = vld [vmem:[%s300 + $0xbc] sm:$0xf]
      %v443 = vld [vmem:[%s300 + $0xc0] sm:$0xf]
      %v444 = vld [vmem:[%s300 + $0xc4] sm:$0xf]
      %v445 = vld [vmem:[%s300 + $0xc8] sm:$0xf]
      %v446 = vld [vmem:[%s300 + $0xcc] sm:$0xf]
      %v447 = vld [vmem:[%s300 + $0xd0] sm:$0xf]
      %v448 = vld [vmem:[%s300 + $0xd4] sm:$0xf]
      %v449 = vld [vmem:[%s300 + $0xd8] sm:$0xf]
      %v450 = vld [vmem:[%s300 + $0xdc] sm:$0xf]
      %v451 = vld [vmem:[%s300 + $0xe0] sm:$0xf]
      %v452 = vld [vmem:[%s300 + $0xe4] sm:$0xf]
      %v453 = vld [vmem:[%s300 + $0xe8] sm:$0xf]
      %v454 = vld [vmem:[%s300 + $0xec] sm:$0xf]
      %v455 = vld [vmem:[%s300 + $0xf0] sm:$0xf]
      %v456 = vld [vmem:[%s300 + $0xf4] sm:$0xf]
      %v457 = vld [vmem:[%s300 + $0xf8] sm:$0xf]
      %v458 = vld [vmem:[%s300 + $0xfc] sm:$0xf]
      %v491 = vunpack.c.l.b16 %v363
      %v492 = vunpack.c.h.b16 %v363
      %v493 = vunpack.c.l.b16 %v364
      %v494 = vunpack.c.h.b16 %v364
      %v495 = vunpack.c.l.b16 %v365
      %v496 = vunpack.c.h.b16 %v365
      %v497 = vunpack.c.l.b16 %v366
      %v498 = vunpack.c.h.b16 %v366
      %v499 = vunpack.c.l.b16 %v367
      %v500 = vunpack.c.h.b16 %v367
      %v501 = vunpack.c.l.b16 %v368
      %v502 = vunpack.c.h.b16 %v368
      %v503 = vunpack.c.l.b16 %v369
      %v504 = vunpack.c.h.b16 %v369
      %v505 = vunpack.c.l.b16 %v370
      %v506 = vunpack.c.h.b16 %v370
      %v507 = vunpack.c.l.b16 %v371
      %v508 = vunpack.c.h.b16 %v371
      %v509 = vunpack.c.l.b16 %v372
      %v510 = vunpack.c.h.b16 %v372
      %v511 = vunpack.c.l.b16 %v373
      %v512 = vunpack.c.h.b16 %v373
      %v513 = vunpack.c.l.b16 %v374
      %v514 = vunpack.c.h.b16 %v374
      %v515 = vunpack.c.l.b16 %v375
      %v516 = vunpack.c.h.b16 %v375
      %v517 = vunpack.c.l.b16 %v376
      %v518 = vunpack.c.h.b16 %v376
      %v519 = vunpack.c.l.b16 %v377
      %v520 = vunpack.c.h.b16 %v377
      %v521 = vunpack.c.l.b16 %v378
      %v522 = vunpack.c.h.b16 %v378
      %v523 = vunpack.c.l.b16 %v379
      %v524 = vunpack.c.h.b16 %v379
      %v525 = vunpack.c.l.b16 %v380
      %v526 = vunpack.c.h.b16 %v380
      %v527 = vunpack.c.l.b16 %v381
      %v528 = vunpack.c.h.b16 %v381
      %v529 = vunpack.c.l.b16 %v382
      %v530 = vunpack.c.h.b16 %v382
      %v531 = vunpack.c.l.b16 %v383
      %v532 = vunpack.c.h.b16 %v383
      %v533 = vunpack.c.l.b16 %v384
      %v534 = vunpack.c.h.b16 %v384
      %v535 = vunpack.c.l.b16 %v385
      %v536 = vunpack.c.h.b16 %v385
      %v537 = vunpack.c.l.b16 %v386
      %v538 = vunpack.c.h.b16 %v386
      %v539 = vunpack.c.l.b16 %v387
      %v540 = vunpack.c.h.b16 %v387
      %v541 = vunpack.c.l.b16 %v388
      %v542 = vunpack.c.h.b16 %v388
      %v543 = vunpack.c.l.b16 %v389
      %v544 = vunpack.c.h.b16 %v389
      %v545 = vunpack.c.l.b16 %v390
      %v546 = vunpack.c.h.b16 %v390
      %v547 = vunpack.c.l.b16 %v391
      %v548 = vunpack.c.h.b16 %v391
      %v549 = vunpack.c.l.b16 %v392
      %v550 = vunpack.c.h.b16 %v392
      %v551 = vunpack.c.l.b16 %v393
      %v552 = vunpack.c.h.b16 %v393
      %v553 = vunpack.c.l.b16 %v394
      %v554 = vunpack.c.h.b16 %v394
      %v555 = vpack.c.b16 %v495, %v491
      %v556 = vpack.c.b16 %v496, %v492
      %v557 = vpack.c.b16 %v497, %v493
      %v558 = vpack.c.b16 %v498, %v494
      %v559 = vpack.c.b16 %v503, %v499
      %v560 = vpack.c.b16 %v504, %v500
      %v561 = vpack.c.b16 %v505, %v501
      %v562 = vpack.c.b16 %v506, %v502
      %v563 = vpack.c.b16 %v511, %v507
      %v564 = vpack.c.b16 %v512, %v508
      %v565 = vpack.c.b16 %v513, %v509
      %v566 = vpack.c.b16 %v514, %v510
      %v567 = vpack.c.b16 %v519, %v515
      %v568 = vpack.c.b16 %v520, %v516
      %v569 = vpack.c.b16 %v521, %v517
      %v570 = vpack.c.b16 %v522, %v518
      %v571 = vpack.c.b16 %v527, %v523
      %v572 = vpack.c.b16 %v528, %v524
      %v573 = vpack.c.b16 %v529, %v525
      %v574 = vpack.c.b16 %v530, %v526
      %v575 = vpack.c.b16 %v535, %v531
      %v576 = vpack.c.b16 %v536, %v532
      %v577 = vpack.c.b16 %v537, %v533
      %v578 = vpack.c.b16 %v538, %v534
      %v579 = vpack.c.b16 %v543, %v539
      %v580 = vpack.c.b16 %v544, %v540
      %v581 = vpack.c.b16 %v545, %v541
      %v582 = vpack.c.b16 %v546, %v542
      %v583 = vpack.c.b16 %v551, %v547
      %v584 = vpack.c.b16 %v552, %v548
      %v585 = vpack.c.b16 %v553, %v549
      %v586 = vpack.c.b16 %v554, %v550
      %v683 = vunpack.c.l.b16 %v395
      %v684 = vunpack.c.l.b16 %v396
      %v685 = vunpack.c.l.b16 %v397
      %v686 = vunpack.c.l.b16 %v398
      %v687 = vunpack.c.l.b16 %v399
      %v688 = vunpack.c.l.b16 %v400
      %v689 = vunpack.c.l.b16 %v401
      %v690 = vunpack.c.l.b16 %v402
      %v691 = vunpack.c.l.b16 %v403
      %v692 = vunpack.c.l.b16 %v404
      %v693 = vunpack.c.l.b16 %v405
      %v694 = vunpack.c.l.b16 %v406
      %v695 = vunpack.c.l.b16 %v407
      %v696 = vunpack.c.l.b16 %v408
      %v697 = vunpack.c.l.b16 %v409
      %v698 = vunpack.c.l.b16 %v410
      %v699 = vunpack.c.l.b16 %v411
      %v700 = vunpack.c.l.b16 %v412
      %v701 = vunpack.c.l.b16 %v413
      %v702 = vunpack.c.l.b16 %v414
      %v703 = vunpack.c.l.b16 %v415
      %v704 = vunpack.c.l.b16 %v416
      %v705 = vunpack.c.l.b16 %v417
      %v706 = vunpack.c.l.b16 %v418
      %v707 = vunpack.c.l.b16 %v419
      %v708 = vunpack.c.l.b16 %v420
      %v709 = vunpack.c.l.b16 %v421
      %v710 = vunpack.c.l.b16 %v422
      %v711 = vunpack.c.l.b16 %v423
      %v712 = vunpack.c.l.b16 %v424
      %v713 = vunpack.c.l.b16 %v425
      %v714 = vunpack.c.l.b16 %v426
      %v715 = vunpack.c.l.b16 %v427
      %v716 = vunpack.c.l.b16 %v428
      %v717 = vunpack.c.l.b16 %v429
      %v718 = vunpack.c.l.b16 %v430
      %v719 = vunpack.c.l.b16 %v431
      %v720 = vunpack.c.l.b16 %v432
      %v721 = vunpack.c.l.b16 %v433
      %v722 = vunpack.c.l.b16 %v434
      %v723 = vunpack.c.l.b16 %v435
      %v724 = vunpack.c.l.b16 %v436
      %v725 = vunpack.c.l.b16 %v437
      %v726 = vunpack.c.l.b16 %v438
      %v727 = vunpack.c.l.b16 %v439
      %v728 = vunpack.c.l.b16 %v440
      %v729 = vunpack.c.l.b16 %v441
      %v730 = vunpack.c.l.b16 %v442
      %v731 = vunpack.c.l.b16 %v443
      %v732 = vunpack.c.l.b16 %v444
      %v733 = vunpack.c.l.b16 %v445
      %v734 = vunpack.c.l.b16 %v446
      %v735 = vunpack.c.l.b16 %v447
      %v736 = vunpack.c.l.b16 %v448
      %v737 = vunpack.c.l.b16 %v449
      %v738 = vunpack.c.l.b16 %v450
      %v739 = vunpack.c.l.b16 %v451
      %v740 = vunpack.c.l.b16 %v452
      %v741 = vunpack.c.l.b16 %v453
      %v742 = vunpack.c.l.b16 %v454
      %v743 = vunpack.c.l.b16 %v455
      %v744 = vunpack.c.l.b16 %v456
      %v745 = vunpack.c.l.b16 %v457
      %v746 = vunpack.c.l.b16 %v458
      %v747 = vpack.c.b16 %v684, %v683
      %v748 = vpack.c.b16 %v686, %v685
      %v749 = vpack.c.b16 %v688, %v687
      %v750 = vpack.c.b16 %v690, %v689
      %v751 = vpack.c.b16 %v692, %v691
      %v752 = vpack.c.b16 %v694, %v693
      %v753 = vpack.c.b16 %v696, %v695
      %v754 = vpack.c.b16 %v698, %v697
      %v755 = vpack.c.b16 %v700, %v699
      %v756 = vpack.c.b16 %v702, %v701
      %v757 = vpack.c.b16 %v704, %v703
      %v758 = vpack.c.b16 %v706, %v705
      %v759 = vpack.c.b16 %v708, %v707
      %v760 = vpack.c.b16 %v710, %v709
      %v761 = vpack.c.b16 %v712, %v711
      %v762 = vpack.c.b16 %v714, %v713
      %v763 = vpack.c.b16 %v716, %v715
      %v764 = vpack.c.b16 %v718, %v717
      %v765 = vpack.c.b16 %v720, %v719
      %v766 = vpack.c.b16 %v722, %v721
      %v767 = vpack.c.b16 %v724, %v723
      %v768 = vpack.c.b16 %v726, %v725
      %v769 = vpack.c.b16 %v728, %v727
      %v770 = vpack.c.b16 %v730, %v729
      %v771 = vpack.c.b16 %v732, %v731
      %v772 = vpack.c.b16 %v734, %v733
      %v773 = vpack.c.b16 %v736, %v735
      %v774 = vpack.c.b16 %v738, %v737
      %v775 = vpack.c.b16 %v740, %v739
      %v776 = vpack.c.b16 %v742, %v741
      %v777 = vpack.c.b16 %v744, %v743
      %v778 = vpack.c.b16 %v746, %v745
      %811 = vmatprep.subr.bf16.mxu0 0
      %812 = vmatpush1.bf16.msra.mxu0 %v747
      %813 = vmatprep.subr.bf16.mxu0 0
      %814 = vmatpush1.bf16.msra.mxu0 %v748
      %815 = vmatprep.subr.bf16.mxu0 0
      %816 = vmatpush1.bf16.msra.mxu0 %v749
      %817 = vmatprep.subr.bf16.mxu0 0
      %818 = vmatpush1.bf16.msra.mxu0 %v750
      %819 = vmatprep.subr.bf16.mxu0 0
      %820 = vmatpush1.bf16.msra.mxu0 %v751
      %821 = vmatprep.subr.bf16.mxu0 0
      %822 = vmatpush1.bf16.msra.mxu0 %v752
      %823 = vmatprep.subr.bf16.mxu0 0
      %824 = vmatpush1.bf16.msra.mxu0 %v753
      %825 = vmatprep.subr.bf16.mxu0 0
      %826 = vmatpush1.bf16.msra.mxu0 %v754
      %827 = vmatprep.subr.bf16.mxu0 0
      %828 = vmatpush1.bf16.msra.mxu0 %v755
      %829 = vmatprep.subr.bf16.mxu0 0
      %830 = vmatpush1.bf16.msra.mxu0 %v756
      %831 = vmatprep.subr.bf16.mxu0 0
      %832 = vmatpush1.bf16.msra.mxu0 %v757
      %833 = vmatprep.subr.bf16.mxu0 0
      %834 = vmatpush1.bf16.msra.mxu0 %v758
      %835 = vmatprep.subr.bf16.mxu0 0
      %836 = vmatpush1.bf16.msra.mxu0 %v759
      %837 = vmatprep.subr.bf16.mxu0 0
      %838 = vmatpush1.bf16.msra.mxu0 %v760
      %839 = vmatprep.subr.bf16.mxu0 0
      %840 = vmatpush1.bf16.msra.mxu0 %v761
      %841 = vmatprep.subr.bf16.mxu0 0
      %842 = vmatpush1.bf16.msra.mxu0 %v762
      %843 = vmatprep.mubr.bf16.mxu0 %v556
      %844 = vmatmul.mubr.bf16.gmra.mrb[0].mxu0 %v555
      %v845 = vpop.f32.mrb[0].mxu0
      %v846 = vadd.f32 0.0, %v845
      %v847 = vpop.f32.mrb[0].mxu0
      %v848 = vpop.f32.mrb[0].mxu0
      %v849 = vadd.f32 0.0, %v848
      %v850 = vpop.f32.mrb[0].mxu0
      %851 = vmatprep.mubr.bf16.mxu0 %v560
      %852 = vmatmul.mubr.bf16.gmra.mrb[0].mxu0 %v559
      %v853 = vpop.f32.mrb[0].mxu0
      %v854 = vadd.f32 0.0, %v853
      %v855 = vpop.f32.mrb[0].mxu0
      %v856 = vpop.f32.mrb[0].mxu0
      %v857 = vadd.f32 0.0, %v856
      %v858 = vpop.f32.mrb[0].mxu0
      %859 = vmatprep.mubr.bf16.mxu0 %v564
      %860 = vmatmul.mubr.bf16.gmra.mrb[0].mxu0 %v563
      %v861 = vpop.f32.mrb[0].mxu0
      %v862 = vadd.f32 0.0, %v861
      %v863 = vpop.f32.mrb[0].mxu0
      %v864 = vpop.f32.mrb[0].mxu0
      %v865 = vadd.f32 0.0, %v864
      %v866 = vpop.f32.mrb[0].mxu0
      %867 = vmatprep.mubr.bf16.mxu0 %v568
      %868 = vmatmul.mubr.bf16.gmra.mrb[0].mxu0 %v567
      %v869 = vpop.f32.mrb[0].mxu0
      %v870 = vadd.f32 0.0, %v869
      %v871 = vpop.f32.mrb[0].mxu0
      %v872 = vpop.f32.mrb[0].mxu0
      %v873 = vadd.f32 0.0, %v872
      %v874 = vpop.f32.mrb[0].mxu0
      %875 = vmatprep.mubr.bf16.mxu0 %v572
      %876 = vmatmul.mubr.bf16.gmra.mrb[0].mxu0 %v571
      %v877 = vpop.f32.mrb[0].mxu0
      %v878 = vadd.f32 0.0, %v877
      %v879 = vpop.f32.mrb[0].mxu0
      %v880 = vpop.f32.mrb[0].mxu0
      %v881 = vadd.f32 0.0, %v880
      %v882 = vpop.f32.mrb[0].mxu0
      %883 = vmatprep.mubr.bf16.mxu0 %v576
      %884 = vmatmul.mubr.bf16.gmra.mrb[0].mxu0 %v575
      %v885 = vpop.f32.mrb[0].mxu0
      %v886 = vadd.f32 0.0, %v885
      %v887 = vpop.f32.mrb[0].mxu0
      %v888 = vpop.f32.mrb[0].mxu0
      %v889 = vadd.f32 0.0, %v888
      %v890 = vpop.f32.mrb[0].mxu0
      %891 = vmatprep.mubr.bf16.mxu0 %v580
      %892 = vmatmul.mubr.bf16.gmra.mrb[0].mxu0 %v579
      %v893 = vpop.f32.mrb[0].mxu0
      %v894 = vadd.f32 0.0, %v893
      %v895 = vpop.f32.mrb[0].mxu0
      %v896 = vpop.f32.mrb[0].mxu0
      %v897 = vadd.f32 0.0, %v896
      %v898 = vpop.f32.mrb[0].mxu0
      %899 = vmatprep.mubr.bf16.mxu0 %v584
      %900 = vmatmul.mubr.bf16.gmra.mrb[0].mxu0 %v583
      %v901 = vpop.f32.mrb[0].mxu0
      %v902 = vadd.f32 0.0, %v901
      %v903 = vpop.f32.mrb[0].mxu0
      %v904 = vpop.f32.mrb[0].mxu0
      %v905 = vadd.f32 0.0, %v904
      %v906 = vpop.f32.mrb[0].mxu0
      %907 = vdwg.mxu0
      %908 = vmatprep.subr.bf16.mxu0 0
      %909 = vmatpush1.bf16.msra.mxu0 %v763
      %910 = vmatprep.subr.bf16.mxu0 0
      %911 = vmatpush1.bf16.msra.mxu0 %v764
      %912 = vmatprep.subr.bf16.mxu0 0
      %913 = vmatpush1.bf16.msra.mxu0 %v765
      %914 = vmatprep.subr.bf16.mxu0 0
      %915 = vmatpush1.bf16.msra.mxu0 %v766
      %916 = vmatprep.subr.bf16.mxu0 0
      %917 = vmatpush1.bf16.msra.mxu0 %v767
      %918 = vmatprep.subr.bf16.mxu0 0
      %919 = vmatpush1.bf16.msra.mxu0 %v768
      %920 = vmatprep.subr.bf16.mxu0 0
      %921 = vmatpush1.bf16.msra.mxu0 %v769
      %922 = vmatprep.subr.bf16.mxu0 0
      %923 = vmatpush1.bf16.msra.mxu0 %v770
      %924 = vmatprep.subr.bf16.mxu0 0
      %925 = vmatpush1.bf16.msra.mxu0 %v771
      %926 = vmatprep.subr.bf16.mxu0 0
      %927 = vmatpush1.bf16.msra.mxu0 %v772
      %928 = vmatprep.subr.bf16.mxu0 0
      %929 = vmatpush1.bf16.msra.mxu0 %v773
      %930 = vmatprep.subr.bf16.mxu0 0
      %931 = vmatpush1.bf16.msra.mxu0 %v774
      %932 = vmatprep.subr.bf16.mxu0 0
      %933 = vmatpush1.bf16.msra.mxu0 %v775
      %934 = vmatprep.subr.bf16.mxu0 0
      %935 = vmatpush1.bf16.msra.mxu0 %v776
      %936 = vmatprep.subr.bf16.mxu0 0
      %937 = vmatpush1.bf16.msra.mxu0 %v777
      %938 = vmatprep.subr.bf16.mxu0 0
      %939 = vmatpush1.bf16.msra.mxu0 %v778
      %940 = vmatprep.mubr.bf16.mxu0 %v558
      %941 = vmatmul.mubr.bf16.gmra.mrb[0].mxu0 %v557
      %v942 = vpop.f32.mrb[0].mxu0
      %v943 = vadd.f32 %v846, %v942
      %v944 = vpop.f32.mrb[0].mxu0
      %v945 = vpop.f32.mrb[0].mxu0
      %v946 = vadd.f32 %v849, %v945
      %v947 = vpop.f32.mrb[0].mxu0
      %948 = vmatprep.mubr.bf16.mxu0 %v562
      %949 = vmatmul.mubr.bf16.gmra.mrb[0].mxu0 %v561
      %v950 = vpop.f32.mrb[0].mxu0
      %v951 = vadd.f32 %v854, %v950
      %v952 = vpop.f32.mrb[0].mxu0
      %v953 = vpop.f32.mrb[0].mxu0
      %v954 = vadd.f32 %v857, %v953
      %v955 = vpop.f32.mrb[0].mxu0
      %956 = vmatprep.mubr.bf16.mxu0 %v566
      %957 = vmatmul.mubr.bf16.gmra.mrb[0].mxu0 %v565
      %v958 = vpop.f32.mrb[0].mxu0
      %v959 = vadd.f32 %v862, %v958
      %v960 = vpop.f32.mrb[0].mxu0
      %v961 = vpop.f32.mrb[0].mxu0
      %v962 = vadd.f32 %v865, %v961
      %v963 = vpop.f32.mrb[0].mxu0
      %964 = vmatprep.mubr.bf16.mxu0 %v570
      %965 = vmatmul.mubr.bf16.gmra.mrb[0].mxu0 %v569
      %v966 = vpop.f32.mrb[0].mxu0
      %v967 = vadd.f32 %v870, %v966
      %v968 = vpop.f32.mrb[0].mxu0
      %v969 = vpop.f32.mrb[0].mxu0
      %v970 = vadd.f32 %v873, %v969
      %v971 = vpop.f32.mrb[0].mxu0
      %972 = vmatprep.mubr.bf16.mxu0 %v574
      %973 = vmatmul.mubr.bf16.gmra.mrb[0].mxu0 %v573
      %v974 = vpop.f32.mrb[0].mxu0
      %v975 = vadd.f32 %v878, %v974
      %v976 = vpop.f32.mrb[0].mxu0
      %v977 = vpop.f32.mrb[0].mxu0
      %v978 = vadd.f32 %v881, %v977
      %v979 = vpop.f32.mrb[0].mxu0
      %980 = vmatprep.mubr.bf16.mxu0 %v578
      %981 = vmatmul.mubr.bf16.gmra.mrb[0].mxu0 %v577
      %v982 = vpop.f32.mrb[0].mxu0
      %v983 = vadd.f32 %v886, %v982
      %v984 = vpop.f32.mrb[0].mxu0
      %v985 = vpop.f32.mrb[0].mxu0
      %v986 = vadd.f32 %v889, %v985
      %v987 = vpop.f32.mrb[0].mxu0
      %988 = vmatprep.mubr.bf16.mxu0 %v582
      %989 = vmatmul.mubr.bf16.gmra.mrb[0].mxu0 %v581
      %v990 = vpop.f32.mrb[0].mxu0
      %v991 = vadd.f32 %v894, %v990
      %v992 = vpop.f32.mrb[0].mxu0
      %v993 = vpop.f32.mrb[0].mxu0
      %v994 = vadd.f32 %v897, %v993
      %v995 = vpop.f32.mrb[0].mxu0
      %996 = vmatprep.mubr.bf16.mxu0 %v586
      %997 = vmatmul.mubr.bf16.gmra.mrb[0].mxu0 %v585
      %v998 = vpop.f32.mrb[0].mxu0
      %v999 = vadd.f32 %v902, %v998
      %v1000 = vpop.f32.mrb[0].mxu0
      %v1001 = vpop.f32.mrb[0].mxu0
      %v1002 = vadd.f32 %v905, %v1001
      %v1003 = vpop.f32.mrb[0].mxu0
      %1004 = vdwg.mxu0
      %v1005 = vadd.f32 %v347, %v943
      %v1006 = vadd.f32 %v348, %v946
      %v1007 = vadd.f32 %v349, %v951
      %v1008 = vadd.f32 %v350, %v954
      %v1009 = vadd.f32 %v351, %v959
      %v1010 = vadd.f32 %v352, %v962
      %v1011 = vadd.f32 %v353, %v967
      %v1012 = vadd.f32 %v354, %v970
      %v1013 = vadd.f32 %v355, %v975
      %v1014 = vadd.f32 %v356, %v978
      %v1015 = vadd.f32 %v357, %v983
      %v1016 = vadd.f32 %v358, %v986
      %v1017 = vadd.f32 %v359, %v991
      %v1018 = vadd.f32 %v360, %v994
      %v1019 = vadd.f32 %v361, %v999
      %v1020 = vadd.f32 %v362, %v1002
      %vm1021 = vcmask 523264
      %1022 = vst.msk [vmem:[#allocation2] sm:$0xff] %vm1021, %v1005
      %1023 = vst.msk [vmem:[#allocation2 + $0x8] sm:$0xff] %vm1021, %v1006
      %1024 = vst.msk [vmem:[#allocation2 + $0x10] sm:$0xff] %vm1021, %v1007
      %1025 = vst.msk [vmem:[#allocation2 + $0x18] sm:$0xff] %vm1021, %v1008
      %1026 = vst.msk [vmem:[#allocation2 + $0x20] sm:$0xff] %vm1021, %v1009
      %1027 = vst.msk [vmem:[#allocation2 + $0x28] sm:$0xff] %vm1021, %v1010
      %1028 = vst.msk [vmem:[#allocation2 + $0x30] sm:$0xff] %vm1021, %v1011
      %1029 = vst.msk [vmem:[#allocation2 + $0x38] sm:$0xff] %vm1021, %v1012
      %1030 = vst.msk [vmem:[#allocation2 + $0x40] sm:$0xff] %vm1021, %v1013
      %1031 = vst.msk [vmem:[#allocation2 + $0x48] sm:$0xff] %vm1021, %v1014
      %1032 = vst.msk [vmem:[#allocation2 + $0x50] sm:$0xff] %vm1021, %v1015
      %1033 = vst.msk [vmem:[#allocation2 + $0x58] sm:$0xff] %vm1021, %v1016
      %1034 = vst.msk [vmem:[#allocation2 + $0x60] sm:$0xff] %vm1021, %v1017
      %1035 = vst.msk [vmem:[#allocation2 + $0x68] sm:$0xff] %vm1021, %v1018
      %1036 = vst.msk [vmem:[#allocation2 + $0x70] sm:$0xff] %vm1021, %v1019
      %1037 = vst.msk [vmem:[#allocation2 + $0x78] sm:$0xff] %vm1021, %v1020
      // Predicated region
      $region33: #{conv_generator_forward.13} parent=27 // pred_check
        %p1038 = pneg %p326
      $region34: #{conv_generator_forward.13} parent=27 // pred_check_branch
        %1040 = sbr.rel (%p1038) target = $region36
      $region35: #{conv_generator_forward.13} parent=27 // pred_region
        %v1041 = vld [vmem:[#allocation2] sm:$0xff]
        %v1042 = vld [vmem:[#allocation2 + $0x8] sm:$0xff]
        %v1043 = vld [vmem:[#allocation2 + $0x10] sm:$0xff]
        %v1044 = vld [vmem:[#allocation2 + $0x18] sm:$0xff]
        %v1045 = vld [vmem:[#allocation2 + $0x20] sm:$0xff]
        %v1046 = vld [vmem:[#allocation2 + $0x28] sm:$0xff]
        %v1047 = vld [vmem:[#allocation2 + $0x30] sm:$0xff]
        %v1048 = vld [vmem:[#allocation2 + $0x38] sm:$0xff]
        %v1049 = vld [vmem:[#allocation2 + $0x40] sm:$0xff]
        %v1050 = vld [vmem:[#allocation2 + $0x48] sm:$0xff]
        %v1051 = vld [vmem:[#allocation2 + $0x50] sm:$0xff]
        %v1052 = vld [vmem:[#allocation2 + $0x58] sm:$0xff]
        %v1053 = vld [vmem:[#allocation2 + $0x60] sm:$0xff]
        %v1054 = vld [vmem:[#allocation2 + $0x68] sm:$0xff]
        %v1055 = vld [vmem:[#allocation2 + $0x70] sm:$0xff]
        %v1056 = vld [vmem:[#allocation2 + $0x78] sm:$0xff]
        %1057 = vst.msk [vmem:[%s313] sm:$0xff] %vm1021, %v1041
        %1058 = vst.msk [vmem:[%s313 + $0x8] sm:$0xff] %vm1021, %v1042
        %1059 = vst.msk [vmem:[%s313 + $0x10] sm:$0xff] %vm1021, %v1043
        %1060 = vst.msk [vmem:[%s313 + $0x18] sm:$0xff] %vm1021, %v1044
        %1061 = vst.msk [vmem:[%s313 + $0x20] sm:$0xff] %vm1021, %v1045
        %1062 = vst.msk [vmem:[%s313 + $0x28] sm:$0xff] %vm1021, %v1046
        %1063 = vst.msk [vmem:[%s313 + $0x30] sm:$0xff] %vm1021, %v1047
        %1064 = vst.msk [vmem:[%s313 + $0x38] sm:$0xff] %vm1021, %v1048
        %1065 = vst.msk [vmem:[%s313 + $0x40] sm:$0xff] %vm1021, %v1049
        %1066 = vst.msk [vmem:[%s313 + $0x48] sm:$0xff] %vm1021, %v1050
        %1067 = vst.msk [vmem:[%s313 + $0x50] sm:$0xff] %vm1021, %v1051
        %1068 = vst.msk [vmem:[%s313 + $0x58] sm:$0xff] %vm1021, %v1052
        %1069 = vst.msk [vmem:[%s313 + $0x60] sm:$0xff] %vm1021, %v1053
        %1070 = vst.msk [vmem:[%s313 + $0x68] sm:$0xff] %vm1021, %v1054
        %1071 = vst.msk [vmem:[%s313 + $0x70] sm:$0xff] %vm1021, %v1055
        %1072 = vst.msk [vmem:[%s313 + $0x78] sm:$0xff] %vm1021, %v1056
        %v1073 = vsel %vm1021, %v1041, 0.0
        %v1074 = vsel %vm1021, %v1042, 0.0
        %v1075 = vadd.f32 %v1073, %v1074
        %v1076 = vsel %vm1021, %v1043, 0.0
        %v1077 = vadd.f32 %v1075, %v1076
        %v1078 = vsel %vm1021, %v1044, 0.0
        %v1079 = vadd.f32 %v1077, %v1078
        %v1080 = vsel %vm1021, %v1045, 0.0
        %v1081 = vadd.f32 %v1079, %v1080
        %v1082 = vsel %vm1021, %v1046, 0.0
        %v1083 = vadd.f32 %v1081, %v1082
        %v1084 = vsel %vm1021, %v1047, 0.0
        %v1085 = vadd.f32 %v1083, %v1084
        %v1086 = vsel %vm1021, %v1048, 0.0
        %v1087 = vadd.f32 %v1085, %v1086
        %v1088 = vsel %vm1021, %v1049, 0.0
        %v1089 = vadd.f32 %v1087, %v1088
        %v1090 = vsel %vm1021, %v1050, 0.0
        %v1091 = vadd.f32 %v1089, %v1090
        %v1092 = vsel %vm1021, %v1051, 0.0
        %v1093 = vadd.f32 %v1091, %v1092
        %v1094 = vsel %vm1021, %v1052, 0.0
        %v1095 = vadd.f32 %v1093, %v1094
        %v1096 = vsel %vm1021, %v1053, 0.0
        %v1097 = vadd.f32 %v1095, %v1096
        %v1098 = vsel %vm1021, %v1054, 0.0
        %v1099 = vadd.f32 %v1097, %v1098
        %v1100 = vsel %vm1021, %v1055, 0.0
        %v1101 = vadd.f32 %v1099, %v1100
        %v1102 = vsel %vm1021, %v1056, 0.0
        %v1103 = vadd.f32 %v1101, %v1102
        %v1104 = vrot.slane %v1103, 4
        %v1105 = vadd.f32 %v1103, %v1104
        %v1106 = vrot.slane %v1105, 2
        %v1107 = vadd.f32 %v1105, %v1106
        %v1108 = vrot.slane %v1107, 1
        %v1109 = vadd.f32 %v1107, %v1108
        %v1110 = vmul.f32 %v1041, %v1041
        %v1111 = vmul.f32 %v1042, %v1042
        %v1112 = vmul.f32 %v1043, %v1043
        %v1113 = vmul.f32 %v1044, %v1044
        %v1114 = vmul.f32 %v1045, %v1045
        %v1115 = vmul.f32 %v1046, %v1046
        %v1116 = vmul.f32 %v1047, %v1047
        %v1117 = vmul.f32 %v1048, %v1048
        %v1118 = vmul.f32 %v1049, %v1049
        %v1119 = vmul.f32 %v1050, %v1050
        %v1120 = vmul.f32 %v1051, %v1051
        %v1121 = vmul.f32 %v1052, %v1052
        %v1122 = vmul.f32 %v1053, %v1053
        %v1123 = vmul.f32 %v1054, %v1054
        %v1124 = vmul.f32 %v1055, %v1055
        %v1125 = vmul.f32 %v1056, %v1056
        %v1126 = vsel %vm1021, %v1110, 0.0
        %v1127 = vsel %vm1021, %v1111, 0.0
        %v1128 = vadd.f32 %v1126, %v1127
        %v1129 = vsel %vm1021, %v1112, 0.0
        %v1130 = vadd.f32 %v1128, %v1129
        %v1131 = vsel %vm1021, %v1113, 0.0
        %v1132 = vadd.f32 %v1130, %v1131
        %v1133 = vsel %vm1021, %v1114, 0.0
        %v1134 = vadd.f32 %v1132, %v1133
        %v1135 = vsel %vm1021, %v1115, 0.0
        %v1136 = vadd.f32 %v1134, %v1135
        %v1137 = vsel %vm1021, %v1116, 0.0
        %v1138 = vadd.f32 %v1136, %v1137
        %v1139 = vsel %vm1021, %v1117, 0.0
        %v1140 = vadd.f32 %v1138, %v1139
        %v1141 = vsel %vm1021, %v1118, 0.0
        %v1142 = vadd.f32 %v1140, %v1141
        %v1143 = vsel %vm1021, %v1119, 0.0
        %v1144 = vadd.f32 %v1142, %v1143
        %v1145 = vsel %vm1021, %v1120, 0.0
        %v1146 = vadd.f32 %v1144, %v1145
        %v1147 = vsel %vm1021, %v1121, 0.0
        %v1148 = vadd.f32 %v1146, %v1147
        %v1149 = vsel %vm1021, %v1122, 0.0
        %v1150 = vadd.f32 %v1148, %v1149
        %v1151 = vsel %vm1021, %v1123, 0.0
        %v1152 = vadd.f32 %v1150, %v1151
        %v1153 = vsel %vm1021, %v1124, 0.0
        %v1154 = vadd.f32 %v1152, %v1153
        %v1155 = vsel %vm1021, %v1125, 0.0
        %v1156 = vadd.f32 %v1154, %v1155
        %v1157 = vrot.slane %v1156, 4
        %v1158 = vadd.f32 %v1156, %v1157
        %v1159 = vrot.slane %v1158, 2
        %v1160 = vadd.f32 %v1158, %v1159
        %v1161 = vrot.slane %v1160, 1
        %v1162 = vadd.f32 %v1160, %v1161
        %vm1163 = vcmask 1040384
        %v1164 = vsel %vm1163, %v1109, %v1162
        %vm1165 = vcmask 517120
        %1166 = vst.msk [vmem:[%s324] sm:$0x3] %vm1165, %v1164
      $region36: #{conv_generator_forward.13} parent=27 // pred_fallthru
        _
      %s1167 = smul.u32 16, %s22
      %p1168 = scmp.lt.s32.totalorder %s21, 3
      %s1169 = scalar_select %p1168, %s21, 3
      %p1170 = scmp.lt.s32.totalorder %s1167, 15
      %s1171 = scalar_select %p1170, %s1167, 15
      %p1172 = scmp.lt.s32.totalorder %s23, 0
      %s1173 = scalar_select %p1172, %s23, 0
      %s1174 = sadd.s32 %s1173, %s1171
      %s1175 = smul.addr %s1169, 16
      %s1176 = sadd.s32 %s1174, %s1175
      %s1177 = smul.addr %s1176, 8
      %s1178 = scalar_lea.vmem %s2, %s1177
      %p1179 = scmp.lt.s32.totalorder %s21, 3
      %s1180 = scalar_select %p1179, %s21, 3
      %p1181 = scmp.lt.s32.totalorder %s22, 0
      %s1182 = scalar_select %p1181, %s22, 0
      %p1183 = scmp.lt.s32.totalorder %s23, 0
      %s1184 = scalar_select %p1183, %s23, 0
      %s1185 = sadd.s32 %s1184, %s1182
      %s1186 = sadd.s32 %s1185, %s1180
      %s1187 = smul.addr %s1186, 2
      %s1188 = scalar_lea.vmem %s3, %s1187
      // Predicated region
      $region37: #{conv_generator_forward.13} parent=27 // pred_check
        %p1189 = pneg %p123
      $region38: #{conv_generator_forward.13} parent=27 // pred_check_branch
        %1191 = sbr.rel (%p1189) target = $region40
      $region39: #{conv_generator_forward.13} parent=27 // pred_region
        %s1192 = smul.u32 16, %s22
      $region40: #{conv_generator_forward.13} parent=27 // pred_fallthru
        _
      // Predicated region
      $region41: #{conv_generator_forward.13} parent=27 // pred_check
        %p1193 = pneg %p153
      $region42: #{conv_generator_forward.13} parent=27 // pred_check_branch
        %1195 = sbr.rel (%p1193) target = $region44
      $region43: #{conv_generator_forward.13} parent=27 // pred_region
        _
      $region44: #{conv_generator_forward.13} parent=27 // pred_fallthru
        _
    $region28: #{conv_generator_forward.13} parent=5 // pred_fallthru
      _
    %p1196 = scmp.le.s32.totalorder 2, %s10
    // Predicated region
    $region45: #{conv_generator_forward.13} parent=5 // pred_check
      %p1197 = pneg %p1196
    $region46: #{conv_generator_forward.13} parent=5 // pred_check_branch
      %1199 = sbr.rel (%p1197) target = $region48
    $region47: #{conv_generator_forward.13} parent=5 // pred_region
      %s1200 = ssub.s32 %s10, 2
      // Predicated region
      $region49: #{conv_generator_forward.13} parent=47 // pred_check
        %p1201 = pneg %p129
      $region50: #{conv_generator_forward.13} parent=47 // pred_check_branch
        %1203 = sbr.rel (%p1201) target = $region52
      $region51: #{conv_generator_forward.13} parent=47 // pred_region
        %s1204 = smul.u32 16, %s26
        %p1205 = scmp.lt.s32.totalorder %s25, 3
        %s1206 = scalar_select %p1205, %s25, 3
        %p1207 = scmp.lt.s32.totalorder %s1204, 15
        %s1208 = scalar_select %p1207, %s1204, 15
        %p1209 = scmp.lt.s32.totalorder %s27, 0
        %s1210 = scalar_select %p1209, %s27, 0
        %s1211 = sadd.s32 %s1210, %s1208
        %s1212 = smul.addr %s1206, 16
        %s1213 = sadd.s32 %s1211, %s1212
        %s1214 = smul.addr %s1213, 8
        %s1215 = scalar_lea.vmem %s2, %s1214
      $region52: #{conv_generator_forward.13} parent=47 // pred_fallthru
        _
      // Predicated region
      $region53: #{conv_generator_forward.13} parent=47 // pred_check
        %p1216 = pneg %p159
      $region54: #{conv_generator_forward.13} parent=47 // pred_check_branch
        %1218 = sbr.rel (%p1216) target = $region56
      $region55: #{conv_generator_forward.13} parent=47 // pred_region
        %p1219 = scmp.lt.s32.totalorder %s25, 3
        %s1220 = scalar_select %p1219, %s25, 3
        %p1221 = scmp.lt.s32.totalorder %s26, 0
        %s1222 = scalar_select %p1221, %s26, 0
        %p1223 = scmp.lt.s32.totalorder %s27, 0
        %s1224 = scalar_select %p1223, %s27, 0
        %s1225 = sadd.s32 %s1224, %s1222
        %s1226 = sadd.s32 %s1225, %s1220
        %s1227 = smul.addr %s1226, 2
        %s1228 = scalar_lea.vmem %s3, %s1227
      $region56: #{conv_generator_forward.13} parent=47 // pred_fallthru
        _
    $region48: #{conv_generator_forward.13} parent=5 // pred_fallthru
      _
  $region6: #{conv_generator_forward.13} parent=0 // loop_footer
    %s14 = sadd.s32 1, %s10
  $region7: #{conv_generator_forward.13} parent=0 // loop_footer_branch
    %9 = sbr.rel target = $region3
  $region8: #{conv_generator_forward.13} parent=0 // loop_exit
    _

// kernel: conv_generator_forward.14
$region0: #{conv_generator_forward.14}
  #allocation0 [shape = 'u32[]', space=smem, size = 0x4, offset = 0x4, fixed_abs, tag = 'smem constant byte address 0x4 - core index']
  #allocation1 [shape = 'u32[144,128]{1,0:T(1,128)}', space=vmem, size = 0x12000, scoped, tag = 'internal scratch']
  %s0 = inlined_call_operand.vmem [shape: f32[512,64], index: 0, kind: input, shape index: {}]
  %s1 = inlined_call_operand.vmem [shape: f32[1,64], index: 1, kind: input, shape index: {}]
  %s2 = inlined_call_operand.vmem [shape: f32[1,64], index: 2, kind: input, shape index: {}]
  %s3 = inlined_call_operand.vmem [shape: bf16[512,64], index: 3, kind: output, shape index: {}]
  %s4 = sld [smem:[#allocation0]]
  $region22: #{conv_generator_forward.14} parent=0
    _
  %s6 = ssub.s32 1, %s4
  %s7 = scalar_select 0, %s6, %s4
  // Predicated region
  $region2: #{conv_generator_forward.14} parent=0 // pred_check
    _
  $region3: #{conv_generator_forward.14} parent=0 // pred_check_branch
    %9 = sbr.rel (0) target = $region5
  $region4: #{conv_generator_forward.14} parent=0 // pred_region
    _
  $region5: #{conv_generator_forward.14} parent=0 // pred_fallthru
    _
  // Predicated region
  $region6: #{conv_generator_forward.14} parent=0 // pred_check
    _
  $region7: #{conv_generator_forward.14} parent=0 // pred_check_branch
    %11 = sbr.rel (0) target = $region9
  $region8: #{conv_generator_forward.14} parent=0 // pred_region
    _
  $region9: #{conv_generator_forward.14} parent=0 // pred_fallthru
    _
  // Predicated region
  $region10: #{conv_generator_forward.14} parent=0 // pred_check
    _
  $region11: #{conv_generator_forward.14} parent=0 // pred_check_branch
    %13 = sbr.rel (0) target = $region13
  $region12: #{conv_generator_forward.14} parent=0 // pred_region
    _
  $region13: #{conv_generator_forward.14} parent=0 // pred_fallthru
    _
  %v14 = vld [vmem:[%s0] sm:$0xff]
  %v15 = vld [vmem:[%s0 + $0x8] sm:$0xff]
  %v16 = vld [vmem:[%s0 + $0x10] sm:$0xff]
  %v17 = vld [vmem:[%s0 + $0x18] sm:$0xff]
  %v18 = vld [vmem:[%s0 + $0x20] sm:$0xff]
  %v19 = vld [vmem:[%s0 + $0x28] sm:$0xff]
  %v20 = vld [vmem:[%s0 + $0x30] sm:$0xff]
  %v21 = vld [vmem:[%s0 + $0x38] sm:$0xff]
  %v22 = vld [vmem:[%s0 + $0x40] sm:$0xff]
  %v23 = vld [vmem:[%s0 + $0x48] sm:$0xff]
  %v24 = vld [vmem:[%s0 + $0x50] sm:$0xff]
  %v25 = vld [vmem:[%s0 + $0x58] sm:$0xff]
  %v26 = vld [vmem:[%s0 + $0x60] sm:$0xff]
  %v27 = vld [vmem:[%s0 + $0x68] sm:$0xff]
  %v28 = vld [vmem:[%s0 + $0x70] sm:$0xff]
  %v29 = vld [vmem:[%s0 + $0x78] sm:$0xff]
  %v30 = vld [vmem:[%s0 + $0x80] sm:$0xff]
  %v31 = vld [vmem:[%s0 + $0x88] sm:$0xff]
  %v32 = vld [vmem:[%s0 + $0x90] sm:$0xff]
  %v33 = vld [vmem:[%s0 + $0x98] sm:$0xff]
  %v34 = vld [vmem:[%s0 + $0xa0] sm:$0xff]
  %v35 = vld [vmem:[%s0 + $0xa8] sm:$0xff]
  %v36 = vld [vmem:[%s0 + $0xb0] sm:$0xff]
  %v37 = vld [vmem:[%s0 + $0xb8] sm:$0xff]
  %v38 = vld [vmem:[%s0 + $0xc0] sm:$0xff]
  %v39 = vld [vmem:[%s0 + $0xc8] sm:$0xff]
  %v40 = vld [vmem:[%s0 + $0xd0] sm:$0xff]
  %v41 = vld [vmem:[%s0 + $0xd8] sm:$0xff]
  %v42 = vld [vmem:[%s0 + $0xe0] sm:$0xff]
  %v43 = vld [vmem:[%s0 + $0xe8] sm:$0xff]
  %v44 = vld [vmem:[%s0 + $0xf0] sm:$0xff]
  %v45 = vld [vmem:[%s0 + $0xf8] sm:$0xff]
  %v46 = vld [vmem:[%s0 + $0x100] sm:$0xff]
  %v47 = vld [vmem:[%s0 + $0x108] sm:$0xff]
  %v48 = vld [vmem:[%s0 + $0x110] sm:$0xff]
  %v49 = vld [vmem:[%s0 + $0x118] sm:$0xff]
  %v50 = vld [vmem:[%s0 + $0x120] sm:$0xff]
  %v51 = vld [vmem:[%s0 + $0x128] sm:$0xff]
  %v52 = vld [vmem:[%s0 + $0x130] sm:$0xff]
  %v53 = vld [vmem:[%s0 + $0x138] sm:$0xff]
  %v54 = vld [vmem:[%s0 + $0x140] sm:$0xff]
  %v55 = vld [vmem:[%s0 + $0x148] sm:$0xff]
  %v56 = vld [vmem:[%s0 + $0x150] sm:$0xff]
  %v57 = vld [vmem:[%s0 + $0x158] sm:$0xff]
  %v58 = vld [vmem:[%s0 + $0x160] sm:$0xff]
  %v59 = vld [vmem:[%s0 + $0x168] sm:$0xff]
  %v60 = vld [vmem:[%s0 + $0x170] sm:$0xff]
  %v61 = vld [vmem:[%s0 + $0x178] sm:$0xff]
  %v62 = vld [vmem:[%s0 + $0x180] sm:$0xff]
  %v63 = vld [vmem:[%s0 + $0x188] sm:$0xff]
  %v64 = vld [vmem:[%s0 + $0x190] sm:$0xff]
  %v65 = vld [vmem:[%s0 + $0x198] sm:$0xff]
  %v66 = vld [vmem:[%s0 + $0x1a0] sm:$0xff]
  %v67 = vld [vmem:[%s0 + $0x1a8] sm:$0xff]
  %v68 = vld [vmem:[%s0 + $0x1b0] sm:$0xff]
  %v69 = vld [vmem:[%s0 + $0x1b8] sm:$0xff]
  %v70 = vld [vmem:[%s0 + $0x1c0] sm:$0xff]
  %v71 = vld [vmem:[%s0 + $0x1c8] sm:$0xff]
  %v72 = vld [vmem:[%s0 + $0x1d0] sm:$0xff]
  %v73 = vld [vmem:[%s0 + $0x1d8] sm:$0xff]
  %v74 = vld [vmem:[%s0 + $0x1e0] sm:$0xff]
  %v75 = vld [vmem:[%s0 + $0x1e8] sm:$0xff]
  %v76 = vld [vmem:[%s0 + $0x1f0] sm:$0xff]
  %v77 = vld [vmem:[%s0 + $0x1f8] sm:$0xff]
  %v78 = vld [vmem:[%s1] sm:$0x1]
  %v80 = vlaneseq
  %v81 = vshrl.u32 %v80, 7
  %v82 = vsub.s32 0, %v81
  %v83 = vrot.slane %v78, %v82
  %v85 = vmul.f32 %v14, %v83
  %v86 = vmul.f32 %v15, %v83
  %v87 = vmul.f32 %v16, %v83
  %v88 = vmul.f32 %v17, %v83
  %v89 = vmul.f32 %v18, %v83
  %v90 = vmul.f32 %v19, %v83
  %v91 = vmul.f32 %v20, %v83
  %v92 = vmul.f32 %v21, %v83
  %v93 = vmul.f32 %v22, %v83
  %v94 = vmul.f32 %v23, %v83
  %v95 = vmul.f32 %v24, %v83
  %v96 = vmul.f32 %v25, %v83
  %v97 = vmul.f32 %v26, %v83
  %v98 = vmul.f32 %v27, %v83
  %v99 = vmul.f32 %v28, %v83
  %v100 = vmul.f32 %v29, %v83
  %v101 = vmul.f32 %v30, %v83
  %v102 = vmul.f32 %v31, %v83
  %v103 = vmul.f32 %v32, %v83
  %v104 = vmul.f32 %v33, %v83
  %v105 = vmul.f32 %v34, %v83
  %v106 = vmul.f32 %v35, %v83
  %v107 = vmul.f32 %v36, %v83
  %v108 = vmul.f32 %v37, %v83
  %v109 = vmul.f32 %v38, %v83
  %v110 = vmul.f32 %v39, %v83
  %v111 = vmul.f32 %v40, %v83
  %v112 = vmul.f32 %v41, %v83
  %v113 = vmul.f32 %v42, %v83
  %v114 = vmul.f32 %v43, %v83
  %v115 = vmul.f32 %v44, %v83
  %v116 = vmul.f32 %v45, %v83
  %v117 = vmul.f32 %v46, %v83
  %v118 = vmul.f32 %v47, %v83
  %v119 = vmul.f32 %v48, %v83
  %v120 = vmul.f32 %v49, %v83
  %v121 = vmul.f32 %v50, %v83
  %v122 = vmul.f32 %v51, %v83
  %v123 = vmul.f32 %v52, %v83
  %v124 = vmul.f32 %v53, %v83
  %v125 = vmul.f32 %v54, %v83
  %v126 = vmul.f32 %v55, %v83
  %v127 = vmul.f32 %v56, %v83
  %v128 = vmul.f32 %v57, %v83
  %v129 = vmul.f32 %v58, %v83
  %v130 = vmul.f32 %v59, %v83
  %v131 = vmul.f32 %v60, %v83
  %v132 = vmul.f32 %v61, %v83
  %v133 = vmul.f32 %v62, %v83
  %v134 = vmul.f32 %v63, %v83
  %v135 = vmul.f32 %v64, %v83
  %v136 = vmul.f32 %v65, %v83
  %v137 = vmul.f32 %v66, %v83
  %v138 = vmul.f32 %v67, %v83
  %v139 = vmul.f32 %v68, %v83
  %v140 = vmul.f32 %v69, %v83
  %v141 = vmul.f32 %v70, %v83
  %v142 = vmul.f32 %v71, %v83
  %v143 = vmul.f32 %v72, %v83
  %v144 = vmul.f32 %v73, %v83
  %v145 = vmul.f32 %v74, %v83
  %v146 = vmul.f32 %v75, %v83
  %v147 = vmul.f32 %v76, %v83
  %v148 = vmul.f32 %v77, %v83
  %v149 = vld [vmem:[%s2] sm:$0x1]
  %v151 = vlaneseq
  %v152 = vshrl.u32 %v151, 7
  %v153 = vsub.s32 0, %v152
  %v154 = vrot.slane %v149, %v153
  %v156 = vadd.f32 %v85, %v154
  %v157 = vadd.f32 %v86, %v154
  %v158 = vadd.f32 %v87, %v154
  %v159 = vadd.f32 %v88, %v154
  %v160 = vadd.f32 %v89, %v154
  %v161 = vadd.f32 %v90, %v154
  %v162 = vadd.f32 %v91, %v154
  %v163 = vadd.f32 %v92, %v154
  %v164 = vadd.f32 %v93, %v154
  %v165 = vadd.f32 %v94, %v154
  %v166 = vadd.f32 %v95, %v154
  %v167 = vadd.f32 %v96, %v154
  %v168 = vadd.f32 %v97, %v154
  %v169 = vadd.f32 %v98, %v154
  %v170 = vadd.f32 %v99, %v154
  %v171 = vadd.f32 %v100, %v154
  %v172 = vadd.f32 %v101, %v154
  %v173 = vadd.f32 %v102, %v154
  %v174 = vadd.f32 %v103, %v154
  %v175 = vadd.f32 %v104, %v154
  %v176 = vadd.f32 %v105, %v154
  %v177 = vadd.f32 %v106, %v154
  %v178 = vadd.f32 %v107, %v154
  %v179 = vadd.f32 %v108, %v154
  %v180 = vadd.f32 %v109, %v154
  %v181 = vadd.f32 %v110, %v154
  %v182 = vadd.f32 %v111, %v154
  %v183 = vadd.f32 %v112, %v154
  %v184 = vadd.f32 %v113, %v154
  %v185 = vadd.f32 %v114, %v154
  %v186 = vadd.f32 %v115, %v154
  %v187 = vadd.f32 %v116, %v154
  %v188 = vadd.f32 %v117, %v154
  %v189 = vadd.f32 %v118, %v154
  %v190 = vadd.f32 %v119, %v154
  %v191 = vadd.f32 %v120, %v154
  %v192 = vadd.f32 %v121, %v154
  %v193 = vadd.f32 %v122, %v154
  %v194 = vadd.f32 %v123, %v154
  %v195 = vadd.f32 %v124, %v154
  %v196 = vadd.f32 %v125, %v154
  %v197 = vadd.f32 %v126, %v154
  %v198 = vadd.f32 %v127, %v154
  %v199 = vadd.f32 %v128, %v154
  %v200 = vadd.f32 %v129, %v154
  %v201 = vadd.f32 %v130, %v154
  %v202 = vadd.f32 %v131, %v154
  %v203 = vadd.f32 %v132, %v154
  %v204 = vadd.f32 %v133, %v154
  %v205 = vadd.f32 %v134, %v154
  %v206 = vadd.f32 %v135, %v154
  %v207 = vadd.f32 %v136, %v154
  %v208 = vadd.f32 %v137, %v154
  %v209 = vadd.f32 %v138, %v154
  %v210 = vadd.f32 %v139, %v154
  %v211 = vadd.f32 %v140, %v154
  %v212 = vadd.f32 %v141, %v154
  %v213 = vadd.f32 %v142, %v154
  %v214 = vadd.f32 %v143, %v154
  %v215 = vadd.f32 %v144, %v154
  %v216 = vadd.f32 %v145, %v154
  %v217 = vadd.f32 %v146, %v154
  %v218 = vadd.f32 %v147, %v154
  %v219 = vadd.f32 %v148, %v154
  %v220 = vmax.f32 %v156, 0.0
  %v221 = vmax.f32 %v157, 0.0
  %v222 = vmax.f32 %v158, 0.0
  %v223 = vmax.f32 %v159, 0.0
  %v224 = vmax.f32 %v160, 0.0
  %v225 = vmax.f32 %v161, 0.0
  %v226 = vmax.f32 %v162, 0.0
  %v227 = vmax.f32 %v163, 0.0
  %v228 = vmax.f32 %v164, 0.0
  %v229 = vmax.f32 %v165, 0.0
  %v230 = vmax.f32 %v166, 0.0
  %v231 = vmax.f32 %v167, 0.0
  %v232 = vmax.f32 %v168, 0.0
  %v233 = vmax.f32 %v169, 0.0
  %v234 = vmax.f32 %v170, 0.0
  %v235 = vmax.f32 %v171, 0.0
  %v236 = vmax.f32 %v172, 0.0
  %v237 = vmax.f32 %v173, 0.0
  %v238 = vmax.f32 %v174, 0.0
  %v239 = vmax.f32 %v175, 0.0
  %v240 = vmax.f32 %v176, 0.0
  %v241 = vmax.f32 %v177, 0.0
  %v242 = vmax.f32 %v178, 0.0
  %v243 = vmax.f32 %v179, 0.0
  %v244 = vmax.f32 %v180, 0.0
  %v245 = vmax.f32 %v181, 0.0
  %v246 = vmax.f32 %v182, 0.0
  %v247 = vmax.f32 %v183, 0.0
  %v248 = vmax.f32 %v184, 0.0
  %v249 = vmax.f32 %v185, 0.0
  %v250 = vmax.f32 %v186, 0.0
  %v251 = vmax.f32 %v187, 0.0
  %v252 = vmax.f32 %v188, 0.0
  %v253 = vmax.f32 %v189, 0.0
  %v254 = vmax.f32 %v190, 0.0
  %v255 = vmax.f32 %v191, 0.0
  %v256 = vmax.f32 %v192, 0.0
  %v257 = vmax.f32 %v193, 0.0
  %v258 = vmax.f32 %v194, 0.0
  %v259 = vmax.f32 %v195, 0.0
  %v260 = vmax.f32 %v196, 0.0
  %v261 = vmax.f32 %v197, 0.0
  %v262 = vmax.f32 %v198, 0.0
  %v263 = vmax.f32 %v199, 0.0
  %v264 = vmax.f32 %v200, 0.0
  %v265 = vmax.f32 %v201, 0.0
  %v266 = vmax.f32 %v202, 0.0
  %v267 = vmax.f32 %v203, 0.0
  %v268 = vmax.f32 %v204, 0.0
  %v269 = vmax.f32 %v205, 0.0
  %v270 = vmax.f32 %v206, 0.0
  %v271 = vmax.f32 %v207, 0.0
  %v272 = vmax.f32 %v208, 0.0
  %v273 = vmax.f32 %v209, 0.0
  %v274 = vmax.f32 %v210, 0.0
  %v275 = vmax.f32 %v211, 0.0
  %v276 = vmax.f32 %v212, 0.0
  %v277 = vmax.f32 %v213, 0.0
  %v278 = vmax.f32 %v214, 0.0
  %v279 = vmax.f32 %v215, 0.0
  %v280 = vmax.f32 %v216, 0.0
  %v281 = vmax.f32 %v217, 0.0
  %v282 = vmax.f32 %v218, 0.0
  %v283 = vmax.f32 %v219, 0.0
  %v284 = vpack.c.bf16 %v221, %v220
  %v285 = vpack.c.bf16 %v223, %v222
  %v286 = vpack.c.bf16 %v225, %v224
  %v287 = vpack.c.bf16 %v227, %v226
  %v288 = vpack.c.bf16 %v229, %v228
  %v289 = vpack.c.bf16 %v231, %v230
  %v290 = vpack.c.bf16 %v233, %v232
  %v291 = vpack.c.bf16 %v235, %v234
  %v292 = vpack.c.bf16 %v237, %v236
  %v293 = vpack.c.bf16 %v239, %v238
  %v294 = vpack.c.bf16 %v241, %v240
  %v295 = vpack.c.bf16 %v243, %v242
  %v296 = vpack.c.bf16 %v245, %v244
  %v297 = vpack.c.bf16 %v247, %v246
  %v298 = vpack.c.bf16 %v249, %v248
  %v299 = vpack.c.bf16 %v251, %v250
  %v300 = vpack.c.bf16 %v253, %v252
  %v301 = vpack.c.bf16 %v255, %v254
  %v302 = vpack.c.bf16 %v257, %v256
  %v303 = vpack.c.bf16 %v259, %v258
  %v304 = vpack.c.bf16 %v261, %v260
  %v305 = vpack.c.bf16 %v263, %v262
  %v306 = vpack.c.bf16 %v265, %v264
  %v307 = vpack.c.bf16 %v267, %v266
  %v308 = vpack.c.bf16 %v269, %v268
  %v309 = vpack.c.bf16 %v271, %v270
  %v310 = vpack.c.bf16 %v273, %v272
  %v311 = vpack.c.bf16 %v275, %v274
  %v312 = vpack.c.bf16 %v277, %v276
  %v313 = vpack.c.bf16 %v279, %v278
  %v314 = vpack.c.bf16 %v281, %v280
  %v315 = vpack.c.bf16 %v283, %v282
  %v348 = vunpack.c.l.b16 %v284
  %v349 = vunpack.c.h.b16 %v284
  %v350 = vunpack.c.l.b16 %v285
  %v351 = vunpack.c.h.b16 %v285
  %v352 = vunpack.c.l.b16 %v286
  %v353 = vunpack.c.h.b16 %v286
  %v354 = vunpack.c.l.b16 %v287
  %v355 = vunpack.c.h.b16 %v287
  %v356 = vunpack.c.l.b16 %v288
  %v357 = vunpack.c.h.b16 %v288
  %v358 = vunpack.c.l.b16 %v289
  %v359 = vunpack.c.h.b16 %v289
  %v360 = vunpack.c.l.b16 %v290
  %v361 = vunpack.c.h.b16 %v290
  %v362 = vunpack.c.l.b16 %v291
  %v363 = vunpack.c.h.b16 %v291
  %v364 = vunpack.c.l.b16 %v292
  %v365 = vunpack.c.h.b16 %v292
  %v366 = vunpack.c.l.b16 %v293
  %v367 = vunpack.c.h.b16 %v293
  %v368 = vunpack.c.l.b16 %v294
  %v369 = vunpack.c.h.b16 %v294
  %v370 = vunpack.c.l.b16 %v295
  %v371 = vunpack.c.h.b16 %v295
  %v372 = vunpack.c.l.b16 %v296
  %v373 = vunpack.c.h.b16 %v296
  %v374 = vunpack.c.l.b16 %v297
  %v375 = vunpack.c.h.b16 %v297
  %v376 = vunpack.c.l.b16 %v298
  %v377 = vunpack.c.h.b16 %v298
  %v378 = vunpack.c.l.b16 %v299
  %v379 = vunpack.c.h.b16 %v299
  %v380 = vunpack.c.l.b16 %v300
  %v381 = vunpack.c.h.b16 %v300
  %v382 = vunpack.c.l.b16 %v301
  %v383 = vunpack.c.h.b16 %v301
  %v384 = vunpack.c.l.b16 %v302
  %v385 = vunpack.c.h.b16 %v302
  %v386 = vunpack.c.l.b16 %v303
  %v387 = vunpack.c.h.b16 %v303
  %v388 = vunpack.c.l.b16 %v304
  %v389 = vunpack.c.h.b16 %v304
  %v390 = vunpack.c.l.b16 %v305
  %v391 = vunpack.c.h.b16 %v305
  %v392 = vunpack.c.l.b16 %v306
  %v393 = vunpack.c.h.b16 %v306
  %v394 = vunpack.c.l.b16 %v307
  %v395 = vunpack.c.h.b16 %v307
  %v396 = vunpack.c.l.b16 %v308
  %v397 = vunpack.c.h.b16 %v308
  %v398 = vunpack.c.l.b16 %v309
  %v399 = vunpack.c.h.b16 %v309
  %v400 = vunpack.c.l.b16 %v310
  %v401 = vunpack.c.h.b16 %v310
  %v402 = vunpack.c.l.b16 %v311
  %v403 = vunpack.c.h.b16 %v311
  %v404 = vunpack.c.l.b16 %v312
  %v405 = vunpack.c.h.b16 %v312
  %v406 = vunpack.c.l.b16 %v313
  %v407 = vunpack.c.h.b16 %v313
  %v408 = vunpack.c.l.b16 %v314
  %v409 = vunpack.c.h.b16 %v314
  %v410 = vunpack.c.l.b16 %v315
  %v411 = vunpack.c.h.b16 %v315
  %v412 = vpack.c.b16 %v348, %v348
  %v413 = vpack.c.b16 %v349, %v349
  %v414 = vpack.c.b16 %v350, %v350
  %v415 = vpack.c.b16 %v351, %v351
  %v416 = vpack.c.b16 %v352, %v352
  %v417 = vpack.c.b16 %v353, %v353
  %v418 = vpack.c.b16 %v354, %v354
  %v419 = vpack.c.b16 %v355, %v355
  %v420 = vpack.c.b16 %v356, %v356
  %v421 = vpack.c.b16 %v357, %v357
  %v422 = vpack.c.b16 %v358, %v358
  %v423 = vpack.c.b16 %v359, %v359
  %v424 = vpack.c.b16 %v360, %v360
  %v425 = vpack.c.b16 %v361, %v361
  %v426 = vpack.c.b16 %v362, %v362
  %v427 = vpack.c.b16 %v363, %v363
  %v428 = vpack.c.b16 %v364, %v364
  %v429 = vpack.c.b16 %v365, %v365
  %v430 = vpack.c.b16 %v366, %v366
  %v431 = vpack.c.b16 %v367, %v367
  %v432 = vpack.c.b16 %v368, %v368
  %v433 = vpack.c.b16 %v369, %v369
  %v434 = vpack.c.b16 %v370, %v370
  %v435 = vpack.c.b16 %v371, %v371
  %v436 = vpack.c.b16 %v372, %v372
  %v437 = vpack.c.b16 %v373, %v373
  %v438 = vpack.c.b16 %v374, %v374
  %v439 = vpack.c.b16 %v375, %v375
  %v440 = vpack.c.b16 %v376, %v376
  %v441 = vpack.c.b16 %v377, %v377
  %v442 = vpack.c.b16 %v378, %v378
  %v443 = vpack.c.b16 %v379, %v379
  %v444 = vpack.c.b16 %v380, %v380
  %v445 = vpack.c.b16 %v381, %v381
  %v446 = vpack.c.b16 %v382, %v382
  %v447 = vpack.c.b16 %v383, %v383
  %v448 = vpack.c.b16 %v384, %v384
  %v449 = vpack.c.b16 %v385, %v385
  %v450 = vpack.c.b16 %v386, %v386
  %v451 = vpack.c.b16 %v387, %v387
  %v452 = vpack.c.b16 %v388, %v388
  %v453 = vpack.c.b16 %v389, %v389
  %v454 = vpack.c.b16 %v390, %v390
  %v455 = vpack.c.b16 %v391, %v391
  %v456 = vpack.c.b16 %v392, %v392
  %v457 = vpack.c.b16 %v393, %v393
  %v458 = vpack.c.b16 %v394, %v394
  %v459 = vpack.c.b16 %v395, %v395
  %v460 = vpack.c.b16 %v396, %v396
  %v461 = vpack.c.b16 %v397, %v397
  %v462 = vpack.c.b16 %v398, %v398
  %v463 = vpack.c.b16 %v399, %v399
  %v464 = vpack.c.b16 %v400, %v400
  %v465 = vpack.c.b16 %v401, %v401
  %v466 = vpack.c.b16 %v402, %v402
  %v467 = vpack.c.b16 %v403, %v403
  %v468 = vpack.c.b16 %v404, %v404
  %v469 = vpack.c.b16 %v405, %v405
  %v470 = vpack.c.b16 %v406, %v406
  %v471 = vpack.c.b16 %v407, %v407
  %v472 = vpack.c.b16 %v408, %v408
  %v473 = vpack.c.b16 %v409, %v409
  %v474 = vpack.c.b16 %v410, %v410
  %v475 = vpack.c.b16 %v411, %v411
  %vm540 = vcmask 519168
  %541 = vst.msk [vmem:[%s3] sm:$0xf] %vm540, %v412
  %542 = vst.msk [vmem:[%s3 + $0x4] sm:$0xf] %vm540, %v413
  %543 = vst.msk [vmem:[%s3 + $0x8] sm:$0xf] %vm540, %v414
  %544 = vst.msk [vmem:[%s3 + $0xc] sm:$0xf] %vm540, %v415
  %545 = vst.msk [vmem:[%s3 + $0x10] sm:$0xf] %vm540, %v416
  %546 = vst.msk [vmem:[%s3 + $0x14] sm:$0xf] %vm540, %v417
  %547 = vst.msk [vmem:[%s3 + $0x18] sm:$0xf] %vm540, %v418
  %548 = vst.msk [vmem:[%s3 + $0x1c] sm:$0xf] %vm540, %v419
  %549 = vst.msk [vmem:[%s3 + $0x20] sm:$0xf] %vm540, %v420
  %550 = vst.msk [vmem:[%s3 + $0x24] sm:$0xf] %vm540, %v421
  %551 = vst.msk [vmem:[%s3 + $0x28] sm:$0xf] %vm540, %v422
  %552 = vst.msk [vmem:[%s3 + $0x2c] sm:$0xf] %vm540, %v423
  %553 = vst.msk [vmem:[%s3 + $0x30] sm:$0xf] %vm540, %v424
  %554 = vst.msk [vmem:[%s3 + $0x34] sm:$0xf] %vm540, %v425
  %555 = vst.msk [vmem:[%s3 + $0x38] sm:$0xf] %vm540, %v426
  %556 = vst.msk [vmem:[%s3 + $0x3c] sm:$0xf] %vm540, %v427
  %557 = vst.msk [vmem:[%s3 + $0x40] sm:$0xf] %vm540, %v428
  %558 = vst.msk [vmem:[%s3 + $0x44] sm:$0xf] %vm540, %v429
  %559 = vst.msk [vmem:[%s3 + $0x48] sm:$0xf] %vm540, %v430
  %560 = vst.msk [vmem:[%s3 + $0x4c] sm:$0xf] %vm540, %v431
  %561 = vst.msk [vmem:[%s3 + $0x50] sm:$0xf] %vm540, %v432
  %562 = vst.msk [vmem:[%s3 + $0x54] sm:$0xf] %vm540, %v433
  %563 = vst.msk [vmem:[%s3 + $0x58] sm:$0xf] %vm540, %v434
  %564 = vst.msk [vmem:[%s3 + $0x5c] sm:$0xf] %vm540, %v435
  %565 = vst.msk [vmem:[%s3 + $0x60] sm:$0xf] %vm540, %v436
  %566 = vst.msk [vmem:[%s3 + $0x64] sm:$0xf] %vm540, %v437
  %567 = vst.msk [vmem:[%s3 + $0x68] sm:$0xf] %vm540, %v438
  %568 = vst.msk [vmem:[%s3 + $0x6c] sm:$0xf] %vm540, %v439
  %569 = vst.msk [vmem:[%s3 + $0x70] sm:$0xf] %vm540, %v440
  %570 = vst.msk [vmem:[%s3 + $0x74] sm:$0xf] %vm540, %v441
  %571 = vst.msk [vmem:[%s3 + $0x78] sm:$0xf] %vm540, %v442
  %572 = vst.msk [vmem:[%s3 + $0x7c] sm:$0xf] %vm540, %v443
  %573 = vst.msk [vmem:[%s3 + $0x80] sm:$0xf] %vm540, %v444
  %574 = vst.msk [vmem:[%s3 + $0x84] sm:$0xf] %vm540, %v445
  %575 = vst.msk [vmem:[%s3 + $0x88] sm:$0xf] %vm540, %v446
  %576 = vst.msk [vmem:[%s3 + $0x8c] sm:$0xf] %vm540, %v447
  %577 = vst.msk [vmem:[%s3 + $0x90] sm:$0xf] %vm540, %v448
  %578 = vst.msk [vmem:[%s3 + $0x94] sm:$0xf] %vm540, %v449
  %579 = vst.msk [vmem:[%s3 + $0x98] sm:$0xf] %vm540, %v450
  %580 = vst.msk [vmem:[%s3 + $0x9c] sm:$0xf] %vm540, %v451
  %581 = vst.msk [vmem:[%s3 + $0xa0] sm:$0xf] %vm540, %v452
  %582 = vst.msk [vmem:[%s3 + $0xa4] sm:$0xf] %vm540, %v453
  %583 = vst.msk [vmem:[%s3 + $0xa8] sm:$0xf] %vm540, %v454
  %584 = vst.msk [vmem:[%s3 + $0xac] sm:$0xf] %vm540, %v455
  %585 = vst.msk [vmem:[%s3 + $0xb0] sm:$0xf] %vm540, %v456
  %586 = vst.msk [vmem:[%s3 + $0xb4] sm:$0xf] %vm540, %v457
  %587 = vst.msk [vmem:[%s3 + $0xb8] sm:$0xf] %vm540, %v458
  %588 = vst.msk [vmem:[%s3 + $0xbc] sm:$0xf] %vm540, %v459
  %589 = vst.msk [vmem:[%s3 + $0xc0] sm:$0xf] %vm540, %v460
  %590 = vst.msk [vmem:[%s3 + $0xc4] sm:$0xf] %vm540, %v461
  %591 = vst.msk [vmem:[%s3 + $0xc8] sm:$0xf] %vm540, %v462
  %592 = vst.msk [vmem:[%s3 + $0xcc] sm:$0xf] %vm540, %v463
  %593 = vst.msk [vmem:[%s3 + $0xd0] sm:$0xf] %vm540, %v464
  %594 = vst.msk [vmem:[%s3 + $0xd4] sm:$0xf] %vm540, %v465
  %595 = vst.msk [vmem:[%s3 + $0xd8] sm:$0xf] %vm540, %v466
  %596 = vst.msk [vmem:[%s3 + $0xdc] sm:$0xf] %vm540, %v467
  %597 = vst.msk [vmem:[%s3 + $0xe0] sm:$0xf] %vm540, %v468
  %598 = vst.msk [vmem:[%s3 + $0xe4] sm:$0xf] %vm540, %v469
  %599 = vst.msk [vmem:[%s3 + $0xe8] sm:$0xf] %vm540, %v470
  %600 = vst.msk [vmem:[%s3 + $0xec] sm:$0xf] %vm540, %v471
  %601 = vst.msk [vmem:[%s3 + $0xf0] sm:$0xf] %vm540, %v472
  %602 = vst.msk [vmem:[%s3 + $0xf4] sm:$0xf] %vm540, %v473
  %603 = vst.msk [vmem:[%s3 + $0xf8] sm:$0xf] %vm540, %v474
  %604 = vst.msk [vmem:[%s3 + $0xfc] sm:$0xf] %vm540, %v475
  // Predicated region
  $region14: #{conv_generator_forward.14} parent=0 // pred_check
    _
  $region15: #{conv_generator_forward.14} parent=0 // pred_check_branch
    %606 = sbr.rel (0) target = $region17
  $region16: #{conv_generator_forward.14} parent=0 // pred_region
    _
  $region17: #{conv_generator_forward.14} parent=0 // pred_fallthru
    _
  // Predicated region
  $region18: #{conv_generator_forward.14} parent=0 // pred_check
    _
  $region19: #{conv_generator_forward.14} parent=0 // pred_check_branch
    %608 = sbr.rel (0) target = $region21
  $region20: #{conv_generator_forward.14} parent=0 // pred_region
    _
  $region21: #{conv_generator_forward.14} parent=0 // pred_fallthru
    _

// kernel: conv_generator_forward.15
$region0: #{conv_generator_forward.15}
  #allocation0 [shape = 'u32[]', space=smem, size = 0x4, offset = 0x4, fixed_abs, tag = 'smem constant byte address 0x4 - core index']
  #allocation1 [shape = 'u32[144,128]{1,0:T(1,128)}', space=vmem, size = 0x12000, scoped, tag = 'internal scratch']
  #allocation2 [shape = 'f32[512,128]{1,0:T(8,128)}', space=vmem, size = 0x40000, scoped, tag = 'scratch operand']
  %s0 = inlined_call_operand.vmem [shape: bf16[1,512,576], index: 0, kind: input, shape index: {}]
  %s1 = inlined_call_operand.vmem [shape: bf16[1,576,128], index: 1, kind: input, shape index: {}]
  %s2 = inlined_call_operand.vmem [shape: f32[1,512,128], index: 2, kind: output, shape index: {}]
  %s3 = sld [smem:[#allocation0]]
  $region26: #{conv_generator_forward.15} parent=0
    _
  %s5 = ssub.s32 1, %s3
  %s6 = scalar_select 0, %s5, %s3
  // Predicated region
  $region2: #{conv_generator_forward.15} parent=0 // pred_check
    _
  $region3: #{conv_generator_forward.15} parent=0 // pred_check_branch
    %8 = sbr.rel (0) target = $region5
  $region4: #{conv_generator_forward.15} parent=0 // pred_region
    _
  $region5: #{conv_generator_forward.15} parent=0 // pred_fallthru
    _
  // Predicated region
  $region6: #{conv_generator_forward.15} parent=0 // pred_check
    _
  $region7: #{conv_generator_forward.15} parent=0 // pred_check_branch
    %10 = sbr.rel (0) target = $region9
  $region8: #{conv_generator_forward.15} parent=0 // pred_region
    _
  $region9: #{conv_generator_forward.15} parent=0 // pred_fallthru
    _
  %p12 = scmp.eq.s32.totalorder 0, 0
  // Predicated region
  $region10: #{conv_generator_forward.15} parent=0 // pred_check
    %p13 = pneg %p12
  $region11: #{conv_generator_forward.15} parent=0 // pred_check_branch
    %15 = sbr.rel (%p13) target = $region13
  $region12: #{conv_generator_forward.15} parent=0 // pred_region
    %16 = vst [vmem:[#allocation2] sm:$0xff] 0.0
    %17 = vst [vmem:[#allocation2 + $0x8] sm:$0xff] 0.0
    %18 = vst [vmem:[#allocation2 + $0x10] sm:$0xff] 0.0
    %19 = vst [vmem:[#allocation2 + $0x18] sm:$0xff] 0.0
    %20 = vst [vmem:[#allocation2 + $0x20] sm:$0xff] 0.0
    %21 = vst [vmem:[#allocation2 + $0x28] sm:$0xff] 0.0
    %22 = vst [vmem:[#allocation2 + $0x30] sm:$0xff] 0.0
    %23 = vst [vmem:[#allocation2 + $0x38] sm:$0xff] 0.0
    %24 = vst [vmem:[#allocation2 + $0x40] sm:$0xff] 0.0
    %25 = vst [vmem:[#allocation2 + $0x48] sm:$0xff] 0.0
    %26 = vst [vmem:[#allocation2 + $0x50] sm:$0xff] 0.0
    %27 = vst [vmem:[#allocation2 + $0x58] sm:$0xff] 0.0
    %28 = vst [vmem:[#allocation2 + $0x60] sm:$0xff] 0.0
    %29 = vst [vmem:[#allocation2 + $0x68] sm:$0xff] 0.0
    %30 = vst [vmem:[#allocation2 + $0x70] sm:$0xff] 0.0
    %31 = vst [vmem:[#allocation2 + $0x78] sm:$0xff] 0.0
    %32 = vst [vmem:[#allocation2 + $0x80] sm:$0xff] 0.0
    %33 = vst [vmem:[#allocation2 + $0x88] sm:$0xff] 0.0
    %34 = vst [vmem:[#allocation2 + $0x90] sm:$0xff] 0.0
    %35 = vst [vmem:[#allocation2 + $0x98] sm:$0xff] 0.0
    %36 = vst [vmem:[#allocation2 + $0xa0] sm:$0xff] 0.0
    %37 = vst [vmem:[#allocation2 + $0xa8] sm:$0xff] 0.0
    %38 = vst [vmem:[#allocation2 + $0xb0] sm:$0xff] 0.0
    %39 = vst [vmem:[#allocation2 + $0xb8] sm:$0xff] 0.0
    %40 = vst [vmem:[#allocation2 + $0xc0] sm:$0xff] 0.0
    %41 = vst [vmem:[#allocation2 + $0xc8] sm:$0xff] 0.0
    %42 = vst [vmem:[#allocation2 + $0xd0] sm:$0xff] 0.0
    %43 = vst [vmem:[#allocation2 + $0xd8] sm:$0xff] 0.0
    %44 = vst [vmem:[#allocation2 + $0xe0] sm:$0xff] 0.0
    %45 = vst [vmem:[#allocation2 + $0xe8] sm:$0xff] 0.0
    %46 = vst [vmem:[#allocation2 + $0xf0] sm:$0xff] 0.0
    %47 = vst [vmem:[#allocation2 + $0xf8] sm:$0xff] 0.0
    %48 = vst [vmem:[#allocation2 + $0x100] sm:$0xff] 0.0
    %49 = vst [vmem:[#allocation2 + $0x108] sm:$0xff] 0.0
    %50 = vst [vmem:[#allocation2 + $0x110] sm:$0xff] 0.0
    %51 = vst [vmem:[#allocation2 + $0x118] sm:$0xff] 0.0
    %52 = vst [vmem:[#allocation2 + $0x120] sm:$0xff] 0.0
    %53 = vst [vmem:[#allocation2 + $0x128] sm:$0xff] 0.0
    %54 = vst [vmem:[#allocation2 + $0x130] sm:$0xff] 0.0
    %55 = vst [vmem:[#allocation2 + $0x138] sm:$0xff] 0.0
    %56 = vst [vmem:[#allocation2 + $0x140] sm:$0xff] 0.0
    %57 = vst [vmem:[#allocation2 + $0x148] sm:$0xff] 0.0
    %58 = vst [vmem:[#allocation2 + $0x150] sm:$0xff] 0.0
    %59 = vst [vmem:[#allocation2 + $0x158] sm:$0xff] 0.0
    %60 = vst [vmem:[#allocation2 + $0x160] sm:$0xff] 0.0
    %61 = vst [vmem:[#allocation2 + $0x168] sm:$0xff] 0.0
    %62 = vst [vmem:[#allocation2 + $0x170] sm:$0xff] 0.0
    %63 = vst [vmem:[#allocation2 + $0x178] sm:$0xff] 0.0
    %64 = vst [vmem:[#allocation2 + $0x180] sm:$0xff] 0.0
    %65 = vst [vmem:[#allocation2 + $0x188] sm:$0xff] 0.0
    %66 = vst [vmem:[#allocation2 + $0x190] sm:$0xff] 0.0
    %67 = vst [vmem:[#allocation2 + $0x198] sm:$0xff] 0.0
    %68 = vst [vmem:[#allocation2 + $0x1a0] sm:$0xff] 0.0
    %69 = vst [vmem:[#allocation2 + $0x1a8] sm:$0xff] 0.0
    %70 = vst [vmem:[#allocation2 + $0x1b0] sm:$0xff] 0.0
    %71 = vst [vmem:[#allocation2 + $0x1b8] sm:$0xff] 0.0
    %72 = vst [vmem:[#allocation2 + $0x1c0] sm:$0xff] 0.0
    %73 = vst [vmem:[#allocation2 + $0x1c8] sm:$0xff] 0.0
    %74 = vst [vmem:[#allocation2 + $0x1d0] sm:$0xff] 0.0
    %75 = vst [vmem:[#allocation2 + $0x1d8] sm:$0xff] 0.0
    %76 = vst [vmem:[#allocation2 + $0x1e0] sm:$0xff] 0.0
    %77 = vst [vmem:[#allocation2 + $0x1e8] sm:$0xff] 0.0
    %78 = vst [vmem:[#allocation2 + $0x1f0] sm:$0xff] 0.0
    %79 = vst [vmem:[#allocation2 + $0x1f8] sm:$0xff] 0.0
  $region13: #{conv_generator_forward.15} parent=0 // pred_fallthru
    _
  %v80 = vld [vmem:[#allocation2] sm:$0xff]
  %v81 = vld [vmem:[#allocation2 + $0x8] sm:$0xff]
  %v82 = vld [vmem:[#allocation2 + $0x10] sm:$0xff]
  %v83 = vld [vmem:[#allocation2 + $0x18] sm:$0xff]
  %v84 = vld [vmem:[#allocation2 + $0x20] sm:$0xff]
  %v85 = vld [vmem:[#allocation2 + $0x28] sm:$0xff]
  %v86 = vld [vmem:[#allocation2 + $0x30] sm:$0xff]
  %v87 = vld [vmem:[#allocation2 + $0x38] sm:$0xff]
  %v88 = vld [vmem:[#allocation2 + $0x40] sm:$0xff]
  %v89 = vld [vmem:[#allocation2 + $0x48] sm:$0xff]
  %v90 = vld [vmem:[#allocation2 + $0x50] sm:$0xff]
  %v91 = vld [vmem:[#allocation2 + $0x58] sm:$0xff]
  %v92 = vld [vmem:[#allocation2 + $0x60] sm:$0xff]
  %v93 = vld [vmem:[#allocation2 + $0x68] sm:$0xff]
  %v94 = vld [vmem:[#allocation2 + $0x70] sm:$0xff]
  %v95 = vld [vmem:[#allocation2 + $0x78] sm:$0xff]
  %v96 = vld [vmem:[#allocation2 + $0x80] sm:$0xff]
  %v97 = vld [vmem:[#allocation2 + $0x88] sm:$0xff]
  %v98 = vld [vmem:[#allocation2 + $0x90] sm:$0xff]
  %v99 = vld [vmem:[#allocation2 + $0x98] sm:$0xff]
  %v100 = vld [vmem:[#allocation2 + $0xa0] sm:$0xff]
  %v101 = vld [vmem:[#allocation2 + $0xa8] sm:$0xff]
  %v102 = vld [vmem:[#allocation2 + $0xb0] sm:$0xff]
  %v103 = vld [vmem:[#allocation2 + $0xb8] sm:$0xff]
  %v104 = vld [vmem:[#allocation2 + $0xc0] sm:$0xff]
  %v105 = vld [vmem:[#allocation2 + $0xc8] sm:$0xff]
  %v106 = vld [vmem:[#allocation2 + $0xd0] sm:$0xff]
  %v107 = vld [vmem:[#allocation2 + $0xd8] sm:$0xff]
  %v108 = vld [vmem:[#allocation2 + $0xe0] sm:$0xff]
  %v109 = vld [vmem:[#allocation2 + $0xe8] sm:$0xff]
  %v110 = vld [vmem:[#allocation2 + $0xf0] sm:$0xff]
  %v111 = vld [vmem:[#allocation2 + $0xf8] sm:$0xff]
  %v112 = vld [vmem:[#allocation2 + $0x100] sm:$0xff]
  %v113 = vld [vmem:[#allocation2 + $0x108] sm:$0xff]
  %v114 = vld [vmem:[#allocation2 + $0x110] sm:$0xff]
  %v115 = vld [vmem:[#allocation2 + $0x118] sm:$0xff]
  %v116 = vld [vmem:[#allocation2 + $0x120] sm:$0xff]
  %v117 = vld [vmem:[#allocation2 + $0x128] sm:$0xff]
  %v118 = vld [vmem:[#allocation2 + $0x130] sm:$0xff]
  %v119 = vld [vmem:[#allocation2 + $0x138] sm:$0xff]
  %v120 = vld [vmem:[#allocation2 + $0x140] sm:$0xff]
  %v121 = vld [vmem:[#allocation2 + $0x148] sm:$0xff]
  %v122 = vld [vmem:[#allocation2 + $0x150] sm:$0xff]
  %v123 = vld [vmem:[#allocation2 + $0x158] sm:$0xff]
  %v124 = vld [vmem:[#allocation2 + $0x160] sm:$0xff]
  %v125 = vld [vmem:[#allocation2 + $0x168] sm:$0xff]
  %v126 = vld [vmem:[#allocation2 + $0x170] sm:$0xff]
  %v127 = vld [vmem:[#allocation2 + $0x178] sm:$0xff]
  %v128 = vld [vmem:[#allocation2 + $0x180] sm:$0xff]
  %v129 = vld [vmem:[#allocation2 + $0x188] sm:$0xff]
  %v130 = vld [vmem:[#allocation2 + $0x190] sm:$0xff]
  %v131 = vld [vmem:[#allocation2 + $0x198] sm:$0xff]
  %v132 = vld [vmem:[#allocation2 + $0x1a0] sm:$0xff]
  %v133 = vld [vmem:[#allocation2 + $0x1a8] sm:$0xff]
  %v134 = vld [vmem:[#allocation2 + $0x1b0] sm:$0xff]
  %v135 = vld [vmem:[#allocation2 + $0x1b8] sm:$0xff]
  %v136 = vld [vmem:[#allocation2 + $0x1c0] sm:$0xff]
  %v137 = vld [vmem:[#allocation2 + $0x1c8] sm:$0xff]
  %v138 = vld [vmem:[#allocation2 + $0x1d0] sm:$0xff]
  %v139 = vld [vmem:[#allocation2 + $0x1d8] sm:$0xff]
  %v140 = vld [vmem:[#allocation2 + $0x1e0] sm:$0xff]
  %v141 = vld [vmem:[#allocation2 + $0x1e8] sm:$0xff]
  %v142 = vld [vmem:[#allocation2 + $0x1f0] sm:$0xff]
  %v143 = vld [vmem:[#allocation2 + $0x1f8] sm:$0xff]
  %v144 = vld [vmem:[%s0] sm:$0xff]
  %v145 = vld [vmem:[%s0 + $0x8] sm:$0xff]
  %v146 = vld [vmem:[%s0 + $0x10] sm:$0xf]
  %v147 = vld [vmem:[%s0 + $0x14] sm:$0xff]
  %v148 = vld [vmem:[%s0 + $0x1c] sm:$0xff]
  %v149 = vld [vmem:[%s0 + $0x24] sm:$0xf]
  %v150 = vld [vmem:[%s0 + $0x28] sm:$0xff]
  %v151 = vld [vmem:[%s0 + $0x30] sm:$0xff]
  %v152 = vld [vmem:[%s0 + $0x38] sm:$0xf]
  %v153 = vld [vmem:[%s0 + $0x3c] sm:$0xff]
  %v154 = vld [vmem:[%s0 + $0x44] sm:$0xff]
  %v155 = vld [vmem:[%s0 + $0x4c] sm:$0xf]
  %v156 = vld [vmem:[%s0 + $0x50] sm:$0xff]
  %v157 = vld [vmem:[%s0 + $0x58] sm:$0xff]
  %v158 = vld [vmem:[%s0 + $0x60] sm:$0xf]
  %v159 = vld [vmem:[%s0 + $0x64] sm:$0xff]
  %v160 = vld [vmem:[%s0 + $0x6c] sm:$0xff]
  %v161 = vld [vmem:[%s0 + $0x74] sm:$0xf]
  %v162 = vld [vmem:[%s0 + $0x78] sm:$0xff]
  %v163 = vld [vmem:[%s0 + $0x80] sm:$0xff]
  %v164 = vld [vmem:[%s0 + $0x88] sm:$0xf]
  %v165 = vld [vmem:[%s0 + $0x8c] sm:$0xff]
  %v166 = vld [vmem:[%s0 + $0x94] sm:$0xff]
  %v167 = vld [vmem:[%s0 + $0x9c] sm:$0xf]
  %v168 = vld [vmem:[%s0 + $0xa0] sm:$0xff]
  %v169 = vld [vmem:[%s0 + $0xa8] sm:$0xff]
  %v170 = vld [vmem:[%s0 + $0xb0] sm:$0xf]
  %v171 = vld [vmem:[%s0 + $0xb4] sm:$0xff]
  %v172 = vld [vmem:[%s0 + $0xbc] sm:$0xff]
  %v173 = vld [vmem:[%s0 + $0xc4] sm:$0xf]
  %v174 = vld [vmem:[%s0 + $0xc8] sm:$0xff]
  %v175 = vld [vmem:[%s0 + $0xd0] sm:$0xff]
  %v176 = vld [vmem:[%s0 + $0xd8] sm:$0xf]
  %v177 = vld [vmem:[%s0 + $0xdc] sm:$0xff]
  %v178 = vld [vmem:[%s0 + $0xe4] sm:$0xff]
  %v179 = vld [vmem:[%s0 + $0xec] sm:$0xf]
  %v180 = vld [vmem:[%s0 + $0xf0] sm:$0xff]
  %v181 = vld [vmem:[%s0 + $0xf8] sm:$0xff]
  %v182 = vld [vmem:[%s0 + $0x100] sm:$0xf]
  %v183 = vld [vmem:[%s0 + $0x104] sm:$0xff]
  %v184 = vld [vmem:[%s0 + $0x10c] sm:$0xff]
  %v185 = vld [vmem:[%s0 + $0x114] sm:$0xf]
  %v186 = vld [vmem:[%s0 + $0x118] sm:$0xff]
  %v187 = vld [vmem:[%s0 + $0x120] sm:$0xff]
  %v188 = vld [vmem:[%s0 + $0x128] sm:$0xf]
  %v189 = vld [vmem:[%s0 + $0x12c] sm:$0xff]
  %v190 = vld [vmem:[%s0 + $0x134] sm:$0xff]
  %v191 = vld [vmem:[%s0 + $0x13c] sm:$0xf]
  %v192 = vld [vmem:[%s0 + $0x140] sm:$0xff]
  %v193 = vld [vmem:[%s0 + $0x148] sm:$0xff]
  %v194 = vld [vmem:[%s0 + $0x150] sm:$0xf]
  %v195 = vld [vmem:[%s0 + $0x154] sm:$0xff]
  %v196 = vld [vmem:[%s0 + $0x15c] sm:$0xff]
  %v197 = vld [vmem:[%s0 + $0x164] sm:$0xf]
  %v198 = vld [vmem:[%s0 + $0x168] sm:$0xff]
  %v199 = vld [vmem:[%s0 + $0x170] sm:$0xff]
  %v200 = vld [vmem:[%s0 + $0x178] sm:$0xf]
  %v201 = vld [vmem:[%s0 + $0x17c] sm:$0xff]
  %v202 = vld [vmem:[%s0 + $0x184] sm:$0xff]
  %v203 = vld [vmem:[%s0 + $0x18c] sm:$0xf]
  %v204 = vld [vmem:[%s0 + $0x190] sm:$0xff]
  %v205 = vld [vmem:[%s0 + $0x198] sm:$0xff]
  %v206 = vld [vmem:[%s0 + $0x1a0] sm:$0xf]
  %v207 = vld [vmem:[%s0 + $0x1a4] sm:$0xff]
  %v208 = vld [vmem:[%s0 + $0x1ac] sm:$0xff]
  %v209 = vld [vmem:[%s0 + $0x1b4] sm:$0xf]
  %v210 = vld [vmem:[%s0 + $0x1b8] sm:$0xff]
  %v211 = vld [vmem:[%s0 + $0x1c0] sm:$0xff]
  %v212 = vld [vmem:[%s0 + $0x1c8] sm:$0xf]
  %v213 = vld [vmem:[%s0 + $0x1cc] sm:$0xff]
  %v214 = vld [vmem:[%s0 + $0x1d4] sm:$0xff]
  %v215 = vld [vmem:[%s0 + $0x1dc] sm:$0xf]
  %v216 = vld [vmem:[%s0 + $0x1e0] sm:$0xff]
  %v217 = vld [vmem:[%s0 + $0x1e8] sm:$0xff]
  %v218 = vld [vmem:[%s0 + $0x1f0] sm:$0xf]
  %v219 = vld [vmem:[%s0 + $0x1f4] sm:$0xff]
  %v220 = vld [vmem:[%s0 + $0x1fc] sm:$0xff]
  %v221 = vld [vmem:[%s0 + $0x204] sm:$0xf]
  %v222 = vld [vmem:[%s0 + $0x208] sm:$0xff]
  %v223 = vld [vmem:[%s0 + $0x210] sm:$0xff]
  %v224 = vld [vmem:[%s0 + $0x218] sm:$0xf]
  %v225 = vld [vmem:[%s0 + $0x21c] sm:$0xff]
  %v226 = vld [vmem:[%s0 + $0x224] sm:$0xff]
  %v227 = vld [vmem:[%s0 + $0x22c] sm:$0xf]
  %v228 = vld [vmem:[%s0 + $0x230] sm:$0xff]
  %v229 = vld [vmem:[%s0 + $0x238] sm:$0xff]
  %v230 = vld [vmem:[%s0 + $0x240] sm:$0xf]
  %v231 = vld [vmem:[%s0 + $0x244] sm:$0xff]
  %v232 = vld [vmem:[%s0 + $0x24c] sm:$0xff]
  %v233 = vld [vmem:[%s0 + $0x254] sm:$0xf]
  %v234 = vld [vmem:[%s0 + $0x258] sm:$0xff]
  %v235 = vld [vmem:[%s0 + $0x260] sm:$0xff]
  %v236 = vld [vmem:[%s0 + $0x268] sm:$0xf]
  %v237 = vld [vmem:[%s0 + $0x26c] sm:$0xff]
  %v238 = vld [vmem:[%s0 + $0x274] sm:$0xff]
  %v239 = vld [vmem:[%s0 + $0x27c] sm:$0xf]
  %v240 = vld [vmem:[%s0 + $0x280] sm:$0xff]
  %v241 = vld [vmem:[%s0 + $0x288] sm:$0xff]
  %v242 = vld [vmem:[%s0 + $0x290] sm:$0xf]
  %v243 = vld [vmem:[%s0 + $0x294] sm:$0xff]
  %v244 = vld [vmem:[%s0 + $0x29c] sm:$0xff]
  %v245 = vld [vmem:[%s0 + $0x2a4] sm:$0xf]
  %v246 = vld [vmem:[%s0 + $0x2a8] sm:$0xff]
  %v247 = vld [vmem:[%s0 + $0x2b0] sm:$0xff]
  %v248 = vld [vmem:[%s0 + $0x2b8] sm:$0xf]
  %v249 = vld [vmem:[%s0 + $0x2bc] sm:$0xff]
  %v250 = vld [vmem:[%s0 + $0x2c4] sm:$0xff]
  %v251 = vld [vmem:[%s0 + $0x2cc] sm:$0xf]
  %v252 = vld [vmem:[%s0 + $0x2d0] sm:$0xff]
  %v253 = vld [vmem:[%s0 + $0x2d8] sm:$0xff]
  %v254 = vld [vmem:[%s0 + $0x2e0] sm:$0xf]
  %v255 = vld [vmem:[%s0 + $0x2e4] sm:$0xff]
  %v256 = vld [vmem:[%s0 + $0x2ec] sm:$0xff]
  %v257 = vld [vmem:[%s0 + $0x2f4] sm:$0xf]
  %v258 = vld [vmem:[%s0 + $0x2f8] sm:$0xff]
  %v259 = vld [vmem:[%s0 + $0x300] sm:$0xff]
  %v260 = vld [vmem:[%s0 + $0x308] sm:$0xf]
  %v261 = vld [vmem:[%s0 + $0x30c] sm:$0xff]
  %v262 = vld [vmem:[%s0 + $0x314] sm:$0xff]
  %v263 = vld [vmem:[%s0 + $0x31c] sm:$0xf]
  %v264 = vld [vmem:[%s0 + $0x320] sm:$0xff]
  %v265 = vld [vmem:[%s0 + $0x328] sm:$0xff]
  %v266 = vld [vmem:[%s0 + $0x330] sm:$0xf]
  %v267 = vld [vmem:[%s0 + $0x334] sm:$0xff]
  %v268 = vld [vmem:[%s0 + $0x33c] sm:$0xff]
  %v269 = vld [vmem:[%s0 + $0x344] sm:$0xf]
  %v270 = vld [vmem:[%s0 + $0x348] sm:$0xff]
  %v271 = vld [vmem:[%s0 + $0x350] sm:$0xff]
  %v272 = vld [vmem:[%s0 + $0x358] sm:$0xf]
  %v273 = vld [vmem:[%s0 + $0x35c] sm:$0xff]
  %v274 = vld [vmem:[%s0 + $0x364] sm:$0xff]
  %v275 = vld [vmem:[%s0 + $0x36c] sm:$0xf]
  %v276 = vld [vmem:[%s0 + $0x370] sm:$0xff]
  %v277 = vld [vmem:[%s0 + $0x378] sm:$0xff]
  %v278 = vld [vmem:[%s0 + $0x380] sm:$0xf]
  %v279 = vld [vmem:[%s0 + $0x384] sm:$0xff]
  %v280 = vld [vmem:[%s0 + $0x38c] sm:$0xff]
  %v281 = vld [vmem:[%s0 + $0x394] sm:$0xf]
  %v282 = vld [vmem:[%s0 + $0x398] sm:$0xff]
  %v283 = vld [vmem:[%s0 + $0x3a0] sm:$0xff]
  %v284 = vld [vmem:[%s0 + $0x3a8] sm:$0xf]
  %v285 = vld [vmem:[%s0 + $0x3ac] sm:$0xff]
  %v286 = vld [vmem:[%s0 + $0x3b4] sm:$0xff]
  %v287 = vld [vmem:[%s0 + $0x3bc] sm:$0xf]
  %v288 = vld [vmem:[%s0 + $0x3c0] sm:$0xff]
  %v289 = vld [vmem:[%s0 + $0x3c8] sm:$0xff]
  %v290 = vld [vmem:[%s0 + $0x3d0] sm:$0xf]
  %v291 = vld [vmem:[%s0 + $0x3d4] sm:$0xff]
  %v292 = vld [vmem:[%s0 + $0x3dc] sm:$0xff]
  %v293 = vld [vmem:[%s0 + $0x3e4] sm:$0xf]
  %v294 = vld [vmem:[%s0 + $0x3e8] sm:$0xff]
  %v295 = vld [vmem:[%s0 + $0x3f0] sm:$0xff]
  %v296 = vld [vmem:[%s0 + $0x3f8] sm:$0xf]
  %v297 = vld [vmem:[%s0 + $0x3fc] sm:$0xff]
  %v298 = vld [vmem:[%s0 + $0x404] sm:$0xff]
  %v299 = vld [vmem:[%s0 + $0x40c] sm:$0xf]
  %v300 = vld [vmem:[%s0 + $0x410] sm:$0xff]
  %v301 = vld [vmem:[%s0 + $0x418] sm:$0xff]
  %v302 = vld [vmem:[%s0 + $0x420] sm:$0xf]
  %v303 = vld [vmem:[%s0 + $0x424] sm:$0xff]
  %v304 = vld [vmem:[%s0 + $0x42c] sm:$0xff]
  %v305 = vld [vmem:[%s0 + $0x434] sm:$0xf]
  %v306 = vld [vmem:[%s0 + $0x438] sm:$0xff]
  %v307 = vld [vmem:[%s0 + $0x440] sm:$0xff]
  %v308 = vld [vmem:[%s0 + $0x448] sm:$0xf]
  %v309 = vld [vmem:[%s0 + $0x44c] sm:$0xff]
  %v310 = vld [vmem:[%s0 + $0x454] sm:$0xff]
  %v311 = vld [vmem:[%s0 + $0x45c] sm:$0xf]
  %v312 = vld [vmem:[%s0 + $0x460] sm:$0xff]
  %v313 = vld [vmem:[%s0 + $0x468] sm:$0xff]
  %v314 = vld [vmem:[%s0 + $0x470] sm:$0xf]
  %v315 = vld [vmem:[%s0 + $0x474] sm:$0xff]
  %v316 = vld [vmem:[%s0 + $0x47c] sm:$0xff]
  %v317 = vld [vmem:[%s0 + $0x484] sm:$0xf]
  %v318 = vld [vmem:[%s0 + $0x488] sm:$0xff]
  %v319 = vld [vmem:[%s0 + $0x490] sm:$0xff]
  %v320 = vld [vmem:[%s0 + $0x498] sm:$0xf]
  %v321 = vld [vmem:[%s0 + $0x49c] sm:$0xff]
  %v322 = vld [vmem:[%s0 + $0x4a4] sm:$0xff]
  %v323 = vld [vmem:[%s0 + $0x4ac] sm:$0xf]
  %v324 = vld [vmem:[%s0 + $0x4b0] sm:$0xff]
  %v325 = vld [vmem:[%s0 + $0x4b8] sm:$0xff]
  %v326 = vld [vmem:[%s0 + $0x4c0] sm:$0xf]
  %v327 = vld [vmem:[%s0 + $0x4c4] sm:$0xff]
  %v328 = vld [vmem:[%s0 + $0x4cc] sm:$0xff]
  %v329 = vld [vmem:[%s0 + $0x4d4] sm:$0xf]
  %v330 = vld [vmem:[%s0 + $0x4d8] sm:$0xff]
  %v331 = vld [vmem:[%s0 + $0x4e0] sm:$0xff]
  %v332 = vld [vmem:[%s0 + $0x4e8] sm:$0xf]
  %v333 = vld [vmem:[%s0 + $0x4ec] sm:$0xff]
  %v334 = vld [vmem:[%s0 + $0x4f4] sm:$0xff]
  %v335 = vld [vmem:[%s0 + $0x4fc] sm:$0xf]
  %v336 = vld [vmem:[%s1] sm:$0xf]
  %v337 = vld [vmem:[%s1 + $0x4] sm:$0xf]
  %v338 = vld [vmem:[%s1 + $0x8] sm:$0xf]
  %v339 = vld [vmem:[%s1 + $0xc] sm:$0xf]
  %v340 = vld [vmem:[%s1 + $0x10] sm:$0xf]
  %v341 = vld [vmem:[%s1 + $0x14] sm:$0xf]
  %v342 = vld [vmem:[%s1 + $0x18] sm:$0xf]
  %v343 = vld [vmem:[%s1 + $0x1c] sm:$0xf]
  %v344 = vld [vmem:[%s1 + $0x20] sm:$0xf]
  %v345 = vld [vmem:[%s1 + $0x24] sm:$0xf]
  %v346 = vld [vmem:[%s1 + $0x28] sm:$0xf]
  %v347 = vld [vmem:[%s1 + $0x2c] sm:$0xf]
  %v348 = vld [vmem:[%s1 + $0x30] sm:$0xf]
  %v349 = vld [vmem:[%s1 + $0x34] sm:$0xf]
  %v350 = vld [vmem:[%s1 + $0x38] sm:$0xf]
  %v351 = vld [vmem:[%s1 + $0x3c] sm:$0xf]
  %v352 = vld [vmem:[%s1 + $0x40] sm:$0xf]
  %v353 = vld [vmem:[%s1 + $0x44] sm:$0xf]
  %v354 = vld [vmem:[%s1 + $0x48] sm:$0xf]
  %v355 = vld [vmem:[%s1 + $0x4c] sm:$0xf]
  %v356 = vld [vmem:[%s1 + $0x50] sm:$0xf]
  %v357 = vld [vmem:[%s1 + $0x54] sm:$0xf]
  %v358 = vld [vmem:[%s1 + $0x58] sm:$0xf]
  %v359 = vld [vmem:[%s1 + $0x5c] sm:$0xf]
  %v360 = vld [vmem:[%s1 + $0x60] sm:$0xf]
  %v361 = vld [vmem:[%s1 + $0x64] sm:$0xf]
  %v362 = vld [vmem:[%s1 + $0x68] sm:$0xf]
  %v363 = vld [vmem:[%s1 + $0x6c] sm:$0xf]
  %v364 = vld [vmem:[%s1 + $0x70] sm:$0xf]
  %v365 = vld [vmem:[%s1 + $0x74] sm:$0xf]
  %v366 = vld [vmem:[%s1 + $0x78] sm:$0xf]
  %v367 = vld [vmem:[%s1 + $0x7c] sm:$0xf]
  %v368 = vld [vmem:[%s1 + $0x80] sm:$0xf]
  %v369 = vld [vmem:[%s1 + $0x84] sm:$0xf]
  %v370 = vld [vmem:[%s1 + $0x88] sm:$0xf]
  %v371 = vld [vmem:[%s1 + $0x8c] sm:$0xf]
  %v372 = vld [vmem:[%s1 + $0x90] sm:$0xf]
  %v373 = vld [vmem:[%s1 + $0x94] sm:$0xf]
  %v374 = vld [vmem:[%s1 + $0x98] sm:$0xf]
  %v375 = vld [vmem:[%s1 + $0x9c] sm:$0xf]
  %v376 = vld [vmem:[%s1 + $0xa0] sm:$0xf]
  %v377 = vld [vmem:[%s1 + $0xa4] sm:$0xf]
  %v378 = vld [vmem:[%s1 + $0xa8] sm:$0xf]
  %v379 = vld [vmem:[%s1 + $0xac] sm:$0xf]
  %v380 = vld [vmem:[%s1 + $0xb0] sm:$0xf]
  %v381 = vld [vmem:[%s1 + $0xb4] sm:$0xf]
  %v382 = vld [vmem:[%s1 + $0xb8] sm:$0xf]
  %v383 = vld [vmem:[%s1 + $0xbc] sm:$0xf]
  %v384 = vld [vmem:[%s1 + $0xc0] sm:$0xf]
  %v385 = vld [vmem:[%s1 + $0xc4] sm:$0xf]
  %v386 = vld [vmem:[%s1 + $0xc8] sm:$0xf]
  %v387 = vld [vmem:[%s1 + $0xcc] sm:$0xf]
  %v388 = vld [vmem:[%s1 + $0xd0] sm:$0xf]
  %v389 = vld [vmem:[%s1 + $0xd4] sm:$0xf]
  %v390 = vld [vmem:[%s1 + $0xd8] sm:$0xf]
  %v391 = vld [vmem:[%s1 + $0xdc] sm:$0xf]
  %v392 = vld [vmem:[%s1 + $0xe0] sm:$0xf]
  %v393 = vld [vmem:[%s1 + $0xe4] sm:$0xf]
  %v394 = vld [vmem:[%s1 + $0xe8] sm:$0xf]
  %v395 = vld [vmem:[%s1 + $0xec] sm:$0xf]
  %v396 = vld [vmem:[%s1 + $0xf0] sm:$0xf]
  %v397 = vld [vmem:[%s1 + $0xf4] sm:$0xf]
  %v398 = vld [vmem:[%s1 + $0xf8] sm:$0xf]
  %v399 = vld [vmem:[%s1 + $0xfc] sm:$0xf]
  %v400 = vld [vmem:[%s1 + $0x100] sm:$0xf]
  %v401 = vld [vmem:[%s1 + $0x104] sm:$0xf]
  %v402 = vld [vmem:[%s1 + $0x108] sm:$0xf]
  %v403 = vld [vmem:[%s1 + $0x10c] sm:$0xf]
  %v404 = vld [vmem:[%s1 + $0x110] sm:$0xf]
  %v405 = vld [vmem:[%s1 + $0x114] sm:$0xf]
  %v406 = vld [vmem:[%s1 + $0x118] sm:$0xf]
  %v407 = vld [vmem:[%s1 + $0x11c] sm:$0xf]
  %v600 = vunpack.c.l.b16 %v144
  %v601 = vunpack.c.h.b16 %v144
  %v602 = vunpack.c.l.b16 %v145
  %v603 = vunpack.c.h.b16 %v145
  %v604 = vunpack.c.l.b16 %v146
  %v605 = vunpack.c.l.b16 %v147
  %v606 = vunpack.c.h.b16 %v147
  %v607 = vunpack.c.l.b16 %v148
  %v608 = vunpack.c.h.b16 %v148
  %v609 = vunpack.c.l.b16 %v149
  %v610 = vunpack.c.l.b16 %v150
  %v611 = vunpack.c.h.b16 %v150
  %v612 = vunpack.c.l.b16 %v151
  %v613 = vunpack.c.h.b16 %v151
  %v614 = vunpack.c.l.b16 %v152
  %v615 = vunpack.c.l.b16 %v153
  %v616 = vunpack.c.h.b16 %v153
  %v617 = vunpack.c.l.b16 %v154
  %v618 = vunpack.c.h.b16 %v154
  %v619 = vunpack.c.l.b16 %v155
  %v620 = vunpack.c.l.b16 %v156
  %v621 = vunpack.c.h.b16 %v156
  %v622 = vunpack.c.l.b16 %v157
  %v623 = vunpack.c.h.b16 %v157
  %v624 = vunpack.c.l.b16 %v158
  %v625 = vunpack.c.l.b16 %v159
  %v626 = vunpack.c.h.b16 %v159
  %v627 = vunpack.c.l.b16 %v160
  %v628 = vunpack.c.h.b16 %v160
  %v629 = vunpack.c.l.b16 %v161
  %v630 = vunpack.c.l.b16 %v162
  %v631 = vunpack.c.h.b16 %v162
  %v632 = vunpack.c.l.b16 %v163
  %v633 = vunpack.c.h.b16 %v163
  %v634 = vunpack.c.l.b16 %v164
  %v635 = vunpack.c.l.b16 %v165
  %v636 = vunpack.c.h.b16 %v165
  %v637 = vunpack.c.l.b16 %v166
  %v638 = vunpack.c.h.b16 %v166
  %v639 = vunpack.c.l.b16 %v167
  %v640 = vunpack.c.l.b16 %v168
  %v641 = vunpack.c.h.b16 %v168
  %v642 = vunpack.c.l.b16 %v169
  %v643 = vunpack.c.h.b16 %v169
  %v644 = vunpack.c.l.b16 %v170
  %v645 = vunpack.c.l.b16 %v171
  %v646 = vunpack.c.h.b16 %v171
  %v647 = vunpack.c.l.b16 %v172
  %v648 = vunpack.c.h.b16 %v172
  %v649 = vunpack.c.l.b16 %v173
  %v650 = vunpack.c.l.b16 %v174
  %v651 = vunpack.c.h.b16 %v174
  %v652 = vunpack.c.l.b16 %v175
  %v653 = vunpack.c.h.b16 %v175
  %v654 = vunpack.c.l.b16 %v176
  %v655 = vunpack.c.l.b16 %v177
  %v656 = vunpack.c.h.b16 %v177
  %v657 = vunpack.c.l.b16 %v178
  %v658 = vunpack.c.h.b16 %v178
  %v659 = vunpack.c.l.b16 %v179
  %v660 = vunpack.c.l.b16 %v180
  %v661 = vunpack.c.h.b16 %v180
  %v662 = vunpack.c.l.b16 %v181
  %v663 = vunpack.c.h.b16 %v181
  %v664 = vunpack.c.l.b16 %v182
  %v665 = vunpack.c.l.b16 %v183
  %v666 = vunpack.c.h.b16 %v183
  %v667 = vunpack.c.l.b16 %v184
  %v668 = vunpack.c.h.b16 %v184
  %v669 = vunpack.c.l.b16 %v185
  %v670 = vunpack.c.l.b16 %v186
  %v671 = vunpack.c.h.b16 %v186
  %v672 = vunpack.c.l.b16 %v187
  %v673 = vunpack.c.h.b16 %v187
  %v674 = vunpack.c.l.b16 %v188
  %v675 = vunpack.c.l.b16 %v189
  %v676 = vunpack.c.h.b16 %v189
  %v677 = vunpack.c.l.b16 %v190
  %v678 = vunpack.c.h.b16 %v190
  %v679 = vunpack.c.l.b16 %v191
  %v680 = vunpack.c.l.b16 %v192
  %v681 = vunpack.c.h.b16 %v192
  %v682 = vunpack.c.l.b16 %v193
  %v683 = vunpack.c.h.b16 %v193
  %v684 = vunpack.c.l.b16 %v194
  %v685 = vunpack.c.l.b16 %v195
  %v686 = vunpack.c.h.b16 %v195
  %v687 = vunpack.c.l.b16 %v196
  %v688 = vunpack.c.h.b16 %v196
  %v689 = vunpack.c.l.b16 %v197
  %v690 = vunpack.c.l.b16 %v198
  %v691 = vunpack.c.h.b16 %v198
  %v692 = vunpack.c.l.b16 %v199
  %v693 = vunpack.c.h.b16 %v199
  %v694 = vunpack.c.l.b16 %v200
  %v695 = vunpack.c.l.b16 %v201
  %v696 = vunpack.c.h.b16 %v201
  %v697 = vunpack.c.l.b16 %v202
  %v698 = vunpack.c.h.b16 %v202
  %v699 = vunpack.c.l.b16 %v203
  %v700 = vunpack.c.l.b16 %v204
  %v701 = vunpack.c.h.b16 %v204
  %v702 = vunpack.c.l.b16 %v205
  %v703 = vunpack.c.h.b16 %v205
  %v704 = vunpack.c.l.b16 %v206
  %v705 = vunpack.c.l.b16 %v207
  %v706 = vunpack.c.h.b16 %v207
  %v707 = vunpack.c.l.b16 %v208
  %v708 = vunpack.c.h.b16 %v208
  %v709 = vunpack.c.l.b16 %v209
  %v710 = vunpack.c.l.b16 %v210
  %v711 = vunpack.c.h.b16 %v210
  %v712 = vunpack.c.l.b16 %v211
  %v713 = vunpack.c.h.b16 %v211
  %v714 = vunpack.c.l.b16 %v212
  %v715 = vunpack.c.l.b16 %v213
  %v716 = vunpack.c.h.b16 %v213
  %v717 = vunpack.c.l.b16 %v214
  %v718 = vunpack.c.h.b16 %v214
  %v719 = vunpack.c.l.b16 %v215
  %v720 = vunpack.c.l.b16 %v216
  %v721 = vunpack.c.h.b16 %v216
  %v722 = vunpack.c.l.b16 %v217
  %v723 = vunpack.c.h.b16 %v217
  %v724 = vunpack.c.l.b16 %v218
  %v725 = vunpack.c.l.b16 %v219
  %v726 = vunpack.c.h.b16 %v219
  %v727 = vunpack.c.l.b16 %v220
  %v728 = vunpack.c.h.b16 %v220
  %v729 = vunpack.c.l.b16 %v221
  %v730 = vunpack.c.l.b16 %v222
  %v731 = vunpack.c.h.b16 %v222
  %v732 = vunpack.c.l.b16 %v223
  %v733 = vunpack.c.h.b16 %v223
  %v734 = vunpack.c.l.b16 %v224
  %v735 = vunpack.c.l.b16 %v225
  %v736 = vunpack.c.h.b16 %v225
  %v737 = vunpack.c.l.b16 %v226
  %v738 = vunpack.c.h.b16 %v226
  %v739 = vunpack.c.l.b16 %v227
  %v740 = vunpack.c.l.b16 %v228
  %v741 = vunpack.c.h.b16 %v228
  %v742 = vunpack.c.l.b16 %v229
  %v743 = vunpack.c.h.b16 %v229
  %v744 = vunpack.c.l.b16 %v230
  %v745 = vunpack.c.l.b16 %v231
  %v746 = vunpack.c.h.b16 %v231
  %v747 = vunpack.c.l.b16 %v232
  %v748 = vunpack.c.h.b16 %v232
  %v749 = vunpack.c.l.b16 %v233
  %v750 = vunpack.c.l.b16 %v234
  %v751 = vunpack.c.h.b16 %v234
  %v752 = vunpack.c.l.b16 %v235
  %v753 = vunpack.c.h.b16 %v235
  %v754 = vunpack.c.l.b16 %v236
  %v755 = vunpack.c.l.b16 %v237
  %v756 = vunpack.c.h.b16 %v237
  %v757 = vunpack.c.l.b16 %v238
  %v758 = vunpack.c.h.b16 %v238
  %v759 = vunpack.c.l.b16 %v239
  %v760 = vunpack.c.l.b16 %v240
  %v761 = vunpack.c.h.b16 %v240
  %v762 = vunpack.c.l.b16 %v241
  %v763 = vunpack.c.h.b16 %v241
  %v764 = vunpack.c.l.b16 %v242
  %v765 = vunpack.c.l.b16 %v243
  %v766 = vunpack.c.h.b16 %v243
  %v767 = vunpack.c.l.b16 %v244
  %v768 = vunpack.c.h.b16 %v244
  %v769 = vunpack.c.l.b16 %v245
  %v770 = vunpack.c.l.b16 %v246
  %v771 = vunpack.c.h.b16 %v246
  %v772 = vunpack.c.l.b16 %v247
  %v773 = vunpack.c.h.b16 %v247
  %v774 = vunpack.c.l.b16 %v248
  %v775 = vunpack.c.l.b16 %v249
  %v776 = vunpack.c.h.b16 %v249
  %v777 = vunpack.c.l.b16 %v250
  %v778 = vunpack.c.h.b16 %v250
  %v779 = vunpack.c.l.b16 %v251
  %v780 = vunpack.c.l.b16 %v252
  %v781 = vunpack.c.h.b16 %v252
  %v782 = vunpack.c.l.b16 %v253
  %v783 = vunpack.c.h.b16 %v253
  %v784 = vunpack.c.l.b16 %v254
  %v785 = vunpack.c.l.b16 %v255
  %v786 = vunpack.c.h.b16 %v255
  %v787 = vunpack.c.l.b16 %v256
  %v788 = vunpack.c.h.b16 %v256
  %v789 = vunpack.c.l.b16 %v257
  %v790 = vunpack.c.l.b16 %v258
  %v791 = vunpack.c.h.b16 %v258
  %v792 = vunpack.c.l.b16 %v259
  %v793 = vunpack.c.h.b16 %v259
  %v794 = vunpack.c.l.b16 %v260
  %v795 = vunpack.c.l.b16 %v261
  %v796 = vunpack.c.h.b16 %v261
  %v797 = vunpack.c.l.b16 %v262
  %v798 = vunpack.c.h.b16 %v262
  %v799 = vunpack.c.l.b16 %v263
  %v800 = vunpack.c.l.b16 %v264
  %v801 = vunpack.c.h.b16 %v264
  %v802 = vunpack.c.l.b16 %v265
  %v803 = vunpack.c.h.b16 %v265
  %v804 = vunpack.c.l.b16 %v266
  %v805 = vunpack.c.l.b16 %v267
  %v806 = vunpack.c.h.b16 %v267
  %v807 = vunpack.c.l.b16 %v268
  %v808 = vunpack.c.h.b16 %v268
  %v809 = vunpack.c.l.b16 %v269
  %v810 = vunpack.c.l.b16 %v270
  %v811 = vunpack.c.h.b16 %v270
  %v812 = vunpack.c.l.b16 %v271
  %v813 = vunpack.c.h.b16 %v271
  %v814 = vunpack.c.l.b16 %v272
  %v815 = vunpack.c.l.b16 %v273
  %v816 = vunpack.c.h.b16 %v273
  %v817 = vunpack.c.l.b16 %v274
  %v818 = vunpack.c.h.b16 %v274
  %v819 = vunpack.c.l.b16 %v275
  %v820 = vunpack.c.l.b16 %v276
  %v821 = vunpack.c.h.b16 %v276
  %v822 = vunpack.c.l.b16 %v277
  %v823 = vunpack.c.h.b16 %v277
  %v824 = vunpack.c.l.b16 %v278
  %v825 = vunpack.c.l.b16 %v279
  %v826 = vunpack.c.h.b16 %v279
  %v827 = vunpack.c.l.b16 %v280
  %v828 = vunpack.c.h.b16 %v280
  %v829 = vunpack.c.l.b16 %v281
  %v830 = vunpack.c.l.b16 %v282
  %v831 = vunpack.c.h.b16 %v282
  %v832 = vunpack.c.l.b16 %v283
  %v833 = vunpack.c.h.b16 %v283
  %v834 = vunpack.c.l.b16 %v284
  %v835 = vunpack.c.l.b16 %v285
  %v836 = vunpack.c.h.b16 %v285
  %v837 = vunpack.c.l.b16 %v286
  %v838 = vunpack.c.h.b16 %v286
  %v839 = vunpack.c.l.b16 %v287
  %v840 = vunpack.c.l.b16 %v288
  %v841 = vunpack.c.h.b16 %v288
  %v842 = vunpack.c.l.b16 %v289
  %v843 = vunpack.c.h.b16 %v289
  %v844 = vunpack.c.l.b16 %v290
  %v845 = vunpack.c.l.b16 %v291
  %v846 = vunpack.c.h.b16 %v291
  %v847 = vunpack.c.l.b16 %v292
  %v848 = vunpack.c.h.b16 %v292
  %v849 = vunpack.c.l.b16 %v293
  %v850 = vunpack.c.l.b16 %v294
  %v851 = vunpack.c.h.b16 %v294
  %v852 = vunpack.c.l.b16 %v295
  %v853 = vunpack.c.h.b16 %v295
  %v854 = vunpack.c.l.b16 %v296
  %v855 = vunpack.c.l.b16 %v297
  %v856 = vunpack.c.h.b16 %v297
  %v857 = vunpack.c.l.b16 %v298
  %v858 = vunpack.c.h.b16 %v298
  %v859 = vunpack.c.l.b16 %v299
  %v860 = vunpack.c.l.b16 %v300
  %v861 = vunpack.c.h.b16 %v300
  %v862 = vunpack.c.l.b16 %v301
  %v863 = vunpack.c.h.b16 %v301
  %v864 = vunpack.c.l.b16 %v302
  %v865 = vunpack.c.l.b16 %v303
  %v866 = vunpack.c.h.b16 %v303
  %v867 = vunpack.c.l.b16 %v304
  %v868 = vunpack.c.h.b16 %v304
  %v869 = vunpack.c.l.b16 %v305
  %v870 = vunpack.c.l.b16 %v306
  %v871 = vunpack.c.h.b16 %v306
  %v872 = vunpack.c.l.b16 %v307
  %v873 = vunpack.c.h.b16 %v307
  %v874 = vunpack.c.l.b16 %v308
  %v875 = vunpack.c.l.b16 %v309
  %v876 = vunpack.c.h.b16 %v309
  %v877 = vunpack.c.l.b16 %v310
  %v878 = vunpack.c.h.b16 %v310
  %v879 = vunpack.c.l.b16 %v311
  %v880 = vunpack.c.l.b16 %v312
  %v881 = vunpack.c.h.b16 %v312
  %v882 = vunpack.c.l.b16 %v313
  %v883 = vunpack.c.h.b16 %v313
  %v884 = vunpack.c.l.b16 %v314
  %v885 = vunpack.c.l.b16 %v315
  %v886 = vunpack.c.h.b16 %v315
  %v887 = vunpack.c.l.b16 %v316
  %v888 = vunpack.c.h.b16 %v316
  %v889 = vunpack.c.l.b16 %v317
  %v890 = vunpack.c.l.b16 %v318
  %v891 = vunpack.c.h.b16 %v318
  %v892 = vunpack.c.l.b16 %v319
  %v893 = vunpack.c.h.b16 %v319
  %v894 = vunpack.c.l.b16 %v320
  %v895 = vunpack.c.l.b16 %v321
  %v896 = vunpack.c.h.b16 %v321
  %v897 = vunpack.c.l.b16 %v322
  %v898 = vunpack.c.h.b16 %v322
  %v899 = vunpack.c.l.b16 %v323
  %v900 = vunpack.c.l.b16 %v324
  %v901 = vunpack.c.h.b16 %v324
  %v902 = vunpack.c.l.b16 %v325
  %v903 = vunpack.c.h.b16 %v325
  %v904 = vunpack.c.l.b16 %v326
  %v905 = vunpack.c.l.b16 %v327
  %v906 = vunpack.c.h.b16 %v327
  %v907 = vunpack.c.l.b16 %v328
  %v908 = vunpack.c.h.b16 %v328
  %v909 = vunpack.c.l.b16 %v329
  %v910 = vunpack.c.l.b16 %v330
  %v911 = vunpack.c.h.b16 %v330
  %v912 = vunpack.c.l.b16 %v331
  %v913 = vunpack.c.h.b16 %v331
  %v914 = vunpack.c.l.b16 %v332
  %v915 = vunpack.c.l.b16 %v333
  %v916 = vunpack.c.h.b16 %v333
  %v917 = vunpack.c.l.b16 %v334
  %v918 = vunpack.c.h.b16 %v334
  %v919 = vunpack.c.l.b16 %v335
  %v920 = vpack.c.b16 %v605, %v600
  %v921 = vpack.c.b16 %v606, %v601
  %v922 = vpack.c.b16 %v607, %v602
  %v923 = vpack.c.b16 %v608, %v603
  %v924 = vpack.c.b16 %v609, %v604
  %v925 = vpack.c.b16 %v615, %v610
  %v926 = vpack.c.b16 %v616, %v611
  %v927 = vpack.c.b16 %v617, %v612
  %v928 = vpack.c.b16 %v618, %v613
  %v929 = vpack.c.b16 %v619, %v614
  %v930 = vpack.c.b16 %v625, %v620
  %v931 = vpack.c.b16 %v626, %v621
  %v932 = vpack.c.b16 %v627, %v622
  %v933 = vpack.c.b16 %v628, %v623
  %v934 = vpack.c.b16 %v629, %v624
  %v935 = vpack.c.b16 %v635, %v630
  %v936 = vpack.c.b16 %v636, %v631
  %v937 = vpack.c.b16 %v637, %v632
  %v938 = vpack.c.b16 %v638, %v633
  %v939 = vpack.c.b16 %v639, %v634
  %v940 = vpack.c.b16 %v645, %v640
  %v941 = vpack.c.b16 %v646, %v641
  %v942 = vpack.c.b16 %v647, %v642
  %v943 = vpack.c.b16 %v648, %v643
  %v944 = vpack.c.b16 %v649, %v644
  %v945 = vpack.c.b16 %v655, %v650
  %v946 = vpack.c.b16 %v656, %v651
  %v947 = vpack.c.b16 %v657, %v652
  %v948 = vpack.c.b16 %v658, %v653
  %v949 = vpack.c.b16 %v659, %v654
  %v950 = vpack.c.b16 %v665, %v660
  %v951 = vpack.c.b16 %v666, %v661
  %v952 = vpack.c.b16 %v667, %v662
  %v953 = vpack.c.b16 %v668, %v663
  %v954 = vpack.c.b16 %v669, %v664
  %v955 = vpack.c.b16 %v675, %v670
  %v956 = vpack.c.b16 %v676, %v671
  %v957 = vpack.c.b16 %v677, %v672
  %v958 = vpack.c.b16 %v678, %v673
  %v959 = vpack.c.b16 %v679, %v674
  %v960 = vpack.c.b16 %v685, %v680
  %v961 = vpack.c.b16 %v686, %v681
  %v962 = vpack.c.b16 %v687, %v682
  %v963 = vpack.c.b16 %v688, %v683
  %v964 = vpack.c.b16 %v689, %v684
  %v965 = vpack.c.b16 %v695, %v690
  %v966 = vpack.c.b16 %v696, %v691
  %v967 = vpack.c.b16 %v697, %v692
  %v968 = vpack.c.b16 %v698, %v693
  %v969 = vpack.c.b16 %v699, %v694
  %v970 = vpack.c.b16 %v705, %v700
  %v971 = vpack.c.b16 %v706, %v701
  %v972 = vpack.c.b16 %v707, %v702
  %v973 = vpack.c.b16 %v708, %v703
  %v974 = vpack.c.b16 %v709, %v704
  %v975 = vpack.c.b16 %v715, %v710
  %v976 = vpack.c.b16 %v716, %v711
  %v977 = vpack.c.b16 %v717, %v712
  %v978 = vpack.c.b16 %v718, %v713
  %v979 = vpack.c.b16 %v719, %v714
  %v980 = vpack.c.b16 %v725, %v720
  %v981 = vpack.c.b16 %v726, %v721
  %v982 = vpack.c.b16 %v727, %v722
  %v983 = vpack.c.b16 %v728, %v723
  %v984 = vpack.c.b16 %v729, %v724
  %v985 = vpack.c.b16 %v735, %v730
  %v986 = vpack.c.b16 %v736, %v731
  %v987 = vpack.c.b16 %v737, %v732
  %v988 = vpack.c.b16 %v738, %v733
  %v989 = vpack.c.b16 %v739, %v734
  %v990 = vpack.c.b16 %v745, %v740
  %v991 = vpack.c.b16 %v746, %v741
  %v992 = vpack.c.b16 %v747, %v742
  %v993 = vpack.c.b16 %v748, %v743
  %v994 = vpack.c.b16 %v749, %v744
  %v995 = vpack.c.b16 %v755, %v750
  %v996 = vpack.c.b16 %v756, %v751
  %v997 = vpack.c.b16 %v757, %v752
  %v998 = vpack.c.b16 %v758, %v753
  %v999 = vpack.c.b16 %v759, %v754
  %v1000 = vpack.c.b16 %v765, %v760
  %v1001 = vpack.c.b16 %v766, %v761
  %v1002 = vpack.c.b16 %v767, %v762
  %v1003 = vpack.c.b16 %v768, %v763
  %v1004 = vpack.c.b16 %v769, %v764
  %v1005 = vpack.c.b16 %v775, %v770
  %v1006 = vpack.c.b16 %v776, %v771
  %v1007 = vpack.c.b16 %v777, %v772
  %v1008 = vpack.c.b16 %v778, %v773
  %v1009 = vpack.c.b16 %v779, %v774
  %v1010 = vpack.c.b16 %v785, %v780
  %v1011 = vpack.c.b16 %v786, %v781
  %v1012 = vpack.c.b16 %v787, %v782
  %v1013 = vpack.c.b16 %v788, %v783
  %v1014 = vpack.c.b16 %v789, %v784
  %v1015 = vpack.c.b16 %v795, %v790
  %v1016 = vpack.c.b16 %v796, %v791
  %v1017 = vpack.c.b16 %v797, %v792
  %v1018 = vpack.c.b16 %v798, %v793
  %v1019 = vpack.c.b16 %v799, %v794
  %v1020 = vpack.c.b16 %v805, %v800
  %v1021 = vpack.c.b16 %v806, %v801
  %v1022 = vpack.c.b16 %v807, %v802
  %v1023 = vpack.c.b16 %v808, %v803
  %v1024 = vpack.c.b16 %v809, %v804
  %v1025 = vpack.c.b16 %v815, %v810
  %v1026 = vpack.c.b16 %v816, %v811
  %v1027 = vpack.c.b16 %v817, %v812
  %v1028 = vpack.c.b16 %v818, %v813
  %v1029 = vpack.c.b16 %v819, %v814
  %v1030 = vpack.c.b16 %v825, %v820
  %v1031 = vpack.c.b16 %v826, %v821
  %v1032 = vpack.c.b16 %v827, %v822
  %v1033 = vpack.c.b16 %v828, %v823
  %v1034 = vpack.c.b16 %v829, %v824
  %v1035 = vpack.c.b16 %v835, %v830
  %v1036 = vpack.c.b16 %v836, %v831
  %v1037 = vpack.c.b16 %v837, %v832
  %v1038 = vpack.c.b16 %v838, %v833
  %v1039 = vpack.c.b16 %v839, %v834
  %v1040 = vpack.c.b16 %v845, %v840
  %v1041 = vpack.c.b16 %v846, %v841
  %v1042 = vpack.c.b16 %v847, %v842
  %v1043 = vpack.c.b16 %v848, %v843
  %v1044 = vpack.c.b16 %v849, %v844
  %v1045 = vpack.c.b16 %v855, %v850
  %v1046 = vpack.c.b16 %v856, %v851
  %v1047 = vpack.c.b16 %v857, %v852
  %v1048 = vpack.c.b16 %v858, %v853
  %v1049 = vpack.c.b16 %v859, %v854
  %v1050 = vpack.c.b16 %v865, %v860
  %v1051 = vpack.c.b16 %v866, %v861
  %v1052 = vpack.c.b16 %v867, %v862
  %v1053 = vpack.c.b16 %v868, %v863
  %v1054 = vpack.c.b16 %v869, %v864
  %v1055 = vpack.c.b16 %v875, %v870
  %v1056 = vpack.c.b16 %v876, %v871
  %v1057 = vpack.c.b16 %v877, %v872
  %v1058 = vpack.c.b16 %v878, %v873
  %v1059 = vpack.c.b16 %v879, %v874
  %v1060 = vpack.c.b16 %v885, %v880
  %v1061 = vpack.c.b16 %v886, %v881
  %v1062 = vpack.c.b16 %v887, %v882
  %v1063 = vpack.c.b16 %v888, %v883
  %v1064 = vpack.c.b16 %v889, %v884
  %v1065 = vpack.c.b16 %v895, %v890
  %v1066 = vpack.c.b16 %v896, %v891
  %v1067 = vpack.c.b16 %v897, %v892
  %v1068 = vpack.c.b16 %v898, %v893
  %v1069 = vpack.c.b16 %v899, %v894
  %v1070 = vpack.c.b16 %v905, %v900
  %v1071 = vpack.c.b16 %v906, %v901
  %v1072 = vpack.c.b16 %v907, %v902
  %v1073 = vpack.c.b16 %v908, %v903
  %v1074 = vpack.c.b16 %v909, %v904
  %v1075 = vpack.c.b16 %v915, %v910
  %v1076 = vpack.c.b16 %v916, %v911
  %v1077 = vpack.c.b16 %v917, %v912
  %v1078 = vpack.c.b16 %v918, %v913
  %v1079 = vpack.c.b16 %v919, %v914
  %v1280 = vunpack.c.l.b16 %v336
  %v1281 = vunpack.c.l.b16 %v337
  %v1282 = vunpack.c.l.b16 %v338
  %v1283 = vunpack.c.l.b16 %v339
  %v1284 = vunpack.c.l.b16 %v340
  %v1285 = vunpack.c.l.b16 %v341
  %v1286 = vunpack.c.l.b16 %v342
  %v1287 = vunpack.c.l.b16 %v343
  %v1288 = vunpack.c.l.b16 %v344
  %v1289 = vunpack.c.l.b16 %v345
  %v1290 = vunpack.c.l.b16 %v346
  %v1291 = vunpack.c.l.b16 %v347
  %v1292 = vunpack.c.l.b16 %v348
  %v1293 = vunpack.c.l.b16 %v349
  %v1294 = vunpack.c.l.b16 %v350
  %v1295 = vunpack.c.l.b16 %v351
  %v1296 = vunpack.c.l.b16 %v352
  %v1297 = vunpack.c.l.b16 %v353
  %v1298 = vunpack.c.l.b16 %v354
  %v1299 = vunpack.c.l.b16 %v355
  %v1300 = vunpack.c.l.b16 %v356
  %v1301 = vunpack.c.l.b16 %v357
  %v1302 = vunpack.c.l.b16 %v358
  %v1303 = vunpack.c.l.b16 %v359
  %v1304 = vunpack.c.l.b16 %v360
  %v1305 = vunpack.c.l.b16 %v361
  %v1306 = vunpack.c.l.b16 %v362
  %v1307 = vunpack.c.l.b16 %v363
  %v1308 = vunpack.c.l.b16 %v364
  %v1309 = vunpack.c.l.b16 %v365
  %v1310 = vunpack.c.l.b16 %v366
  %v1311 = vunpack.c.l.b16 %v367
  %v1312 = vunpack.c.l.b16 %v368
  %v1313 = vunpack.c.l.b16 %v369
  %v1314 = vunpack.c.l.b16 %v370
  %v1315 = vunpack.c.l.b16 %v371
  %v1316 = vunpack.c.l.b16 %v372
  %v1317 = vunpack.c.l.b16 %v373
  %v1318 = vunpack.c.l.b16 %v374
  %v1319 = vunpack.c.l.b16 %v375
  %v1320 = vunpack.c.l.b16 %v376
  %v1321 = vunpack.c.l.b16 %v377
  %v1322 = vunpack.c.l.b16 %v378
  %v1323 = vunpack.c.l.b16 %v379
  %v1324 = vunpack.c.l.b16 %v380
  %v1325 = vunpack.c.l.b16 %v381
  %v1326 = vunpack.c.l.b16 %v382
  %v1327 = vunpack.c.l.b16 %v383
  %v1328 = vunpack.c.l.b16 %v384
  %v1329 = vunpack.c.l.b16 %v385
  %v1330 = vunpack.c.l.b16 %v386
  %v1331 = vunpack.c.l.b16 %v387
  %v1332 = vunpack.c.l.b16 %v388
  %v1333 = vunpack.c.l.b16 %v389
  %v1334 = vunpack.c.l.b16 %v390
  %v1335 = vunpack.c.l.b16 %v391
  %v1336 = vunpack.c.l.b16 %v392
  %v1337 = vunpack.c.l.b16 %v393
  %v1338 = vunpack.c.l.b16 %v394
  %v1339 = vunpack.c.l.b16 %v395
  %v1340 = vunpack.c.l.b16 %v396
  %v1341 = vunpack.c.l.b16 %v397
  %v1342 = vunpack.c.l.b16 %v398
  %v1343 = vunpack.c.l.b16 %v399
  %v1344 = vunpack.c.l.b16 %v400
  %v1345 = vunpack.c.l.b16 %v401
  %v1346 = vunpack.c.l.b16 %v402
  %v1347 = vunpack.c.l.b16 %v403
  %v1348 = vunpack.c.l.b16 %v404
  %v1349 = vunpack.c.l.b16 %v405
  %v1350 = vunpack.c.l.b16 %v406
  %v1351 = vunpack.c.l.b16 %v407
  %v1352 = vpack.c.b16 %v1281, %v1280
  %v1353 = vpack.c.b16 %v1283, %v1282
  %v1354 = vpack.c.b16 %v1285, %v1284
  %v1355 = vpack.c.b16 %v1287, %v1286
  %v1356 = vpack.c.b16 %v1289, %v1288
  %v1357 = vpack.c.b16 %v1291, %v1290
  %v1358 = vpack.c.b16 %v1293, %v1292
  %v1359 = vpack.c.b16 %v1295, %v1294
  %v1360 = vpack.c.b16 %v1297, %v1296
  %v1361 = vpack.c.b16 %v1299, %v1298
  %v1362 = vpack.c.b16 %v1301, %v1300
  %v1363 = vpack.c.b16 %v1303, %v1302
  %v1364 = vpack.c.b16 %v1305, %v1304
  %v1365 = vpack.c.b16 %v1307, %v1306
  %v1366 = vpack.c.b16 %v1309, %v1308
  %v1367 = vpack.c.b16 %v1311, %v1310
  %v1368 = vpack.c.b16 %v1313, %v1312
  %v1369 = vpack.c.b16 %v1315, %v1314
  %v1370 = vpack.c.b16 %v1317, %v1316
  %v1371 = vpack.c.b16 %v1319, %v1318
  %v1372 = vpack.c.b16 %v1321, %v1320
  %v1373 = vpack.c.b16 %v1323, %v1322
  %v1374 = vpack.c.b16 %v1325, %v1324
  %v1375 = vpack.c.b16 %v1327, %v1326
  %v1376 = vpack.c.b16 %v1329, %v1328
  %v1377 = vpack.c.b16 %v1331, %v1330
  %v1378 = vpack.c.b16 %v1333, %v1332
  %v1379 = vpack.c.b16 %v1335, %v1334
  %v1380 = vpack.c.b16 %v1337, %v1336
  %v1381 = vpack.c.b16 %v1339, %v1338
  %v1382 = vpack.c.b16 %v1341, %v1340
  %v1383 = vpack.c.b16 %v1343, %v1342
  %v1384 = vpack.c.b16 %v1345, %v1344
  %v1385 = vpack.c.b16 %v1347, %v1346
  %v1386 = vpack.c.b16 %v1349, %v1348
  %v1387 = vpack.c.b16 %v1351, %v1350
  %vm1424 = vcmask 523264
  %v1426 = vsel %vm1424, %v924, 0
  %v1429 = vsel %vm1424, %v929, 0
  %v1432 = vsel %vm1424, %v934, 0
  %v1435 = vsel %vm1424, %v939, 0
  %v1438 = vsel %vm1424, %v944, 0
  %v1441 = vsel %vm1424, %v949, 0
  %v1444 = vsel %vm1424, %v954, 0
  %v1447 = vsel %vm1424, %v959, 0
  %v1450 = vsel %vm1424, %v964, 0
  %v1453 = vsel %vm1424, %v969, 0
  %v1456 = vsel %vm1424, %v974, 0
  %v1459 = vsel %vm1424, %v979, 0
  %v1462 = vsel %vm1424, %v984, 0
  %v1465 = vsel %vm1424, %v989, 0
  %v1468 = vsel %vm1424, %v994, 0
  %v1471 = vsel %vm1424, %v999, 0
  %v1474 = vsel %vm1424, %v1004, 0
  %v1477 = vsel %vm1424, %v1009, 0
  %v1480 = vsel %vm1424, %v1014, 0
  %v1483 = vsel %vm1424, %v1019, 0
  %v1486 = vsel %vm1424, %v1024, 0
  %v1489 = vsel %vm1424, %v1029, 0
  %v1492 = vsel %vm1424, %v1034, 0
  %v1495 = vsel %vm1424, %v1039, 0
  %v1498 = vsel %vm1424, %v1044, 0
  %v1501 = vsel %vm1424, %v1049, 0
  %v1504 = vsel %vm1424, %v1054, 0
  %v1507 = vsel %vm1424, %v1059, 0
  %v1510 = vsel %vm1424, %v1064, 0
  %v1513 = vsel %vm1424, %v1069, 0
  %v1516 = vsel %vm1424, %v1074, 0
  %v1519 = vsel %vm1424, %v1079, 0
  %1521 = vmatprep.subr.bf16.mxu0 0
  %1522 = vmatpush1.bf16.msra.mxu0 %v1352
  %1523 = vmatprep.subr.bf16.mxu0 0
  %1524 = vmatpush1.bf16.msra.mxu0 %v1353
  %1525 = vmatprep.subr.bf16.mxu0 0
  %1526 = vmatpush1.bf16.msra.mxu0 %v1354
  %1527 = vmatprep.subr.bf16.mxu0 0
  %1528 = vmatpush1.bf16.msra.mxu0 %v1355
  %1529 = vmatprep.subr.bf16.mxu0 0
  %1530 = vmatpush1.bf16.msra.mxu0 %v1356
  %1531 = vmatprep.subr.bf16.mxu0 0
  %1532 = vmatpush1.bf16.msra.mxu0 %v1357
  %1533 = vmatprep.subr.bf16.mxu0 0
  %1534 = vmatpush1.bf16.msra.mxu0 %v1358
  %1535 = vmatprep.subr.bf16.mxu0 0
  %1536 = vmatpush1.bf16.msra.mxu0 %v1359
  %1537 = vmatprep.subr.bf16.mxu0 0
  %1538 = vmatpush1.bf16.msra.mxu0 %v1360
  %1539 = vmatprep.subr.bf16.mxu0 0
  %1540 = vmatpush1.bf16.msra.mxu0 %v1361
  %1541 = vmatprep.subr.bf16.mxu0 0
  %1542 = vmatpush1.bf16.msra.mxu0 %v1362
  %1543 = vmatprep.subr.bf16.mxu0 0
  %1544 = vmatpush1.bf16.msra.mxu0 %v1363
  %1545 = vmatprep.subr.bf16.mxu0 0
  %1546 = vmatpush1.bf16.msra.mxu0 %v1364
  %1547 = vmatprep.subr.bf16.mxu0 0
  %1548 = vmatpush1.bf16.msra.mxu0 %v1365
  %1549 = vmatprep.subr.bf16.mxu0 0
  %1550 = vmatpush1.bf16.msra.mxu0 %v1366
  %1551 = vmatprep.subr.bf16.mxu0 0
  %1552 = vmatpush1.bf16.msra.mxu0 %v1367
  %1553 = vmatprep.mubr.bf16.mxu0 %v921
  %1554 = vmatmul.mubr.bf16.gmra.mrb[0].mxu0 %v920
  %v1555 = vpop.f32.mrb[0].mxu0
  %v1556 = vadd.f32 0.0, %v1555
  %v1557 = vpop.f32.mrb[0].mxu0
  %v1558 = vpop.f32.mrb[0].mxu0
  %v1559 = vadd.f32 0.0, %v1558
  %v1560 = vpop.f32.mrb[0].mxu0
  %1561 = vmatprep.mubr.bf16.mxu0 %v926
  %1562 = vmatmul.mubr.bf16.gmra.mrb[0].mxu0 %v925
  %v1563 = vpop.f32.mrb[0].mxu0
  %v1564 = vadd.f32 0.0, %v1563
  %v1565 = vpop.f32.mrb[0].mxu0
  %v1566 = vpop.f32.mrb[0].mxu0
  %v1567 = vadd.f32 0.0, %v1566
  %v1568 = vpop.f32.mrb[0].mxu0
  %1569 = vmatprep.mubr.bf16.mxu0 %v931
  %1570 = vmatmul.mubr.bf16.gmra.mrb[0].mxu0 %v930
  %v1571 = vpop.f32.mrb[0].mxu0
  %v1572 = vadd.f32 0.0, %v1571
  %v1573 = vpop.f32.mrb[0].mxu0
  %v1574 = vpop.f32.mrb[0].mxu0
  %v1575 = vadd.f32 0.0, %v1574
  %v1576 = vpop.f32.mrb[0].mxu0
  %1577 = vmatprep.mubr.bf16.mxu0 %v936
  %1578 = vmatmul.mubr.bf16.gmra.mrb[0].mxu0 %v935
  %v1579 = vpop.f32.mrb[0].mxu0
  %v1580 = vadd.f32 0.0, %v1579
  %v1581 = vpop.f32.mrb[0].mxu0
  %v1582 = vpop.f32.mrb[0].mxu0
  %v1583 = vadd.f32 0.0, %v1582
  %v1584 = vpop.f32.mrb[0].mxu0
  %1585 = vmatprep.mubr.bf16.mxu0 %v941
  %1586 = vmatmul.mubr.bf16.gmra.mrb[0].mxu0 %v940
  %v1587 = vpop.f32.mrb[0].mxu0
  %v1588 = vadd.f32 0.0, %v1587
  %v1589 = vpop.f32.mrb[0].mxu0
  %v1590 = vpop.f32.mrb[0].mxu0
  %v1591 = vadd.f32 0.0, %v1590
  %v1592 = vpop.f32.mrb[0].mxu0
  %1593 = vmatprep.mubr.bf16.mxu0 %v946
  %1594 = vmatmul.mubr.bf16.gmra.mrb[0].mxu0 %v945
  %v1595 = vpop.f32.mrb[0].mxu0
  %v1596 = vadd.f32 0.0, %v1595
  %v1597 = vpop.f32.mrb[0].mxu0
  %v1598 = vpop.f32.mrb[0].mxu0
  %v1599 = vadd.f32 0.0, %v1598
  %v1600 = vpop.f32.mrb[0].mxu0
  %1601 = vmatprep.mubr.bf16.mxu0 %v951
  %1602 = vmatmul.mubr.bf16.gmra.mrb[0].mxu0 %v950
  %v1603 = vpop.f32.mrb[0].mxu0
  %v1604 = vadd.f32 0.0, %v1603
  %v1605 = vpop.f32.mrb[0].mxu0
  %v1606 = vpop.f32.mrb[0].mxu0
  %v1607 = vadd.f32 0.0, %v1606
  %v1608 = vpop.f32.mrb[0].mxu0
  %1609 = vmatprep.mubr.bf16.mxu0 %v956
  %1610 = vmatmul.mubr.bf16.gmra.mrb[0].mxu0 %v955
  %v1611 = vpop.f32.mrb[0].mxu0
  %v1612 = vadd.f32 0.0, %v1611
  %v1613 = vpop.f32.mrb[0].mxu0
  %v1614 = vpop.f32.mrb[0].mxu0
  %v1615 = vadd.f32 0.0, %v1614
  %v1616 = vpop.f32.mrb[0].mxu0
  %1617 = vmatprep.mubr.bf16.mxu0 %v961
  %1618 = vmatmul.mubr.bf16.gmra.mrb[0].mxu0 %v960
  %v1619 = vpop.f32.mrb[0].mxu0
  %v1620 = vadd.f32 0.0, %v1619
  %v1621 = vpop.f32.mrb[0].mxu0
  %v1622 = vpop.f32.mrb[0].mxu0
  %v1623 = vadd.f32 0.0, %v1622
  %v1624 = vpop.f32.mrb[0].mxu0
  %1625 = vmatprep.mubr.bf16.mxu0 %v966
  %1626 = vmatmul.mubr.bf16.gmra.mrb[0].mxu0 %v965
  %v1627 = vpop.f32.mrb[0].mxu0
  %v1628 = vadd.f32 0.0, %v1627
  %v1629 = vpop.f32.mrb[0].mxu0
  %v1630 = vpop.f32.mrb[0].mxu0
  %v1631 = vadd.f32 0.0, %v1630
  %v1632 = vpop.f32.mrb[0].mxu0
  %1633 = vmatprep.mubr.bf16.mxu0 %v971
  %1634 = vmatmul.mubr.bf16.gmra.mrb[0].mxu0 %v970
  %v1635 = vpop.f32.mrb[0].mxu0
  %v1636 = vadd.f32 0.0, %v1635
  %v1637 = vpop.f32.mrb[0].mxu0
  %v1638 = vpop.f32.mrb[0].mxu0
  %v1639 = vadd.f32 0.0, %v1638
  %v1640 = vpop.f32.mrb[0].mxu0
  %1641 = vmatprep.mubr.bf16.mxu0 %v976
  %1642 = vmatmul.mubr.bf16.gmra.mrb[0].mxu0 %v975
  %v1643 = vpop.f32.mrb[0].mxu0
  %v1644 = vadd.f32 0.0, %v1643
  %v1645 = vpop.f32.mrb[0].mxu0
  %v1646 = vpop.f32.mrb[0].mxu0
  %v1647 = vadd.f32 0.0, %v1646
  %v1648 = vpop.f32.mrb[0].mxu0
  %1649 = vmatprep.mubr.bf16.mxu0 %v981
  %1650 = vmatmul.mubr.bf16.gmra.mrb[0].mxu0 %v980
  %v1651 = vpop.f32.mrb[0].mxu0
  %v1652 = vadd.f32 0.0, %v1651
  %v1653 = vpop.f32.mrb[0].mxu0
  %v1654 = vpop.f32.mrb[0].mxu0
  %v1655 = vadd.f32 0.0, %v1654
  %v1656 = vpop.f32.mrb[0].mxu0
  %1657 = vmatprep.mubr.bf16.mxu0 %v986
  %1658 = vmatmul.mubr.bf16.gmra.mrb[0].mxu0 %v985
  %v1659 = vpop.f32.mrb[0].mxu0
  %v1660 = vadd.f32 0.0, %v1659
  %v1661 = vpop.f32.mrb[0].mxu0
  %v1662 = vpop.f32.mrb[0].mxu0
  %v1663 = vadd.f32 0.0, %v1662
  %v1664 = vpop.f32.mrb[0].mxu0
  %1665 = vmatprep.mubr.bf16.mxu0 %v991
  %1666 = vmatmul.mubr.bf16.gmra.mrb[0].mxu0 %v990
  %v1667 = vpop.f32.mrb[0].mxu0
  %v1668 = vadd.f32 0.0, %v1667
  %v1669 = vpop.f32.mrb[0].mxu0
  %v1670 = vpop.f32.mrb[0].mxu0
  %v1671 = vadd.f32 0.0, %v1670
  %v1672 = vpop.f32.mrb[0].mxu0
  %1673 = vmatprep.mubr.bf16.mxu0 %v996
  %1674 = vmatmul.mubr.bf16.gmra.mrb[0].mxu0 %v995
  %v1675 = vpop.f32.mrb[0].mxu0
  %v1676 = vadd.f32 0.0, %v1675
  %v1677 = vpop.f32.mrb[0].mxu0
  %v1678 = vpop.f32.mrb[0].mxu0
  %v1679 = vadd.f32 0.0, %v1678
  %v1680 = vpop.f32.mrb[0].mxu0
  %1681 = vmatprep.mubr.bf16.mxu0 %v1001
  %1682 = vmatmul.mubr.bf16.gmra.mrb[0].mxu0 %v1000
  %v1683 = vpop.f32.mrb[0].mxu0
  %v1684 = vadd.f32 0.0, %v1683
  %v1685 = vpop.f32.mrb[0].mxu0
  %v1686 = vpop.f32.mrb[0].mxu0
  %v1687 = vadd.f32 0.0, %v1686
  %v1688 = vpop.f32.mrb[0].mxu0
  %1689 = vmatprep.mubr.bf16.mxu0 %v1006
  %1690 = vmatmul.mubr.bf16.gmra.mrb[0].mxu0 %v1005
  %v1691 = vpop.f32.mrb[0].mxu0
  %v1692 = vadd.f32 0.0, %v1691
  %v1693 = vpop.f32.mrb[0].mxu0
  %v1694 = vpop.f32.mrb[0].mxu0
  %v1695 = vadd.f32 0.0, %v1694
  %v1696 = vpop.f32.mrb[0].mxu0
  %1697 = vmatprep.mubr.bf16.mxu0 %v1011
  %1698 = vmatmul.mubr.bf16.gmra.mrb[0].mxu0 %v1010
  %v1699 = vpop.f32.mrb[0].mxu0
  %v1700 = vadd.f32 0.0, %v1699
  %v1701 = vpop.f32.mrb[0].mxu0
  %v1702 = vpop.f32.mrb[0].mxu0
  %v1703 = vadd.f32 0.0, %v1702
  %v1704 = vpop.f32.mrb[0].mxu0
  %1705 = vmatprep.mubr.bf16.mxu0 %v1016
  %1706 = vmatmul.mubr.bf16.gmra.mrb[0].mxu0 %v1015
  %v1707 = vpop.f32.mrb[0].mxu0
  %v1708 = vadd.f32 0.0, %v1707
  %v1709 = vpop.f32.mrb[0].mxu0
  %v1710 = vpop.f32.mrb[0].mxu0
  %v1711 = vadd.f32 0.0, %v1710
  %v1712 = vpop.f32.mrb[0].mxu0
  %1713 = vmatprep.mubr.bf16.mxu0 %v1021
  %1714 = vmatmul.mubr.bf16.gmra.mrb[0].mxu0 %v1020
  %v1715 = vpop.f32.mrb[0].mxu0
  %v1716 = vadd.f32 0.0, %v1715
  %v1717 = vpop.f32.mrb[0].mxu0
  %v1718 = vpop.f32.mrb[0].mxu0
  %v1719 = vadd.f32 0.0, %v1718
  %v1720 = vpop.f32.mrb[0].mxu0
  %1721 = vmatprep.mubr.bf16.mxu0 %v1026
  %1722 = vmatmul.mubr.bf16.gmra.mrb[0].mxu0 %v1025
  %v1723 = vpop.f32.mrb[0].mxu0
  %v1724 = vadd.f32 0.0, %v1723
  %v1725 = vpop.f32.mrb[0].mxu0
  %v1726 = vpop.f32.mrb[0].mxu0
  %v1727 = vadd.f32 0.0, %v1726
  %v1728 = vpop.f32.mrb[0].mxu0
  %1729 = vmatprep.mubr.bf16.mxu0 %v1031
  %1730 = vmatmul.mubr.bf16.gmra.mrb[0].mxu0 %v1030
  %v1731 = vpop.f32.mrb[0].mxu0
  %v1732 = vadd.f32 0.0, %v1731
  %v1733 = vpop.f32.mrb[0].mxu0
  %v1734 = vpop.f32.mrb[0].mxu0
  %v1735 = vadd.f32 0.0, %v1734
  %v1736 = vpop.f32.mrb[0].mxu0
  %1737 = vmatprep.mubr.bf16.mxu0 %v1036
  %1738 = vmatmul.mubr.bf16.gmra.mrb[0].mxu0 %v1035
  %v1739 = vpop.f32.mrb[0].mxu0
  %v1740 = vadd.f32 0.0, %v1739
  %v1741 = vpop.f32.mrb[0].mxu0
  %v1742 = vpop.f32.mrb[0].mxu0
  %v1743 = vadd.f32 0.0, %v1742
  %v1744 = vpop.f32.mrb[0].mxu0
  %1745 = vmatprep.mubr.bf16.mxu0 %v1041
  %1746 = vmatmul.mubr.bf16.gmra.mrb[0].mxu0 %v1040
  %v1747 = vpop.f32.mrb[0].mxu0
  %v1748 = vadd.f32 0.0, %v1747
  %v1749 = vpop.f32.mrb[0].mxu0
  %v1750 = vpop.f32.mrb[0].mxu0
  %v1751 = vadd.f32 0.0, %v1750
  %v1752 = vpop.f32.mrb[0].mxu0
  %1753 = vmatprep.mubr.bf16.mxu0 %v1046
  %1754 = vmatmul.mubr.bf16.gmra.mrb[0].mxu0 %v1045
  %v1755 = vpop.f32.mrb[0].mxu0
  %v1756 = vadd.f32 0.0, %v1755
  %v1757 = vpop.f32.mrb[0].mxu0
  %v1758 = vpop.f32.mrb[0].mxu0
  %v1759 = vadd.f32 0.0, %v1758
  %v1760 = vpop.f32.mrb[0].mxu0
  %1761 = vmatprep.mubr.bf16.mxu0 %v1051
  %1762 = vmatmul.mubr.bf16.gmra.mrb[0].mxu0 %v1050
  %v1763 = vpop.f32.mrb[0].mxu0
  %v1764 = vadd.f32 0.0, %v1763
  %v1765 = vpop.f32.mrb[0].mxu0
  %v1766 = vpop.f32.mrb[0].mxu0
  %v1767 = vadd.f32 0.0, %v1766
  %v1768 = vpop.f32.mrb[0].mxu0
  %1769 = vmatprep.mubr.bf16.mxu0 %v1056
  %1770 = vmatmul.mubr.bf16.gmra.mrb[0].mxu0 %v1055
  %v1771 = vpop.f32.mrb[0].mxu0
  %v1772 = vadd.f32 0.0, %v1771
  %v1773 = vpop.f32.mrb[0].mxu0
  %v1774 = vpop.f32.mrb[0].mxu0
  %v1775 = vadd.f32 0.0, %v1774
  %v1776 = vpop.f32.mrb[0].mxu0
  %1777 = vmatprep.mubr.bf16.mxu0 %v1061
  %1778 = vmatmul.mubr.bf16.gmra.mrb[0].mxu0 %v1060
  %v1779 = vpop.f32.mrb[0].mxu0
  %v1780 = vadd.f32 0.0, %v1779
  %v1781 = vpop.f32.mrb[0].mxu0
  %v1782 = vpop.f32.mrb[0].mxu0
  %v1783 = vadd.f32 0.0, %v1782
  %v1784 = vpop.f32.mrb[0].mxu0
  %1785 = vmatprep.mubr.bf16.mxu0 %v1066
  %1786 = vmatmul.mubr.bf16.gmra.mrb[0].mxu0 %v1065
  %v1787 = vpop.f32.mrb[0].mxu0
  %v1788 = vadd.f32 0.0, %v1787
  %v1789 = vpop.f32.mrb[0].mxu0
  %v1790 = vpop.f32.mrb[0].mxu0
  %v1791 = vadd.f32 0.0, %v1790
  %v1792 = vpop.f32.mrb[0].mxu0
  %1793 = vmatprep.mubr.bf16.mxu0 %v1071
  %1794 = vmatmul.mubr.bf16.gmra.mrb[0].mxu0 %v1070
  %v1795 = vpop.f32.mrb[0].mxu0
  %v1796 = vadd.f32 0.0, %v1795
  %v1797 = vpop.f32.mrb[0].mxu0
  %v1798 = vpop.f32.mrb[0].mxu0
  %v1799 = vadd.f32 0.0, %v1798
  %v1800 = vpop.f32.mrb[0].mxu0
  %1801 = vmatprep.mubr.bf16.mxu0 %v1076
  %1802 = vmatmul.mubr.bf16.gmra.mrb[0].mxu0 %v1075
  %v1803 = vpop.f32.mrb[0].mxu0
  %v1804 = vadd.f32 0.0, %v1803
  %v1805 = vpop.f32.mrb[0].mxu0
  %v1806 = vpop.f32.mrb[0].mxu0
  %v1807 = vadd.f32 0.0, %v1806
  %v1808 = vpop.f32.mrb[0].mxu0
  %1809 = vdwg.mxu0
  %1810 = vmatprep.subr.bf16.mxu0 0
  %1811 = vmatpush1.bf16.msra.mxu0 %v1368
  %1812 = vmatprep.subr.bf16.mxu0 0
  %1813 = vmatpush1.bf16.msra.mxu0 %v1369
  %1814 = vmatprep.subr.bf16.mxu0 0
  %1815 = vmatpush1.bf16.msra.mxu0 %v1370
  %1816 = vmatprep.subr.bf16.mxu0 0
  %1817 = vmatpush1.bf16.msra.mxu0 %v1371
  %1818 = vmatprep.subr.bf16.mxu0 0
  %1819 = vmatpush1.bf16.msra.mxu0 %v1372
  %1820 = vmatprep.subr.bf16.mxu0 0
  %1821 = vmatpush1.bf16.msra.mxu0 %v1373
  %1822 = vmatprep.subr.bf16.mxu0 0
  %1823 = vmatpush1.bf16.msra.mxu0 %v1374
  %1824 = vmatprep.subr.bf16.mxu0 0
  %1825 = vmatpush1.bf16.msra.mxu0 %v1375
  %1826 = vmatprep.subr.bf16.mxu0 0
  %1827 = vmatpush1.bf16.msra.mxu0 %v1376
  %1828 = vmatprep.subr.bf16.mxu0 0
  %1829 = vmatpush1.bf16.msra.mxu0 %v1377
  %1830 = vmatprep.subr.bf16.mxu0 0
  %1831 = vmatpush1.bf16.msra.mxu0 %v1378
  %1832 = vmatprep.subr.bf16.mxu0 0
  %1833 = vmatpush1.bf16.msra.mxu0 %v1379
  %1834 = vmatprep.subr.bf16.mxu0 0
  %1835 = vmatpush1.bf16.msra.mxu0 %v1380
  %1836 = vmatprep.subr.bf16.mxu0 0
  %1837 = vmatpush1.bf16.msra.mxu0 %v1381
  %1838 = vmatprep.subr.bf16.mxu0 0
  %1839 = vmatpush1.bf16.msra.mxu0 %v1382
  %1840 = vmatprep.subr.bf16.mxu0 0
  %1841 = vmatpush1.bf16.msra.mxu0 %v1383
  %1842 = vmatprep.mubr.bf16.mxu0 %v923
  %1843 = vmatmul.mubr.bf16.gmra.mrb[0].mxu0 %v922
  %v1844 = vpop.f32.mrb[0].mxu0
  %v1845 = vadd.f32 %v1556, %v1844
  %v1846 = vpop.f32.mrb[0].mxu0
  %v1847 = vpop.f32.mrb[0].mxu0
  %v1848 = vadd.f32 %v1559, %v1847
  %v1849 = vpop.f32.mrb[0].mxu0
  %1850 = vmatprep.mubr.bf16.mxu0 %v928
  %1851 = vmatmul.mubr.bf16.gmra.mrb[0].mxu0 %v927
  %v1852 = vpop.f32.mrb[0].mxu0
  %v1853 = vadd.f32 %v1564, %v1852
  %v1854 = vpop.f32.mrb[0].mxu0
  %v1855 = vpop.f32.mrb[0].mxu0
  %v1856 = vadd.f32 %v1567, %v1855
  %v1857 = vpop.f32.mrb[0].mxu0
  %1858 = vmatprep.mubr.bf16.mxu0 %v933
  %1859 = vmatmul.mubr.bf16.gmra.mrb[0].mxu0 %v932
  %v1860 = vpop.f32.mrb[0].mxu0
  %v1861 = vadd.f32 %v1572, %v1860
  %v1862 = vpop.f32.mrb[0].mxu0
  %v1863 = vpop.f32.mrb[0].mxu0
  %v1864 = vadd.f32 %v1575, %v1863
  %v1865 = vpop.f32.mrb[0].mxu0
  %1866 = vmatprep.mubr.bf16.mxu0 %v938
  %1867 = vmatmul.mubr.bf16.gmra.mrb[0].mxu0 %v937
  %v1868 = vpop.f32.mrb[0].mxu0
  %v1869 = vadd.f32 %v1580, %v1868
  %v1870 = vpop.f32.mrb[0].mxu0
  %v1871 = vpop.f32.mrb[0].mxu0
  %v1872 = vadd.f32 %v1583, %v1871
  %v1873 = vpop.f32.mrb[0].mxu0
  %1874 = vmatprep.mubr.bf16.mxu0 %v943
  %1875 = vmatmul.mubr.bf16.gmra.mrb[0].mxu0 %v942
  %v1876 = vpop.f32.mrb[0].mxu0
  %v1877 = vadd.f32 %v1588, %v1876
  %v1878 = vpop.f32.mrb[0].mxu0
  %v1879 = vpop.f32.mrb[0].mxu0
  %v1880 = vadd.f32 %v1591, %v1879
  %v1881 = vpop.f32.mrb[0].mxu0
  %1882 = vmatprep.mubr.bf16.mxu0 %v948
  %1883 = vmatmul.mubr.bf16.gmra.mrb[0].mxu0 %v947
  %v1884 = vpop.f32.mrb[0].mxu0
  %v1885 = vadd.f32 %v1596, %v1884
  %v1886 = vpop.f32.mrb[0].mxu0
  %v1887 = vpop.f32.mrb[0].mxu0
  %v1888 = vadd.f32 %v1599, %v1887
  %v1889 = vpop.f32.mrb[0].mxu0
  %1890 = vmatprep.mubr.bf16.mxu0 %v953
  %1891 = vmatmul.mubr.bf16.gmra.mrb[0].mxu0 %v952
  %v1892 = vpop.f32.mrb[0].mxu0
  %v1893 = vadd.f32 %v1604, %v1892
  %v1894 = vpop.f32.mrb[0].mxu0
  %v1895 = vpop.f32.mrb[0].mxu0
  %v1896 = vadd.f32 %v1607, %v1895
  %v1897 = vpop.f32.mrb[0].mxu0
  %1898 = vmatprep.mubr.bf16.mxu0 %v958
  %1899 = vmatmul.mubr.bf16.gmra.mrb[0].mxu0 %v957
  %v1900 = vpop.f32.mrb[0].mxu0
  %v1901 = vadd.f32 %v1612, %v1900
  %v1902 = vpop.f32.mrb[0].mxu0
  %v1903 = vpop.f32.mrb[0].mxu0
  %v1904 = vadd.f32 %v1615, %v1903
  %v1905 = vpop.f32.mrb[0].mxu0
  %1906 = vmatprep.mubr.bf16.mxu0 %v963
  %1907 = vmatmul.mubr.bf16.gmra.mrb[0].mxu0 %v962
  %v1908 = vpop.f32.mrb[0].mxu0
  %v1909 = vadd.f32 %v1620, %v1908
  %v1910 = vpop.f32.mrb[0].mxu0
  %v1911 = vpop.f32.mrb[0].mxu0
  %v1912 = vadd.f32 %v1623, %v1911
  %v1913 = vpop.f32.mrb[0].mxu0
  %1914 = vmatprep.mubr.bf16.mxu0 %v968
  %1915 = vmatmul.mubr.bf16.gmra.mrb[0].mxu0 %v967
  %v1916 = vpop.f32.mrb[0].mxu0
  %v1917 = vadd.f32 %v1628, %v1916
  %v1918 = vpop.f32.mrb[0].mxu0
  %v1919 = vpop.f32.mrb[0].mxu0
  %v1920 = vadd.f32 %v1631, %v1919
  %v1921 = vpop.f32.mrb[0].mxu0
  %1922 = vmatprep.mubr.bf16.mxu0 %v973
  %1923 = vmatmul.mubr.bf16.gmra.mrb[0].mxu0 %v972
  %v1924 = vpop.f32.mrb[0].mxu0
  %v1925 = vadd.f32 %v1636, %v1924
  %v1926 = vpop.f32.mrb[0].mxu0
  %v1927 = vpop.f32.mrb[0].mxu0
  %v1928 = vadd.f32 %v1639, %v1927
  %v1929 = vpop.f32.mrb[0].mxu0
  %1930 = vmatprep.mubr.bf16.mxu0 %v978
  %1931 = vmatmul.mubr.bf16.gmra.mrb[0].mxu0 %v977
  %v1932 = vpop.f32.mrb[0].mxu0
  %v1933 = vadd.f32 %v1644, %v1932
  %v1934 = vpop.f32.mrb[0].mxu0
  %v1935 = vpop.f32.mrb[0].mxu0
  %v1936 = vadd.f32 %v1647, %v1935
  %v1937 = vpop.f32.mrb[0].mxu0
  %1938 = vmatprep.mubr.bf16.mxu0 %v983
  %1939 = vmatmul.mubr.bf16.gmra.mrb[0].mxu0 %v982
  %v1940 = vpop.f32.mrb[0].mxu0
  %v1941 = vadd.f32 %v1652, %v1940
  %v1942 = vpop.f32.mrb[0].mxu0
  %v1943 = vpop.f32.mrb[0].mxu0
  %v1944 = vadd.f32 %v1655, %v1943
  %v1945 = vpop.f32.mrb[0].mxu0
  %1946 = vmatprep.mubr.bf16.mxu0 %v988
  %1947 = vmatmul.mubr.bf16.gmra.mrb[0].mxu0 %v987
  %v1948 = vpop.f32.mrb[0].mxu0
  %v1949 = vadd.f32 %v1660, %v1948
  %v1950 = vpop.f32.mrb[0].mxu0
  %v1951 = vpop.f32.mrb[0].mxu0
  %v1952 = vadd.f32 %v1663, %v1951
  %v1953 = vpop.f32.mrb[0].mxu0
  %1954 = vmatprep.mubr.bf16.mxu0 %v993
  %1955 = vmatmul.mubr.bf16.gmra.mrb[0].mxu0 %v992
  %v1956 = vpop.f32.mrb[0].mxu0
  %v1957 = vadd.f32 %v1668, %v1956
  %v1958 = vpop.f32.mrb[0].mxu0
  %v1959 = vpop.f32.mrb[0].mxu0
  %v1960 = vadd.f32 %v1671, %v1959
  %v1961 = vpop.f32.mrb[0].mxu0
  %1962 = vmatprep.mubr.bf16.mxu0 %v998
  %1963 = vmatmul.mubr.bf16.gmra.mrb[0].mxu0 %v997
  %v1964 = vpop.f32.mrb[0].mxu0
  %v1965 = vadd.f32 %v1676, %v1964
  %v1966 = vpop.f32.mrb[0].mxu0
  %v1967 = vpop.f32.mrb[0].mxu0
  %v1968 = vadd.f32 %v1679, %v1967
  %v1969 = vpop.f32.mrb[0].mxu0
  %1970 = vmatprep.mubr.bf16.mxu0 %v1003
  %1971 = vmatmul.mubr.bf16.gmra.mrb[0].mxu0 %v1002
  %v1972 = vpop.f32.mrb[0].mxu0
  %v1973 = vadd.f32 %v1684, %v1972
  %v1974 = vpop.f32.mrb[0].mxu0
  %v1975 = vpop.f32.mrb[0].mxu0
  %v1976 = vadd.f32 %v1687, %v1975
  %v1977 = vpop.f32.mrb[0].mxu0
  %1978 = vmatprep.mubr.bf16.mxu0 %v1008
  %1979 = vmatmul.mubr.bf16.gmra.mrb[0].mxu0 %v1007
  %v1980 = vpop.f32.mrb[0].mxu0
  %v1981 = vadd.f32 %v1692, %v1980
  %v1982 = vpop.f32.mrb[0].mxu0
  %v1983 = vpop.f32.mrb[0].mxu0
  %v1984 = vadd.f32 %v1695, %v1983
  %v1985 = vpop.f32.mrb[0].mxu0
  %1986 = vmatprep.mubr.bf16.mxu0 %v1013
  %1987 = vmatmul.mubr.bf16.gmra.mrb[0].mxu0 %v1012
  %v1988 = vpop.f32.mrb[0].mxu0
  %v1989 = vadd.f32 %v1700, %v1988
  %v1990 = vpop.f32.mrb[0].mxu0
  %v1991 = vpop.f32.mrb[0].mxu0
  %v1992 = vadd.f32 %v1703, %v1991
  %v1993 = vpop.f32.mrb[0].mxu0
  %1994 = vmatprep.mubr.bf16.mxu0 %v1018
  %1995 = vmatmul.mubr.bf16.gmra.mrb[0].mxu0 %v1017
  %v1996 = vpop.f32.mrb[0].mxu0
  %v1997 = vadd.f32 %v1708, %v1996
  %v1998 = vpop.f32.mrb[0].mxu0
  %v1999 = vpop.f32.mrb[0].mxu0
  %v2000 = vadd.f32 %v1711, %v1999
  %v2001 = vpop.f32.mrb[0].mxu0
  %2002 = vmatprep.mubr.bf16.mxu0 %v1023
  %2003 = vmatmul.mubr.bf16.gmra.mrb[0].mxu0 %v1022
  %v2004 = vpop.f32.mrb[0].mxu0
  %v2005 = vadd.f32 %v1716, %v2004
  %v2006 = vpop.f32.mrb[0].mxu0
  %v2007 = vpop.f32.mrb[0].mxu0
  %v2008 = vadd.f32 %v1719, %v2007
  %v2009 = vpop.f32.mrb[0].mxu0
  %2010 = vmatprep.mubr.bf16.mxu0 %v1028
  %2011 = vmatmul.mubr.bf16.gmra.mrb[0].mxu0 %v1027
  %v2012 = vpop.f32.mrb[0].mxu0
  %v2013 = vadd.f32 %v1724, %v2012
  %v2014 = vpop.f32.mrb[0].mxu0
  %v2015 = vpop.f32.mrb[0].mxu0
  %v2016 = vadd.f32 %v1727, %v2015
  %v2017 = vpop.f32.mrb[0].mxu0
  %2018 = vmatprep.mubr.bf16.mxu0 %v1033
  %2019 = vmatmul.mubr.bf16.gmra.mrb[0].mxu0 %v1032
  %v2020 = vpop.f32.mrb[0].mxu0
  %v2021 = vadd.f32 %v1732, %v2020
  %v2022 = vpop.f32.mrb[0].mxu0
  %v2023 = vpop.f32.mrb[0].mxu0
  %v2024 = vadd.f32 %v1735, %v2023
  %v2025 = vpop.f32.mrb[0].mxu0
  %2026 = vmatprep.mubr.bf16.mxu0 %v1038
  %2027 = vmatmul.mubr.bf16.gmra.mrb[0].mxu0 %v1037
  %v2028 = vpop.f32.mrb[0].mxu0
  %v2029 = vadd.f32 %v1740, %v2028
  %v2030 = vpop.f32.mrb[0].mxu0
  %v2031 = vpop.f32.mrb[0].mxu0
  %v2032 = vadd.f32 %v1743, %v2031
  %v2033 = vpop.f32.mrb[0].mxu0
  %2034 = vmatprep.mubr.bf16.mxu0 %v1043
  %2035 = vmatmul.mubr.bf16.gmra.mrb[0].mxu0 %v1042
  %v2036 = vpop.f32.mrb[0].mxu0
  %v2037 = vadd.f32 %v1748, %v2036
  %v2038 = vpop.f32.mrb[0].mxu0
  %v2039 = vpop.f32.mrb[0].mxu0
  %v2040 = vadd.f32 %v1751, %v2039
  %v2041 = vpop.f32.mrb[0].mxu0
  %2042 = vmatprep.mubr.bf16.mxu0 %v1048
  %2043 = vmatmul.mubr.bf16.gmra.mrb[0].mxu0 %v1047
  %v2044 = vpop.f32.mrb[0].mxu0
  %v2045 = vadd.f32 %v1756, %v2044
  %v2046 = vpop.f32.mrb[0].mxu0
  %v2047 = vpop.f32.mrb[0].mxu0
  %v2048 = vadd.f32 %v1759, %v2047
  %v2049 = vpop.f32.mrb[0].mxu0
  %2050 = vmatprep.mubr.bf16.mxu0 %v1053
  %2051 = vmatmul.mubr.bf16.gmra.mrb[0].mxu0 %v1052
  %v2052 = vpop.f32.mrb[0].mxu0
  %v2053 = vadd.f32 %v1764, %v2052
  %v2054 = vpop.f32.mrb[0].mxu0
  %v2055 = vpop.f32.mrb[0].mxu0
  %v2056 = vadd.f32 %v1767, %v2055
  %v2057 = vpop.f32.mrb[0].mxu0
  %2058 = vmatprep.mubr.bf16.mxu0 %v1058
  %2059 = vmatmul.mubr.bf16.gmra.mrb[0].mxu0 %v1057
  %v2060 = vpop.f32.mrb[0].mxu0
  %v2061 = vadd.f32 %v1772, %v2060
  %v2062 = vpop.f32.mrb[0].mxu0
  %v2063 = vpop.f32.mrb[0].mxu0
  %v2064 = vadd.f32 %v1775, %v2063
  %v2065 = vpop.f32.mrb[0].mxu0
  %2066 = vmatprep.mubr.bf16.mxu0 %v1063
  %2067 = vmatmul.mubr.bf16.gmra.mrb[0].mxu0 %v1062
  %v2068 = vpop.f32.mrb[0].mxu0
  %v2069 = vadd.f32 %v1780, %v2068
  %v2070 = vpop.f32.mrb[0].mxu0
  %v2071 = vpop.f32.mrb[0].mxu0
  %v2072 = vadd.f32 %v1783, %v2071
  %v2073 = vpop.f32.mrb[0].mxu0
  %2074 = vmatprep.mubr.bf16.mxu0 %v1068
  %2075 = vmatmul.mubr.bf16.gmra.mrb[0].mxu0 %v1067
  %v2076 = vpop.f32.mrb[0].mxu0
  %v2077 = vadd.f32 %v1788, %v2076
  %v2078 = vpop.f32.mrb[0].mxu0
  %v2079 = vpop.f32.mrb[0].mxu0
  %v2080 = vadd.f32 %v1791, %v2079
  %v2081 = vpop.f32.mrb[0].mxu0
  %2082 = vmatprep.mubr.bf16.mxu0 %v1073
  %2083 = vmatmul.mubr.bf16.gmra.mrb[0].mxu0 %v1072
  %v2084 = vpop.f32.mrb[0].mxu0
  %v2085 = vadd.f32 %v1796, %v2084
  %v2086 = vpop.f32.mrb[0].mxu0
  %v2087 = vpop.f32.mrb[0].mxu0
  %v2088 = vadd.f32 %v1799, %v2087
  %v2089 = vpop.f32.mrb[0].mxu0
  %2090 = vmatprep.mubr.bf16.mxu0 %v1078
  %2091 = vmatmul.mubr.bf16.gmra.mrb[0].mxu0 %v1077
  %v2092 = vpop.f32.mrb[0].mxu0
  %v2093 = vadd.f32 %v1804, %v2092
  %v2094 = vpop.f32.mrb[0].mxu0
  %v2095 = vpop.f32.mrb[0].mxu0
  %v2096 = vadd.f32 %v1807, %v2095
  %v2097 = vpop.f32.mrb[0].mxu0
  %2098 = vdwg.mxu0
  %2099 = vmatprep.subr.bf16.mxu0 0
  %2100 = vmatpush1.bf16.msra.mxu0 %v1384
  %2101 = vmatprep.subr.bf16.mxu0 0
  %2102 = vmatpush1.bf16.msra.mxu0 %v1385
  %2103 = vmatprep.subr.bf16.mxu0 0
  %2104 = vmatpush1.bf16.msra.mxu0 %v1386
  %2105 = vmatprep.subr.bf16.mxu0 0
  %2106 = vmatpush1.bf16.msra.mxu0 %v1387
  %2107 = vmatprep.subr.bf16.mxu0 0
  %2108 = vmatpush1.bf16.msra.mxu0 0
  %2109 = vmatprep.subr.bf16.mxu0 0
  %2110 = vmatpush1.bf16.msra.mxu0 0
  %2111 = vmatprep.subr.bf16.mxu0 0
  %2112 = vmatpush1.bf16.msra.mxu0 0
  %2113 = vmatprep.subr.bf16.mxu0 0
  %2114 = vmatpush1.bf16.msra.mxu0 0
  %2115 = vmatprep.subr.bf16.mxu0 0
  %2116 = vmatpush1.bf16.msra.mxu0 0
  %2117 = vmatprep.subr.bf16.mxu0 0
  %2118 = vmatpush1.bf16.msra.mxu0 0
  %2119 = vmatprep.subr.bf16.mxu0 0
  %2120 = vmatpush1.bf16.msra.mxu0 0
  %2121 = vmatprep.subr.bf16.mxu0 0
  %2122 = vmatpush1.bf16.msra.mxu0 0
  %2123 = vmatprep.subr.bf16.mxu0 0
  %2124 = vmatpush1.bf16.msra.mxu0 0
  %2125 = vmatprep.subr.bf16.mxu0 0
  %2126 = vmatpush1.bf16.msra.mxu0 0
  %2127 = vmatprep.subr.bf16.mxu0 0
  %2128 = vmatpush1.bf16.msra.mxu0 0
  %2129 = vmatprep.subr.bf16.mxu0 0
  %2130 = vmatpush1.bf16.msra.mxu0 0
  %2131 = vmatprep.mubr.bf16.mxu0 0
  %2132 = vmatmul.mubr.bf16.gmra.mrb[0].mxu0 %v1426
  %v2133 = vpop.f32.mrb[0].mxu0
  %v2134 = vadd.f32 %v1845, %v2133
  %v2135 = vpop.f32.mrb[0].mxu0
  %v2136 = vpop.f32.mrb[0].mxu0
  %v2137 = vadd.f32 %v1848, %v2136
  %v2138 = vpop.f32.mrb[0].mxu0
  %2139 = vmatprep.mubr.bf16.mxu0 0
  %2140 = vmatmul.mubr.bf16.gmra.mrb[0].mxu0 %v1429
  %v2141 = vpop.f32.mrb[0].mxu0
  %v2142 = vadd.f32 %v1853, %v2141
  %v2143 = vpop.f32.mrb[0].mxu0
  %v2144 = vpop.f32.mrb[0].mxu0
  %v2145 = vadd.f32 %v1856, %v2144
  %v2146 = vpop.f32.mrb[0].mxu0
  %2147 = vmatprep.mubr.bf16.mxu0 0
  %2148 = vmatmul.mubr.bf16.gmra.mrb[0].mxu0 %v1432
  %v2149 = vpop.f32.mrb[0].mxu0
  %v2150 = vadd.f32 %v1861, %v2149
  %v2151 = vpop.f32.mrb[0].mxu0
  %v2152 = vpop.f32.mrb[0].mxu0
  %v2153 = vadd.f32 %v1864, %v2152
  %v2154 = vpop.f32.mrb[0].mxu0
  %2155 = vmatprep.mubr.bf16.mxu0 0
  %2156 = vmatmul.mubr.bf16.gmra.mrb[0].mxu0 %v1435
  %v2157 = vpop.f32.mrb[0].mxu0
  %v2158 = vadd.f32 %v1869, %v2157
  %v2159 = vpop.f32.mrb[0].mxu0
  %v2160 = vpop.f32.mrb[0].mxu0
  %v2161 = vadd.f32 %v1872, %v2160
  %v2162 = vpop.f32.mrb[0].mxu0
  %2163 = vmatprep.mubr.bf16.mxu0 0
  %2164 = vmatmul.mubr.bf16.gmra.mrb[0].mxu0 %v1438
  %v2165 = vpop.f32.mrb[0].mxu0
  %v2166 = vadd.f32 %v1877, %v2165
  %v2167 = vpop.f32.mrb[0].mxu0
  %v2168 = vpop.f32.mrb[0].mxu0
  %v2169 = vadd.f32 %v1880, %v2168
  %v2170 = vpop.f32.mrb[0].mxu0
  %2171 = vmatprep.mubr.bf16.mxu0 0
  %2172 = vmatmul.mubr.bf16.gmra.mrb[0].mxu0 %v1441
  %v2173 = vpop.f32.mrb[0].mxu0
  %v2174 = vadd.f32 %v1885, %v2173
  %v2175 = vpop.f32.mrb[0].mxu0
  %v2176 = vpop.f32.mrb[0].mxu0
  %v2177 = vadd.f32 %v1888, %v2176
  %v2178 = vpop.f32.mrb[0].mxu0
  %2179 = vmatprep.mubr.bf16.mxu0 0
  %2180 = vmatmul.mubr.bf16.gmra.mrb[0].mxu0 %v1444
  %v2181 = vpop.f32.mrb[0].mxu0
  %v2182 = vadd.f32 %v1893, %v2181
  %v2183 = vpop.f32.mrb[0].mxu0
  %v2184 = vpop.f32.mrb[0].mxu0
  %v2185 = vadd.f32 %v1896, %v2184
  %v2186 = vpop.f32.mrb[0].mxu0
  %2187 = vmatprep.mubr.bf16.mxu0 0
  %2188 = vmatmul.mubr.bf16.gmra.mrb[0].mxu0 %v1447
  %v2189 = vpop.f32.mrb[0].mxu0
  %v2190 = vadd.f32 %v1901, %v2189
  %v2191 = vpop.f32.mrb[0].mxu0
  %v2192 = vpop.f32.mrb[0].mxu0
  %v2193 = vadd.f32 %v1904, %v2192
  %v2194 = vpop.f32.mrb[0].mxu0
  %2195 = vmatprep.mubr.bf16.mxu0 0
  %2196 = vmatmul.mubr.bf16.gmra.mrb[0].mxu0 %v1450
  %v2197 = vpop.f32.mrb[0].mxu0
  %v2198 = vadd.f32 %v1909, %v2197
  %v2199 = vpop.f32.mrb[0].mxu0
  %v2200 = vpop.f32.mrb[0].mxu0
  %v2201 = vadd.f32 %v1912, %v2200
  %v2202 = vpop.f32.mrb[0].mxu0
  %2203 = vmatprep.mubr.bf16.mxu0 0
  %2204 = vmatmul.mubr.bf16.gmra.mrb[0].mxu0 %v1453
  %v2205 = vpop.f32.mrb[0].mxu0
  %v2206 = vadd.f32 %v1917, %v2205
  %v2207 = vpop.f32.mrb[0].mxu0
  %v2208 = vpop.f32.mrb[0].mxu0
  %v2209 = vadd.f32 %v1920, %v2208
  %v2210 = vpop.f32.mrb[0].mxu0
  %2211 = vmatprep.mubr.bf16.mxu0 0
  %2212 = vmatmul.mubr.bf16.gmra.mrb[0].mxu0 %v1456
  %v2213 = vpop.f32.mrb[0].mxu0
  %v2214 = vadd.f32 %v1925, %v2213
  %v2215 = vpop.f32.mrb[0].mxu0
  %v2216 = vpop.f32.mrb[0].mxu0
  %v2217 = vadd.f32 %v1928, %v2216
  %v2218 = vpop.f32.mrb[0].mxu0
  %2219 = vmatprep.mubr.bf16.mxu0 0
  %2220 = vmatmul.mubr.bf16.gmra.mrb[0].mxu0 %v1459
  %v2221 = vpop.f32.mrb[0].mxu0
  %v2222 = vadd.f32 %v1933, %v2221
  %v2223 = vpop.f32.mrb[0].mxu0
  %v2224 = vpop.f32.mrb[0].mxu0
  %v2225 = vadd.f32 %v1936, %v2224
  %v2226 = vpop.f32.mrb[0].mxu0
  %2227 = vmatprep.mubr.bf16.mxu0 0
  %2228 = vmatmul.mubr.bf16.gmra.mrb[0].mxu0 %v1462
  %v2229 = vpop.f32.mrb[0].mxu0
  %v2230 = vadd.f32 %v1941, %v2229
  %v2231 = vpop.f32.mrb[0].mxu0
  %v2232 = vpop.f32.mrb[0].mxu0
  %v2233 = vadd.f32 %v1944, %v2232
  %v2234 = vpop.f32.mrb[0].mxu0
  %2235 = vmatprep.mubr.bf16.mxu0 0
  %2236 = vmatmul.mubr.bf16.gmra.mrb[0].mxu0 %v1465
  %v2237 = vpop.f32.mrb[0].mxu0
  %v2238 = vadd.f32 %v1949, %v2237
  %v2239 = vpop.f32.mrb[0].mxu0
  %v2240 = vpop.f32.mrb[0].mxu0
  %v2241 = vadd.f32 %v1952, %v2240
  %v2242 = vpop.f32.mrb[0].mxu0
  %2243 = vmatprep.mubr.bf16.mxu0 0
  %2244 = vmatmul.mubr.bf16.gmra.mrb[0].mxu0 %v1468
  %v2245 = vpop.f32.mrb[0].mxu0
  %v2246 = vadd.f32 %v1957, %v2245
  %v2247 = vpop.f32.mrb[0].mxu0
  %v2248 = vpop.f32.mrb[0].mxu0
  %v2249 = vadd.f32 %v1960, %v2248
  %v2250 = vpop.f32.mrb[0].mxu0
  %2251 = vmatprep.mubr.bf16.mxu0 0
  %2252 = vmatmul.mubr.bf16.gmra.mrb[0].mxu0 %v1471
  %v2253 = vpop.f32.mrb[0].mxu0
  %v2254 = vadd.f32 %v1965, %v2253
  %v2255 = vpop.f32.mrb[0].mxu0
  %v2256 = vpop.f32.mrb[0].mxu0
  %v2257 = vadd.f32 %v1968, %v2256
  %v2258 = vpop.f32.mrb[0].mxu0
  %2259 = vmatprep.mubr.bf16.mxu0 0
  %2260 = vmatmul.mubr.bf16.gmra.mrb[0].mxu0 %v1474
  %v2261 = vpop.f32.mrb[0].mxu0
  %v2262 = vadd.f32 %v1973, %v2261
  %v2263 = vpop.f32.mrb[0].mxu0
  %v2264 = vpop.f32.mrb[0].mxu0
  %v2265 = vadd.f32 %v1976, %v2264
  %v2266 = vpop.f32.mrb[0].mxu0
  %2267 = vmatprep.mubr.bf16.mxu0 0
  %2268 = vmatmul.mubr.bf16.gmra.mrb[0].mxu0 %v1477
  %v2269 = vpop.f32.mrb[0].mxu0
  %v2270 = vadd.f32 %v1981, %v2269
  %v2271 = vpop.f32.mrb[0].mxu0
  %v2272 = vpop.f32.mrb[0].mxu0
  %v2273 = vadd.f32 %v1984, %v2272
  %v2274 = vpop.f32.mrb[0].mxu0
  %2275 = vmatprep.mubr.bf16.mxu0 0
  %2276 = vmatmul.mubr.bf16.gmra.mrb[0].mxu0 %v1480
  %v2277 = vpop.f32.mrb[0].mxu0
  %v2278 = vadd.f32 %v1989, %v2277
  %v2279 = vpop.f32.mrb[0].mxu0
  %v2280 = vpop.f32.mrb[0].mxu0
  %v2281 = vadd.f32 %v1992, %v2280
  %v2282 = vpop.f32.mrb[0].mxu0
  %2283 = vmatprep.mubr.bf16.mxu0 0
  %2284 = vmatmul.mubr.bf16.gmra.mrb[0].mxu0 %v1483
  %v2285 = vpop.f32.mrb[0].mxu0
  %v2286 = vadd.f32 %v1997, %v2285
  %v2287 = vpop.f32.mrb[0].mxu0
  %v2288 = vpop.f32.mrb[0].mxu0
  %v2289 = vadd.f32 %v2000, %v2288
  %v2290 = vpop.f32.mrb[0].mxu0
  %2291 = vmatprep.mubr.bf16.mxu0 0
  %2292 = vmatmul.mubr.bf16.gmra.mrb[0].mxu0 %v1486
  %v2293 = vpop.f32.mrb[0].mxu0
  %v2294 = vadd.f32 %v2005, %v2293
  %v2295 = vpop.f32.mrb[0].mxu0
  %v2296 = vpop.f32.mrb[0].mxu0
  %v2297 = vadd.f32 %v2008, %v2296
  %v2298 = vpop.f32.mrb[0].mxu0
  %2299 = vmatprep.mubr.bf16.mxu0 0
  %2300 = vmatmul.mubr.bf16.gmra.mrb[0].mxu0 %v1489
  %v2301 = vpop.f32.mrb[0].mxu0
  %v2302 = vadd.f32 %v2013, %v2301
  %v2303 = vpop.f32.mrb[0].mxu0
  %v2304 = vpop.f32.mrb[0].mxu0
  %v2305 = vadd.f32 %v2016, %v2304
  %v2306 = vpop.f32.mrb[0].mxu0
  %2307 = vmatprep.mubr.bf16.mxu0 0
  %2308 = vmatmul.mubr.bf16.gmra.mrb[0].mxu0 %v1492
  %v2309 = vpop.f32.mrb[0].mxu0
  %v2310 = vadd.f32 %v2021, %v2309
  %v2311 = vpop.f32.mrb[0].mxu0
  %v2312 = vpop.f32.mrb[0].mxu0
  %v2313 = vadd.f32 %v2024, %v2312
  %v2314 = vpop.f32.mrb[0].mxu0
  %2315 = vmatprep.mubr.bf16.mxu0 0
  %2316 = vmatmul.mubr.bf16.gmra.mrb[0].mxu0 %v1495
  %v2317 = vpop.f32.mrb[0].mxu0
  %v2318 = vadd.f32 %v2029, %v2317
  %v2319 = vpop.f32.mrb[0].mxu0
  %v2320 = vpop.f32.mrb[0].mxu0
  %v2321 = vadd.f32 %v2032, %v2320
  %v2322 = vpop.f32.mrb[0].mxu0
  %2323 = vmatprep.mubr.bf16.mxu0 0
  %2324 = vmatmul.mubr.bf16.gmra.mrb[0].mxu0 %v1498
  %v2325 = vpop.f32.mrb[0].mxu0
  %v2326 = vadd.f32 %v2037, %v2325
  %v2327 = vpop.f32.mrb[0].mxu0
  %v2328 = vpop.f32.mrb[0].mxu0
  %v2329 = vadd.f32 %v2040, %v2328
  %v2330 = vpop.f32.mrb[0].mxu0
  %2331 = vmatprep.mubr.bf16.mxu0 0
  %2332 = vmatmul.mubr.bf16.gmra.mrb[0].mxu0 %v1501
  %v2333 = vpop.f32.mrb[0].mxu0
  %v2334 = vadd.f32 %v2045, %v2333
  %v2335 = vpop.f32.mrb[0].mxu0
  %v2336 = vpop.f32.mrb[0].mxu0
  %v2337 = vadd.f32 %v2048, %v2336
  %v2338 = vpop.f32.mrb[0].mxu0
  %2339 = vmatprep.mubr.bf16.mxu0 0
  %2340 = vmatmul.mubr.bf16.gmra.mrb[0].mxu0 %v1504
  %v2341 = vpop.f32.mrb[0].mxu0
  %v2342 = vadd.f32 %v2053, %v2341
  %v2343 = vpop.f32.mrb[0].mxu0
  %v2344 = vpop.f32.mrb[0].mxu0
  %v2345 = vadd.f32 %v2056, %v2344
  %v2346 = vpop.f32.mrb[0].mxu0
  %2347 = vmatprep.mubr.bf16.mxu0 0
  %2348 = vmatmul.mubr.bf16.gmra.mrb[0].mxu0 %v1507
  %v2349 = vpop.f32.mrb[0].mxu0
  %v2350 = vadd.f32 %v2061, %v2349
  %v2351 = vpop.f32.mrb[0].mxu0
  %v2352 = vpop.f32.mrb[0].mxu0
  %v2353 = vadd.f32 %v2064, %v2352
  %v2354 = vpop.f32.mrb[0].mxu0
  %2355 = vmatprep.mubr.bf16.mxu0 0
  %2356 = vmatmul.mubr.bf16.gmra.mrb[0].mxu0 %v1510
  %v2357 = vpop.f32.mrb[0].mxu0
  %v2358 = vadd.f32 %v2069, %v2357
  %v2359 = vpop.f32.mrb[0].mxu0
  %v2360 = vpop.f32.mrb[0].mxu0
  %v2361 = vadd.f32 %v2072, %v2360
  %v2362 = vpop.f32.mrb[0].mxu0
  %2363 = vmatprep.mubr.bf16.mxu0 0
  %2364 = vmatmul.mubr.bf16.gmra.mrb[0].mxu0 %v1513
  %v2365 = vpop.f32.mrb[0].mxu0
  %v2366 = vadd.f32 %v2077, %v2365
  %v2367 = vpop.f32.mrb[0].mxu0
  %v2368 = vpop.f32.mrb[0].mxu0
  %v2369 = vadd.f32 %v2080, %v2368
  %v2370 = vpop.f32.mrb[0].mxu0
  %2371 = vmatprep.mubr.bf16.mxu0 0
  %2372 = vmatmul.mubr.bf16.gmra.mrb[0].mxu0 %v1516
  %v2373 = vpop.f32.mrb[0].mxu0
  %v2374 = vadd.f32 %v2085, %v2373
  %v2375 = vpop.f32.mrb[0].mxu0
  %v2376 = vpop.f32.mrb[0].mxu0
  %v2377 = vadd.f32 %v2088, %v2376
  %v2378 = vpop.f32.mrb[0].mxu0
  %2379 = vmatprep.mubr.bf16.mxu0 0
  %2380 = vmatmul.mubr.bf16.gmra.mrb[0].mxu0 %v1519
  %v2381 = vpop.f32.mrb[0].mxu0
  %v2382 = vadd.f32 %v2093, %v2381
  %v2383 = vpop.f32.mrb[0].mxu0
  %v2384 = vpop.f32.mrb[0].mxu0
  %v2385 = vadd.f32 %v2096, %v2384
  %v2386 = vpop.f32.mrb[0].mxu0
  %2387 = vdwg.mxu0
  %v2388 = vadd.f32 %v80, %v2134
  %v2389 = vadd.f32 %v81, %v2137
  %v2390 = vadd.f32 %v82, %v2142
  %v2391 = vadd.f32 %v83, %v2145
  %v2392 = vadd.f32 %v84, %v2150
  %v2393 = vadd.f32 %v85, %v2153
  %v2394 = vadd.f32 %v86, %v2158
  %v2395 = vadd.f32 %v87, %v2161
  %v2396 = vadd.f32 %v88, %v2166
  %v2397 = vadd.f32 %v89, %v2169
  %v2398 = vadd.f32 %v90, %v2174
  %v2399 = vadd.f32 %v91, %v2177
  %v2400 = vadd.f32 %v92, %v2182
  %v2401 = vadd.f32 %v93, %v2185
  %v2402 = vadd.f32 %v94, %v2190
  %v2403 = vadd.f32 %v95, %v2193
  %v2404 = vadd.f32 %v96, %v2198
  %v2405 = vadd.f32 %v97, %v2201
  %v2406 = vadd.f32 %v98, %v2206
  %v2407 = vadd.f32 %v99, %v2209
  %v2408 = vadd.f32 %v100, %v2214
  %v2409 = vadd.f32 %v101, %v2217
  %v2410 = vadd.f32 %v102, %v2222
  %v2411 = vadd.f32 %v103, %v2225
  %v2412 = vadd.f32 %v104, %v2230
  %v2413 = vadd.f32 %v105, %v2233
  %v2414 = vadd.f32 %v106, %v2238
  %v2415 = vadd.f32 %v107, %v2241
  %v2416 = vadd.f32 %v108, %v2246
  %v2417 = vadd.f32 %v109, %v2249
  %v2418 = vadd.f32 %v110, %v2254
  %v2419 = vadd.f32 %v111, %v2257
  %v2420 = vadd.f32 %v112, %v2262
  %v2421 = vadd.f32 %v113, %v2265
  %v2422 = vadd.f32 %v114, %v2270
  %v2423 = vadd.f32 %v115, %v2273
  %v2424 = vadd.f32 %v116, %v2278
  %v2425 = vadd.f32 %v117, %v2281
  %v2426 = vadd.f32 %v118, %v2286
  %v2427 = vadd.f32 %v119, %v2289
  %v2428 = vadd.f32 %v120, %v2294
  %v2429 = vadd.f32 %v121, %v2297
  %v2430 = vadd.f32 %v122, %v2302
  %v2431 = vadd.f32 %v123, %v2305
  %v2432 = vadd.f32 %v124, %v2310
  %v2433 = vadd.f32 %v125, %v2313
  %v2434 = vadd.f32 %v126, %v2318
  %v2435 = vadd.f32 %v127, %v2321
  %v2436 = vadd.f32 %v128, %v2326
  %v2437 = vadd.f32 %v129, %v2329
  %v2438 = vadd.f32 %v130, %v2334
  %v2439 = vadd.f32 %v131, %v2337
  %v2440 = vadd.f32 %v132, %v2342
  %v2441 = vadd.f32 %v133, %v2345
  %v2442 = vadd.f32 %v134, %v2350
  %v2443 = vadd.f32 %v135, %v2353
  %v2444 = vadd.f32 %v136, %v2358
  %v2445 = vadd.f32 %v137, %v2361
  %v2446 = vadd.f32 %v138, %v2366
  %v2447 = vadd.f32 %v139, %v2369
  %v2448 = vadd.f32 %v140, %v2374
  %v2449 = vadd.f32 %v141, %v2377
  %v2450 = vadd.f32 %v142, %v2382
  %v2451 = vadd.f32 %v143, %v2385
  %2452 = vst [vmem:[#allocation2] sm:$0xff] %v2388
  %2453 = vst [vmem:[#allocation2 + $0x8] sm:$0xff] %v2389
  %2454 = vst [vmem:[#allocation2 + $0x10] sm:$0xff] %v2390
  %2455 = vst [vmem:[#allocation2 + $0x18] sm:$0xff] %v2391
  %2456 = vst [vmem:[#allocation2 + $0x20] sm:$0xff] %v2392
  %2457 = vst [vmem:[#allocation2 + $0x28] sm:$0xff] %v2393
  %2458 = vst [vmem:[#allocation2 + $0x30] sm:$0xff] %v2394
  %2459 = vst [vmem:[#allocation2 + $0x38] sm:$0xff] %v2395
  %2460 = vst [vmem:[#allocation2 + $0x40] sm:$0xff] %v2396
  %2461 = vst [vmem:[#allocation2 + $0x48] sm:$0xff] %v2397
  %2462 = vst [vmem:[#allocation2 + $0x50] sm:$0xff] %v2398
  %2463 = vst [vmem:[#allocation2 + $0x58] sm:$0xff] %v2399
  %2464 = vst [vmem:[#allocation2 + $0x60] sm:$0xff] %v2400
  %2465 = vst [vmem:[#allocation2 + $0x68] sm:$0xff] %v2401
  %2466 = vst [vmem:[#allocation2 + $0x70] sm:$0xff] %v2402
  %2467 = vst [vmem:[#allocation2 + $0x78] sm:$0xff] %v2403
  %2468 = vst [vmem:[#allocation2 + $0x80] sm:$0xff] %v2404
  %2469 = vst [vmem:[#allocation2 + $0x88] sm:$0xff] %v2405
  %2470 = vst [vmem:[#allocation2 + $0x90] sm:$0xff] %v2406
  %2471 = vst [vmem:[#allocation2 + $0x98] sm:$0xff] %v2407
  %2472 = vst [vmem:[#allocation2 + $0xa0] sm:$0xff] %v2408
  %2473 = vst [vmem:[#allocation2 + $0xa8] sm:$0xff] %v2409
  %2474 = vst [vmem:[#allocation2 + $0xb0] sm:$0xff] %v2410
  %2475 = vst [vmem:[#allocation2 + $0xb8] sm:$0xff] %v2411
  %2476 = vst [vmem:[#allocation2 + $0xc0] sm:$0xff] %v2412
  %2477 = vst [vmem:[#allocation2 + $0xc8] sm:$0xff] %v2413
  %2478 = vst [vmem:[#allocation2 + $0xd0] sm:$0xff] %v2414
  %2479 = vst [vmem:[#allocation2 + $0xd8] sm:$0xff] %v2415
  %2480 = vst [vmem:[#allocation2 + $0xe0] sm:$0xff] %v2416
  %2481 = vst [vmem:[#allocation2 + $0xe8] sm:$0xff] %v2417
  %2482 = vst [vmem:[#allocation2 + $0xf0] sm:$0xff] %v2418
  %2483 = vst [vmem:[#allocation2 + $0xf8] sm:$0xff] %v2419
  %2484 = vst [vmem:[#allocation2 + $0x100] sm:$0xff] %v2420
  %2485 = vst [vmem:[#allocation2 + $0x108] sm:$0xff] %v2421
  %2486 = vst [vmem:[#allocation2 + $0x110] sm:$0xff] %v2422
  %2487 = vst [vmem:[#allocation2 + $0x118] sm:$0xff] %v2423
  %2488 = vst [vmem:[#allocation2 + $0x120] sm:$0xff] %v2424
  %2489 = vst [vmem:[#allocation2 + $0x128] sm:$0xff] %v2425
  %2490 = vst [vmem:[#allocation2 + $0x130] sm:$0xff] %v2426
  %2491 = vst [vmem:[#allocation2 + $0x138] sm:$0xff] %v2427
  %2492 = vst [vmem:[#allocation2 + $0x140] sm:$0xff] %v2428
  %2493 = vst [vmem:[#allocation2 + $0x148] sm:$0xff] %v2429
  %2494 = vst [vmem:[#allocation2 + $0x150] sm:$0xff] %v2430
  %2495 = vst [vmem:[#allocation2 + $0x158] sm:$0xff] %v2431
  %2496 = vst [vmem:[#allocation2 + $0x160] sm:$0xff] %v2432
  %2497 = vst [vmem:[#allocation2 + $0x168] sm:$0xff] %v2433
  %2498 = vst [vmem:[#allocation2 + $0x170] sm:$0xff] %v2434
  %2499 = vst [vmem:[#allocation2 + $0x178] sm:$0xff] %v2435
  %2500 = vst [vmem:[#allocation2 + $0x180] sm:$0xff] %v2436
  %2501 = vst [vmem:[#allocation2 + $0x188] sm:$0xff] %v2437
  %2502 = vst [vmem:[#allocation2 + $0x190] sm:$0xff] %v2438
  %2503 = vst [vmem:[#allocation2 + $0x198] sm:$0xff] %v2439
  %2504 = vst [vmem:[#allocation2 + $0x1a0] sm:$0xff] %v2440
  %2505 = vst [vmem:[#allocation2 + $0x1a8] sm:$0xff] %v2441
  %2506 = vst [vmem:[#allocation2 + $0x1b0] sm:$0xff] %v2442
  %2507 = vst [vmem:[#allocation2 + $0x1b8] sm:$0xff] %v2443
  %2508 = vst [vmem:[#allocation2 + $0x1c0] sm:$0xff] %v2444
  %2509 = vst [vmem:[#allocation2 + $0x1c8] sm:$0xff] %v2445
  %2510 = vst [vmem:[#allocation2 + $0x1d0] sm:$0xff] %v2446
  %2511 = vst [vmem:[#allocation2 + $0x1d8] sm:$0xff] %v2447
  %2512 = vst [vmem:[#allocation2 + $0x1e0] sm:$0xff] %v2448
  %2513 = vst [vmem:[#allocation2 + $0x1e8] sm:$0xff] %v2449
  %2514 = vst [vmem:[#allocation2 + $0x1f0] sm:$0xff] %v2450
  %2515 = vst [vmem:[#allocation2 + $0x1f8] sm:$0xff] %v2451
  // Predicated region
  $region14: #{conv_generator_forward.15} parent=0 // pred_check
    %p2516 = pneg %p12
  $region15: #{conv_generator_forward.15} parent=0 // pred_check_branch
    %2518 = sbr.rel (%p2516) target = $region17
  $region16: #{conv_generator_forward.15} parent=0 // pred_region
    %v2519 = vld [vmem:[#allocation2] sm:$0xff]
    %v2520 = vld [vmem:[#allocation2 + $0x8] sm:$0xff]
    %v2521 = vld [vmem:[#allocation2 + $0x10] sm:$0xff]
    %v2522 = vld [vmem:[#allocation2 + $0x18] sm:$0xff]
    %v2523 = vld [vmem:[#allocation2 + $0x20] sm:$0xff]
    %v2524 = vld [vmem:[#allocation2 + $0x28] sm:$0xff]
    %v2525 = vld [vmem:[#allocation2 + $0x30] sm:$0xff]
    %v2526 = vld [vmem:[#allocation2 + $0x38] sm:$0xff]
    %v2527 = vld [vmem:[#allocation2 + $0x40] sm:$0xff]
    %v2528 = vld [vmem:[#allocation2 + $0x48] sm:$0xff]
    %v2529 = vld [vmem:[#allocation2 + $0x50] sm:$0xff]
    %v2530 = vld [vmem:[#allocation2 + $0x58] sm:$0xff]
    %v2531 = vld [vmem:[#allocation2 + $0x60] sm:$0xff]
    %v2532 = vld [vmem:[#allocation2 + $0x68] sm:$0xff]
    %v2533 = vld [vmem:[#allocation2 + $0x70] sm:$0xff]
    %v2534 = vld [vmem:[#allocation2 + $0x78] sm:$0xff]
    %v2535 = vld [vmem:[#allocation2 + $0x80] sm:$0xff]
    %v2536 = vld [vmem:[#allocation2 + $0x88] sm:$0xff]
    %v2537 = vld [vmem:[#allocation2 + $0x90] sm:$0xff]
    %v2538 = vld [vmem:[#allocation2 + $0x98] sm:$0xff]
    %v2539 = vld [vmem:[#allocation2 + $0xa0] sm:$0xff]
    %v2540 = vld [vmem:[#allocation2 + $0xa8] sm:$0xff]
    %v2541 = vld [vmem:[#allocation2 + $0xb0] sm:$0xff]
    %v2542 = vld [vmem:[#allocation2 + $0xb8] sm:$0xff]
    %v2543 = vld [vmem:[#allocation2 + $0xc0] sm:$0xff]
    %v2544 = vld [vmem:[#allocation2 + $0xc8] sm:$0xff]
    %v2545 = vld [vmem:[#allocation2 + $0xd0] sm:$0xff]
    %v2546 = vld [vmem:[#allocation2 + $0xd8] sm:$0xff]
    %v2547 = vld [vmem:[#allocation2 + $0xe0] sm:$0xff]
    %v2548 = vld [vmem:[#allocation2 + $0xe8] sm:$0xff]
    %v2549 = vld [vmem:[#allocation2 + $0xf0] sm:$0xff]
    %v2550 = vld [vmem:[#allocation2 + $0xf8] sm:$0xff]
    %v2551 = vld [vmem:[#allocation2 + $0x100] sm:$0xff]
    %v2552 = vld [vmem:[#allocation2 + $0x108] sm:$0xff]
    %v2553 = vld [vmem:[#allocation2 + $0x110] sm:$0xff]
    %v2554 = vld [vmem:[#allocation2 + $0x118] sm:$0xff]
    %v2555 = vld [vmem:[#allocation2 + $0x120] sm:$0xff]
    %v2556 = vld [vmem:[#allocation2 + $0x128] sm:$0xff]
    %v2557 = vld [vmem:[#allocation2 + $0x130] sm:$0xff]
    %v2558 = vld [vmem:[#allocation2 + $0x138] sm:$0xff]
    %v2559 = vld [vmem:[#allocation2 + $0x140] sm:$0xff]
    %v2560 = vld [vmem:[#allocation2 + $0x148] sm:$0xff]
    %v2561 = vld [vmem:[#allocation2 + $0x150] sm:$0xff]
    %v2562 = vld [vmem:[#allocation2 + $0x158] sm:$0xff]
    %v2563 = vld [vmem:[#allocation2 + $0x160] sm:$0xff]
    %v2564 = vld [vmem:[#allocation2 + $0x168] sm:$0xff]
    %v2565 = vld [vmem:[#allocation2 + $0x170] sm:$0xff]
    %v2566 = vld [vmem:[#allocation2 + $0x178] sm:$0xff]
    %v2567 = vld [vmem:[#allocation2 + $0x180] sm:$0xff]
    %v2568 = vld [vmem:[#allocation2 + $0x188] sm:$0xff]
    %v2569 = vld [vmem:[#allocation2 + $0x190] sm:$0xff]
    %v2570 = vld [vmem:[#allocation2 + $0x198] sm:$0xff]
    %v2571 = vld [vmem:[#allocation2 + $0x1a0] sm:$0xff]
    %v2572 = vld [vmem:[#allocation2 + $0x1a8] sm:$0xff]
    %v2573 = vld [vmem:[#allocation2 + $0x1b0] sm:$0xff]
    %v2574 = vld [vmem:[#allocation2 + $0x1b8] sm:$0xff]
    %v2575 = vld [vmem:[#allocation2 + $0x1c0] sm:$0xff]
    %v2576 = vld [vmem:[#allocation2 + $0x1c8] sm:$0xff]
    %v2577 = vld [vmem:[#allocation2 + $0x1d0] sm:$0xff]
    %v2578 = vld [vmem:[#allocation2 + $0x1d8] sm:$0xff]
    %v2579 = vld [vmem:[#allocation2 + $0x1e0] sm:$0xff]
    %v2580 = vld [vmem:[#allocation2 + $0x1e8] sm:$0xff]
    %v2581 = vld [vmem:[#allocation2 + $0x1f0] sm:$0xff]
    %v2582 = vld [vmem:[#allocation2 + $0x1f8] sm:$0xff]
    %v2583 = vtanh.pop %v2519
    %v2584 = vtanh.pop %v2520
    %v2585 = vtanh.pop %v2521
    %v2586 = vtanh.pop %v2522
    %v2587 = vtanh.pop %v2523
    %v2588 = vtanh.pop %v2524
    %v2589 = vtanh.pop %v2525
    %v2590 = vtanh.pop %v2526
    %v2591 = vtanh.pop %v2527
    %v2592 = vtanh.pop %v2528
    %v2593 = vtanh.pop %v2529
    %v2594 = vtanh.pop %v2530
    %v2595 = vtanh.pop %v2531
    %v2596 = vtanh.pop %v2532
    %v2597 = vtanh.pop %v2533
    %v2598 = vtanh.pop %v2534
    %v2599 = vtanh.pop %v2535
    %v2600 = vtanh.pop %v2536
    %v2601 = vtanh.pop %v2537
    %v2602 = vtanh.pop %v2538
    %v2603 = vtanh.pop %v2539
    %v2604 = vtanh.pop %v2540
    %v2605 = vtanh.pop %v2541
    %v2606 = vtanh.pop %v2542
    %v2607 = vtanh.pop %v2543
    %v2608 = vtanh.pop %v2544
    %v2609 = vtanh.pop %v2545
    %v2610 = vtanh.pop %v2546
    %v2611 = vtanh.pop %v2547
    %v2612 = vtanh.pop %v2548
    %v2613 = vtanh.pop %v2549
    %v2614 = vtanh.pop %v2550
    %v2615 = vtanh.pop %v2551
    %v2616 = vtanh.pop %v2552
    %v2617 = vtanh.pop %v2553
    %v2618 = vtanh.pop %v2554
    %v2619 = vtanh.pop %v2555
    %v2620 = vtanh.pop %v2556
    %v2621 = vtanh.pop %v2557
    %v2622 = vtanh.pop %v2558
    %v2623 = vtanh.pop %v2559
    %v2624 = vtanh.pop %v2560
    %v2625 = vtanh.pop %v2561
    %v2626 = vtanh.pop %v2562
    %v2627 = vtanh.pop %v2563
    %v2628 = vtanh.pop %v2564
    %v2629 = vtanh.pop %v2565
    %v2630 = vtanh.pop %v2566
    %v2631 = vtanh.pop %v2567
    %v2632 = vtanh.pop %v2568
    %v2633 = vtanh.pop %v2569
    %v2634 = vtanh.pop %v2570
    %v2635 = vtanh.pop %v2571
    %v2636 = vtanh.pop %v2572
    %v2637 = vtanh.pop %v2573
    %v2638 = vtanh.pop %v2574
    %v2639 = vtanh.pop %v2575
    %v2640 = vtanh.pop %v2576
    %v2641 = vtanh.pop %v2577
    %v2642 = vtanh.pop %v2578
    %v2643 = vtanh.pop %v2579
    %v2644 = vtanh.pop %v2580
    %v2645 = vtanh.pop %v2581
    %v2646 = vtanh.pop %v2582
    %2647 = vst [vmem:[%s2] sm:$0xff] %v2583
    %2648 = vst [vmem:[%s2 + $0x8] sm:$0xff] %v2584
    %2649 = vst [vmem:[%s2 + $0x10] sm:$0xff] %v2585
    %2650 = vst [vmem:[%s2 + $0x18] sm:$0xff] %v2586
    %2651 = vst [vmem:[%s2 + $0x20] sm:$0xff] %v2587
    %2652 = vst [vmem:[%s2 + $0x28] sm:$0xff] %v2588
    %2653 = vst [vmem:[%s2 + $0x30] sm:$0xff] %v2589
    %2654 = vst [vmem:[%s2 + $0x38] sm:$0xff] %v2590
    %2655 = vst [vmem:[%s2 + $0x40] sm:$0xff] %v2591
    %2656 = vst [vmem:[%s2 + $0x48] sm:$0xff] %v2592
    %2657 = vst [vmem:[%s2 + $0x50] sm:$0xff] %v2593
    %2658 = vst [vmem:[%s2 + $0x58] sm:$0xff] %v2594
    %2659 = vst [vmem:[%s2 + $0x60] sm:$0xff] %v2595
    %2660 = vst [vmem:[%s2 + $0x68] sm:$0xff] %v2596
    %2661 = vst [vmem:[%s2 + $0x70] sm:$0xff] %v2597
    %2662 = vst [vmem:[%s2 + $0x78] sm:$0xff] %v2598
    %2663 = vst [vmem:[%s2 + $0x80] sm:$0xff] %v2599
    %2664 = vst [vmem:[%s2 + $0x88] sm:$0xff] %v2600
    %2665 = vst [vmem:[%s2 + $0x90] sm:$0xff] %v2601
    %2666 = vst [vmem:[%s2 + $0x98] sm:$0xff] %v2602
    %2667 = vst [vmem:[%s2 + $0xa0] sm:$0xff] %v2603
    %2668 = vst [vmem:[%s2 + $0xa8] sm:$0xff] %v2604
    %2669 = vst [vmem:[%s2 + $0xb0] sm:$0xff] %v2605
    %2670 = vst [vmem:[%s2 + $0xb8] sm:$0xff] %v2606
    %2671 = vst [vmem:[%s2 + $0xc0] sm:$0xff] %v2607
    %2672 = vst [vmem:[%s2 + $0xc8] sm:$0xff] %v2608
    %2673 = vst [vmem:[%s2 + $0xd0] sm:$0xff] %v2609
    %2674 = vst [vmem:[%s2 + $0xd8] sm:$0xff] %v2610
    %2675 = vst [vmem:[%s2 + $0xe0] sm:$0xff] %v2611
    %2676 = vst [vmem:[%s2 + $0xe8] sm:$0xff] %v2612
    %2677 = vst [vmem:[%s2 + $0xf0] sm:$0xff] %v2613
    %2678 = vst [vmem:[%s2 + $0xf8] sm:$0xff] %v2614
    %2679 = vst [vmem:[%s2 + $0x100] sm:$0xff] %v2615
    %2680 = vst [vmem:[%s2 + $0x108] sm:$0xff] %v2616
    %2681 = vst [vmem:[%s2 + $0x110] sm:$0xff] %v2617
    %2682 = vst [vmem:[%s2 + $0x118] sm:$0xff] %v2618
    %2683 = vst [vmem:[%s2 + $0x120] sm:$0xff] %v2619
    %2684 = vst [vmem:[%s2 + $0x128] sm:$0xff] %v2620
    %2685 = vst [vmem:[%s2 + $0x130] sm:$0xff] %v2621
    %2686 = vst [vmem:[%s2 + $0x138] sm:$0xff] %v2622
    %2687 = vst [vmem:[%s2 + $0x140] sm:$0xff] %v2623
    %2688 = vst [vmem:[%s2 + $0x148] sm:$0xff] %v2624
    %2689 = vst [vmem:[%s2 + $0x150] sm:$0xff] %v2625
    %2690 = vst [vmem:[%s2 + $0x158] sm:$0xff] %v2626
    %2691 = vst [vmem:[%s2 + $0x160] sm:$0xff] %v2627
    %2692 = vst [vmem:[%s2 + $0x168] sm:$0xff] %v2628
    %2693 = vst [vmem:[%s2 + $0x170] sm:$0xff] %v2629
    %2694 = vst [vmem:[%s2 + $0x178] sm:$0xff] %v2630
    %2695 = vst [vmem:[%s2 + $0x180] sm:$0xff] %v2631
    %2696 = vst [vmem:[%s2 + $0x188] sm:$0xff] %v2632
    %2697 = vst [vmem:[%s2 + $0x190] sm:$0xff] %v2633
    %2698 = vst [vmem:[%s2 + $0x198] sm:$0xff] %v2634
    %2699 = vst [vmem:[%s2 + $0x1a0] sm:$0xff] %v2635
    %2700 = vst [vmem:[%s2 + $0x1a8] sm:$0xff] %v2636
    %2701 = vst [vmem:[%s2 + $0x1b0] sm:$0xff] %v2637
    %2702 = vst [vmem:[%s2 + $0x1b8] sm:$0xff] %v2638
    %2703 = vst [vmem:[%s2 + $0x1c0] sm:$0xff] %v2639
    %2704 = vst [vmem:[%s2 + $0x1c8] sm:$0xff] %v2640
    %2705 = vst [vmem:[%s2 + $0x1d0] sm:$0xff] %v2641
    %2706 = vst [vmem:[%s2 + $0x1d8] sm:$0xff] %v2642
    %2707 = vst [vmem:[%s2 + $0x1e0] sm:$0xff] %v2643
    %2708 = vst [vmem:[%s2 + $0x1e8] sm:$0xff] %v2644
    %2709 = vst [vmem:[%s2 + $0x1f0] sm:$0xff] %v2645
    %2710 = vst [vmem:[%s2 + $0x1f8] sm:$0xff] %v2646
  $region17: #{conv_generator_forward.15} parent=0 // pred_fallthru
    _
  // Predicated region
  $region18: #{conv_generator_forward.15} parent=0 // pred_check
    _
  $region19: #{conv_generator_forward.15} parent=0 // pred_check_branch
    %2712 = sbr.rel (0) target = $region21
  $region20: #{conv_generator_forward.15} parent=0 // pred_region
    _
  $region21: #{conv_generator_forward.15} parent=0 // pred_fallthru
    _
  // Predicated region
  $region22: #{conv_generator_forward.15} parent=0 // pred_check
    _
  $region23: #{conv_generator_forward.15} parent=0 // pred_check_branch
    %2714 = sbr.rel (0) target = $region25
  $region24: #{conv_generator_forward.15} parent=0 // pred_region
    _
  $region25: #{conv_generator_forward.15} parent=0 // pred_fallthru
    _

</llo_original>
